<compile_context>
chip_gen: v5e
topology: v5e:2x2
jax: 0.10.0
libtpu: 0.0.40
codegen_flags: <defaults>
</compile_context>

<pallas_src>
import jax
import jax.numpy as jnp
from jax.experimental import pallas as pl
from jax.experimental.pallas import tpu as pltpu

BN_EPS = 1e-5


# ----------------------------------------------------------------------------
# In-kernel building blocks
# ----------------------------------------------------------------------------
def _im2col_conv3x3(halo_ref, patch_ref, w, n, h, wd, cin):
    """3x3 / pad=1 conv of a halo-padded NHWC VMEM buffer as ONE deep-K matmul.

    halo_ref : (n, h+2, wd+2, cin) VMEM, zero halo
    patch_ref: (n*h*wd, 9*cin)     VMEM im2col scratch
    w        : (9*cin, cout)       weight value, (kh, kw, cin)-major rows
    returns  : (n*h*wd, cout)      f32 conv accumulator (register value)
    """
    rows = n * h * wd
    for dh in range(3):
        for dw in range(3):
            tap = dh * 3 + dw
            patch_ref[:, tap * cin:(tap + 1) * cin] = (
                halo_ref[:, dh:dh + h, dw:dw + wd, :].reshape(rows, cin))
    return jnp.dot(patch_ref[...], w, preferred_element_type=jnp.float32)


def _bn_act(acc, gamma, beta, residual=None):
    """Training-mode BatchNorm (batch stats, biased var) + optional residual
    + ReLU, applied to the raw conv accumulator as a single FMA.

    The conv bias is intentionally absent: BN subtracts the per-channel batch
    mean, so a per-channel conv bias cancels exactly.
    """
    mean = jnp.mean(acc, axis=0, keepdims=True)
    var = jnp.mean(jnp.square(acc - mean), axis=0, keepdims=True)
    scale = gamma * jax.lax.rsqrt(var + BN_EPS)
    shift = beta - mean * scale
    z = acc * scale + shift
    if residual is not None:
        z = z + residual
    return jnp.maximum(z, 0.0)


def _make_fused_kernel(N, H, W, Cin, C, num_classes, num_blocks):
    Hb, Wb = H // 2, W // 2          # spatial size after the stem max-pool
    M = N * Hb * Wb                  # rows of a block-level activation

    def kernel(x_ref, stem_w_ref, stem_g_ref, stem_bt_ref,
               blk_w_ref, blk_g_ref, blk_bt_ref,
               fc_w_ref, fc_b_ref,
               out_ref,
               act_ref, mid_ref, stem_halo_ref, stem_patch_ref, patch_ref):
        b = pl.program_id(0)

        # ------------------------------------------------------------------
        # Grid step 0: stem conv + BN + ReLU + 2x2 max-pool.  The pooled
        # result lands in the persistent halo-padded scratch `act_ref`.
        # ------------------------------------------------------------------
        @pl.when(b == 0)
        def _stem():
            act_ref[...] = jnp.zeros((N, Hb + 2, Wb + 2, C), jnp.float32)
            mid_ref[...] = jnp.zeros((N, Hb + 2, Wb + 2, C), jnp.float32)
            stem_halo_ref[...] = jnp.zeros((N, H + 2, W + 2, Cin), jnp.float32)
            stem_halo_ref[:, 1:H + 1, 1:W + 1, :] = x_ref[...]

            acc = _im2col_conv3x3(stem_halo_ref, stem_patch_ref,
                                  stem_w_ref[...], N, H, W, Cin)   # (N*H*W, C)
            z = _bn_act(acc, stem_g_ref[...], stem_bt_ref[...])

            # Fused 2x2 max-pool; row index of z is ((n*H + h)*W + w).
            zw = z.reshape(N * H * (W // 2), 2, C)
            zw = jnp.maximum(zw[:, 0, :], zw[:, 1, :])             # pool W
            zh = zw.reshape(N * Hb, 2, Wb, C)
            pooled = jnp.maximum(zh[:, 0, :, :], zh[:, 1, :, :])   # pool H
            act_ref[:, 1:Hb + 1, 1:Wb + 1, :] = pooled.reshape(N, Hb, Wb, C)

        # ------------------------------------------------------------------
        # BasicBlock b (every grid step).  blk_*_ref hold just this block's
        # two convs, streamed into VMEM by the BlockSpec pipeline.
        # ------------------------------------------------------------------
        identity = act_ref[:, 1:Hb + 1, 1:Wb + 1, :].reshape(M, C)

        acc1 = _im2col_conv3x3(act_ref, patch_ref, blk_w_ref[0], N, Hb, Wb, C)
        h1 = _bn_act(acc1, blk_g_ref[0], blk_bt_ref[0])            # (M, C)

        mid_ref[:, 1:Hb + 1, 1:Wb + 1, :] = h1.reshape(N, Hb, Wb, C)
        acc2 = _im2col_conv3x3(mid_ref, patch_ref, blk_w_ref[1], N, Hb, Wb, C)
        blk_out = _bn_act(acc2, blk_g_ref[1], blk_bt_ref[1], residual=identity)

        act_ref[:, 1:Hb + 1, 1:Wb + 1, :] = blk_out.reshape(N, Hb, Wb, C)

        # ------------------------------------------------------------------
        # Last grid step: global average pool + fc.  Logits are the only
        # HBM write of the whole forward pass.
        # ------------------------------------------------------------------
        @pl.when(b == num_blocks - 1)
        def _head():
            pooled = jnp.mean(blk_out.reshape(N, Hb * Wb, C), axis=1)  # (N, C)
            out_ref[...] = (jnp.dot(pooled, fc_w_ref[...],
                                    preferred_element_type=jnp.float32)
                            + fc_b_ref[...])

    return kernel


# ----------------------------------------------------------------------------
# Wrapper
# ----------------------------------------------------------------------------
def _const_spec(arr):
    nd = arr.ndim
    return pl.BlockSpec(arr.shape, lambda b, _n=nd: (0,) * _n)


@jax.jit
def mini_resnet_forward(x_nchw, params):
    N, Cin, H, W = x_nchw.shape
    C = params["stem_w"].shape[1]
    Cin_pad = params["stem_w"].shape[0] // 9
    num_blocks = params["blk_w"].shape[0] // 2
    num_classes = params["fc_w"].shape[1]
    Hb, Wb = H // 2, W // 2
    M = N * Hb * Wb

    # Single tiny layout fix-up of the network input: NCHW -> NHWC and zero-pad
    # channels 3 -> 8 (the padded stem-weight rows are zero, so the result is
    # identical).  Everything else happens inside the fused kernel.
    x = jnp.transpose(x_nchw, (0, 2, 3, 1)).astype(jnp.float32)
    if Cin_pad > Cin:
        x = jnp.pad(x, ((0, 0), (0, 0), (0, 0), (0, Cin_pad - Cin)))

    kernel = _make_fused_kernel(N, H, W, Cin_pad, C, num_classes, num_blocks)

    return pl.pallas_call(
        kernel,
        out_shape=jax.ShapeDtypeStruct((N, num_classes), jnp.float32),
        grid=(num_blocks,),
        in_specs=[
            _const_spec(x),                                       # input
            _const_spec(params["stem_w"]),                        # (9*Cin_pad, C)
            _const_spec(params["stem_g"]),                        # (1, C)
            _const_spec(params["stem_bt"]),                       # (1, C)
            pl.BlockSpec((2, 9 * C, C), lambda b: (b, 0, 0)),     # block weights
            pl.BlockSpec((2, 1, C), lambda b: (b, 0, 0)),         # block gammas
            pl.BlockSpec((2, 1, C), lambda b: (b, 0, 0)),         # block betas
            _const_spec(params["fc_w"]),                          # (C, classes)
            _const_spec(params["fc_b"]),                          # (1, classes)
        ],
        out_specs=pl.BlockSpec((N, num_classes), lambda b: (0, 0)),
        scratch_shapes=[
            pltpu.VMEM((N, Hb + 2, Wb + 2, C), jnp.float32),      # act  (halo)
            pltpu.VMEM((N, Hb + 2, Wb + 2, C), jnp.float32),      # mid  (halo)
            pltpu.VMEM((N, H + 2, W + 2, Cin_pad), jnp.float32),  # stem halo
            pltpu.VMEM((N * H * W, 9 * Cin_pad), jnp.float32),    # stem im2col
            pltpu.VMEM((M, 9 * C), jnp.float32),                  # block im2col
        ],
        compiler_params=pltpu.CompilerParams(
            dimension_semantics=("arbitrary",)),
    )(x, params["stem_w"], params["stem_g"], params["stem_bt"],
      params["blk_w"], params["blk_g"], params["blk_bt"],
      params["fc_w"], params["fc_b"])


# ----------------------------------------------------------------------------
# Deterministic synthetic parameters (PyTorch-shaped, then reordered/stacked)
# ----------------------------------------------------------------------------
def _conv_weight_to_mat(w_pt, cin_pad=None):
    """PyTorch (Cout, Cin, 3, 3) -> (9*Cin[_pad], Cout), (kh, kw, cin)-major."""
    cout, cin = w_pt.shape[0], w_pt.shape[1]
    w = jnp.transpose(w_pt, (2, 3, 1, 0))                 # (3, 3, Cin, Cout)
    if cin_pad is not None and cin_pad > cin:
        w = jnp.pad(w, ((0, 0), (0, 0), (0, cin_pad - cin), (0, 0)))
    return w.reshape(-1, cout)


def init_params(key, in_channels=3, channels=64, num_classes=10, num_blocks=6):
    keys = iter(jax.random.split(key, 64))
    cin_pad = ((in_channels + 7) // 8) * 8

    def conv_mat(cin, cout, pad_to=None):
        w = jax.random.normal(next(keys), (cout, cin, 3, 3), jnp.float32) * 0.1
        return _conv_weight_to_mat(w, pad_to)

    def bn(c):
        g = 1.0 + 0.1 * jax.random.normal(next(keys), (1, c), jnp.float32)
        bt = 0.05 * jax.random.normal(next(keys), (1, c), jnp.float32)
        return g, bt

    # NOTE: nn.Conv2d biases are not created: with training-mode (batch-stat)
    # BatchNorm right after every conv, a per-channel bias is removed exactly
    # by the mean subtraction and has no effect on the forward output.
    stem_w = conv_mat(in_channels, channels, pad_to=cin_pad)
    stem_g, stem_bt = bn(channels)

    blk_w, blk_g, blk_bt = [], [], []
    for _ in range(num_blocks):
        for _conv in range(2):
            blk_w.append(conv_mat(channels, channels))
            g, bt = bn(channels)
            blk_g.append(g)
            blk_bt.append(bt)

    w_fc = jax.random.normal(next(keys), (num_classes, channels),
                             jnp.float32) * 0.1
    b_fc = jax.random.normal(next(keys), (1, num_classes), jnp.float32) * 0.05

    return {
        "stem_w": stem_w,                         # (9*cin_pad, C)
        "stem_g": stem_g, "stem_bt": stem_bt,     # (1, C)
        "blk_w": jnp.stack(blk_w),                # (2*num_blocks, 9*C, C)
        "blk_g": jnp.stack(blk_g),                # (2*num_blocks, 1, C)
        "blk_bt": jnp.stack(blk_bt),              # (2*num_blocks, 1, C)
        "fc_w": jnp.transpose(w_fc),              # (C, num_classes)
        "fc_b": b_fc,                             # (1, num_classes)
    }


if __name__ == "__main__":
    key = jax.random.PRNGKey(0)
    kx, kp = jax.random.split(key)

    N, Cin, H, W = 2, 3, 16, 16
    x = jax.random.normal(kx, (N, Cin, H, W), jnp.float32)
    params = init_params(kp, in_channels=Cin, channels=64, num_classes=10,
                         num_blocks=6)

    logits = mini_resnet_forward(x, params)
    jax.block_until_ready(logits)
    assert logits.shape == (N, 10)
    assert bool(jnp.all(jnp.isfinite(logits)))
    print("KERNEL_OK")
</pallas_src>

<mosaic_0001>
module attributes {stable_mosaic.version = 11 : i64} {
  func.func @kernel(%arg0: i32, %arg1: memref<2x16x16x8xf32, #tpu.memory_space<vmem>>, %arg2: memref<72x64xf32, #tpu.memory_space<vmem>>, %arg3: memref<1x64xf32, #tpu.memory_space<vmem>>, %arg4: memref<1x64xf32, #tpu.memory_space<vmem>>, %arg5: memref<2x576x64xf32, #tpu.memory_space<vmem>>, %arg6: memref<2x1x64xf32, #tpu.memory_space<vmem>>, %arg7: memref<2x1x64xf32, #tpu.memory_space<vmem>>, %arg8: memref<64x10xf32, #tpu.memory_space<vmem>>, %arg9: memref<1x10xf32, #tpu.memory_space<vmem>>, %arg10: memref<2x10xf32, #tpu.memory_space<vmem>>, %arg11: memref<2x10x10x64xf32, #tpu.memory_space<vmem>>, %arg12: memref<2x10x10x64xf32, #tpu.memory_space<vmem>>, %arg13: memref<2x18x18x8xf32, #tpu.memory_space<vmem>>, %arg14: memref<512x72xf32, #tpu.memory_space<vmem>>, %arg15: memref<128x576xf32, #tpu.memory_space<vmem>>) attributes {dimension_semantics = [#tpu.dimension_semantics<arbitrary>], iteration_bounds = array<i64: 6>, scalar_prefetch = 0 : i64, scratch_operands = 5 : i64, tpu.core_type = #tpu.core_type<tc>, window_params = [{pipeline_mode = #tpu.pipeline_mode<synchronous>, transform_indices = @transform_0, window_bounds = array<i64: 2, 16, 16, 8>}, {pipeline_mode = #tpu.pipeline_mode<synchronous>, transform_indices = @transform_1, window_bounds = array<i64: 72, 64>}, {pipeline_mode = #tpu.pipeline_mode<synchronous>, transform_indices = @transform_2, window_bounds = array<i64: 1, 64>}, {pipeline_mode = #tpu.pipeline_mode<synchronous>, transform_indices = @transform_3, window_bounds = array<i64: 1, 64>}, {transform_indices = @transform_4, window_bounds = array<i64: 2, 576, 64>}, {transform_indices = @transform_5, window_bounds = array<i64: 2, 1, 64>}, {transform_indices = @transform_6, window_bounds = array<i64: 2, 1, 64>}, {pipeline_mode = #tpu.pipeline_mode<synchronous>, transform_indices = @transform_7, window_bounds = array<i64: 64, 10>}, {pipeline_mode = #tpu.pipeline_mode<synchronous>, transform_indices = @transform_8, window_bounds = array<i64: 1, 10>}, {pipeline_mode = #tpu.pipeline_mode<synchronous>, transform_indices = @transform_9, window_bounds = array<i64: 2, 10>}]} {
    %c0_i32 = arith.constant 0 : i32
    %0 = arith.cmpi eq, %arg0, %c0_i32 : i32
    %1 = arith.extui %0 : i1 to i32
    %c0_i32_0 = arith.constant 0 : i32
    %2 = arith.cmpi ne, %1, %c0_i32_0 : i32
    scf.if %2 {
      %cst_146 = arith.constant 0.000000e+00 : f32
      %129 = vector.broadcast %cst_146 : f32 to vector<2x10x10x64xf32>
      %c0_147 = arith.constant 0 : index
      %c0_148 = arith.constant 0 : index
      %c0_149 = arith.constant 0 : index
      %c0_150 = arith.constant 0 : index
      %130 = vector.load %arg11[%c0_147, %c0_148, %c0_149, %c0_150] : memref<2x10x10x64xf32, #tpu.memory_space<vmem>>, vector<2x10x10x64xf32>
      tpu.vector_store %arg11[%c0_147, %c0_148, %c0_149, %c0_150], %129 {strides = array<i32>} : memref<2x10x10x64xf32, #tpu.memory_space<vmem>>, vector<2x10x10x64xf32>,
      %cst_151 = arith.constant 0.000000e+00 : f32
      %131 = vector.broadcast %cst_151 : f32 to vector<2x10x10x64xf32>
      %c0_152 = arith.constant 0 : index
      %c0_153 = arith.constant 0 : index
      %c0_154 = arith.constant 0 : index
      %c0_155 = arith.constant 0 : index
      %132 = vector.load %arg12[%c0_152, %c0_153, %c0_154, %c0_155] : memref<2x10x10x64xf32, #tpu.memory_space<vmem>>, vector<2x10x10x64xf32>
      tpu.vector_store %arg12[%c0_152, %c0_153, %c0_154, %c0_155], %131 {strides = array<i32>} : memref<2x10x10x64xf32, #tpu.memory_space<vmem>>, vector<2x10x10x64xf32>,
      %cst_156 = arith.constant 0.000000e+00 : f32
      %133 = vector.broadcast %cst_156 : f32 to vector<2x18x18x8xf32>
      %c0_157 = arith.constant 0 : index
      %c0_158 = arith.constant 0 : index
      %c0_159 = arith.constant 0 : index
      %c0_160 = arith.constant 0 : index
      %134 = vector.load %arg13[%c0_157, %c0_158, %c0_159, %c0_160] : memref<2x18x18x8xf32, #tpu.memory_space<vmem>>, vector<2x18x18x8xf32>
      tpu.vector_store %arg13[%c0_157, %c0_158, %c0_159, %c0_160], %133 {strides = array<i32>} : memref<2x18x18x8xf32, #tpu.memory_space<vmem>>, vector<2x18x18x8xf32>,
      %c0_161 = arith.constant 0 : index
      %c0_162 = arith.constant 0 : index
      %c0_163 = arith.constant 0 : index
      %c0_164 = arith.constant 0 : index
      %135 = vector.load %arg1[%c0_161, %c0_162, %c0_163, %c0_164] : memref<2x16x16x8xf32, #tpu.memory_space<vmem>>, vector<2x16x16x8xf32>
      %c0_165 = arith.constant 0 : index
      %c1_166 = arith.constant 1 : index
      %c1_167 = arith.constant 1 : index
      %c0_168 = arith.constant 0 : index
      %136 = vector.load %arg13[%c0_165, %c1_166, %c1_167, %c0_168] : memref<2x18x18x8xf32, #tpu.memory_space<vmem>>, vector<2x16x16x8xf32>
      tpu.vector_store %arg13[%c0_165, %c1_166, %c1_167, %c0_168], %135 {strides = array<i32>} : memref<2x18x18x8xf32, #tpu.memory_space<vmem>>, vector<2x16x16x8xf32>,
      %c0_169 = arith.constant 0 : index
      %c0_170 = arith.constant 0 : index
      %137 = vector.load %arg2[%c0_169, %c0_170] : memref<72x64xf32, #tpu.memory_space<vmem>>, vector<72x64xf32>
      %c0_171 = arith.constant 0 : index
      %c0_172 = arith.constant 0 : index
      %c0_173 = arith.constant 0 : index
      %c0_174 = arith.constant 0 : index
      %138 = vector.load %arg13[%c0_171, %c0_172, %c0_173, %c0_174] : memref<2x18x18x8xf32, #tpu.memory_space<vmem>>, vector<2x16x16x8xf32>
      %139 = vector.shape_cast %138 : vector<2x16x16x8xf32> to vector<512x8xf32>
      %c0_175 = arith.constant 0 : index
      %c0_176 = arith.constant 0 : index
      %140 = vector.load %arg14[%c0_175, %c0_176] : memref<512x72xf32, #tpu.memory_space<vmem>>, vector<512x8xf32>
      tpu.vector_store %arg14[%c0_175, %c0_176], %139 {strides = array<i32>} : memref<512x72xf32, #tpu.memory_space<vmem>>, vector<512x8xf32>,
      %c0_177 = arith.constant 0 : index
      %c0_178 = arith.constant 0 : index
      %c1_179 = arith.constant 1 : index
      %c0_180 = arith.constant 0 : index
      %141 = vector.load %arg13[%c0_177, %c0_178, %c1_179, %c0_180] : memref<2x18x18x8xf32, #tpu.memory_space<vmem>>, vector<2x16x16x8xf32>
      %142 = vector.shape_cast %141 : vector<2x16x16x8xf32> to vector<512x8xf32>
      %c0_181 = arith.constant 0 : index
      %c8 = arith.constant 8 : index
      %143 = vector.load %arg14[%c0_181, %c8] : memref<512x72xf32, #tpu.memory_space<vmem>>, vector<512x8xf32>
      tpu.vector_store %arg14[%c0_181, %c8], %142 {strides = array<i32>} : memref<512x72xf32, #tpu.memory_space<vmem>>, vector<512x8xf32>,
      %c0_182 = arith.constant 0 : index
      %c0_183 = arith.constant 0 : index
      %c2_184 = arith.constant 2 : index
      %c0_185 = arith.constant 0 : index
      %144 = vector.load %arg13[%c0_182, %c0_183, %c2_184, %c0_185] : memref<2x18x18x8xf32, #tpu.memory_space<vmem>>, vector<2x16x16x8xf32>
      %145 = vector.shape_cast %144 : vector<2x16x16x8xf32> to vector<512x8xf32>
      %c0_186 = arith.constant 0 : index
      %c16 = arith.constant 16 : index
      %146 = vector.load %arg14[%c0_186, %c16] : memref<512x72xf32, #tpu.memory_space<vmem>>, vector<512x8xf32>
      tpu.vector_store %arg14[%c0_186, %c16], %145 {strides = array<i32>} : memref<512x72xf32, #tpu.memory_space<vmem>>, vector<512x8xf32>,
      %c0_187 = arith.constant 0 : index
      %c1_188 = arith.constant 1 : index
      %c0_189 = arith.constant 0 : index
      %c0_190 = arith.constant 0 : index
      %147 = vector.load %arg13[%c0_187, %c1_188, %c0_189, %c0_190] : memref<2x18x18x8xf32, #tpu.memory_space<vmem>>, vector<2x16x16x8xf32>
      %148 = vector.shape_cast %147 : vector<2x16x16x8xf32> to vector<512x8xf32>
      %c0_191 = arith.constant 0 : index
      %c24 = arith.constant 24 : index
      %149 = vector.load %arg14[%c0_191, %c24] : memref<512x72xf32, #tpu.memory_space<vmem>>, vector<512x8xf32>
      tpu.vector_store %arg14[%c0_191, %c24], %148 {strides = array<i32>} : memref<512x72xf32, #tpu.memory_space<vmem>>, vector<512x8xf32>,
      %c0_192 = arith.constant 0 : index
      %c1_193 = arith.constant 1 : index
      %c1_194 = arith.constant 1 : index
      %c0_195 = arith.constant 0 : index
      %150 = vector.load %arg13[%c0_192, %c1_193, %c1_194, %c0_195] : memref<2x18x18x8xf32, #tpu.memory_space<vmem>>, vector<2x16x16x8xf32>
      %151 = vector.shape_cast %150 : vector<2x16x16x8xf32> to vector<512x8xf32>
      %c0_196 = arith.constant 0 : index
      %c32 = arith.constant 32 : index
      %152 = vector.load %arg14[%c0_196, %c32] : memref<512x72xf32, #tpu.memory_space<vmem>>, vector<512x8xf32>
      tpu.vector_store %arg14[%c0_196, %c32], %151 {strides = array<i32>} : memref<512x72xf32, #tpu.memory_space<vmem>>, vector<512x8xf32>,
      %c0_197 = arith.constant 0 : index
      %c1_198 = arith.constant 1 : index
      %c2_199 = arith.constant 2 : index
      %c0_200 = arith.constant 0 : index
      %153 = vector.load %arg13[%c0_197, %c1_198, %c2_199, %c0_200] : memref<2x18x18x8xf32, #tpu.memory_space<vmem>>, vector<2x16x16x8xf32>
      %154 = vector.shape_cast %153 : vector<2x16x16x8xf32> to vector<512x8xf32>
      %c0_201 = arith.constant 0 : index
      %c40 = arith.constant 40 : index
      %155 = vector.load %arg14[%c0_201, %c40] : memref<512x72xf32, #tpu.memory_space<vmem>>, vector<512x8xf32>
      tpu.vector_store %arg14[%c0_201, %c40], %154 {strides = array<i32>} : memref<512x72xf32, #tpu.memory_space<vmem>>, vector<512x8xf32>,
      %c0_202 = arith.constant 0 : index
      %c2_203 = arith.constant 2 : index
      %c0_204 = arith.constant 0 : index
      %c0_205 = arith.constant 0 : index
      %156 = vector.load %arg13[%c0_202, %c2_203, %c0_204, %c0_205] : memref<2x18x18x8xf32, #tpu.memory_space<vmem>>, vector<2x16x16x8xf32>
      %157 = vector.shape_cast %156 : vector<2x16x16x8xf32> to vector<512x8xf32>
      %c0_206 = arith.constant 0 : index
      %c48 = arith.constant 48 : index
      %158 = vector.load %arg14[%c0_206, %c48] : memref<512x72xf32, #tpu.memory_space<vmem>>, vector<512x8xf32>
      tpu.vector_store %arg14[%c0_206, %c48], %157 {strides = array<i32>} : memref<512x72xf32, #tpu.memory_space<vmem>>, vector<512x8xf32>,
      %c0_207 = arith.constant 0 : index
      %c2_208 = arith.constant 2 : index
      %c1_209 = arith.constant 1 : index
      %c0_210 = arith.constant 0 : index
      %159 = vector.load %arg13[%c0_207, %c2_208, %c1_209, %c0_210] : memref<2x18x18x8xf32, #tpu.memory_space<vmem>>, vector<2x16x16x8xf32>
      %160 = vector.shape_cast %159 : vector<2x16x16x8xf32> to vector<512x8xf32>
      %c0_211 = arith.constant 0 : index
      %c56 = arith.constant 56 : index
      %161 = vector.load %arg14[%c0_211, %c56] : memref<512x72xf32, #tpu.memory_space<vmem>>, vector<512x8xf32>
      tpu.vector_store %arg14[%c0_211, %c56], %160 {strides = array<i32>} : memref<512x72xf32, #tpu.memory_space<vmem>>, vector<512x8xf32>,
      %c0_212 = arith.constant 0 : index
      %c2_213 = arith.constant 2 : index
      %c2_214 = arith.constant 2 : index
      %c0_215 = arith.constant 0 : index
      %162 = vector.load %arg13[%c0_212, %c2_213, %c2_214, %c0_215] : memref<2x18x18x8xf32, #tpu.memory_space<vmem>>, vector<2x16x16x8xf32>
      %163 = vector.shape_cast %162 : vector<2x16x16x8xf32> to vector<512x8xf32>
      %c0_216 = arith.constant 0 : index
      %c64_217 = arith.constant 64 : index
      %164 = vector.load %arg14[%c0_216, %c64_217] : memref<512x72xf32, #tpu.memory_space<vmem>>, vector<512x8xf32>
      tpu.vector_store %arg14[%c0_216, %c64_217], %163 {strides = array<i32>} : memref<512x72xf32, #tpu.memory_space<vmem>>, vector<512x8xf32>,
      %c0_218 = arith.constant 0 : index
      %c0_219 = arith.constant 0 : index
      %165 = vector.load %arg14[%c0_218, %c0_219] : memref<512x72xf32, #tpu.memory_space<vmem>>, vector<512x72xf32>
      %cst_220 = arith.constant dense<0.000000e+00> : vector<512x64xf32>
      %166 = tpu.matmul %165, %137, %cst_220 {dimension_numbers = #tpu.dot_dimension_numbers<[1], [0], [0], [1], [0, 0, 1, 1], [], []>} : vector<512x72xf32>, vector<72x64xf32>, vector<512x64xf32> -> vector<512x64xf32>
      %c0_221 = arith.constant 0 : index
      %c0_222 = arith.constant 0 : index
      %167 = vector.load %arg3[%c0_221, %c0_222] : memref<1x64xf32, #tpu.memory_space<vmem>>, vector<1x64xf32>
      %c0_223 = arith.constant 0 : index
      %c0_224 = arith.constant 0 : index
      %168 = vector.load %arg4[%c0_223, %c0_224] : memref<1x64xf32, #tpu.memory_space<vmem>>, vector<1x64xf32>
      %cst_225 = arith.constant dense<0.000000e+00> : vector<64xf32>
      %169 = vector.multi_reduction <add>, %166, %cst_225 [0] : vector<512x64xf32> to vector<64xf32>
      %170 = vector.shape_cast %169 : vector<64xf32> to vector<1x64xf32>
      %cst_226 = arith.constant 5.120000e+02 : f32
      %171 = vector.broadcast %cst_226 : f32 to vector<1x64xf32>
      %172 = arith.divf %170, %171 : vector<1x64xf32>
      %173 = vector.broadcast %172 : vector<1x64xf32> to vector<512x64xf32>
      %174 = arith.subf %166, %173 : vector<512x64xf32>
      %175 = arith.mulf %174, %174 : vector<512x64xf32>
      %cst_227 = arith.constant dense<0.000000e+00> : vector<64xf32>
      %176 = vector.multi_reduction <add>, %175, %cst_227 [0] : vector<512x64xf32> to vector<64xf32>
      %177 = vector.shape_cast %176 : vector<64xf32> to vector<1x64xf32>
      %cst_228 = arith.constant 5.120000e+02 : f32
      %178 = vector.broadcast %cst_228 : f32 to vector<1x64xf32>
      %179 = arith.divf %177, %178 : vector<1x64xf32>
      %cst_229 = arith.constant 9.99999974E-6 : f32
      %180 = vector.broadcast %cst_229 : f32 to vector<1x64xf32>
      %181 = arith.addf %179, %180 : vector<1x64xf32>
      %182 = math.rsqrt %181 : vector<1x64xf32>
      %183 = arith.mulf %167, %182 : vector<1x64xf32>
      %184 = arith.mulf %172, %183 : vector<1x64xf32>
      %185 = arith.subf %168, %184 : vector<1x64xf32>
      %186 = vector.broadcast %183 : vector<1x64xf32> to vector<512x64xf32>
      %187 = arith.mulf %166, %186 : vector<512x64xf32>
      %188 = vector.broadcast %185 : vector<1x64xf32> to vector<512x64xf32>
      %189 = arith.addf %187, %188 : vector<512x64xf32>
      %cst_230 = arith.constant 0.000000e+00 : f32
      %190 = vector.broadcast %cst_230 : f32 to vector<512x64xf32>
      %191 = arith.maximumf %189, %190 : vector<512x64xf32>
      %192 = vector.shape_cast %191 : vector<512x64xf32> to vector<256x2x64xf32>
      %193 = vector.extract_strided_slice %192 {offsets = [0, 0, 0], sizes = [256, 1, 64], strides = [1, 1, 1]} : vector<256x2x64xf32> to vector<256x1x64xf32>
      %194 = vector.shape_cast %193 : vector<256x1x64xf32> to vector<256x64xf32>
      %195 = vector.extract_strided_slice %192 {offsets = [0, 1, 0], sizes = [256, 1, 64], strides = [1, 1, 1]} : vector<256x2x64xf32> to vector<256x1x64xf32>
      %196 = vector.shape_cast %195 : vector<256x1x64xf32> to vector<256x64xf32>
      %197 = arith.maximumf %194, %196 : vector<256x64xf32>
      %198 = vector.shape_cast %197 : vector<256x64xf32> to vector<16x2x8x64xf32>
      %199 = vector.extract_strided_slice %198 {offsets = [0, 0, 0, 0], sizes = [16, 1, 8, 64], strides = [1, 1, 1, 1]} : vector<16x2x8x64xf32> to vector<16x1x8x64xf32>
      %200 = vector.shape_cast %199 : vector<16x1x8x64xf32> to vector<16x8x64xf32>
      %201 = vector.extract_strided_slice %198 {offsets = [0, 1, 0, 0], sizes = [16, 1, 8, 64], strides = [1, 1, 1, 1]} : vector<16x2x8x64xf32> to vector<16x1x8x64xf32>
      %202 = vector.shape_cast %201 : vector<16x1x8x64xf32> to vector<16x8x64xf32>
      %203 = arith.maximumf %200, %202 : vector<16x8x64xf32>
      %204 = vector.shape_cast %203 : vector<16x8x64xf32> to vector<2x8x8x64xf32>
      %c0_231 = arith.constant 0 : index
      %c1_232 = arith.constant 1 : index
      %c1_233 = arith.constant 1 : index
      %c0_234 = arith.constant 0 : index
      %205 = vector.load %arg11[%c0_231, %c1_232, %c1_233, %c0_234] : memref<2x10x10x64xf32, #tpu.memory_space<vmem>>, vector<2x8x8x64xf32>
      tpu.vector_store %arg11[%c0_231, %c1_232, %c1_233, %c0_234], %204 {strides = array<i32>} : memref<2x10x10x64xf32, #tpu.memory_space<vmem>>, vector<2x8x8x64xf32>,
    } else {
    }
    %c0 = arith.constant 0 : index
    %c1 = arith.constant 1 : index
    %c1_1 = arith.constant 1 : index
    %c0_2 = arith.constant 0 : index
    %3 = vector.load %arg11[%c0, %c1, %c1_1, %c0_2] : memref<2x10x10x64xf32, #tpu.memory_space<vmem>>, vector<2x8x8x64xf32>
    %4 = vector.shape_cast %3 : vector<2x8x8x64xf32> to vector<128x64xf32>
    %c0_3 = arith.constant 0 : index
    %c0_4 = arith.constant 0 : index
    %c0_5 = arith.constant 0 : index
    %5 = vector.load %arg5[%c0_3, %c0_4, %c0_5] : memref<2x576x64xf32, #tpu.memory_space<vmem>>, vector<1x576x64xf32>
    %6 = vector.shape_cast %5 : vector<1x576x64xf32> to vector<576x64xf32>
    %c0_6 = arith.constant 0 : index
    %c0_7 = arith.constant 0 : index
    %c0_8 = arith.constant 0 : index
    %c0_9 = arith.constant 0 : index
    %7 = vector.load %arg11[%c0_6, %c0_7, %c0_8, %c0_9] : memref<2x10x10x64xf32, #tpu.memory_space<vmem>>, vector<2x8x8x64xf32>
    %8 = vector.shape_cast %7 : vector<2x8x8x64xf32> to vector<128x64xf32>
    %c0_10 = arith.constant 0 : index
    %c0_11 = arith.constant 0 : index
    %9 = vector.load %arg15[%c0_10, %c0_11] : memref<128x576xf32, #tpu.memory_space<vmem>>, vector<128x64xf32>
    tpu.vector_store %arg15[%c0_10, %c0_11], %8 {strides = array<i32>} : memref<128x576xf32, #tpu.memory_space<vmem>>, vector<128x64xf32>,
    %c0_12 = arith.constant 0 : index
    %c0_13 = arith.constant 0 : index
    %c1_14 = arith.constant 1 : index
    %c0_15 = arith.constant 0 : index
    %10 = vector.load %arg11[%c0_12, %c0_13, %c1_14, %c0_15] : memref<2x10x10x64xf32, #tpu.memory_space<vmem>>, vector<2x8x8x64xf32>
    %11 = vector.shape_cast %10 : vector<2x8x8x64xf32> to vector<128x64xf32>
    %c0_16 = arith.constant 0 : index
    %c64 = arith.constant 64 : index
    %12 = vector.load %arg15[%c0_16, %c64] : memref<128x576xf32, #tpu.memory_space<vmem>>, vector<128x64xf32>
    tpu.vector_store %arg15[%c0_16, %c64], %11 {strides = array<i32>} : memref<128x576xf32, #tpu.memory_space<vmem>>, vector<128x64xf32>,
    %c0_17 = arith.constant 0 : index
    %c0_18 = arith.constant 0 : index
    %c2 = arith.constant 2 : index
    %c0_19 = arith.constant 0 : index
    %13 = vector.load %arg11[%c0_17, %c0_18, %c2, %c0_19] : memref<2x10x10x64xf32, #tpu.memory_space<vmem>>, vector<2x8x8x64xf32>
    %14 = vector.shape_cast %13 : vector<2x8x8x64xf32> to vector<128x64xf32>
    %c0_20 = arith.constant 0 : index
    %c128 = arith.constant 128 : index
    %15 = vector.load %arg15[%c0_20, %c128] : memref<128x576xf32, #tpu.memory_space<vmem>>, vector<128x64xf32>
    tpu.vector_store %arg15[%c0_20, %c128], %14 {strides = array<i32>} : memref<128x576xf32, #tpu.memory_space<vmem>>, vector<128x64xf32>,
    %c0_21 = arith.constant 0 : index
    %c1_22 = arith.constant 1 : index
    %c0_23 = arith.constant 0 : index
    %c0_24 = arith.constant 0 : index
    %16 = vector.load %arg11[%c0_21, %c1_22, %c0_23, %c0_24] : memref<2x10x10x64xf32, #tpu.memory_space<vmem>>, vector<2x8x8x64xf32>
    %17 = vector.shape_cast %16 : vector<2x8x8x64xf32> to vector<128x64xf32>
    %c0_25 = arith.constant 0 : index
    %c192 = arith.constant 192 : index
    %18 = vector.load %arg15[%c0_25, %c192] : memref<128x576xf32, #tpu.memory_space<vmem>>, vector<128x64xf32>
    tpu.vector_store %arg15[%c0_25, %c192], %17 {strides = array<i32>} : memref<128x576xf32, #tpu.memory_space<vmem>>, vector<128x64xf32>,
    %c0_26 = arith.constant 0 : index
    %c1_27 = arith.constant 1 : index
    %c1_28 = arith.constant 1 : index
    %c0_29 = arith.constant 0 : index
    %19 = vector.load %arg11[%c0_26, %c1_27, %c1_28, %c0_29] : memref<2x10x10x64xf32, #tpu.memory_space<vmem>>, vector<2x8x8x64xf32>
    %20 = vector.shape_cast %19 : vector<2x8x8x64xf32> to vector<128x64xf32>
    %c0_30 = arith.constant 0 : index
    %c256 = arith.constant 256 : index
    %21 = vector.load %arg15[%c0_30, %c256] : memref<128x576xf32, #tpu.memory_space<vmem>>, vector<128x64xf32>
    tpu.vector_store %arg15[%c0_30, %c256], %20 {strides = array<i32>} : memref<128x576xf32, #tpu.memory_space<vmem>>, vector<128x64xf32>,
    %c0_31 = arith.constant 0 : index
    %c1_32 = arith.constant 1 : index
    %c2_33 = arith.constant 2 : index
    %c0_34 = arith.constant 0 : index
    %22 = vector.load %arg11[%c0_31, %c1_32, %c2_33, %c0_34] : memref<2x10x10x64xf32, #tpu.memory_space<vmem>>, vector<2x8x8x64xf32>
    %23 = vector.shape_cast %22 : vector<2x8x8x64xf32> to vector<128x64xf32>
    %c0_35 = arith.constant 0 : index
    %c320 = arith.constant 320 : index
    %24 = vector.load %arg15[%c0_35, %c320] : memref<128x576xf32, #tpu.memory_space<vmem>>, vector<128x64xf32>
    tpu.vector_store %arg15[%c0_35, %c320], %23 {strides = array<i32>} : memref<128x576xf32, #tpu.memory_space<vmem>>, vector<128x64xf32>,
    %c0_36 = arith.constant 0 : index
    %c2_37 = arith.constant 2 : index
    %c0_38 = arith.constant 0 : index
    %c0_39 = arith.constant 0 : index
    %25 = vector.load %arg11[%c0_36, %c2_37, %c0_38, %c0_39] : memref<2x10x10x64xf32, #tpu.memory_space<vmem>>, vector<2x8x8x64xf32>
    %26 = vector.shape_cast %25 : vector<2x8x8x64xf32> to vector<128x64xf32>
    %c0_40 = arith.constant 0 : index
    %c384 = arith.constant 384 : index
    %27 = vector.load %arg15[%c0_40, %c384] : memref<128x576xf32, #tpu.memory_space<vmem>>, vector<128x64xf32>
    tpu.vector_store %arg15[%c0_40, %c384], %26 {strides = array<i32>} : memref<128x576xf32, #tpu.memory_space<vmem>>, vector<128x64xf32>,
    %c0_41 = arith.constant 0 : index
    %c2_42 = arith.constant 2 : index
    %c1_43 = arith.constant 1 : index
    %c0_44 = arith.constant 0 : index
    %28 = vector.load %arg11[%c0_41, %c2_42, %c1_43, %c0_44] : memref<2x10x10x64xf32, #tpu.memory_space<vmem>>, vector<2x8x8x64xf32>
    %29 = vector.shape_cast %28 : vector<2x8x8x64xf32> to vector<128x64xf32>
    %c0_45 = arith.constant 0 : index
    %c448 = arith.constant 448 : index
    %30 = vector.load %arg15[%c0_45, %c448] : memref<128x576xf32, #tpu.memory_space<vmem>>, vector<128x64xf32>
    tpu.vector_store %arg15[%c0_45, %c448], %29 {strides = array<i32>} : memref<128x576xf32, #tpu.memory_space<vmem>>, vector<128x64xf32>,
    %c0_46 = arith.constant 0 : index
    %c2_47 = arith.constant 2 : index
    %c2_48 = arith.constant 2 : index
    %c0_49 = arith.constant 0 : index
    %31 = vector.load %arg11[%c0_46, %c2_47, %c2_48, %c0_49] : memref<2x10x10x64xf32, #tpu.memory_space<vmem>>, vector<2x8x8x64xf32>
    %32 = vector.shape_cast %31 : vector<2x8x8x64xf32> to vector<128x64xf32>
    %c0_50 = arith.constant 0 : index
    %c512 = arith.constant 512 : index
    %33 = vector.load %arg15[%c0_50, %c512] : memref<128x576xf32, #tpu.memory_space<vmem>>, vector<128x64xf32>
    tpu.vector_store %arg15[%c0_50, %c512], %32 {strides = array<i32>} : memref<128x576xf32, #tpu.memory_space<vmem>>, vector<128x64xf32>,
    %c0_51 = arith.constant 0 : index
    %c0_52 = arith.constant 0 : index
    %34 = vector.load %arg15[%c0_51, %c0_52] : memref<128x576xf32, #tpu.memory_space<vmem>>, vector<128x576xf32>
    %cst = arith.constant dense<0.000000e+00> : vector<128x64xf32>
    %35 = tpu.matmul %34, %6, %cst {dimension_numbers = #tpu.dot_dimension_numbers<[1], [0], [0], [1], [0, 0, 1, 1], [], []>} : vector<128x576xf32>, vector<576x64xf32>, vector<128x64xf32> -> vector<128x64xf32>
    %c0_53 = arith.constant 0 : index
    %c0_54 = arith.constant 0 : index
    %c0_55 = arith.constant 0 : index
    %36 = vector.load %arg6[%c0_53, %c0_54, %c0_55] : memref<2x1x64xf32, #tpu.memory_space<vmem>>, vector<1x1x64xf32>
    %37 = vector.shape_cast %36 : vector<1x1x64xf32> to vector<1x64xf32>
    %c0_56 = arith.constant 0 : index
    %c0_57 = arith.constant 0 : index
    %c0_58 = arith.constant 0 : index
    %38 = vector.load %arg7[%c0_56, %c0_57, %c0_58] : memref<2x1x64xf32, #tpu.memory_space<vmem>>, vector<1x1x64xf32>
    %39 = vector.shape_cast %38 : vector<1x1x64xf32> to vector<1x64xf32>
    %cst_59 = arith.constant dense<0.000000e+00> : vector<64xf32>
    %40 = vector.multi_reduction <add>, %35, %cst_59 [0] : vector<128x64xf32> to vector<64xf32>
    %41 = vector.shape_cast %40 : vector<64xf32> to vector<1x64xf32>
    %cst_60 = arith.constant 1.280000e+02 : f32
    %42 = vector.broadcast %cst_60 : f32 to vector<1x64xf32>
    %43 = arith.divf %41, %42 : vector<1x64xf32>
    %44 = vector.broadcast %43 : vector<1x64xf32> to vector<128x64xf32>
    %45 = arith.subf %35, %44 : vector<128x64xf32>
    %46 = arith.mulf %45, %45 : vector<128x64xf32>
    %cst_61 = arith.constant dense<0.000000e+00> : vector<64xf32>
    %47 = vector.multi_reduction <add>, %46, %cst_61 [0] : vector<128x64xf32> to vector<64xf32>
    %48 = vector.shape_cast %47 : vector<64xf32> to vector<1x64xf32>
    %cst_62 = arith.constant 1.280000e+02 : f32
    %49 = vector.broadcast %cst_62 : f32 to vector<1x64xf32>
    %50 = arith.divf %48, %49 : vector<1x64xf32>
    %cst_63 = arith.constant 9.99999974E-6 : f32
    %51 = vector.broadcast %cst_63 : f32 to vector<1x64xf32>
    %52 = arith.addf %50, %51 : vector<1x64xf32>
    %53 = math.rsqrt %52 : vector<1x64xf32>
    %54 = arith.mulf %37, %53 : vector<1x64xf32>
    %55 = arith.mulf %43, %54 : vector<1x64xf32>
    %56 = arith.subf %39, %55 : vector<1x64xf32>
    %57 = vector.broadcast %54 : vector<1x64xf32> to vector<128x64xf32>
    %58 = arith.mulf %35, %57 : vector<128x64xf32>
    %59 = vector.broadcast %56 : vector<1x64xf32> to vector<128x64xf32>
    %60 = arith.addf %58, %59 : vector<128x64xf32>
    %cst_64 = arith.constant 0.000000e+00 : f32
    %61 = vector.broadcast %cst_64 : f32 to vector<128x64xf32>
    %62 = arith.maximumf %60, %61 : vector<128x64xf32>
    %63 = vector.shape_cast %62 : vector<128x64xf32> to vector<2x8x8x64xf32>
    %c0_65 = arith.constant 0 : index
    %c1_66 = arith.constant 1 : index
    %c1_67 = arith.constant 1 : index
    %c0_68 = arith.constant 0 : index
    %64 = vector.load %arg12[%c0_65, %c1_66, %c1_67, %c0_68] : memref<2x10x10x64xf32, #tpu.memory_space<vmem>>, vector<2x8x8x64xf32>
    tpu.vector_store %arg12[%c0_65, %c1_66, %c1_67, %c0_68], %63 {strides = array<i32>} : memref<2x10x10x64xf32, #tpu.memory_space<vmem>>, vector<2x8x8x64xf32>,
    %c1_69 = arith.constant 1 : index
    %c0_70 = arith.constant 0 : index
    %c0_71 = arith.constant 0 : index
    %65 = vector.load %arg5[%c1_69, %c0_70, %c0_71] : memref<2x576x64xf32, #tpu.memory_space<vmem>>, vector<1x576x64xf32>
    %66 = vector.shape_cast %65 : vector<1x576x64xf32> to vector<576x64xf32>
    %c0_72 = arith.constant 0 : index
    %c0_73 = arith.constant 0 : index
    %c0_74 = arith.constant 0 : index
    %c0_75 = arith.constant 0 : index
    %67 = vector.load %arg12[%c0_72, %c0_73, %c0_74, %c0_75] : memref<2x10x10x64xf32, #tpu.memory_space<vmem>>, vector<2x8x8x64xf32>
    %68 = vector.shape_cast %67 : vector<2x8x8x64xf32> to vector<128x64xf32>
    %c0_76 = arith.constant 0 : index
    %c0_77 = arith.constant 0 : index
    %69 = vector.load %arg15[%c0_76, %c0_77] : memref<128x576xf32, #tpu.memory_space<vmem>>, vector<128x64xf32>
    tpu.vector_store %arg15[%c0_76, %c0_77], %68 {strides = array<i32>} : memref<128x576xf32, #tpu.memory_space<vmem>>, vector<128x64xf32>,
    %c0_78 = arith.constant 0 : index
    %c0_79 = arith.constant 0 : index
    %c1_80 = arith.constant 1 : index
    %c0_81 = arith.constant 0 : index
    %70 = vector.load %arg12[%c0_78, %c0_79, %c1_80, %c0_81] : memref<2x10x10x64xf32, #tpu.memory_space<vmem>>, vector<2x8x8x64xf32>
    %71 = vector.shape_cast %70 : vector<2x8x8x64xf32> to vector<128x64xf32>
    %c0_82 = arith.constant 0 : index
    %c64_83 = arith.constant 64 : index
    %72 = vector.load %arg15[%c0_82, %c64_83] : memref<128x576xf32, #tpu.memory_space<vmem>>, vector<128x64xf32>
    tpu.vector_store %arg15[%c0_82, %c64_83], %71 {strides = array<i32>} : memref<128x576xf32, #tpu.memory_space<vmem>>, vector<128x64xf32>,
    %c0_84 = arith.constant 0 : index
    %c0_85 = arith.constant 0 : index
    %c2_86 = arith.constant 2 : index
    %c0_87 = arith.constant 0 : index
    %73 = vector.load %arg12[%c0_84, %c0_85, %c2_86, %c0_87] : memref<2x10x10x64xf32, #tpu.memory_space<vmem>>, vector<2x8x8x64xf32>
    %74 = vector.shape_cast %73 : vector<2x8x8x64xf32> to vector<128x64xf32>
    %c0_88 = arith.constant 0 : index
    %c128_89 = arith.constant 128 : index
    %75 = vector.load %arg15[%c0_88, %c128_89] : memref<128x576xf32, #tpu.memory_space<vmem>>, vector<128x64xf32>
    tpu.vector_store %arg15[%c0_88, %c128_89], %74 {strides = array<i32>} : memref<128x576xf32, #tpu.memory_space<vmem>>, vector<128x64xf32>,
    %c0_90 = arith.constant 0 : index
    %c1_91 = arith.constant 1 : index
    %c0_92 = arith.constant 0 : index
    %c0_93 = arith.constant 0 : index
    %76 = vector.load %arg12[%c0_90, %c1_91, %c0_92, %c0_93] : memref<2x10x10x64xf32, #tpu.memory_space<vmem>>, vector<2x8x8x64xf32>
    %77 = vector.shape_cast %76 : vector<2x8x8x64xf32> to vector<128x64xf32>
    %c0_94 = arith.constant 0 : index
    %c192_95 = arith.constant 192 : index
    %78 = vector.load %arg15[%c0_94, %c192_95] : memref<128x576xf32, #tpu.memory_space<vmem>>, vector<128x64xf32>
    tpu.vector_store %arg15[%c0_94, %c192_95], %77 {strides = array<i32>} : memref<128x576xf32, #tpu.memory_space<vmem>>, vector<128x64xf32>,
    %c0_96 = arith.constant 0 : index
    %c1_97 = arith.constant 1 : index
    %c1_98 = arith.constant 1 : index
    %c0_99 = arith.constant 0 : index
    %79 = vector.load %arg12[%c0_96, %c1_97, %c1_98, %c0_99] : memref<2x10x10x64xf32, #tpu.memory_space<vmem>>, vector<2x8x8x64xf32>
    %80 = vector.shape_cast %79 : vector<2x8x8x64xf32> to vector<128x64xf32>
    %c0_100 = arith.constant 0 : index
    %c256_101 = arith.constant 256 : index
    %81 = vector.load %arg15[%c0_100, %c256_101] : memref<128x576xf32, #tpu.memory_space<vmem>>, vector<128x64xf32>
    tpu.vector_store %arg15[%c0_100, %c256_101], %80 {strides = array<i32>} : memref<128x576xf32, #tpu.memory_space<vmem>>, vector<128x64xf32>,
    %c0_102 = arith.constant 0 : index
    %c1_103 = arith.constant 1 : index
    %c2_104 = arith.constant 2 : index
    %c0_105 = arith.constant 0 : index
    %82 = vector.load %arg12[%c0_102, %c1_103, %c2_104, %c0_105] : memref<2x10x10x64xf32, #tpu.memory_space<vmem>>, vector<2x8x8x64xf32>
    %83 = vector.shape_cast %82 : vector<2x8x8x64xf32> to vector<128x64xf32>
    %c0_106 = arith.constant 0 : index
    %c320_107 = arith.constant 320 : index
    %84 = vector.load %arg15[%c0_106, %c320_107] : memref<128x576xf32, #tpu.memory_space<vmem>>, vector<128x64xf32>
    tpu.vector_store %arg15[%c0_106, %c320_107], %83 {strides = array<i32>} : memref<128x576xf32, #tpu.memory_space<vmem>>, vector<128x64xf32>,
    %c0_108 = arith.constant 0 : index
    %c2_109 = arith.constant 2 : index
    %c0_110 = arith.constant 0 : index
    %c0_111 = arith.constant 0 : index
    %85 = vector.load %arg12[%c0_108, %c2_109, %c0_110, %c0_111] : memref<2x10x10x64xf32, #tpu.memory_space<vmem>>, vector<2x8x8x64xf32>
    %86 = vector.shape_cast %85 : vector<2x8x8x64xf32> to vector<128x64xf32>
    %c0_112 = arith.constant 0 : index
    %c384_113 = arith.constant 384 : index
    %87 = vector.load %arg15[%c0_112, %c384_113] : memref<128x576xf32, #tpu.memory_space<vmem>>, vector<128x64xf32>
    tpu.vector_store %arg15[%c0_112, %c384_113], %86 {strides = array<i32>} : memref<128x576xf32, #tpu.memory_space<vmem>>, vector<128x64xf32>,
    %c0_114 = arith.constant 0 : index
    %c2_115 = arith.constant 2 : index
    %c1_116 = arith.constant 1 : index
    %c0_117 = arith.constant 0 : index
    %88 = vector.load %arg12[%c0_114, %c2_115, %c1_116, %c0_117] : memref<2x10x10x64xf32, #tpu.memory_space<vmem>>, vector<2x8x8x64xf32>
    %89 = vector.shape_cast %88 : vector<2x8x8x64xf32> to vector<128x64xf32>
    %c0_118 = arith.constant 0 : index
    %c448_119 = arith.constant 448 : index
    %90 = vector.load %arg15[%c0_118, %c448_119] : memref<128x576xf32, #tpu.memory_space<vmem>>, vector<128x64xf32>
    tpu.vector_store %arg15[%c0_118, %c448_119], %89 {strides = array<i32>} : memref<128x576xf32, #tpu.memory_space<vmem>>, vector<128x64xf32>,
    %c0_120 = arith.constant 0 : index
    %c2_121 = arith.constant 2 : index
    %c2_122 = arith.constant 2 : index
    %c0_123 = arith.constant 0 : index
    %91 = vector.load %arg12[%c0_120, %c2_121, %c2_122, %c0_123] : memref<2x10x10x64xf32, #tpu.memory_space<vmem>>, vector<2x8x8x64xf32>
    %92 = vector.shape_cast %91 : vector<2x8x8x64xf32> to vector<128x64xf32>
    %c0_124 = arith.constant 0 : index
    %c512_125 = arith.constant 512 : index
    %93 = vector.load %arg15[%c0_124, %c512_125] : memref<128x576xf32, #tpu.memory_space<vmem>>, vector<128x64xf32>
    tpu.vector_store %arg15[%c0_124, %c512_125], %92 {strides = array<i32>} : memref<128x576xf32, #tpu.memory_space<vmem>>, vector<128x64xf32>,
    %c0_126 = arith.constant 0 : index
    %c0_127 = arith.constant 0 : index
    %94 = vector.load %arg15[%c0_126, %c0_127] : memref<128x576xf32, #tpu.memory_space<vmem>>, vector<128x576xf32>
    %cst_128 = arith.constant dense<0.000000e+00> : vector<128x64xf32>
    %95 = tpu.matmul %94, %66, %cst_128 {dimension_numbers = #tpu.dot_dimension_numbers<[1], [0], [0], [1], [0, 0, 1, 1], [], []>} : vector<128x576xf32>, vector<576x64xf32>, vector<128x64xf32> -> vector<128x64xf32>
    %c1_129 = arith.constant 1 : index
    %c0_130 = arith.constant 0 : index
    %c0_131 = arith.constant 0 : index
    %96 = vector.load %arg6[%c1_129, %c0_130, %c0_131] : memref<2x1x64xf32, #tpu.memory_space<vmem>>, vector<1x1x64xf32>
    %97 = vector.shape_cast %96 : vector<1x1x64xf32> to vector<1x64xf32>
    %c1_132 = arith.constant 1 : index
    %c0_133 = arith.constant 0 : index
    %c0_134 = arith.constant 0 : index
    %98 = vector.load %arg7[%c1_132, %c0_133, %c0_134] : memref<2x1x64xf32, #tpu.memory_space<vmem>>, vector<1x1x64xf32>
    %99 = vector.shape_cast %98 : vector<1x1x64xf32> to vector<1x64xf32>
    %cst_135 = arith.constant dense<0.000000e+00> : vector<64xf32>
    %100 = vector.multi_reduction <add>, %95, %cst_135 [0] : vector<128x64xf32> to vector<64xf32>
    %101 = vector.shape_cast %100 : vector<64xf32> to vector<1x64xf32>
    %cst_136 = arith.constant 1.280000e+02 : f32
    %102 = vector.broadcast %cst_136 : f32 to vector<1x64xf32>
    %103 = arith.divf %101, %102 : vector<1x64xf32>
    %104 = vector.broadcast %103 : vector<1x64xf32> to vector<128x64xf32>
    %105 = arith.subf %95, %104 : vector<128x64xf32>
    %106 = arith.mulf %105, %105 : vector<128x64xf32>
    %cst_137 = arith.constant dense<0.000000e+00> : vector<64xf32>
    %107 = vector.multi_reduction <add>, %106, %cst_137 [0] : vector<128x64xf32> to vector<64xf32>
    %108 = vector.shape_cast %107 : vector<64xf32> to vector<1x64xf32>
    %cst_138 = arith.constant 1.280000e+02 : f32
    %109 = vector.broadcast %cst_138 : f32 to vector<1x64xf32>
    %110 = arith.divf %108, %109 : vector<1x64xf32>
    %cst_139 = arith.constant 9.99999974E-6 : f32
    %111 = vector.broadcast %cst_139 : f32 to vector<1x64xf32>
    %112 = arith.addf %110, %111 : vector<1x64xf32>
    %113 = math.rsqrt %112 : vector<1x64xf32>
    %114 = arith.mulf %97, %113 : vector<1x64xf32>
    %115 = arith.mulf %103, %114 : vector<1x64xf32>
    %116 = arith.subf %99, %115 : vector<1x64xf32>
    %117 = vector.broadcast %114 : vector<1x64xf32> to vector<128x64xf32>
    %118 = arith.mulf %95, %117 : vector<128x64xf32>
    %119 = vector.broadcast %116 : vector<1x64xf32> to vector<128x64xf32>
    %120 = arith.addf %118, %119 : vector<128x64xf32>
    %121 = arith.addf %120, %4 : vector<128x64xf32>
    %cst_140 = arith.constant 0.000000e+00 : f32
    %122 = vector.broadcast %cst_140 : f32 to vector<128x64xf32>
    %123 = arith.maximumf %121, %122 : vector<128x64xf32>
    %124 = vector.shape_cast %123 : vector<128x64xf32> to vector<2x8x8x64xf32>
    %c0_141 = arith.constant 0 : index
    %c1_142 = arith.constant 1 : index
    %c1_143 = arith.constant 1 : index
    %c0_144 = arith.constant 0 : index
    %125 = vector.load %arg11[%c0_141, %c1_142, %c1_143, %c0_144] : memref<2x10x10x64xf32, #tpu.memory_space<vmem>>, vector<2x8x8x64xf32>
    tpu.vector_store %arg11[%c0_141, %c1_142, %c1_143, %c0_144], %124 {strides = array<i32>} : memref<2x10x10x64xf32, #tpu.memory_space<vmem>>, vector<2x8x8x64xf32>,
    %c5_i32 = arith.constant 5 : i32
    %126 = arith.cmpi eq, %arg0, %c5_i32 : i32
    %127 = arith.extui %126 : i1 to i32
    %c0_i32_145 = arith.constant 0 : i32
    %128 = arith.cmpi ne, %127, %c0_i32_145 : i32
    scf.if %128 {
      %129 = vector.shape_cast %123 : vector<128x64xf32> to vector<2x64x64xf32>
      %cst_146 = arith.constant dense<0.000000e+00> : vector<2x64xf32>
      %130 = vector.multi_reduction <add>, %129, %cst_146 [1] : vector<2x64x64xf32> to vector<2x64xf32>
      %cst_147 = arith.constant 6.400000e+01 : f32
      %131 = vector.broadcast %cst_147 : f32 to vector<2x64xf32>
      %132 = arith.divf %130, %131 : vector<2x64xf32>
      %c0_148 = arith.constant 0 : index
      %c0_149 = arith.constant 0 : index
      %133 = vector.load %arg8[%c0_148, %c0_149] : memref<64x10xf32, #tpu.memory_space<vmem>>, vector<64x10xf32>
      %cst_150 = arith.constant dense<0.000000e+00> : vector<2x10xf32>
      %134 = tpu.matmul %132, %133, %cst_150 {dimension_numbers = #tpu.dot_dimension_numbers<[1], [0], [0], [1], [0, 0, 1, 1], [], []>} : vector<2x64xf32>, vector<64x10xf32>, vector<2x10xf32> -> vector<2x10xf32>
      %c0_151 = arith.constant 0 : index
      %c0_152 = arith.constant 0 : index
      %135 = vector.load %arg9[%c0_151, %c0_152] : memref<1x10xf32, #tpu.memory_space<vmem>>, vector<1x10xf32>
      %136 = vector.broadcast %135 : vector<1x10xf32> to vector<2x10xf32>
      %137 = arith.addf %134, %136 : vector<2x10xf32>
      %c0_153 = arith.constant 0 : index
      %c0_154 = arith.constant 0 : index
      %138 = vector.load %arg10[%c0_153, %c0_154] : memref<2x10xf32, #tpu.memory_space<vmem>>, vector<2x10xf32>
      tpu.vector_store %arg10[%c0_153, %c0_154], %137 {strides = array<i32>} : memref<2x10xf32, #tpu.memory_space<vmem>>, vector<2x10xf32>,
    } else {
    }
    return
  }
  func.func @transform_0(%arg0: i32) -> (i32, i32, i32, i32) {
    %c0_i32 = arith.constant 0 : i32
    %c0_i32_0 = arith.constant 0 : i32
    %c0_i32_1 = arith.constant 0 : i32
    %c0_i32_2 = arith.constant 0 : i32
    %c0_i32_3 = arith.constant 0 : i32
    return %c0_i32, %c0_i32_0, %c0_i32_1, %c0_i32_2 : i32, i32, i32, i32
  }
  func.func @transform_1(%arg0: i32) -> (i32, i32) {
    %c0_i32 = arith.constant 0 : i32
    %c0_i32_0 = arith.constant 0 : i32
    %c0_i32_1 = arith.constant 0 : i32
    return %c0_i32, %c0_i32_0 : i32, i32
  }
  func.func @transform_2(%arg0: i32) -> (i32, i32) {
    %c0_i32 = arith.constant 0 : i32
    %c0_i32_0 = arith.constant 0 : i32
    %c0_i32_1 = arith.constant 0 : i32
    return %c0_i32, %c0_i32_0 : i32, i32
  }
  func.func @transform_3(%arg0: i32) -> (i32, i32) {
    %c0_i32 = arith.constant 0 : i32
    %c0_i32_0 = arith.constant 0 : i32
    %c0_i32_1 = arith.constant 0 : i32
    return %c0_i32, %c0_i32_0 : i32, i32
  }
  func.func @transform_4(%arg0: i32) -> (i32, i32, i32) {
    %c0_i32 = arith.constant 0 : i32
    %c0_i32_0 = arith.constant 0 : i32
    %c0_i32_1 = arith.constant 0 : i32
    return %arg0, %c0_i32, %c0_i32_0 : i32, i32, i32
  }
  func.func @transform_5(%arg0: i32) -> (i32, i32, i32) {
    %c0_i32 = arith.constant 0 : i32
    %c0_i32_0 = arith.constant 0 : i32
    %c0_i32_1 = arith.constant 0 : i32
    return %arg0, %c0_i32, %c0_i32_0 : i32, i32, i32
  }
  func.func @transform_6(%arg0: i32) -> (i32, i32, i32) {
    %c0_i32 = arith.constant 0 : i32
    %c0_i32_0 = arith.constant 0 : i32
    %c0_i32_1 = arith.constant 0 : i32
    return %arg0, %c0_i32, %c0_i32_0 : i32, i32, i32
  }
  func.func @transform_7(%arg0: i32) -> (i32, i32) {
    %c0_i32 = arith.constant 0 : i32
    %c0_i32_0 = arith.constant 0 : i32
    %c0_i32_1 = arith.constant 0 : i32
    return %c0_i32, %c0_i32_0 : i32, i32
  }
  func.func @transform_8(%arg0: i32) -> (i32, i32) {
    %c0_i32 = arith.constant 0 : i32
    %c0_i32_0 = arith.constant 0 : i32
    %c0_i32_1 = arith.constant 0 : i32
    return %c0_i32, %c0_i32_0 : i32, i32
  }
  func.func @transform_9(%arg0: i32) -> (i32, i32) {
    %c0_i32 = arith.constant 0 : i32
    %c0_i32_0 = arith.constant 0 : i32
    %c0_i32_1 = arith.constant 0 : i32
    return %c0_i32, %c0_i32_0 : i32, i32
  }
}

</mosaic_0001>

<llo_original>
// kernel: mini_resnet_forward.1
$region0: #{mini_resnet_forward.1}
  #allocation0 [shape = 'u32[]', space=smem, size = 0x4, offset = 0x4, fixed_abs, tag = 'smem constant byte address 0x4 - core index']
  #allocation1 [shape = 'u32[72,128]{1,0:T(1,128)}', space=vmem, size = 0x9000, scoped, tag = 'internal scratch']
  #allocation2 [shape = 'f32[2,10,10,64]{3,2,1,0:T(8,128)}', space=vmem, size = 0x28000, scoped, tag = 'scratch operand']
  #allocation3 [shape = 'f32[2,10,10,64]{3,2,1,0:T(8,128)}', space=vmem, size = 0x28000, scoped, tag = 'scratch operand']
  #allocation4 [shape = 'f32[2,18,18,8]{3,2,1,0:T(8,128)}', space=vmem, size = 0x6c000, scoped, tag = 'scratch operand']
  #allocation5 [shape = 'f32[512,72]{1,0:T(8,128)}', space=vmem, size = 0x40000, scoped, tag = 'scratch operand']
  #allocation6 [shape = 'f32[128,576]{1,0:T(8,128)}', space=vmem, size = 0x50000, scoped, tag = 'scratch operand']
  %s0 = inlined_call_operand.vmem [shape: f32[2,16,16,8], index: 0, kind: input, shape index: {}]
  %s1 = inlined_call_operand.vmem [shape: f32[72,64], index: 1, kind: input, shape index: {}]
  %s2 = inlined_call_operand.vmem [shape: f32[1,64], index: 2, kind: input, shape index: {}]
  %s3 = inlined_call_operand.vmem [shape: f32[1,64], index: 3, kind: input, shape index: {}]
  %s4 = inlined_call_operand.vmem [shape: f32[12,576,64], index: 4, kind: input, shape index: {}]
  %s5 = inlined_call_operand.vmem [shape: f32[12,1,64], index: 5, kind: input, shape index: {}]
  %s6 = inlined_call_operand.vmem [shape: f32[12,1,64], index: 6, kind: input, shape index: {}]
  %s7 = inlined_call_operand.vmem [shape: f32[64,10], index: 7, kind: input, shape index: {}]
  %s8 = inlined_call_operand.vmem [shape: f32[1,10], index: 8, kind: input, shape index: {}]
  %s9 = inlined_call_operand.hbm [shape: f32[2,10], index: 9, kind: output, shape index: {}]
  %s10 = sld [smem:[#allocation0]]
  $region77: #{mini_resnet_forward.1} parent=0
    _
  %s12 = ssub.s32 1, %s10
  %s13 = scalar_select 0, %s12, %s10
  $region1: #{mini_resnet_forward.1} parent=0
    #allocation7 [shape = 'u8[1024]{0}', space=vmem, size = 0x400, scoped, tag = 'output window, operand 0, single buffered']
    #allocation8 [shape = 's32[2]{0}', space=sflag, size = 0x8, scoped, tag = 'scoped memory for mini_resnet_forward.1']
    %14 = vsyncpa [#allocation8], 0
    loop: start=0, step=1, limit=8
    $region2: #{mini_resnet_forward.1} parent=1 // loop_pre_header
      _
    $region3: #{mini_resnet_forward.1} parent=1 // loop_header
      %s16 = sphi 0, %s20
      %p17 = scmp.ge.s32.totalorder %s16, 8
      %s24 = sphi 0, %s24
      %s26 = sphi 0, %s24
      %s27 = sphi 0, %s26
      %s41 = sphi 0, %s27
      %s45 = sphi 0, %s45
      %s47 = sphi 0, %s45
      %s48 = sphi 0, %s47
      %s62 = sphi 0, %s48
      %s66 = sphi 0, %s66
      %s68 = sphi 0, %s66
      %s69 = sphi 0, %s68
      %s83 = sphi 0, %s69
      %s87 = sphi 0, %s87
      %s89 = sphi 0, %s87
      %s90 = sphi 0, %s89
      %s104 = sphi 0, %s90
      %s110 = sphi 0, %s112
      %s113 = sphi 0, %s110
      %s114 = sphi 0, %s113
      %s130 = sphi 0, %s114
      %s136 = sphi 0, %s138
      %s139 = sphi 0, %s136
      %s140 = sphi 0, %s139
      %s156 = sphi 0, %s140
      %s162 = sphi 0, %s164
      %s165 = sphi 0, %s162
      %s166 = sphi 0, %s165
      %s182 = sphi 0, %s166
      %s186 = sphi 0, %s186
      %s188 = sphi 0, %s186
      %s189 = sphi 0, %s188
      %s203 = sphi 0, %s189
      %s207 = sphi 0, %s207
      %s209 = sphi 0, %s207
      %s210 = sphi 0, %s209
      %s224 = sphi 0, %s210
      %s228 = sphi 0, %s228
      %s230 = sphi 0, %s228
      %s231 = sphi 0, %s230
      %s245 = sphi 0, %s231
    $region4: #{mini_resnet_forward.1} parent=1 // loop_header_branch
      %19 = sbr.rel (%p17) target = $region8
    $region5: #{mini_resnet_forward.1} parent=1 // loop_body
      %s21 = ssub.s32 %s16, 1
      %s22 = ssub.s32 %s16, 2
      %s23 = sadd.s32 %s16, 1
      %s25 = sadd.s32 %s24, 1
      %p28 = scmp.eq.s32.totalorder %s16, 5
      %p29 = scmp.ne.s32.totalorder %s24, %s26
      %p30 = scmp.eq.s32.totalorder %s16, 0
      %p31 = por %p29, %p30
      %p32 = scmp.ne.s32.totalorder %s24, %s26
      %p33 = scmp.eq.s32.totalorder %s21, 5
      %p34 = por %p32, %p33
      %p35 = scmp.ne.s32.totalorder %s26, %s27
      %p36 = scmp.eq.s32.totalorder %s21, 0
      %p37 = por %p35, %p36
      %p38 = scmp.ne.s32.totalorder %s26, %s27
      %p39 = scmp.eq.s32.totalorder %s22, 5
      %p40 = por %p38, %p39
      %p42 = scmp.ne.s32.totalorder %s27, %s41
      %p43 = scmp.eq.s32.totalorder %s22, 0
      %p44 = por %p42, %p43
      %s46 = sadd.s32 %s45, 1
      %p49 = scmp.eq.s32.totalorder %s16, 5
      %p50 = scmp.ne.s32.totalorder %s45, %s47
      %p51 = scmp.eq.s32.totalorder %s16, 0
      %p52 = por %p50, %p51
      %p53 = scmp.ne.s32.totalorder %s45, %s47
      %p54 = scmp.eq.s32.totalorder %s21, 5
      %p55 = por %p53, %p54
      %p56 = scmp.ne.s32.totalorder %s47, %s48
      %p57 = scmp.eq.s32.totalorder %s21, 0
      %p58 = por %p56, %p57
      %p59 = scmp.ne.s32.totalorder %s47, %s48
      %p60 = scmp.eq.s32.totalorder %s22, 5
      %p61 = por %p59, %p60
      %p63 = scmp.ne.s32.totalorder %s48, %s62
      %p64 = scmp.eq.s32.totalorder %s22, 0
      %p65 = por %p63, %p64
      %s67 = sadd.s32 %s66, 1
      %p70 = scmp.eq.s32.totalorder %s16, 5
      %p71 = scmp.ne.s32.totalorder %s66, %s68
      %p72 = scmp.eq.s32.totalorder %s16, 0
      %p73 = por %p71, %p72
      %p74 = scmp.ne.s32.totalorder %s66, %s68
      %p75 = scmp.eq.s32.totalorder %s21, 5
      %p76 = por %p74, %p75
      %p77 = scmp.ne.s32.totalorder %s68, %s69
      %p78 = scmp.eq.s32.totalorder %s21, 0
      %p79 = por %p77, %p78
      %p80 = scmp.ne.s32.totalorder %s68, %s69
      %p81 = scmp.eq.s32.totalorder %s22, 5
      %p82 = por %p80, %p81
      %p84 = scmp.ne.s32.totalorder %s69, %s83
      %p85 = scmp.eq.s32.totalorder %s22, 0
      %p86 = por %p84, %p85
      %s88 = sadd.s32 %s87, 1
      %p91 = scmp.eq.s32.totalorder %s16, 5
      %p92 = scmp.ne.s32.totalorder %s87, %s89
      %p93 = scmp.eq.s32.totalorder %s16, 0
      %p94 = por %p92, %p93
      %p95 = scmp.ne.s32.totalorder %s87, %s89
      %p96 = scmp.eq.s32.totalorder %s21, 5
      %p97 = por %p95, %p96
      %p98 = scmp.ne.s32.totalorder %s89, %s90
      %p99 = scmp.eq.s32.totalorder %s21, 0
      %p100 = por %p98, %p99
      %p101 = scmp.ne.s32.totalorder %s89, %s90
      %p102 = scmp.eq.s32.totalorder %s22, 5
      %p103 = por %p101, %p102
      %p105 = scmp.ne.s32.totalorder %s90, %s104
      %p106 = scmp.eq.s32.totalorder %s22, 0
      %p107 = por %p105, %p106
      %s108 = ssub.s32 %s16, %s23
      %p109 = scmp.eq.s32.totalorder %s108, 0
      %s111 = sadd.s32 %s110, 1
      %s112 = scalar_select %p109, %s110, %s111
      %p115 = pneg %p109
      %p116 = scmp.eq.s32.totalorder %s16, 5
      %p117 = por %p115, %p116
      %p118 = scmp.ne.s32.totalorder %s110, %s113
      %p119 = scmp.eq.s32.totalorder %s16, 0
      %p120 = por %p118, %p119
      %p121 = scmp.ne.s32.totalorder %s110, %s113
      %p122 = scmp.eq.s32.totalorder %s21, 5
      %p123 = por %p121, %p122
      %p124 = scmp.ne.s32.totalorder %s113, %s114
      %p125 = scmp.eq.s32.totalorder %s21, 0
      %p126 = por %p124, %p125
      %p127 = scmp.ne.s32.totalorder %s113, %s114
      %p128 = scmp.eq.s32.totalorder %s22, 5
      %p129 = por %p127, %p128
      %p131 = scmp.ne.s32.totalorder %s114, %s130
      %p132 = scmp.eq.s32.totalorder %s22, 0
      %p133 = por %p131, %p132
      %s134 = ssub.s32 %s16, %s23
      %p135 = scmp.eq.s32.totalorder %s134, 0
      %s137 = sadd.s32 %s136, 1
      %s138 = scalar_select %p135, %s136, %s137
      %p141 = pneg %p135
      %p142 = scmp.eq.s32.totalorder %s16, 5
      %p143 = por %p141, %p142
      %p144 = scmp.ne.s32.totalorder %s136, %s139
      %p145 = scmp.eq.s32.totalorder %s16, 0
      %p146 = por %p144, %p145
      %p147 = scmp.ne.s32.totalorder %s136, %s139
      %p148 = scmp.eq.s32.totalorder %s21, 5
      %p149 = por %p147, %p148
      %p150 = scmp.ne.s32.totalorder %s139, %s140
      %p151 = scmp.eq.s32.totalorder %s21, 0
      %p152 = por %p150, %p151
      %p153 = scmp.ne.s32.totalorder %s139, %s140
      %p154 = scmp.eq.s32.totalorder %s22, 5
      %p155 = por %p153, %p154
      %p157 = scmp.ne.s32.totalorder %s140, %s156
      %p158 = scmp.eq.s32.totalorder %s22, 0
      %p159 = por %p157, %p158
      %s160 = ssub.s32 %s16, %s23
      %p161 = scmp.eq.s32.totalorder %s160, 0
      %s163 = sadd.s32 %s162, 1
      %s164 = scalar_select %p161, %s162, %s163
      %p167 = pneg %p161
      %p168 = scmp.eq.s32.totalorder %s16, 5
      %p169 = por %p167, %p168
      %p170 = scmp.ne.s32.totalorder %s162, %s165
      %p171 = scmp.eq.s32.totalorder %s16, 0
      %p172 = por %p170, %p171
      %p173 = scmp.ne.s32.totalorder %s162, %s165
      %p174 = scmp.eq.s32.totalorder %s21, 5
      %p175 = por %p173, %p174
      %p176 = scmp.ne.s32.totalorder %s165, %s166
      %p177 = scmp.eq.s32.totalorder %s21, 0
      %p178 = por %p176, %p177
      %p179 = scmp.ne.s32.totalorder %s165, %s166
      %p180 = scmp.eq.s32.totalorder %s22, 5
      %p181 = por %p179, %p180
      %p183 = scmp.ne.s32.totalorder %s166, %s182
      %p184 = scmp.eq.s32.totalorder %s22, 0
      %p185 = por %p183, %p184
      %s187 = sadd.s32 %s186, 1
      %p190 = scmp.eq.s32.totalorder %s16, 5
      %p191 = scmp.ne.s32.totalorder %s186, %s188
      %p192 = scmp.eq.s32.totalorder %s16, 0
      %p193 = por %p191, %p192
      %p194 = scmp.ne.s32.totalorder %s186, %s188
      %p195 = scmp.eq.s32.totalorder %s21, 5
      %p196 = por %p194, %p195
      %p197 = scmp.ne.s32.totalorder %s188, %s189
      %p198 = scmp.eq.s32.totalorder %s21, 0
      %p199 = por %p197, %p198
      %p200 = scmp.ne.s32.totalorder %s188, %s189
      %p201 = scmp.eq.s32.totalorder %s22, 5
      %p202 = por %p200, %p201
      %p204 = scmp.ne.s32.totalorder %s189, %s203
      %p205 = scmp.eq.s32.totalorder %s22, 0
      %p206 = por %p204, %p205
      %s208 = sadd.s32 %s207, 1
      %p211 = scmp.eq.s32.totalorder %s16, 5
      %p212 = scmp.ne.s32.totalorder %s207, %s209
      %p213 = scmp.eq.s32.totalorder %s16, 0
      %p214 = por %p212, %p213
      %p215 = scmp.ne.s32.totalorder %s207, %s209
      %p216 = scmp.eq.s32.totalorder %s21, 5
      %p217 = por %p215, %p216
      %p218 = scmp.ne.s32.totalorder %s209, %s210
      %p219 = scmp.eq.s32.totalorder %s21, 0
      %p220 = por %p218, %p219
      %p221 = scmp.ne.s32.totalorder %s209, %s210
      %p222 = scmp.eq.s32.totalorder %s22, 5
      %p223 = por %p221, %p222
      %p225 = scmp.ne.s32.totalorder %s210, %s224
      %p226 = scmp.eq.s32.totalorder %s22, 0
      %p227 = por %p225, %p226
      %s229 = sadd.s32 %s228, 1
      %p232 = scmp.eq.s32.totalorder %s16, 5
      %p233 = scmp.ne.s32.totalorder %s228, %s230
      %p234 = scmp.eq.s32.totalorder %s16, 0
      %p235 = por %p233, %p234
      %p236 = scmp.ne.s32.totalorder %s228, %s230
      %p237 = scmp.eq.s32.totalorder %s21, 5
      %p238 = por %p236, %p237
      %p239 = scmp.ne.s32.totalorder %s230, %s231
      %p240 = scmp.eq.s32.totalorder %s21, 0
      %p241 = por %p239, %p240
      %p242 = scmp.ne.s32.totalorder %s230, %s231
      %p243 = scmp.eq.s32.totalorder %s22, 5
      %p244 = por %p242, %p243
      %p246 = scmp.ne.s32.totalorder %s231, %s245
      %p247 = scmp.eq.s32.totalorder %s22, 0
      %p248 = por %p246, %p247
      %p249 = scmp.le.s32.totalorder 1, %s16
      %p250 = scmp.lt.s32.totalorder %s16, 7
      %p251 = pnand %p249, %p250
      %p252 = pneg %p251
      // Predicated region
      $region9: #{mini_resnet_forward.1} parent=5 // pred_check
        _
      $region10: #{mini_resnet_forward.1} parent=5 // pred_check_branch
        %254 = sbr.rel (%p251) target = $region12
      $region11: #{mini_resnet_forward.1} parent=5 // pred_region
        %s255 = ssub.s32 %s16, 1
        // Predicated region
        $region13: #{mini_resnet_forward.1} parent=11 // pred_check
          %p256 = pneg %p37
        $region14: #{mini_resnet_forward.1} parent=11 // pred_check_branch
          %258 = sbr.rel (%p256) target = $region16
        $region15: #{mini_resnet_forward.1} parent=11 // pred_region
          _
        $region16: #{mini_resnet_forward.1} parent=11 // pred_fallthru
          _
        // Predicated region
        $region17: #{mini_resnet_forward.1} parent=11 // pred_check
          %p259 = pneg %p58
        $region18: #{mini_resnet_forward.1} parent=11 // pred_check_branch
          %261 = sbr.rel (%p259) target = $region20
        $region19: #{mini_resnet_forward.1} parent=11 // pred_region
          _
        $region20: #{mini_resnet_forward.1} parent=11 // pred_fallthru
          _
        // Predicated region
        $region21: #{mini_resnet_forward.1} parent=11 // pred_check
          %p262 = pneg %p79
        $region22: #{mini_resnet_forward.1} parent=11 // pred_check_branch
          %264 = sbr.rel (%p262) target = $region24
        $region23: #{mini_resnet_forward.1} parent=11 // pred_region
          _
        $region24: #{mini_resnet_forward.1} parent=11 // pred_fallthru
          _
        // Predicated region
        $region25: #{mini_resnet_forward.1} parent=11 // pred_check
          %p265 = pneg %p100
        $region26: #{mini_resnet_forward.1} parent=11 // pred_check_branch
          %267 = sbr.rel (%p265) target = $region28
        $region27: #{mini_resnet_forward.1} parent=11 // pred_region
          _
        $region28: #{mini_resnet_forward.1} parent=11 // pred_fallthru
          _
        // Predicated region
        $region29: #{mini_resnet_forward.1} parent=11 // pred_check
          %p268 = pneg %p199
        $region30: #{mini_resnet_forward.1} parent=11 // pred_check_branch
          %270 = sbr.rel (%p268) target = $region32
        $region31: #{mini_resnet_forward.1} parent=11 // pred_region
          _
        $region32: #{mini_resnet_forward.1} parent=11 // pred_fallthru
          _
        // Predicated region
        $region33: #{mini_resnet_forward.1} parent=11 // pred_check
          %p271 = pneg %p220
        $region34: #{mini_resnet_forward.1} parent=11 // pred_check_branch
          %273 = sbr.rel (%p271) target = $region36
        $region35: #{mini_resnet_forward.1} parent=11 // pred_region
          _
        $region36: #{mini_resnet_forward.1} parent=11 // pred_fallthru
          _
      $region12: #{mini_resnet_forward.1} parent=5 // pred_fallthru
        _
      %p274 = scmp.lt.s32.totalorder %s16, 6
      // Predicated region
      $region37: #{mini_resnet_forward.1} parent=5 // pred_check
        %p275 = pneg %p274
      $region38: #{mini_resnet_forward.1} parent=5 // pred_check_branch
        %277 = sbr.rel (%p275) target = $region40
      $region39: #{mini_resnet_forward.1} parent=5 // pred_region
        // Predicated region
        $region41: #{mini_resnet_forward.1} parent=39 // pred_check
          %p278 = pneg %p120
        $region42: #{mini_resnet_forward.1} parent=39 // pred_check_branch
          %280 = sbr.rel (%p278) target = $region44
        $region43: #{mini_resnet_forward.1} parent=39 // pred_region
          %s281 = smul.u32 2, %s16
          %p282 = scmp.lt.s32.totalorder %s281, 11
          %s283 = scalar_select %p282, %s281, 11
          %s284 = smul.addr %s283, 72
          %s285 = smul.addr %s284, 8
          %s286 = scalar_lea.vmem %s4, %s285
          %s287 = smul.u32 2, %s16
        $region44: #{mini_resnet_forward.1} parent=39 // pred_fallthru
          _
        // Predicated region
        $region45: #{mini_resnet_forward.1} parent=39 // pred_check
          %p288 = pneg %p146
        $region46: #{mini_resnet_forward.1} parent=39 // pred_check_branch
          %290 = sbr.rel (%p288) target = $region48
        $region47: #{mini_resnet_forward.1} parent=39 // pred_region
          %s291 = smul.u32 2, %s16
          %p292 = scmp.lt.s32.totalorder %s291, 11
          %s293 = scalar_select %p292, %s291, 11
          %s294 = scalar_lea.vmem %s5, %s293
          %s295 = smul.u32 2, %s16
        $region48: #{mini_resnet_forward.1} parent=39 // pred_fallthru
          _
        // Predicated region
        $region49: #{mini_resnet_forward.1} parent=39 // pred_check
          %p296 = pneg %p172
        $region50: #{mini_resnet_forward.1} parent=39 // pred_check_branch
          %298 = sbr.rel (%p296) target = $region52
        $region51: #{mini_resnet_forward.1} parent=39 // pred_region
          %s299 = smul.u32 2, %s16
          %p300 = scmp.lt.s32.totalorder %s299, 11
          %s301 = scalar_select %p300, %s299, 11
          %s302 = scalar_lea.vmem %s6, %s301
          %s303 = smul.u32 2, %s16
        $region52: #{mini_resnet_forward.1} parent=39 // pred_fallthru
          _
      $region40: #{mini_resnet_forward.1} parent=5 // pred_fallthru
        _
      %p304 = scmp.le.s32.totalorder 1, %s16
      %p305 = scmp.lt.s32.totalorder %s16, 7
      %p306 = pnand %p304, %p305
      %p307 = pneg %p306
      // Predicated region
      $region53: #{mini_resnet_forward.1} parent=5 // pred_check
        _
      $region54: #{mini_resnet_forward.1} parent=5 // pred_check_branch
        %309 = sbr.rel (%p306) target = $region56
      $region55: #{mini_resnet_forward.1} parent=5 // pred_region
        %s310 = ssub.s32 %s16, 1
        %p311 = pneg %p37
        %p312 = pneg %p34
        %p313 = pneg %p58
        %p314 = pneg %p55
        %p315 = pneg %p79
        %p316 = pneg %p76
        %p317 = pneg %p100
        %p318 = pneg %p97
        %s319 = smul.u32 2, %s21
        %p320 = scmp.lt.s32.totalorder %s319, 11
        %s321 = scalar_select %p320, %s319, 11
        %s322 = smul.addr %s321, 72
        %s323 = smul.addr %s322, 8
        %s324 = scalar_lea.vmem %s4, %s323
        %p325 = pneg %p126
        %p326 = pneg %p123
        %s327 = smul.u32 2, %s21
        %p328 = scmp.lt.s32.totalorder %s327, 11
        %s329 = scalar_select %p328, %s327, 11
        %s330 = scalar_lea.vmem %s5, %s329
        %p331 = pneg %p152
        %p332 = pneg %p149
        %s333 = smul.u32 2, %s21
        %p334 = scmp.lt.s32.totalorder %s333, 11
        %s335 = scalar_select %p334, %s333, 11
        %s336 = scalar_lea.vmem %s6, %s335
        %p337 = pneg %p178
        %p338 = pneg %p175
        %p339 = pneg %p199
        %p340 = pneg %p196
        %p341 = pneg %p220
        %p342 = pneg %p217
        %p343 = pneg %p241
        %p344 = pneg %p238
        %s345 = smul.u32 2, %s21
        %p346 = scmp.lt.s32.totalorder %s345, 11
        %s347 = scalar_select %p346, %s345, 11
        %s348 = smul.addr %s347, 72
        %s349 = smul.addr %s348, 8
        %s350 = scalar_lea.vmem %s4, %s349
        %s351 = smul.u32 2, %s21
        %s352 = smul.u32 2, %s21
        %p353 = scmp.lt.s32.totalorder %s352, 11
        %s354 = scalar_select %p353, %s352, 11
        %s355 = scalar_lea.vmem %s5, %s354
        %s356 = smul.u32 2, %s21
        %s357 = smul.u32 2, %s21
        %p358 = scmp.lt.s32.totalorder %s357, 11
        %s359 = scalar_select %p358, %s357, 11
        %s360 = scalar_lea.vmem %s6, %s359
        %s361 = smul.u32 2, %s21
        %p362 = scmp.eq.s32.totalorder %s21, 0
        // Predicated region
        $region57: #{mini_resnet_forward.1} parent=55 // pred_check
          %p363 = pneg %p362
        $region58: #{mini_resnet_forward.1} parent=55 // pred_check_branch
          %365 = sbr.rel (%p363) target = $region60
        $region59: #{mini_resnet_forward.1} parent=55 // pred_region
          %vm366 = vcmask 523264
          %367 = vst.msk [vmem:[#allocation2] sm:$0xff] %vm366, 0.0
          %vm368 = vcmask 517120
          %369 = vst.msk [vmem:[#allocation2 + $0x8] sm:$0x3] %vm368, 0.0
          %370 = vst.msk [vmem:[#allocation2 + $0x10] sm:$0xff] %vm366, 0.0
          %371 = vst.msk [vmem:[#allocation2 + $0x18] sm:$0x3] %vm368, 0.0
          %372 = vst.msk [vmem:[#allocation2 + $0x20] sm:$0xff] %vm366, 0.0
          %373 = vst.msk [vmem:[#allocation2 + $0x28] sm:$0x3] %vm368, 0.0
          %374 = vst.msk [vmem:[#allocation2 + $0x30] sm:$0xff] %vm366, 0.0
          %375 = vst.msk [vmem:[#allocation2 + $0x38] sm:$0x3] %vm368, 0.0
          %376 = vst.msk [vmem:[#allocation2 + $0x40] sm:$0xff] %vm366, 0.0
          %377 = vst.msk [vmem:[#allocation2 + $0x48] sm:$0x3] %vm368, 0.0
          %378 = vst.msk [vmem:[#allocation2 + $0x50] sm:$0xff] %vm366, 0.0
          %379 = vst.msk [vmem:[#allocation2 + $0x58] sm:$0x3] %vm368, 0.0
          %380 = vst.msk [vmem:[#allocation2 + $0x60] sm:$0xff] %vm366, 0.0
          %381 = vst.msk [vmem:[#allocation2 + $0x68] sm:$0x3] %vm368, 0.0
          %382 = vst.msk [vmem:[#allocation2 + $0x70] sm:$0xff] %vm366, 0.0
          %383 = vst.msk [vmem:[#allocation2 + $0x78] sm:$0x3] %vm368, 0.0
          %384 = vst.msk [vmem:[#allocation2 + $0x80] sm:$0xff] %vm366, 0.0
          %385 = vst.msk [vmem:[#allocation2 + $0x88] sm:$0x3] %vm368, 0.0
          %386 = vst.msk [vmem:[#allocation2 + $0x90] sm:$0xff] %vm366, 0.0
          %387 = vst.msk [vmem:[#allocation2 + $0x98] sm:$0x3] %vm368, 0.0
          %388 = vst.msk [vmem:[#allocation2 + $0xa0] sm:$0xff] %vm366, 0.0
          %389 = vst.msk [vmem:[#allocation2 + $0xa8] sm:$0x3] %vm368, 0.0
          %390 = vst.msk [vmem:[#allocation2 + $0xb0] sm:$0xff] %vm366, 0.0
          %391 = vst.msk [vmem:[#allocation2 + $0xb8] sm:$0x3] %vm368, 0.0
          %392 = vst.msk [vmem:[#allocation2 + $0xc0] sm:$0xff] %vm366, 0.0
          %393 = vst.msk [vmem:[#allocation2 + $0xc8] sm:$0x3] %vm368, 0.0
          %394 = vst.msk [vmem:[#allocation2 + $0xd0] sm:$0xff] %vm366, 0.0
          %395 = vst.msk [vmem:[#allocation2 + $0xd8] sm:$0x3] %vm368, 0.0
          %396 = vst.msk [vmem:[#allocation2 + $0xe0] sm:$0xff] %vm366, 0.0
          %397 = vst.msk [vmem:[#allocation2 + $0xe8] sm:$0x3] %vm368, 0.0
          %398 = vst.msk [vmem:[#allocation2 + $0xf0] sm:$0xff] %vm366, 0.0
          %399 = vst.msk [vmem:[#allocation2 + $0xf8] sm:$0x3] %vm368, 0.0
          %400 = vst.msk [vmem:[#allocation2 + $0x100] sm:$0xff] %vm366, 0.0
          %401 = vst.msk [vmem:[#allocation2 + $0x108] sm:$0x3] %vm368, 0.0
          %402 = vst.msk [vmem:[#allocation2 + $0x110] sm:$0xff] %vm366, 0.0
          %403 = vst.msk [vmem:[#allocation2 + $0x118] sm:$0x3] %vm368, 0.0
          %404 = vst.msk [vmem:[#allocation2 + $0x120] sm:$0xff] %vm366, 0.0
          %405 = vst.msk [vmem:[#allocation2 + $0x128] sm:$0x3] %vm368, 0.0
          %406 = vst.msk [vmem:[#allocation2 + $0x130] sm:$0xff] %vm366, 0.0
          %407 = vst.msk [vmem:[#allocation2 + $0x138] sm:$0x3] %vm368, 0.0
          %408 = vst.msk [vmem:[#allocation3] sm:$0xff] %vm366, 0.0
          %409 = vst.msk [vmem:[#allocation3 + $0x8] sm:$0x3] %vm368, 0.0
          %410 = vst.msk [vmem:[#allocation3 + $0x10] sm:$0xff] %vm366, 0.0
          %411 = vst.msk [vmem:[#allocation3 + $0x18] sm:$0x3] %vm368, 0.0
          %412 = vst.msk [vmem:[#allocation3 + $0x20] sm:$0xff] %vm366, 0.0
          %413 = vst.msk [vmem:[#allocation3 + $0x28] sm:$0x3] %vm368, 0.0
          %414 = vst.msk [vmem:[#allocation3 + $0x30] sm:$0xff] %vm366, 0.0
          %415 = vst.msk [vmem:[#allocation3 + $0x38] sm:$0x3] %vm368, 0.0
          %416 = vst.msk [vmem:[#allocation3 + $0x40] sm:$0xff] %vm366, 0.0
          %417 = vst.msk [vmem:[#allocation3 + $0x48] sm:$0x3] %vm368, 0.0
          %418 = vst.msk [vmem:[#allocation3 + $0x50] sm:$0xff] %vm366, 0.0
          %419 = vst.msk [vmem:[#allocation3 + $0x58] sm:$0x3] %vm368, 0.0
          %420 = vst.msk [vmem:[#allocation3 + $0x60] sm:$0xff] %vm366, 0.0
          %421 = vst.msk [vmem:[#allocation3 + $0x68] sm:$0x3] %vm368, 0.0
          %422 = vst.msk [vmem:[#allocation3 + $0x70] sm:$0xff] %vm366, 0.0
          %423 = vst.msk [vmem:[#allocation3 + $0x78] sm:$0x3] %vm368, 0.0
          %424 = vst.msk [vmem:[#allocation3 + $0x80] sm:$0xff] %vm366, 0.0
          %425 = vst.msk [vmem:[#allocation3 + $0x88] sm:$0x3] %vm368, 0.0
          %426 = vst.msk [vmem:[#allocation3 + $0x90] sm:$0xff] %vm366, 0.0
          %427 = vst.msk [vmem:[#allocation3 + $0x98] sm:$0x3] %vm368, 0.0
          %428 = vst.msk [vmem:[#allocation3 + $0xa0] sm:$0xff] %vm366, 0.0
          %429 = vst.msk [vmem:[#allocation3 + $0xa8] sm:$0x3] %vm368, 0.0
          %430 = vst.msk [vmem:[#allocation3 + $0xb0] sm:$0xff] %vm366, 0.0
          %431 = vst.msk [vmem:[#allocation3 + $0xb8] sm:$0x3] %vm368, 0.0
          %432 = vst.msk [vmem:[#allocation3 + $0xc0] sm:$0xff] %vm366, 0.0
          %433 = vst.msk [vmem:[#allocation3 + $0xc8] sm:$0x3] %vm368, 0.0
          %434 = vst.msk [vmem:[#allocation3 + $0xd0] sm:$0xff] %vm366, 0.0
          %435 = vst.msk [vmem:[#allocation3 + $0xd8] sm:$0x3] %vm368, 0.0
          %436 = vst.msk [vmem:[#allocation3 + $0xe0] sm:$0xff] %vm366, 0.0
          %437 = vst.msk [vmem:[#allocation3 + $0xe8] sm:$0x3] %vm368, 0.0
          %438 = vst.msk [vmem:[#allocation3 + $0xf0] sm:$0xff] %vm366, 0.0
          %439 = vst.msk [vmem:[#allocation3 + $0xf8] sm:$0x3] %vm368, 0.0
          %440 = vst.msk [vmem:[#allocation3 + $0x100] sm:$0xff] %vm366, 0.0
          %441 = vst.msk [vmem:[#allocation3 + $0x108] sm:$0x3] %vm368, 0.0
          %442 = vst.msk [vmem:[#allocation3 + $0x110] sm:$0xff] %vm366, 0.0
          %443 = vst.msk [vmem:[#allocation3 + $0x118] sm:$0x3] %vm368, 0.0
          %444 = vst.msk [vmem:[#allocation3 + $0x120] sm:$0xff] %vm366, 0.0
          %445 = vst.msk [vmem:[#allocation3 + $0x128] sm:$0x3] %vm368, 0.0
          %446 = vst.msk [vmem:[#allocation3 + $0x130] sm:$0xff] %vm366, 0.0
          %447 = vst.msk [vmem:[#allocation3 + $0x138] sm:$0x3] %vm368, 0.0
          %vm448 = vcmask 64512
          %449 = vst.msk [vmem:[#allocation4] sm:$0xff] %vm448, 0.0
          %450 = vst.msk [vmem:[#allocation4 + $0x8] sm:$0xff] %vm448, 0.0
          %vm451 = vcmask 58368
          %452 = vst.msk [vmem:[#allocation4 + $0x10] sm:$0x3] %vm451, 0.0
          %453 = vst.msk [vmem:[#allocation4 + $0x18] sm:$0xff] %vm448, 0.0
          %454 = vst.msk [vmem:[#allocation4 + $0x20] sm:$0xff] %vm448, 0.0
          %455 = vst.msk [vmem:[#allocation4 + $0x28] sm:$0x3] %vm451, 0.0
          %456 = vst.msk [vmem:[#allocation4 + $0x30] sm:$0xff] %vm448, 0.0
          %457 = vst.msk [vmem:[#allocation4 + $0x38] sm:$0xff] %vm448, 0.0
          %458 = vst.msk [vmem:[#allocation4 + $0x40] sm:$0x3] %vm451, 0.0
          %459 = vst.msk [vmem:[#allocation4 + $0x48] sm:$0xff] %vm448, 0.0
          %460 = vst.msk [vmem:[#allocation4 + $0x50] sm:$0xff] %vm448, 0.0
          %461 = vst.msk [vmem:[#allocation4 + $0x58] sm:$0x3] %vm451, 0.0
          %462 = vst.msk [vmem:[#allocation4 + $0x60] sm:$0xff] %vm448, 0.0
          %463 = vst.msk [vmem:[#allocation4 + $0x68] sm:$0xff] %vm448, 0.0
          %464 = vst.msk [vmem:[#allocation4 + $0x70] sm:$0x3] %vm451, 0.0
          %465 = vst.msk [vmem:[#allocation4 + $0x78] sm:$0xff] %vm448, 0.0
          %466 = vst.msk [vmem:[#allocation4 + $0x80] sm:$0xff] %vm448, 0.0
          %467 = vst.msk [vmem:[#allocation4 + $0x88] sm:$0x3] %vm451, 0.0
          %468 = vst.msk [vmem:[#allocation4 + $0x90] sm:$0xff] %vm448, 0.0
          %469 = vst.msk [vmem:[#allocation4 + $0x98] sm:$0xff] %vm448, 0.0
          %470 = vst.msk [vmem:[#allocation4 + $0xa0] sm:$0x3] %vm451, 0.0
          %471 = vst.msk [vmem:[#allocation4 + $0xa8] sm:$0xff] %vm448, 0.0
          %472 = vst.msk [vmem:[#allocation4 + $0xb0] sm:$0xff] %vm448, 0.0
          %473 = vst.msk [vmem:[#allocation4 + $0xb8] sm:$0x3] %vm451, 0.0
          %474 = vst.msk [vmem:[#allocation4 + $0xc0] sm:$0xff] %vm448, 0.0
          %475 = vst.msk [vmem:[#allocation4 + $0xc8] sm:$0xff] %vm448, 0.0
          %476 = vst.msk [vmem:[#allocation4 + $0xd0] sm:$0x3] %vm451, 0.0
          %477 = vst.msk [vmem:[#allocation4 + $0xd8] sm:$0xff] %vm448, 0.0
          %478 = vst.msk [vmem:[#allocation4 + $0xe0] sm:$0xff] %vm448, 0.0
          %479 = vst.msk [vmem:[#allocation4 + $0xe8] sm:$0x3] %vm451, 0.0
          %480 = vst.msk [vmem:[#allocation4 + $0xf0] sm:$0xff] %vm448, 0.0
          %481 = vst.msk [vmem:[#allocation4 + $0xf8] sm:$0xff] %vm448, 0.0
          %482 = vst.msk [vmem:[#allocation4 + $0x100] sm:$0x3] %vm451, 0.0
          %483 = vst.msk [vmem:[#allocation4 + $0x108] sm:$0xff] %vm448, 0.0
          %484 = vst.msk [vmem:[#allocation4 + $0x110] sm:$0xff] %vm448, 0.0
          %485 = vst.msk [vmem:[#allocation4 + $0x118] sm:$0x3] %vm451, 0.0
          %486 = vst.msk [vmem:[#allocation4 + $0x120] sm:$0xff] %vm448, 0.0
          %487 = vst.msk [vmem:[#allocation4 + $0x128] sm:$0xff] %vm448, 0.0
          %488 = vst.msk [vmem:[#allocation4 + $0x130] sm:$0x3] %vm451, 0.0
          %489 = vst.msk [vmem:[#allocation4 + $0x138] sm:$0xff] %vm448, 0.0
          %490 = vst.msk [vmem:[#allocation4 + $0x140] sm:$0xff] %vm448, 0.0
          %491 = vst.msk [vmem:[#allocation4 + $0x148] sm:$0x3] %vm451, 0.0
          %492 = vst.msk [vmem:[#allocation4 + $0x150] sm:$0xff] %vm448, 0.0
          %493 = vst.msk [vmem:[#allocation4 + $0x158] sm:$0xff] %vm448, 0.0
          %494 = vst.msk [vmem:[#allocation4 + $0x160] sm:$0x3] %vm451, 0.0
          %495 = vst.msk [vmem:[#allocation4 + $0x168] sm:$0xff] %vm448, 0.0
          %496 = vst.msk [vmem:[#allocation4 + $0x170] sm:$0xff] %vm448, 0.0
          %497 = vst.msk [vmem:[#allocation4 + $0x178] sm:$0x3] %vm451, 0.0
          %498 = vst.msk [vmem:[#allocation4 + $0x180] sm:$0xff] %vm448, 0.0
          %499 = vst.msk [vmem:[#allocation4 + $0x188] sm:$0xff] %vm448, 0.0
          %500 = vst.msk [vmem:[#allocation4 + $0x190] sm:$0x3] %vm451, 0.0
          %501 = vst.msk [vmem:[#allocation4 + $0x198] sm:$0xff] %vm448, 0.0
          %502 = vst.msk [vmem:[#allocation4 + $0x1a0] sm:$0xff] %vm448, 0.0
          %503 = vst.msk [vmem:[#allocation4 + $0x1a8] sm:$0x3] %vm451, 0.0
          %504 = vst.msk [vmem:[#allocation4 + $0x1b0] sm:$0xff] %vm448, 0.0
          %505 = vst.msk [vmem:[#allocation4 + $0x1b8] sm:$0xff] %vm448, 0.0
          %506 = vst.msk [vmem:[#allocation4 + $0x1c0] sm:$0x3] %vm451, 0.0
          %507 = vst.msk [vmem:[#allocation4 + $0x1c8] sm:$0xff] %vm448, 0.0
          %508 = vst.msk [vmem:[#allocation4 + $0x1d0] sm:$0xff] %vm448, 0.0
          %509 = vst.msk [vmem:[#allocation4 + $0x1d8] sm:$0x3] %vm451, 0.0
          %510 = vst.msk [vmem:[#allocation4 + $0x1e0] sm:$0xff] %vm448, 0.0
          %511 = vst.msk [vmem:[#allocation4 + $0x1e8] sm:$0xff] %vm448, 0.0
          %512 = vst.msk [vmem:[#allocation4 + $0x1f0] sm:$0x3] %vm451, 0.0
          %513 = vst.msk [vmem:[#allocation4 + $0x1f8] sm:$0xff] %vm448, 0.0
          %514 = vst.msk [vmem:[#allocation4 + $0x200] sm:$0xff] %vm448, 0.0
          %515 = vst.msk [vmem:[#allocation4 + $0x208] sm:$0x3] %vm451, 0.0
          %516 = vst.msk [vmem:[#allocation4 + $0x210] sm:$0xff] %vm448, 0.0
          %517 = vst.msk [vmem:[#allocation4 + $0x218] sm:$0xff] %vm448, 0.0
          %518 = vst.msk [vmem:[#allocation4 + $0x220] sm:$0x3] %vm451, 0.0
          %519 = vst.msk [vmem:[#allocation4 + $0x228] sm:$0xff] %vm448, 0.0
          %520 = vst.msk [vmem:[#allocation4 + $0x230] sm:$0xff] %vm448, 0.0
          %521 = vst.msk [vmem:[#allocation4 + $0x238] sm:$0x3] %vm451, 0.0
          %522 = vst.msk [vmem:[#allocation4 + $0x240] sm:$0xff] %vm448, 0.0
          %523 = vst.msk [vmem:[#allocation4 + $0x248] sm:$0xff] %vm448, 0.0
          %524 = vst.msk [vmem:[#allocation4 + $0x250] sm:$0x3] %vm451, 0.0
          %525 = vst.msk [vmem:[#allocation4 + $0x258] sm:$0xff] %vm448, 0.0
          %526 = vst.msk [vmem:[#allocation4 + $0x260] sm:$0xff] %vm448, 0.0
          %527 = vst.msk [vmem:[#allocation4 + $0x268] sm:$0x3] %vm451, 0.0
          %528 = vst.msk [vmem:[#allocation4 + $0x270] sm:$0xff] %vm448, 0.0
          %529 = vst.msk [vmem:[#allocation4 + $0x278] sm:$0xff] %vm448, 0.0
          %530 = vst.msk [vmem:[#allocation4 + $0x280] sm:$0x3] %vm451, 0.0
          %531 = vst.msk [vmem:[#allocation4 + $0x288] sm:$0xff] %vm448, 0.0
          %532 = vst.msk [vmem:[#allocation4 + $0x290] sm:$0xff] %vm448, 0.0
          %533 = vst.msk [vmem:[#allocation4 + $0x298] sm:$0x3] %vm451, 0.0
          %534 = vst.msk [vmem:[#allocation4 + $0x2a0] sm:$0xff] %vm448, 0.0
          %535 = vst.msk [vmem:[#allocation4 + $0x2a8] sm:$0xff] %vm448, 0.0
          %536 = vst.msk [vmem:[#allocation4 + $0x2b0] sm:$0x3] %vm451, 0.0
          %537 = vst.msk [vmem:[#allocation4 + $0x2b8] sm:$0xff] %vm448, 0.0
          %538 = vst.msk [vmem:[#allocation4 + $0x2c0] sm:$0xff] %vm448, 0.0
          %539 = vst.msk [vmem:[#allocation4 + $0x2c8] sm:$0x3] %vm451, 0.0
          %540 = vst.msk [vmem:[#allocation4 + $0x2d0] sm:$0xff] %vm448, 0.0
          %541 = vst.msk [vmem:[#allocation4 + $0x2d8] sm:$0xff] %vm448, 0.0
          %542 = vst.msk [vmem:[#allocation4 + $0x2e0] sm:$0x3] %vm451, 0.0
          %543 = vst.msk [vmem:[#allocation4 + $0x2e8] sm:$0xff] %vm448, 0.0
          %544 = vst.msk [vmem:[#allocation4 + $0x2f0] sm:$0xff] %vm448, 0.0
          %545 = vst.msk [vmem:[#allocation4 + $0x2f8] sm:$0x3] %vm451, 0.0
          %546 = vst.msk [vmem:[#allocation4 + $0x300] sm:$0xff] %vm448, 0.0
          %547 = vst.msk [vmem:[#allocation4 + $0x308] sm:$0xff] %vm448, 0.0
          %548 = vst.msk [vmem:[#allocation4 + $0x310] sm:$0x3] %vm451, 0.0
          %549 = vst.msk [vmem:[#allocation4 + $0x318] sm:$0xff] %vm448, 0.0
          %550 = vst.msk [vmem:[#allocation4 + $0x320] sm:$0xff] %vm448, 0.0
          %551 = vst.msk [vmem:[#allocation4 + $0x328] sm:$0x3] %vm451, 0.0
          %552 = vst.msk [vmem:[#allocation4 + $0x330] sm:$0xff] %vm448, 0.0
          %553 = vst.msk [vmem:[#allocation4 + $0x338] sm:$0xff] %vm448, 0.0
          %554 = vst.msk [vmem:[#allocation4 + $0x340] sm:$0x3] %vm451, 0.0
          %555 = vst.msk [vmem:[#allocation4 + $0x348] sm:$0xff] %vm448, 0.0
          %556 = vst.msk [vmem:[#allocation4 + $0x350] sm:$0xff] %vm448, 0.0
          %557 = vst.msk [vmem:[#allocation4 + $0x358] sm:$0x3] %vm451, 0.0
          %v558 = vld [vmem:[%s0] sm:$0xff]
          %v559 = vld [vmem:[%s0 + $0x8] sm:$0xff]
          %v560 = vld [vmem:[%s0 + $0x10] sm:$0xff]
          %v561 = vld [vmem:[%s0 + $0x18] sm:$0xff]
          %v562 = vld [vmem:[%s0 + $0x20] sm:$0xff]
          %v563 = vld [vmem:[%s0 + $0x28] sm:$0xff]
          %v564 = vld [vmem:[%s0 + $0x30] sm:$0xff]
          %v565 = vld [vmem:[%s0 + $0x38] sm:$0xff]
          %v566 = vld [vmem:[%s0 + $0x40] sm:$0xff]
          %v567 = vld [vmem:[%s0 + $0x48] sm:$0xff]
          %v568 = vld [vmem:[%s0 + $0x50] sm:$0xff]
          %v569 = vld [vmem:[%s0 + $0x58] sm:$0xff]
          %v570 = vld [vmem:[%s0 + $0x60] sm:$0xff]
          %v571 = vld [vmem:[%s0 + $0x68] sm:$0xff]
          %v572 = vld [vmem:[%s0 + $0x70] sm:$0xff]
          %v573 = vld [vmem:[%s0 + $0x78] sm:$0xff]
          %v574 = vld [vmem:[%s0 + $0x80] sm:$0xff]
          %v575 = vld [vmem:[%s0 + $0x88] sm:$0xff]
          %v576 = vld [vmem:[%s0 + $0x90] sm:$0xff]
          %v577 = vld [vmem:[%s0 + $0x98] sm:$0xff]
          %v578 = vld [vmem:[%s0 + $0xa0] sm:$0xff]
          %v579 = vld [vmem:[%s0 + $0xa8] sm:$0xff]
          %v580 = vld [vmem:[%s0 + $0xb0] sm:$0xff]
          %v581 = vld [vmem:[%s0 + $0xb8] sm:$0xff]
          %v582 = vld [vmem:[%s0 + $0xc0] sm:$0xff]
          %v583 = vld [vmem:[%s0 + $0xc8] sm:$0xff]
          %v584 = vld [vmem:[%s0 + $0xd0] sm:$0xff]
          %v585 = vld [vmem:[%s0 + $0xd8] sm:$0xff]
          %v586 = vld [vmem:[%s0 + $0xe0] sm:$0xff]
          %v587 = vld [vmem:[%s0 + $0xe8] sm:$0xff]
          %v588 = vld [vmem:[%s0 + $0xf0] sm:$0xff]
          %v589 = vld [vmem:[%s0 + $0xf8] sm:$0xff]
          %v590 = vld [vmem:[%s0 + $0x100] sm:$0xff]
          %v591 = vld [vmem:[%s0 + $0x108] sm:$0xff]
          %v592 = vld [vmem:[%s0 + $0x110] sm:$0xff]
          %v593 = vld [vmem:[%s0 + $0x118] sm:$0xff]
          %v594 = vld [vmem:[%s0 + $0x120] sm:$0xff]
          %v595 = vld [vmem:[%s0 + $0x128] sm:$0xff]
          %v596 = vld [vmem:[%s0 + $0x130] sm:$0xff]
          %v597 = vld [vmem:[%s0 + $0x138] sm:$0xff]
          %v598 = vld [vmem:[%s0 + $0x140] sm:$0xff]
          %v599 = vld [vmem:[%s0 + $0x148] sm:$0xff]
          %v600 = vld [vmem:[%s0 + $0x150] sm:$0xff]
          %v601 = vld [vmem:[%s0 + $0x158] sm:$0xff]
          %v602 = vld [vmem:[%s0 + $0x160] sm:$0xff]
          %v603 = vld [vmem:[%s0 + $0x168] sm:$0xff]
          %v604 = vld [vmem:[%s0 + $0x170] sm:$0xff]
          %v605 = vld [vmem:[%s0 + $0x178] sm:$0xff]
          %v606 = vld [vmem:[%s0 + $0x180] sm:$0xff]
          %v607 = vld [vmem:[%s0 + $0x188] sm:$0xff]
          %v608 = vld [vmem:[%s0 + $0x190] sm:$0xff]
          %v609 = vld [vmem:[%s0 + $0x198] sm:$0xff]
          %v610 = vld [vmem:[%s0 + $0x1a0] sm:$0xff]
          %v611 = vld [vmem:[%s0 + $0x1a8] sm:$0xff]
          %v612 = vld [vmem:[%s0 + $0x1b0] sm:$0xff]
          %v613 = vld [vmem:[%s0 + $0x1b8] sm:$0xff]
          %v614 = vld [vmem:[%s0 + $0x1c0] sm:$0xff]
          %v615 = vld [vmem:[%s0 + $0x1c8] sm:$0xff]
          %v616 = vld [vmem:[%s0 + $0x1d0] sm:$0xff]
          %v617 = vld [vmem:[%s0 + $0x1d8] sm:$0xff]
          %v618 = vld [vmem:[%s0 + $0x1e0] sm:$0xff]
          %v619 = vld [vmem:[%s0 + $0x1e8] sm:$0xff]
          %v620 = vld [vmem:[%s0 + $0x1f0] sm:$0xff]
          %v621 = vld [vmem:[%s0 + $0x1f8] sm:$0xff]
          %s622 = scalar_lea.vmem [#allocation4], 24
          %623 = vst.msk [vmem:[%s622 + $0x1] sm:$0xff] %vm448, %v558
          %624 = vst.msk [vmem:[%s622 + $0x9] sm:$0xff] %vm448, %v559
          %625 = vst.msk [vmem:[%s622 + $0x19] sm:$0xff] %vm448, %v560
          %626 = vst.msk [vmem:[%s622 + $0x21] sm:$0xff] %vm448, %v561
          %627 = vst.msk [vmem:[%s622 + $0x31] sm:$0xff] %vm448, %v562
          %628 = vst.msk [vmem:[%s622 + $0x39] sm:$0xff] %vm448, %v563
          %629 = vst.msk [vmem:[%s622 + $0x49] sm:$0xff] %vm448, %v564
          %630 = vst.msk [vmem:[%s622 + $0x51] sm:$0xff] %vm448, %v565
          %631 = vst.msk [vmem:[%s622 + $0x61] sm:$0xff] %vm448, %v566
          %632 = vst.msk [vmem:[%s622 + $0x69] sm:$0xff] %vm448, %v567
          %633 = vst.msk [vmem:[%s622 + $0x79] sm:$0xff] %vm448, %v568
          %634 = vst.msk [vmem:[%s622 + $0x81] sm:$0xff] %vm448, %v569
          %635 = vst.msk [vmem:[%s622 + $0x91] sm:$0xff] %vm448, %v570
          %636 = vst.msk [vmem:[%s622 + $0x99] sm:$0xff] %vm448, %v571
          %637 = vst.msk [vmem:[%s622 + $0xa9] sm:$0xff] %vm448, %v572
          %638 = vst.msk [vmem:[%s622 + $0xb1] sm:$0xff] %vm448, %v573
          %639 = vst.msk [vmem:[%s622 + $0xc1] sm:$0xff] %vm448, %v574
          %640 = vst.msk [vmem:[%s622 + $0xc9] sm:$0xff] %vm448, %v575
          %641 = vst.msk [vmem:[%s622 + $0xd9] sm:$0xff] %vm448, %v576
          %642 = vst.msk [vmem:[%s622 + $0xe1] sm:$0xff] %vm448, %v577
          %643 = vst.msk [vmem:[%s622 + $0xf1] sm:$0xff] %vm448, %v578
          %644 = vst.msk [vmem:[%s622 + $0xf9] sm:$0xff] %vm448, %v579
          %645 = vst.msk [vmem:[%s622 + $0x109] sm:$0xff] %vm448, %v580
          %646 = vst.msk [vmem:[%s622 + $0x111] sm:$0xff] %vm448, %v581
          %647 = vst.msk [vmem:[%s622 + $0x121] sm:$0xff] %vm448, %v582
          %648 = vst.msk [vmem:[%s622 + $0x129] sm:$0xff] %vm448, %v583
          %649 = vst.msk [vmem:[%s622 + $0x139] sm:$0xff] %vm448, %v584
          %650 = vst.msk [vmem:[%s622 + $0x141] sm:$0xff] %vm448, %v585
          %651 = vst.msk [vmem:[%s622 + $0x151] sm:$0xff] %vm448, %v586
          %652 = vst.msk [vmem:[%s622 + $0x159] sm:$0xff] %vm448, %v587
          %653 = vst.msk [vmem:[%s622 + $0x169] sm:$0xff] %vm448, %v588
          %654 = vst.msk [vmem:[%s622 + $0x171] sm:$0xff] %vm448, %v589
          %655 = vst.msk [vmem:[%s622 + $0x1b1] sm:$0xff] %vm448, %v590
          %656 = vst.msk [vmem:[%s622 + $0x1b9] sm:$0xff] %vm448, %v591
          %657 = vst.msk [vmem:[%s622 + $0x1c9] sm:$0xff] %vm448, %v592
          %658 = vst.msk [vmem:[%s622 + $0x1d1] sm:$0xff] %vm448, %v593
          %659 = vst.msk [vmem:[%s622 + $0x1e1] sm:$0xff] %vm448, %v594
          %660 = vst.msk [vmem:[%s622 + $0x1e9] sm:$0xff] %vm448, %v595
          %661 = vst.msk [vmem:[%s622 + $0x1f9] sm:$0xff] %vm448, %v596
          %662 = vst.msk [vmem:[%s622 + $0x201] sm:$0xff] %vm448, %v597
          %663 = vst.msk [vmem:[%s622 + $0x211] sm:$0xff] %vm448, %v598
          %664 = vst.msk [vmem:[%s622 + $0x219] sm:$0xff] %vm448, %v599
          %665 = vst.msk [vmem:[%s622 + $0x229] sm:$0xff] %vm448, %v600
          %666 = vst.msk [vmem:[%s622 + $0x231] sm:$0xff] %vm448, %v601
          %667 = vst.msk [vmem:[%s622 + $0x241] sm:$0xff] %vm448, %v602
          %668 = vst.msk [vmem:[%s622 + $0x249] sm:$0xff] %vm448, %v603
          %669 = vst.msk [vmem:[%s622 + $0x259] sm:$0xff] %vm448, %v604
          %670 = vst.msk [vmem:[%s622 + $0x261] sm:$0xff] %vm448, %v605
          %671 = vst.msk [vmem:[%s622 + $0x271] sm:$0xff] %vm448, %v606
          %672 = vst.msk [vmem:[%s622 + $0x279] sm:$0xff] %vm448, %v607
          %673 = vst.msk [vmem:[%s622 + $0x289] sm:$0xff] %vm448, %v608
          %674 = vst.msk [vmem:[%s622 + $0x291] sm:$0xff] %vm448, %v609
          %675 = vst.msk [vmem:[%s622 + $0x2a1] sm:$0xff] %vm448, %v610
          %676 = vst.msk [vmem:[%s622 + $0x2a9] sm:$0xff] %vm448, %v611
          %677 = vst.msk [vmem:[%s622 + $0x2b9] sm:$0xff] %vm448, %v612
          %678 = vst.msk [vmem:[%s622 + $0x2c1] sm:$0xff] %vm448, %v613
          %679 = vst.msk [vmem:[%s622 + $0x2d1] sm:$0xff] %vm448, %v614
          %680 = vst.msk [vmem:[%s622 + $0x2d9] sm:$0xff] %vm448, %v615
          %681 = vst.msk [vmem:[%s622 + $0x2e9] sm:$0xff] %vm448, %v616
          %682 = vst.msk [vmem:[%s622 + $0x2f1] sm:$0xff] %vm448, %v617
          %683 = vst.msk [vmem:[%s622 + $0x301] sm:$0xff] %vm448, %v618
          %684 = vst.msk [vmem:[%s622 + $0x309] sm:$0xff] %vm448, %v619
          %685 = vst.msk [vmem:[%s622 + $0x319] sm:$0xff] %vm448, %v620
          %686 = vst.msk [vmem:[%s622 + $0x321] sm:$0xff] %vm448, %v621
          %v687 = vld [vmem:[%s1] sm:$0xff]
          %v688 = vld [vmem:[%s1 + $0x8] sm:$0xff]
          %v689 = vld [vmem:[%s1 + $0x10] sm:$0xff]
          %v690 = vld [vmem:[%s1 + $0x18] sm:$0xff]
          %v691 = vld [vmem:[%s1 + $0x20] sm:$0xff]
          %v692 = vld [vmem:[%s1 + $0x28] sm:$0xff]
          %v693 = vld [vmem:[%s1 + $0x30] sm:$0xff]
          %v694 = vld [vmem:[%s1 + $0x38] sm:$0xff]
          %v695 = vld [vmem:[%s1 + $0x40] sm:$0xff]
          %v696 = vld [vmem:[#allocation4] sm:$0xff]
          %v697 = vld [vmem:[#allocation4 + $0x8] sm:$0xff]
          %v698 = vld [vmem:[#allocation4 + $0x18] sm:$0xff]
          %v699 = vld [vmem:[#allocation4 + $0x20] sm:$0xff]
          %v700 = vld [vmem:[#allocation4 + $0x30] sm:$0xff]
          %v701 = vld [vmem:[#allocation4 + $0x38] sm:$0xff]
          %v702 = vld [vmem:[#allocation4 + $0x48] sm:$0xff]
          %v703 = vld [vmem:[#allocation4 + $0x50] sm:$0xff]
          %v704 = vld [vmem:[#allocation4 + $0x60] sm:$0xff]
          %v705 = vld [vmem:[#allocation4 + $0x68] sm:$0xff]
          %v706 = vld [vmem:[#allocation4 + $0x78] sm:$0xff]
          %v707 = vld [vmem:[#allocation4 + $0x80] sm:$0xff]
          %v708 = vld [vmem:[#allocation4 + $0x90] sm:$0xff]
          %v709 = vld [vmem:[#allocation4 + $0x98] sm:$0xff]
          %v710 = vld [vmem:[#allocation4 + $0xa8] sm:$0xff]
          %v711 = vld [vmem:[#allocation4 + $0xb0] sm:$0xff]
          %v712 = vld [vmem:[#allocation4 + $0xc0] sm:$0xff]
          %v713 = vld [vmem:[#allocation4 + $0xc8] sm:$0xff]
          %v714 = vld [vmem:[#allocation4 + $0xd8] sm:$0xff]
          %v715 = vld [vmem:[#allocation4 + $0xe0] sm:$0xff]
          %v716 = vld [vmem:[#allocation4 + $0xf0] sm:$0xff]
          %v717 = vld [vmem:[#allocation4 + $0xf8] sm:$0xff]
          %v718 = vld [vmem:[#allocation4 + $0x108] sm:$0xff]
          %v719 = vld [vmem:[#allocation4 + $0x110] sm:$0xff]
          %v720 = vld [vmem:[#allocation4 + $0x120] sm:$0xff]
          %v721 = vld [vmem:[#allocation4 + $0x128] sm:$0xff]
          %v722 = vld [vmem:[#allocation4 + $0x138] sm:$0xff]
          %v723 = vld [vmem:[#allocation4 + $0x140] sm:$0xff]
          %v724 = vld [vmem:[#allocation4 + $0x150] sm:$0xff]
          %v725 = vld [vmem:[#allocation4 + $0x158] sm:$0xff]
          %v726 = vld [vmem:[#allocation4 + $0x168] sm:$0xff]
          %v727 = vld [vmem:[#allocation4 + $0x170] sm:$0xff]
          %v728 = vld [vmem:[#allocation4 + $0x1b0] sm:$0xff]
          %v729 = vld [vmem:[#allocation4 + $0x1b8] sm:$0xff]
          %v730 = vld [vmem:[#allocation4 + $0x1c8] sm:$0xff]
          %v731 = vld [vmem:[#allocation4 + $0x1d0] sm:$0xff]
          %v732 = vld [vmem:[#allocation4 + $0x1e0] sm:$0xff]
          %v733 = vld [vmem:[#allocation4 + $0x1e8] sm:$0xff]
          %v734 = vld [vmem:[#allocation4 + $0x1f8] sm:$0xff]
          %v735 = vld [vmem:[#allocation4 + $0x200] sm:$0xff]
          %v736 = vld [vmem:[#allocation4 + $0x210] sm:$0xff]
          %v737 = vld [vmem:[#allocation4 + $0x218] sm:$0xff]
          %v738 = vld [vmem:[#allocation4 + $0x228] sm:$0xff]
          %v739 = vld [vmem:[#allocation4 + $0x230] sm:$0xff]
          %v740 = vld [vmem:[#allocation4 + $0x240] sm:$0xff]
          %v741 = vld [vmem:[#allocation4 + $0x248] sm:$0xff]
          %v742 = vld [vmem:[#allocation4 + $0x258] sm:$0xff]
          %v743 = vld [vmem:[#allocation4 + $0x260] sm:$0xff]
          %v744 = vld [vmem:[#allocation4 + $0x270] sm:$0xff]
          %v745 = vld [vmem:[#allocation4 + $0x278] sm:$0xff]
          %v746 = vld [vmem:[#allocation4 + $0x288] sm:$0xff]
          %v747 = vld [vmem:[#allocation4 + $0x290] sm:$0xff]
          %v748 = vld [vmem:[#allocation4 + $0x2a0] sm:$0xff]
          %v749 = vld [vmem:[#allocation4 + $0x2a8] sm:$0xff]
          %v750 = vld [vmem:[#allocation4 + $0x2b8] sm:$0xff]
          %v751 = vld [vmem:[#allocation4 + $0x2c0] sm:$0xff]
          %v752 = vld [vmem:[#allocation4 + $0x2d0] sm:$0xff]
          %v753 = vld [vmem:[#allocation4 + $0x2d8] sm:$0xff]
          %v754 = vld [vmem:[#allocation4 + $0x2e8] sm:$0xff]
          %v755 = vld [vmem:[#allocation4 + $0x2f0] sm:$0xff]
          %v756 = vld [vmem:[#allocation4 + $0x300] sm:$0xff]
          %v757 = vld [vmem:[#allocation4 + $0x308] sm:$0xff]
          %v758 = vld [vmem:[#allocation4 + $0x318] sm:$0xff]
          %v759 = vld [vmem:[#allocation4 + $0x320] sm:$0xff]
          %760 = vst.msk [vmem:[#allocation5] sm:$0xff] %vm448, %v696
          %761 = vst.msk [vmem:[#allocation5 + $0x8] sm:$0xff] %vm448, %v697
          %762 = vst.msk [vmem:[#allocation5 + $0x10] sm:$0xff] %vm448, %v698
          %763 = vst.msk [vmem:[#allocation5 + $0x18] sm:$0xff] %vm448, %v699
          %764 = vst.msk [vmem:[#allocation5 + $0x20] sm:$0xff] %vm448, %v700
          %765 = vst.msk [vmem:[#allocation5 + $0x28] sm:$0xff] %vm448, %v701
          %766 = vst.msk [vmem:[#allocation5 + $0x30] sm:$0xff] %vm448, %v702
          %767 = vst.msk [vmem:[#allocation5 + $0x38] sm:$0xff] %vm448, %v703
          %768 = vst.msk [vmem:[#allocation5 + $0x40] sm:$0xff] %vm448, %v704
          %769 = vst.msk [vmem:[#allocation5 + $0x48] sm:$0xff] %vm448, %v705
          %770 = vst.msk [vmem:[#allocation5 + $0x50] sm:$0xff] %vm448, %v706
          %771 = vst.msk [vmem:[#allocation5 + $0x58] sm:$0xff] %vm448, %v707
          %772 = vst.msk [vmem:[#allocation5 + $0x60] sm:$0xff] %vm448, %v708
          %773 = vst.msk [vmem:[#allocation5 + $0x68] sm:$0xff] %vm448, %v709
          %774 = vst.msk [vmem:[#allocation5 + $0x70] sm:$0xff] %vm448, %v710
          %775 = vst.msk [vmem:[#allocation5 + $0x78] sm:$0xff] %vm448, %v711
          %776 = vst.msk [vmem:[#allocation5 + $0x80] sm:$0xff] %vm448, %v712
          %777 = vst.msk [vmem:[#allocation5 + $0x88] sm:$0xff] %vm448, %v713
          %778 = vst.msk [vmem:[#allocation5 + $0x90] sm:$0xff] %vm448, %v714
          %779 = vst.msk [vmem:[#allocation5 + $0x98] sm:$0xff] %vm448, %v715
          %780 = vst.msk [vmem:[#allocation5 + $0xa0] sm:$0xff] %vm448, %v716
          %781 = vst.msk [vmem:[#allocation5 + $0xa8] sm:$0xff] %vm448, %v717
          %782 = vst.msk [vmem:[#allocation5 + $0xb0] sm:$0xff] %vm448, %v718
          %783 = vst.msk [vmem:[#allocation5 + $0xb8] sm:$0xff] %vm448, %v719
          %784 = vst.msk [vmem:[#allocation5 + $0xc0] sm:$0xff] %vm448, %v720
          %785 = vst.msk [vmem:[#allocation5 + $0xc8] sm:$0xff] %vm448, %v721
          %786 = vst.msk [vmem:[#allocation5 + $0xd0] sm:$0xff] %vm448, %v722
          %787 = vst.msk [vmem:[#allocation5 + $0xd8] sm:$0xff] %vm448, %v723
          %788 = vst.msk [vmem:[#allocation5 + $0xe0] sm:$0xff] %vm448, %v724
          %789 = vst.msk [vmem:[#allocation5 + $0xe8] sm:$0xff] %vm448, %v725
          %790 = vst.msk [vmem:[#allocation5 + $0xf0] sm:$0xff] %vm448, %v726
          %791 = vst.msk [vmem:[#allocation5 + $0xf8] sm:$0xff] %vm448, %v727
          %792 = vst.msk [vmem:[#allocation5 + $0x100] sm:$0xff] %vm448, %v728
          %793 = vst.msk [vmem:[#allocation5 + $0x108] sm:$0xff] %vm448, %v729
          %794 = vst.msk [vmem:[#allocation5 + $0x110] sm:$0xff] %vm448, %v730
          %795 = vst.msk [vmem:[#allocation5 + $0x118] sm:$0xff] %vm448, %v731
          %796 = vst.msk [vmem:[#allocation5 + $0x120] sm:$0xff] %vm448, %v732
          %797 = vst.msk [vmem:[#allocation5 + $0x128] sm:$0xff] %vm448, %v733
          %798 = vst.msk [vmem:[#allocation5 + $0x130] sm:$0xff] %vm448, %v734
          %799 = vst.msk [vmem:[#allocation5 + $0x138] sm:$0xff] %vm448, %v735
          %800 = vst.msk [vmem:[#allocation5 + $0x140] sm:$0xff] %vm448, %v736
          %801 = vst.msk [vmem:[#allocation5 + $0x148] sm:$0xff] %vm448, %v737
          %802 = vst.msk [vmem:[#allocation5 + $0x150] sm:$0xff] %vm448, %v738
          %803 = vst.msk [vmem:[#allocation5 + $0x158] sm:$0xff] %vm448, %v739
          %804 = vst.msk [vmem:[#allocation5 + $0x160] sm:$0xff] %vm448, %v740
          %805 = vst.msk [vmem:[#allocation5 + $0x168] sm:$0xff] %vm448, %v741
          %806 = vst.msk [vmem:[#allocation5 + $0x170] sm:$0xff] %vm448, %v742
          %807 = vst.msk [vmem:[#allocation5 + $0x178] sm:$0xff] %vm448, %v743
          %808 = vst.msk [vmem:[#allocation5 + $0x180] sm:$0xff] %vm448, %v744
          %809 = vst.msk [vmem:[#allocation5 + $0x188] sm:$0xff] %vm448, %v745
          %810 = vst.msk [vmem:[#allocation5 + $0x190] sm:$0xff] %vm448, %v746
          %811 = vst.msk [vmem:[#allocation5 + $0x198] sm:$0xff] %vm448, %v747
          %812 = vst.msk [vmem:[#allocation5 + $0x1a0] sm:$0xff] %vm448, %v748
          %813 = vst.msk [vmem:[#allocation5 + $0x1a8] sm:$0xff] %vm448, %v749
          %814 = vst.msk [vmem:[#allocation5 + $0x1b0] sm:$0xff] %vm448, %v750
          %815 = vst.msk [vmem:[#allocation5 + $0x1b8] sm:$0xff] %vm448, %v751
          %816 = vst.msk [vmem:[#allocation5 + $0x1c0] sm:$0xff] %vm448, %v752
          %817 = vst.msk [vmem:[#allocation5 + $0x1c8] sm:$0xff] %vm448, %v753
          %818 = vst.msk [vmem:[#allocation5 + $0x1d0] sm:$0xff] %vm448, %v754
          %819 = vst.msk [vmem:[#allocation5 + $0x1d8] sm:$0xff] %vm448, %v755
          %820 = vst.msk [vmem:[#allocation5 + $0x1e0] sm:$0xff] %vm448, %v756
          %821 = vst.msk [vmem:[#allocation5 + $0x1e8] sm:$0xff] %vm448, %v757
          %822 = vst.msk [vmem:[#allocation5 + $0x1f0] sm:$0xff] %vm448, %v758
          %823 = vst.msk [vmem:[#allocation5 + $0x1f8] sm:$0xff] %vm448, %v759
          %v824 = vld [vmem:[#allocation4 + $0x1] sm:$0xff]
          %v825 = vld [vmem:[#allocation4 + $0x9] sm:$0xff]
          %v826 = vld [vmem:[#allocation4 + $0x19] sm:$0xff]
          %v827 = vld [vmem:[#allocation4 + $0x21] sm:$0xff]
          %v828 = vld [vmem:[#allocation4 + $0x31] sm:$0xff]
          %v829 = vld [vmem:[#allocation4 + $0x39] sm:$0xff]
          %v830 = vld [vmem:[#allocation4 + $0x49] sm:$0xff]
          %v831 = vld [vmem:[#allocation4 + $0x51] sm:$0xff]
          %v832 = vld [vmem:[#allocation4 + $0x61] sm:$0xff]
          %v833 = vld [vmem:[#allocation4 + $0x69] sm:$0xff]
          %v834 = vld [vmem:[#allocation4 + $0x79] sm:$0xff]
          %v835 = vld [vmem:[#allocation4 + $0x81] sm:$0xff]
          %v836 = vld [vmem:[#allocation4 + $0x91] sm:$0xff]
          %v837 = vld [vmem:[#allocation4 + $0x99] sm:$0xff]
          %v838 = vld [vmem:[#allocation4 + $0xa9] sm:$0xff]
          %v839 = vld [vmem:[#allocation4 + $0xb1] sm:$0xff]
          %v840 = vld [vmem:[#allocation4 + $0xc1] sm:$0xff]
          %v841 = vld [vmem:[#allocation4 + $0xc9] sm:$0xff]
          %v842 = vld [vmem:[#allocation4 + $0xd9] sm:$0xff]
          %v843 = vld [vmem:[#allocation4 + $0xe1] sm:$0xff]
          %v844 = vld [vmem:[#allocation4 + $0xf1] sm:$0xff]
          %v845 = vld [vmem:[#allocation4 + $0xf9] sm:$0xff]
          %v846 = vld [vmem:[#allocation4 + $0x109] sm:$0xff]
          %v847 = vld [vmem:[#allocation4 + $0x111] sm:$0xff]
          %v848 = vld [vmem:[#allocation4 + $0x121] sm:$0xff]
          %v849 = vld [vmem:[#allocation4 + $0x129] sm:$0xff]
          %v850 = vld [vmem:[#allocation4 + $0x139] sm:$0xff]
          %v851 = vld [vmem:[#allocation4 + $0x141] sm:$0xff]
          %v852 = vld [vmem:[#allocation4 + $0x151] sm:$0xff]
          %v853 = vld [vmem:[#allocation4 + $0x159] sm:$0xff]
          %v854 = vld [vmem:[#allocation4 + $0x169] sm:$0xff]
          %v855 = vld [vmem:[#allocation4 + $0x171] sm:$0xff]
          %v856 = vld [vmem:[#allocation4 + $0x1b1] sm:$0xff]
          %v857 = vld [vmem:[#allocation4 + $0x1b9] sm:$0xff]
          %v858 = vld [vmem:[#allocation4 + $0x1c9] sm:$0xff]
          %v859 = vld [vmem:[#allocation4 + $0x1d1] sm:$0xff]
          %v860 = vld [vmem:[#allocation4 + $0x1e1] sm:$0xff]
          %v861 = vld [vmem:[#allocation4 + $0x1e9] sm:$0xff]
          %v862 = vld [vmem:[#allocation4 + $0x1f9] sm:$0xff]
          %v863 = vld [vmem:[#allocation4 + $0x201] sm:$0xff]
          %v864 = vld [vmem:[#allocation4 + $0x211] sm:$0xff]
          %v865 = vld [vmem:[#allocation4 + $0x219] sm:$0xff]
          %v866 = vld [vmem:[#allocation4 + $0x229] sm:$0xff]
          %v867 = vld [vmem:[#allocation4 + $0x231] sm:$0xff]
          %v868 = vld [vmem:[#allocation4 + $0x241] sm:$0xff]
          %v869 = vld [vmem:[#allocation4 + $0x249] sm:$0xff]
          %v870 = vld [vmem:[#allocation4 + $0x259] sm:$0xff]
          %v871 = vld [vmem:[#allocation4 + $0x261] sm:$0xff]
          %v872 = vld [vmem:[#allocation4 + $0x271] sm:$0xff]
          %v873 = vld [vmem:[#allocation4 + $0x279] sm:$0xff]
          %v874 = vld [vmem:[#allocation4 + $0x289] sm:$0xff]
          %v875 = vld [vmem:[#allocation4 + $0x291] sm:$0xff]
          %v876 = vld [vmem:[#allocation4 + $0x2a1] sm:$0xff]
          %v877 = vld [vmem:[#allocation4 + $0x2a9] sm:$0xff]
          %v878 = vld [vmem:[#allocation4 + $0x2b9] sm:$0xff]
          %v879 = vld [vmem:[#allocation4 + $0x2c1] sm:$0xff]
          %v880 = vld [vmem:[#allocation4 + $0x2d1] sm:$0xff]
          %v881 = vld [vmem:[#allocation4 + $0x2d9] sm:$0xff]
          %v882 = vld [vmem:[#allocation4 + $0x2e9] sm:$0xff]
          %v883 = vld [vmem:[#allocation4 + $0x2f1] sm:$0xff]
          %v884 = vld [vmem:[#allocation4 + $0x301] sm:$0xff]
          %v885 = vld [vmem:[#allocation4 + $0x309] sm:$0xff]
          %v886 = vld [vmem:[#allocation4 + $0x319] sm:$0xff]
          %v887 = vld [vmem:[#allocation4 + $0x321] sm:$0xff]
          %952 = vrot.lane.b32.xlu0 %v824, 8
          %v953 = vpop.permute.xlu0 %952
          %954 = vrot.lane.b32.xlu0 %v825, 8
          %v955 = vpop.permute.xlu0 %954
          %956 = vrot.lane.b32.xlu0 %v826, 8
          %v957 = vpop.permute.xlu0 %956
          %958 = vrot.lane.b32.xlu0 %v827, 8
          %v959 = vpop.permute.xlu0 %958
          %960 = vrot.lane.b32.xlu0 %v828, 8
          %v961 = vpop.permute.xlu0 %960
          %962 = vrot.lane.b32.xlu0 %v829, 8
          %v963 = vpop.permute.xlu0 %962
          %964 = vrot.lane.b32.xlu0 %v830, 8
          %v965 = vpop.permute.xlu0 %964
          %966 = vrot.lane.b32.xlu0 %v831, 8
          %v967 = vpop.permute.xlu0 %966
          %968 = vrot.lane.b32.xlu0 %v832, 8
          %v969 = vpop.permute.xlu0 %968
          %970 = vrot.lane.b32.xlu0 %v833, 8
          %v971 = vpop.permute.xlu0 %970
          %972 = vrot.lane.b32.xlu0 %v834, 8
          %v973 = vpop.permute.xlu0 %972
          %974 = vrot.lane.b32.xlu0 %v835, 8
          %v975 = vpop.permute.xlu0 %974
          %976 = vrot.lane.b32.xlu0 %v836, 8
          %v977 = vpop.permute.xlu0 %976
          %978 = vrot.lane.b32.xlu0 %v837, 8
          %v979 = vpop.permute.xlu0 %978
          %980 = vrot.lane.b32.xlu0 %v838, 8
          %v981 = vpop.permute.xlu0 %980
          %982 = vrot.lane.b32.xlu0 %v839, 8
          %v983 = vpop.permute.xlu0 %982
          %984 = vrot.lane.b32.xlu0 %v840, 8
          %v985 = vpop.permute.xlu0 %984
          %986 = vrot.lane.b32.xlu0 %v841, 8
          %v987 = vpop.permute.xlu0 %986
          %988 = vrot.lane.b32.xlu0 %v842, 8
          %v989 = vpop.permute.xlu0 %988
          %990 = vrot.lane.b32.xlu0 %v843, 8
          %v991 = vpop.permute.xlu0 %990
          %992 = vrot.lane.b32.xlu0 %v844, 8
          %v993 = vpop.permute.xlu0 %992
          %994 = vrot.lane.b32.xlu0 %v845, 8
          %v995 = vpop.permute.xlu0 %994
          %996 = vrot.lane.b32.xlu0 %v846, 8
          %v997 = vpop.permute.xlu0 %996
          %998 = vrot.lane.b32.xlu0 %v847, 8
          %v999 = vpop.permute.xlu0 %998
          %1000 = vrot.lane.b32.xlu0 %v848, 8
          %v1001 = vpop.permute.xlu0 %1000
          %1002 = vrot.lane.b32.xlu0 %v849, 8
          %v1003 = vpop.permute.xlu0 %1002
          %1004 = vrot.lane.b32.xlu0 %v850, 8
          %v1005 = vpop.permute.xlu0 %1004
          %1006 = vrot.lane.b32.xlu0 %v851, 8
          %v1007 = vpop.permute.xlu0 %1006
          %1008 = vrot.lane.b32.xlu0 %v852, 8
          %v1009 = vpop.permute.xlu0 %1008
          %1010 = vrot.lane.b32.xlu0 %v853, 8
          %v1011 = vpop.permute.xlu0 %1010
          %1012 = vrot.lane.b32.xlu0 %v854, 8
          %v1013 = vpop.permute.xlu0 %1012
          %1014 = vrot.lane.b32.xlu0 %v855, 8
          %v1015 = vpop.permute.xlu0 %1014
          %1016 = vrot.lane.b32.xlu0 %v856, 8
          %v1017 = vpop.permute.xlu0 %1016
          %1018 = vrot.lane.b32.xlu0 %v857, 8
          %v1019 = vpop.permute.xlu0 %1018
          %1020 = vrot.lane.b32.xlu0 %v858, 8
          %v1021 = vpop.permute.xlu0 %1020
          %1022 = vrot.lane.b32.xlu0 %v859, 8
          %v1023 = vpop.permute.xlu0 %1022
          %1024 = vrot.lane.b32.xlu0 %v860, 8
          %v1025 = vpop.permute.xlu0 %1024
          %1026 = vrot.lane.b32.xlu0 %v861, 8
          %v1027 = vpop.permute.xlu0 %1026
          %1028 = vrot.lane.b32.xlu0 %v862, 8
          %v1029 = vpop.permute.xlu0 %1028
          %1030 = vrot.lane.b32.xlu0 %v863, 8
          %v1031 = vpop.permute.xlu0 %1030
          %1032 = vrot.lane.b32.xlu0 %v864, 8
          %v1033 = vpop.permute.xlu0 %1032
          %1034 = vrot.lane.b32.xlu0 %v865, 8
          %v1035 = vpop.permute.xlu0 %1034
          %1036 = vrot.lane.b32.xlu0 %v866, 8
          %v1037 = vpop.permute.xlu0 %1036
          %1038 = vrot.lane.b32.xlu0 %v867, 8
          %v1039 = vpop.permute.xlu0 %1038
          %1040 = vrot.lane.b32.xlu0 %v868, 8
          %v1041 = vpop.permute.xlu0 %1040
          %1042 = vrot.lane.b32.xlu0 %v869, 8
          %v1043 = vpop.permute.xlu0 %1042
          %1044 = vrot.lane.b32.xlu0 %v870, 8
          %v1045 = vpop.permute.xlu0 %1044
          %1046 = vrot.lane.b32.xlu0 %v871, 8
          %v1047 = vpop.permute.xlu0 %1046
          %1048 = vrot.lane.b32.xlu0 %v872, 8
          %v1049 = vpop.permute.xlu0 %1048
          %1050 = vrot.lane.b32.xlu0 %v873, 8
          %v1051 = vpop.permute.xlu0 %1050
          %1052 = vrot.lane.b32.xlu0 %v874, 8
          %v1053 = vpop.permute.xlu0 %1052
          %1054 = vrot.lane.b32.xlu0 %v875, 8
          %v1055 = vpop.permute.xlu0 %1054
          %1056 = vrot.lane.b32.xlu0 %v876, 8
          %v1057 = vpop.permute.xlu0 %1056
          %1058 = vrot.lane.b32.xlu0 %v877, 8
          %v1059 = vpop.permute.xlu0 %1058
          %1060 = vrot.lane.b32.xlu0 %v878, 8
          %v1061 = vpop.permute.xlu0 %1060
          %1062 = vrot.lane.b32.xlu0 %v879, 8
          %v1063 = vpop.permute.xlu0 %1062
          %1064 = vrot.lane.b32.xlu0 %v880, 8
          %v1065 = vpop.permute.xlu0 %1064
          %1066 = vrot.lane.b32.xlu0 %v881, 8
          %v1067 = vpop.permute.xlu0 %1066
          %1068 = vrot.lane.b32.xlu0 %v882, 8
          %v1069 = vpop.permute.xlu0 %1068
          %1070 = vrot.lane.b32.xlu0 %v883, 8
          %v1071 = vpop.permute.xlu0 %1070
          %1072 = vrot.lane.b32.xlu0 %v884, 8
          %v1073 = vpop.permute.xlu0 %1072
          %1074 = vrot.lane.b32.xlu0 %v885, 8
          %v1075 = vpop.permute.xlu0 %1074
          %1076 = vrot.lane.b32.xlu0 %v886, 8
          %v1077 = vpop.permute.xlu0 %1076
          %1078 = vrot.lane.b32.xlu0 %v887, 8
          %v1079 = vpop.permute.xlu0 %1078
          %vm1144 = vcmask 130112
          %1145 = vst.msk [vmem:[#allocation5] sm:$0xff] %vm1144, %v953
          %1146 = vst.msk [vmem:[#allocation5 + $0x8] sm:$0xff] %vm1144, %v955
          %1147 = vst.msk [vmem:[#allocation5 + $0x10] sm:$0xff] %vm1144, %v957
          %1148 = vst.msk [vmem:[#allocation5 + $0x18] sm:$0xff] %vm1144, %v959
          %1149 = vst.msk [vmem:[#allocation5 + $0x20] sm:$0xff] %vm1144, %v961
          %1150 = vst.msk [vmem:[#allocation5 + $0x28] sm:$0xff] %vm1144, %v963
          %1151 = vst.msk [vmem:[#allocation5 + $0x30] sm:$0xff] %vm1144, %v965
          %1152 = vst.msk [vmem:[#allocation5 + $0x38] sm:$0xff] %vm1144, %v967
          %1153 = vst.msk [vmem:[#allocation5 + $0x40] sm:$0xff] %vm1144, %v969
          %1154 = vst.msk [vmem:[#allocation5 + $0x48] sm:$0xff] %vm1144, %v971
          %1155 = vst.msk [vmem:[#allocation5 + $0x50] sm:$0xff] %vm1144, %v973
          %1156 = vst.msk [vmem:[#allocation5 + $0x58] sm:$0xff] %vm1144, %v975
          %1157 = vst.msk [vmem:[#allocation5 + $0x60] sm:$0xff] %vm1144, %v977
          %1158 = vst.msk [vmem:[#allocation5 + $0x68] sm:$0xff] %vm1144, %v979
          %1159 = vst.msk [vmem:[#allocation5 + $0x70] sm:$0xff] %vm1144, %v981
          %1160 = vst.msk [vmem:[#allocation5 + $0x78] sm:$0xff] %vm1144, %v983
          %1161 = vst.msk [vmem:[#allocation5 + $0x80] sm:$0xff] %vm1144, %v985
          %1162 = vst.msk [vmem:[#allocation5 + $0x88] sm:$0xff] %vm1144, %v987
          %1163 = vst.msk [vmem:[#allocation5 + $0x90] sm:$0xff] %vm1144, %v989
          %1164 = vst.msk [vmem:[#allocation5 + $0x98] sm:$0xff] %vm1144, %v991
          %1165 = vst.msk [vmem:[#allocation5 + $0xa0] sm:$0xff] %vm1144, %v993
          %1166 = vst.msk [vmem:[#allocation5 + $0xa8] sm:$0xff] %vm1144, %v995
          %1167 = vst.msk [vmem:[#allocation5 + $0xb0] sm:$0xff] %vm1144, %v997
          %1168 = vst.msk [vmem:[#allocation5 + $0xb8] sm:$0xff] %vm1144, %v999
          %1169 = vst.msk [vmem:[#allocation5 + $0xc0] sm:$0xff] %vm1144, %v1001
          %1170 = vst.msk [vmem:[#allocation5 + $0xc8] sm:$0xff] %vm1144, %v1003
          %1171 = vst.msk [vmem:[#allocation5 + $0xd0] sm:$0xff] %vm1144, %v1005
          %1172 = vst.msk [vmem:[#allocation5 + $0xd8] sm:$0xff] %vm1144, %v1007
          %1173 = vst.msk [vmem:[#allocation5 + $0xe0] sm:$0xff] %vm1144, %v1009
          %1174 = vst.msk [vmem:[#allocation5 + $0xe8] sm:$0xff] %vm1144, %v1011
          %1175 = vst.msk [vmem:[#allocation5 + $0xf0] sm:$0xff] %vm1144, %v1013
          %1176 = vst.msk [vmem:[#allocation5 + $0xf8] sm:$0xff] %vm1144, %v1015
          %1177 = vst.msk [vmem:[#allocation5 + $0x100] sm:$0xff] %vm1144, %v1017
          %1178 = vst.msk [vmem:[#allocation5 + $0x108] sm:$0xff] %vm1144, %v1019
          %1179 = vst.msk [vmem:[#allocation5 + $0x110] sm:$0xff] %vm1144, %v1021
          %1180 = vst.msk [vmem:[#allocation5 + $0x118] sm:$0xff] %vm1144, %v1023
          %1181 = vst.msk [vmem:[#allocation5 + $0x120] sm:$0xff] %vm1144, %v1025
          %1182 = vst.msk [vmem:[#allocation5 + $0x128] sm:$0xff] %vm1144, %v1027
          %1183 = vst.msk [vmem:[#allocation5 + $0x130] sm:$0xff] %vm1144, %v1029
          %1184 = vst.msk [vmem:[#allocation5 + $0x138] sm:$0xff] %vm1144, %v1031
          %1185 = vst.msk [vmem:[#allocation5 + $0x140] sm:$0xff] %vm1144, %v1033
          %1186 = vst.msk [vmem:[#allocation5 + $0x148] sm:$0xff] %vm1144, %v1035
          %1187 = vst.msk [vmem:[#allocation5 + $0x150] sm:$0xff] %vm1144, %v1037
          %1188 = vst.msk [vmem:[#allocation5 + $0x158] sm:$0xff] %vm1144, %v1039
          %1189 = vst.msk [vmem:[#allocation5 + $0x160] sm:$0xff] %vm1144, %v1041
          %1190 = vst.msk [vmem:[#allocation5 + $0x168] sm:$0xff] %vm1144, %v1043
          %1191 = vst.msk [vmem:[#allocation5 + $0x170] sm:$0xff] %vm1144, %v1045
          %1192 = vst.msk [vmem:[#allocation5 + $0x178] sm:$0xff] %vm1144, %v1047
          %1193 = vst.msk [vmem:[#allocation5 + $0x180] sm:$0xff] %vm1144, %v1049
          %1194 = vst.msk [vmem:[#allocation5 + $0x188] sm:$0xff] %vm1144, %v1051
          %1195 = vst.msk [vmem:[#allocation5 + $0x190] sm:$0xff] %vm1144, %v1053
          %1196 = vst.msk [vmem:[#allocation5 + $0x198] sm:$0xff] %vm1144, %v1055
          %1197 = vst.msk [vmem:[#allocation5 + $0x1a0] sm:$0xff] %vm1144, %v1057
          %1198 = vst.msk [vmem:[#allocation5 + $0x1a8] sm:$0xff] %vm1144, %v1059
          %1199 = vst.msk [vmem:[#allocation5 + $0x1b0] sm:$0xff] %vm1144, %v1061
          %1200 = vst.msk [vmem:[#allocation5 + $0x1b8] sm:$0xff] %vm1144, %v1063
          %1201 = vst.msk [vmem:[#allocation5 + $0x1c0] sm:$0xff] %vm1144, %v1065
          %1202 = vst.msk [vmem:[#allocation5 + $0x1c8] sm:$0xff] %vm1144, %v1067
          %1203 = vst.msk [vmem:[#allocation5 + $0x1d0] sm:$0xff] %vm1144, %v1069
          %1204 = vst.msk [vmem:[#allocation5 + $0x1d8] sm:$0xff] %vm1144, %v1071
          %1205 = vst.msk [vmem:[#allocation5 + $0x1e0] sm:$0xff] %vm1144, %v1073
          %1206 = vst.msk [vmem:[#allocation5 + $0x1e8] sm:$0xff] %vm1144, %v1075
          %1207 = vst.msk [vmem:[#allocation5 + $0x1f0] sm:$0xff] %vm1144, %v1077
          %1208 = vst.msk [vmem:[#allocation5 + $0x1f8] sm:$0xff] %vm1144, %v1079
          %v1209 = vld [vmem:[#allocation4 + $0x2] sm:$0xff]
          %v1210 = vld [vmem:[#allocation4 + $0xa] sm:$0xff]
          %v1211 = vld [vmem:[#allocation4 + $0x1a] sm:$0xff]
          %v1212 = vld [vmem:[#allocation4 + $0x22] sm:$0xff]
          %v1213 = vld [vmem:[#allocation4 + $0x32] sm:$0xff]
          %v1214 = vld [vmem:[#allocation4 + $0x3a] sm:$0xff]
          %v1215 = vld [vmem:[#allocation4 + $0x4a] sm:$0xff]
          %v1216 = vld [vmem:[#allocation4 + $0x52] sm:$0xff]
          %v1217 = vld [vmem:[#allocation4 + $0x62] sm:$0xff]
          %v1218 = vld [vmem:[#allocation4 + $0x6a] sm:$0xff]
          %v1219 = vld [vmem:[#allocation4 + $0x7a] sm:$0xff]
          %v1220 = vld [vmem:[#allocation4 + $0x82] sm:$0xff]
          %v1221 = vld [vmem:[#allocation4 + $0x92] sm:$0xff]
          %v1222 = vld [vmem:[#allocation4 + $0x9a] sm:$0xff]
          %v1223 = vld [vmem:[#allocation4 + $0xaa] sm:$0xff]
          %v1224 = vld [vmem:[#allocation4 + $0xb2] sm:$0xff]
          %v1225 = vld [vmem:[#allocation4 + $0xc2] sm:$0xff]
          %v1226 = vld [vmem:[#allocation4 + $0xca] sm:$0xff]
          %v1227 = vld [vmem:[#allocation4 + $0xda] sm:$0xff]
          %v1228 = vld [vmem:[#allocation4 + $0xe2] sm:$0xff]
          %v1229 = vld [vmem:[#allocation4 + $0xf2] sm:$0xff]
          %v1230 = vld [vmem:[#allocation4 + $0xfa] sm:$0xff]
          %v1231 = vld [vmem:[#allocation4 + $0x10a] sm:$0xff]
          %v1232 = vld [vmem:[#allocation4 + $0x112] sm:$0xff]
          %v1233 = vld [vmem:[#allocation4 + $0x122] sm:$0xff]
          %v1234 = vld [vmem:[#allocation4 + $0x12a] sm:$0xff]
          %v1235 = vld [vmem:[#allocation4 + $0x13a] sm:$0xff]
          %v1236 = vld [vmem:[#allocation4 + $0x142] sm:$0xff]
          %v1237 = vld [vmem:[#allocation4 + $0x152] sm:$0xff]
          %v1238 = vld [vmem:[#allocation4 + $0x15a] sm:$0xff]
          %v1239 = vld [vmem:[#allocation4 + $0x16a] sm:$0xff]
          %v1240 = vld [vmem:[#allocation4 + $0x172] sm:$0xff]
          %v1241 = vld [vmem:[#allocation4 + $0x1b2] sm:$0xff]
          %v1242 = vld [vmem:[#allocation4 + $0x1ba] sm:$0xff]
          %v1243 = vld [vmem:[#allocation4 + $0x1ca] sm:$0xff]
          %v1244 = vld [vmem:[#allocation4 + $0x1d2] sm:$0xff]
          %v1245 = vld [vmem:[#allocation4 + $0x1e2] sm:$0xff]
          %v1246 = vld [vmem:[#allocation4 + $0x1ea] sm:$0xff]
          %v1247 = vld [vmem:[#allocation4 + $0x1fa] sm:$0xff]
          %v1248 = vld [vmem:[#allocation4 + $0x202] sm:$0xff]
          %v1249 = vld [vmem:[#allocation4 + $0x212] sm:$0xff]
          %v1250 = vld [vmem:[#allocation4 + $0x21a] sm:$0xff]
          %v1251 = vld [vmem:[#allocation4 + $0x22a] sm:$0xff]
          %v1252 = vld [vmem:[#allocation4 + $0x232] sm:$0xff]
          %v1253 = vld [vmem:[#allocation4 + $0x242] sm:$0xff]
          %v1254 = vld [vmem:[#allocation4 + $0x24a] sm:$0xff]
          %v1255 = vld [vmem:[#allocation4 + $0x25a] sm:$0xff]
          %v1256 = vld [vmem:[#allocation4 + $0x262] sm:$0xff]
          %v1257 = vld [vmem:[#allocation4 + $0x272] sm:$0xff]
          %v1258 = vld [vmem:[#allocation4 + $0x27a] sm:$0xff]
          %v1259 = vld [vmem:[#allocation4 + $0x28a] sm:$0xff]
          %v1260 = vld [vmem:[#allocation4 + $0x292] sm:$0xff]
          %v1261 = vld [vmem:[#allocation4 + $0x2a2] sm:$0xff]
          %v1262 = vld [vmem:[#allocation4 + $0x2aa] sm:$0xff]
          %v1263 = vld [vmem:[#allocation4 + $0x2ba] sm:$0xff]
          %v1264 = vld [vmem:[#allocation4 + $0x2c2] sm:$0xff]
          %v1265 = vld [vmem:[#allocation4 + $0x2d2] sm:$0xff]
          %v1266 = vld [vmem:[#allocation4 + $0x2da] sm:$0xff]
          %v1267 = vld [vmem:[#allocation4 + $0x2ea] sm:$0xff]
          %v1268 = vld [vmem:[#allocation4 + $0x2f2] sm:$0xff]
          %v1269 = vld [vmem:[#allocation4 + $0x302] sm:$0xff]
          %v1270 = vld [vmem:[#allocation4 + $0x30a] sm:$0xff]
          %v1271 = vld [vmem:[#allocation4 + $0x31a] sm:$0xff]
          %v1272 = vld [vmem:[#allocation4 + $0x322] sm:$0xff]
          %1337 = vrot.lane.b32.xlu0 %v1209, 16
          %v1338 = vpop.permute.xlu0 %1337
          %1339 = vrot.lane.b32.xlu0 %v1210, 16
          %v1340 = vpop.permute.xlu0 %1339
          %1341 = vrot.lane.b32.xlu0 %v1211, 16
          %v1342 = vpop.permute.xlu0 %1341
          %1343 = vrot.lane.b32.xlu0 %v1212, 16
          %v1344 = vpop.permute.xlu0 %1343
          %1345 = vrot.lane.b32.xlu0 %v1213, 16
          %v1346 = vpop.permute.xlu0 %1345
          %1347 = vrot.lane.b32.xlu0 %v1214, 16
          %v1348 = vpop.permute.xlu0 %1347
          %1349 = vrot.lane.b32.xlu0 %v1215, 16
          %v1350 = vpop.permute.xlu0 %1349
          %1351 = vrot.lane.b32.xlu0 %v1216, 16
          %v1352 = vpop.permute.xlu0 %1351
          %1353 = vrot.lane.b32.xlu0 %v1217, 16
          %v1354 = vpop.permute.xlu0 %1353
          %1355 = vrot.lane.b32.xlu0 %v1218, 16
          %v1356 = vpop.permute.xlu0 %1355
          %1357 = vrot.lane.b32.xlu0 %v1219, 16
          %v1358 = vpop.permute.xlu0 %1357
          %1359 = vrot.lane.b32.xlu0 %v1220, 16
          %v1360 = vpop.permute.xlu0 %1359
          %1361 = vrot.lane.b32.xlu0 %v1221, 16
          %v1362 = vpop.permute.xlu0 %1361
          %1363 = vrot.lane.b32.xlu0 %v1222, 16
          %v1364 = vpop.permute.xlu0 %1363
          %1365 = vrot.lane.b32.xlu0 %v1223, 16
          %v1366 = vpop.permute.xlu0 %1365
          %1367 = vrot.lane.b32.xlu0 %v1224, 16
          %v1368 = vpop.permute.xlu0 %1367
          %1369 = vrot.lane.b32.xlu0 %v1225, 16
          %v1370 = vpop.permute.xlu0 %1369
          %1371 = vrot.lane.b32.xlu0 %v1226, 16
          %v1372 = vpop.permute.xlu0 %1371
          %1373 = vrot.lane.b32.xlu0 %v1227, 16
          %v1374 = vpop.permute.xlu0 %1373
          %1375 = vrot.lane.b32.xlu0 %v1228, 16
          %v1376 = vpop.permute.xlu0 %1375
          %1377 = vrot.lane.b32.xlu0 %v1229, 16
          %v1378 = vpop.permute.xlu0 %1377
          %1379 = vrot.lane.b32.xlu0 %v1230, 16
          %v1380 = vpop.permute.xlu0 %1379
          %1381 = vrot.lane.b32.xlu0 %v1231, 16
          %v1382 = vpop.permute.xlu0 %1381
          %1383 = vrot.lane.b32.xlu0 %v1232, 16
          %v1384 = vpop.permute.xlu0 %1383
          %1385 = vrot.lane.b32.xlu0 %v1233, 16
          %v1386 = vpop.permute.xlu0 %1385
          %1387 = vrot.lane.b32.xlu0 %v1234, 16
          %v1388 = vpop.permute.xlu0 %1387
          %1389 = vrot.lane.b32.xlu0 %v1235, 16
          %v1390 = vpop.permute.xlu0 %1389
          %1391 = vrot.lane.b32.xlu0 %v1236, 16
          %v1392 = vpop.permute.xlu0 %1391
          %1393 = vrot.lane.b32.xlu0 %v1237, 16
          %v1394 = vpop.permute.xlu0 %1393
          %1395 = vrot.lane.b32.xlu0 %v1238, 16
          %v1396 = vpop.permute.xlu0 %1395
          %1397 = vrot.lane.b32.xlu0 %v1239, 16
          %v1398 = vpop.permute.xlu0 %1397
          %1399 = vrot.lane.b32.xlu0 %v1240, 16
          %v1400 = vpop.permute.xlu0 %1399
          %1401 = vrot.lane.b32.xlu0 %v1241, 16
          %v1402 = vpop.permute.xlu0 %1401
          %1403 = vrot.lane.b32.xlu0 %v1242, 16
          %v1404 = vpop.permute.xlu0 %1403
          %1405 = vrot.lane.b32.xlu0 %v1243, 16
          %v1406 = vpop.permute.xlu0 %1405
          %1407 = vrot.lane.b32.xlu0 %v1244, 16
          %v1408 = vpop.permute.xlu0 %1407
          %1409 = vrot.lane.b32.xlu0 %v1245, 16
          %v1410 = vpop.permute.xlu0 %1409
          %1411 = vrot.lane.b32.xlu0 %v1246, 16
          %v1412 = vpop.permute.xlu0 %1411
          %1413 = vrot.lane.b32.xlu0 %v1247, 16
          %v1414 = vpop.permute.xlu0 %1413
          %1415 = vrot.lane.b32.xlu0 %v1248, 16
          %v1416 = vpop.permute.xlu0 %1415
          %1417 = vrot.lane.b32.xlu0 %v1249, 16
          %v1418 = vpop.permute.xlu0 %1417
          %1419 = vrot.lane.b32.xlu0 %v1250, 16
          %v1420 = vpop.permute.xlu0 %1419
          %1421 = vrot.lane.b32.xlu0 %v1251, 16
          %v1422 = vpop.permute.xlu0 %1421
          %1423 = vrot.lane.b32.xlu0 %v1252, 16
          %v1424 = vpop.permute.xlu0 %1423
          %1425 = vrot.lane.b32.xlu0 %v1253, 16
          %v1426 = vpop.permute.xlu0 %1425
          %1427 = vrot.lane.b32.xlu0 %v1254, 16
          %v1428 = vpop.permute.xlu0 %1427
          %1429 = vrot.lane.b32.xlu0 %v1255, 16
          %v1430 = vpop.permute.xlu0 %1429
          %1431 = vrot.lane.b32.xlu0 %v1256, 16
          %v1432 = vpop.permute.xlu0 %1431
          %1433 = vrot.lane.b32.xlu0 %v1257, 16
          %v1434 = vpop.permute.xlu0 %1433
          %1435 = vrot.lane.b32.xlu0 %v1258, 16
          %v1436 = vpop.permute.xlu0 %1435
          %1437 = vrot.lane.b32.xlu0 %v1259, 16
          %v1438 = vpop.permute.xlu0 %1437
          %1439 = vrot.lane.b32.xlu0 %v1260, 16
          %v1440 = vpop.permute.xlu0 %1439
          %1441 = vrot.lane.b32.xlu0 %v1261, 16
          %v1442 = vpop.permute.xlu0 %1441
          %1443 = vrot.lane.b32.xlu0 %v1262, 16
          %v1444 = vpop.permute.xlu0 %1443
          %1445 = vrot.lane.b32.xlu0 %v1263, 16
          %v1446 = vpop.permute.xlu0 %1445
          %1447 = vrot.lane.b32.xlu0 %v1264, 16
          %v1448 = vpop.permute.xlu0 %1447
          %1449 = vrot.lane.b32.xlu0 %v1265, 16
          %v1450 = vpop.permute.xlu0 %1449
          %1451 = vrot.lane.b32.xlu0 %v1266, 16
          %v1452 = vpop.permute.xlu0 %1451
          %1453 = vrot.lane.b32.xlu0 %v1267, 16
          %v1454 = vpop.permute.xlu0 %1453
          %1455 = vrot.lane.b32.xlu0 %v1268, 16
          %v1456 = vpop.permute.xlu0 %1455
          %1457 = vrot.lane.b32.xlu0 %v1269, 16
          %v1458 = vpop.permute.xlu0 %1457
          %1459 = vrot.lane.b32.xlu0 %v1270, 16
          %v1460 = vpop.permute.xlu0 %1459
          %1461 = vrot.lane.b32.xlu0 %v1271, 16
          %v1462 = vpop.permute.xlu0 %1461
          %1463 = vrot.lane.b32.xlu0 %v1272, 16
          %v1464 = vpop.permute.xlu0 %1463
          %vm1529 = vcmask 195712
          %1530 = vst.msk [vmem:[#allocation5] sm:$0xff] %vm1529, %v1338
          %1531 = vst.msk [vmem:[#allocation5 + $0x8] sm:$0xff] %vm1529, %v1340
          %1532 = vst.msk [vmem:[#allocation5 + $0x10] sm:$0xff] %vm1529, %v1342
          %1533 = vst.msk [vmem:[#allocation5 + $0x18] sm:$0xff] %vm1529, %v1344
          %1534 = vst.msk [vmem:[#allocation5 + $0x20] sm:$0xff] %vm1529, %v1346
          %1535 = vst.msk [vmem:[#allocation5 + $0x28] sm:$0xff] %vm1529, %v1348
          %1536 = vst.msk [vmem:[#allocation5 + $0x30] sm:$0xff] %vm1529, %v1350
          %1537 = vst.msk [vmem:[#allocation5 + $0x38] sm:$0xff] %vm1529, %v1352
          %1538 = vst.msk [vmem:[#allocation5 + $0x40] sm:$0xff] %vm1529, %v1354
          %1539 = vst.msk [vmem:[#allocation5 + $0x48] sm:$0xff] %vm1529, %v1356
          %1540 = vst.msk [vmem:[#allocation5 + $0x50] sm:$0xff] %vm1529, %v1358
          %1541 = vst.msk [vmem:[#allocation5 + $0x58] sm:$0xff] %vm1529, %v1360
          %1542 = vst.msk [vmem:[#allocation5 + $0x60] sm:$0xff] %vm1529, %v1362
          %1543 = vst.msk [vmem:[#allocation5 + $0x68] sm:$0xff] %vm1529, %v1364
          %1544 = vst.msk [vmem:[#allocation5 + $0x70] sm:$0xff] %vm1529, %v1366
          %1545 = vst.msk [vmem:[#allocation5 + $0x78] sm:$0xff] %vm1529, %v1368
          %1546 = vst.msk [vmem:[#allocation5 + $0x80] sm:$0xff] %vm1529, %v1370
          %1547 = vst.msk [vmem:[#allocation5 + $0x88] sm:$0xff] %vm1529, %v1372
          %1548 = vst.msk [vmem:[#allocation5 + $0x90] sm:$0xff] %vm1529, %v1374
          %1549 = vst.msk [vmem:[#allocation5 + $0x98] sm:$0xff] %vm1529, %v1376
          %1550 = vst.msk [vmem:[#allocation5 + $0xa0] sm:$0xff] %vm1529, %v1378
          %1551 = vst.msk [vmem:[#allocation5 + $0xa8] sm:$0xff] %vm1529, %v1380
          %1552 = vst.msk [vmem:[#allocation5 + $0xb0] sm:$0xff] %vm1529, %v1382
          %1553 = vst.msk [vmem:[#allocation5 + $0xb8] sm:$0xff] %vm1529, %v1384
          %1554 = vst.msk [vmem:[#allocation5 + $0xc0] sm:$0xff] %vm1529, %v1386
          %1555 = vst.msk [vmem:[#allocation5 + $0xc8] sm:$0xff] %vm1529, %v1388
          %1556 = vst.msk [vmem:[#allocation5 + $0xd0] sm:$0xff] %vm1529, %v1390
          %1557 = vst.msk [vmem:[#allocation5 + $0xd8] sm:$0xff] %vm1529, %v1392
          %1558 = vst.msk [vmem:[#allocation5 + $0xe0] sm:$0xff] %vm1529, %v1394
          %1559 = vst.msk [vmem:[#allocation5 + $0xe8] sm:$0xff] %vm1529, %v1396
          %1560 = vst.msk [vmem:[#allocation5 + $0xf0] sm:$0xff] %vm1529, %v1398
          %1561 = vst.msk [vmem:[#allocation5 + $0xf8] sm:$0xff] %vm1529, %v1400
          %1562 = vst.msk [vmem:[#allocation5 + $0x100] sm:$0xff] %vm1529, %v1402
          %1563 = vst.msk [vmem:[#allocation5 + $0x108] sm:$0xff] %vm1529, %v1404
          %1564 = vst.msk [vmem:[#allocation5 + $0x110] sm:$0xff] %vm1529, %v1406
          %1565 = vst.msk [vmem:[#allocation5 + $0x118] sm:$0xff] %vm1529, %v1408
          %1566 = vst.msk [vmem:[#allocation5 + $0x120] sm:$0xff] %vm1529, %v1410
          %1567 = vst.msk [vmem:[#allocation5 + $0x128] sm:$0xff] %vm1529, %v1412
          %1568 = vst.msk [vmem:[#allocation5 + $0x130] sm:$0xff] %vm1529, %v1414
          %1569 = vst.msk [vmem:[#allocation5 + $0x138] sm:$0xff] %vm1529, %v1416
          %1570 = vst.msk [vmem:[#allocation5 + $0x140] sm:$0xff] %vm1529, %v1418
          %1571 = vst.msk [vmem:[#allocation5 + $0x148] sm:$0xff] %vm1529, %v1420
          %1572 = vst.msk [vmem:[#allocation5 + $0x150] sm:$0xff] %vm1529, %v1422
          %1573 = vst.msk [vmem:[#allocation5 + $0x158] sm:$0xff] %vm1529, %v1424
          %1574 = vst.msk [vmem:[#allocation5 + $0x160] sm:$0xff] %vm1529, %v1426
          %1575 = vst.msk [vmem:[#allocation5 + $0x168] sm:$0xff] %vm1529, %v1428
          %1576 = vst.msk [vmem:[#allocation5 + $0x170] sm:$0xff] %vm1529, %v1430
          %1577 = vst.msk [vmem:[#allocation5 + $0x178] sm:$0xff] %vm1529, %v1432
          %1578 = vst.msk [vmem:[#allocation5 + $0x180] sm:$0xff] %vm1529, %v1434
          %1579 = vst.msk [vmem:[#allocation5 + $0x188] sm:$0xff] %vm1529, %v1436
          %1580 = vst.msk [vmem:[#allocation5 + $0x190] sm:$0xff] %vm1529, %v1438
          %1581 = vst.msk [vmem:[#allocation5 + $0x198] sm:$0xff] %vm1529, %v1440
          %1582 = vst.msk [vmem:[#allocation5 + $0x1a0] sm:$0xff] %vm1529, %v1442
          %1583 = vst.msk [vmem:[#allocation5 + $0x1a8] sm:$0xff] %vm1529, %v1444
          %1584 = vst.msk [vmem:[#allocation5 + $0x1b0] sm:$0xff] %vm1529, %v1446
          %1585 = vst.msk [vmem:[#allocation5 + $0x1b8] sm:$0xff] %vm1529, %v1448
          %1586 = vst.msk [vmem:[#allocation5 + $0x1c0] sm:$0xff] %vm1529, %v1450
          %1587 = vst.msk [vmem:[#allocation5 + $0x1c8] sm:$0xff] %vm1529, %v1452
          %1588 = vst.msk [vmem:[#allocation5 + $0x1d0] sm:$0xff] %vm1529, %v1454
          %1589 = vst.msk [vmem:[#allocation5 + $0x1d8] sm:$0xff] %vm1529, %v1456
          %1590 = vst.msk [vmem:[#allocation5 + $0x1e0] sm:$0xff] %vm1529, %v1458
          %1591 = vst.msk [vmem:[#allocation5 + $0x1e8] sm:$0xff] %vm1529, %v1460
          %1592 = vst.msk [vmem:[#allocation5 + $0x1f0] sm:$0xff] %vm1529, %v1462
          %1593 = vst.msk [vmem:[#allocation5 + $0x1f8] sm:$0xff] %vm1529, %v1464
          %v1594 = vld [vmem:[%s622] sm:$0xff]
          %v1595 = vld [vmem:[%s622 + $0x8] sm:$0xff]
          %v1596 = vld [vmem:[%s622 + $0x18] sm:$0xff]
          %v1597 = vld [vmem:[%s622 + $0x20] sm:$0xff]
          %v1598 = vld [vmem:[%s622 + $0x30] sm:$0xff]
          %v1599 = vld [vmem:[%s622 + $0x38] sm:$0xff]
          %v1600 = vld [vmem:[%s622 + $0x48] sm:$0xff]
          %v1601 = vld [vmem:[%s622 + $0x50] sm:$0xff]
          %v1602 = vld [vmem:[%s622 + $0x60] sm:$0xff]
          %v1603 = vld [vmem:[%s622 + $0x68] sm:$0xff]
          %v1604 = vld [vmem:[%s622 + $0x78] sm:$0xff]
          %v1605 = vld [vmem:[%s622 + $0x80] sm:$0xff]
          %v1606 = vld [vmem:[%s622 + $0x90] sm:$0xff]
          %v1607 = vld [vmem:[%s622 + $0x98] sm:$0xff]
          %v1608 = vld [vmem:[%s622 + $0xa8] sm:$0xff]
          %v1609 = vld [vmem:[%s622 + $0xb0] sm:$0xff]
          %v1610 = vld [vmem:[%s622 + $0xc0] sm:$0xff]
          %v1611 = vld [vmem:[%s622 + $0xc8] sm:$0xff]
          %v1612 = vld [vmem:[%s622 + $0xd8] sm:$0xff]
          %v1613 = vld [vmem:[%s622 + $0xe0] sm:$0xff]
          %v1614 = vld [vmem:[%s622 + $0xf0] sm:$0xff]
          %v1615 = vld [vmem:[%s622 + $0xf8] sm:$0xff]
          %v1616 = vld [vmem:[%s622 + $0x108] sm:$0xff]
          %v1617 = vld [vmem:[%s622 + $0x110] sm:$0xff]
          %v1618 = vld [vmem:[%s622 + $0x120] sm:$0xff]
          %v1619 = vld [vmem:[%s622 + $0x128] sm:$0xff]
          %v1620 = vld [vmem:[%s622 + $0x138] sm:$0xff]
          %v1621 = vld [vmem:[%s622 + $0x140] sm:$0xff]
          %v1622 = vld [vmem:[%s622 + $0x150] sm:$0xff]
          %v1623 = vld [vmem:[%s622 + $0x158] sm:$0xff]
          %v1624 = vld [vmem:[%s622 + $0x168] sm:$0xff]
          %v1625 = vld [vmem:[%s622 + $0x170] sm:$0xff]
          %v1626 = vld [vmem:[%s622 + $0x1b0] sm:$0xff]
          %v1627 = vld [vmem:[%s622 + $0x1b8] sm:$0xff]
          %v1628 = vld [vmem:[%s622 + $0x1c8] sm:$0xff]
          %v1629 = vld [vmem:[%s622 + $0x1d0] sm:$0xff]
          %v1630 = vld [vmem:[%s622 + $0x1e0] sm:$0xff]
          %v1631 = vld [vmem:[%s622 + $0x1e8] sm:$0xff]
          %v1632 = vld [vmem:[%s622 + $0x1f8] sm:$0xff]
          %v1633 = vld [vmem:[%s622 + $0x200] sm:$0xff]
          %v1634 = vld [vmem:[%s622 + $0x210] sm:$0xff]
          %v1635 = vld [vmem:[%s622 + $0x218] sm:$0xff]
          %v1636 = vld [vmem:[%s622 + $0x228] sm:$0xff]
          %v1637 = vld [vmem:[%s622 + $0x230] sm:$0xff]
          %v1638 = vld [vmem:[%s622 + $0x240] sm:$0xff]
          %v1639 = vld [vmem:[%s622 + $0x248] sm:$0xff]
          %v1640 = vld [vmem:[%s622 + $0x258] sm:$0xff]
          %v1641 = vld [vmem:[%s622 + $0x260] sm:$0xff]
          %v1642 = vld [vmem:[%s622 + $0x270] sm:$0xff]
          %v1643 = vld [vmem:[%s622 + $0x278] sm:$0xff]
          %v1644 = vld [vmem:[%s622 + $0x288] sm:$0xff]
          %v1645 = vld [vmem:[%s622 + $0x290] sm:$0xff]
          %v1646 = vld [vmem:[%s622 + $0x2a0] sm:$0xff]
          %v1647 = vld [vmem:[%s622 + $0x2a8] sm:$0xff]
          %v1648 = vld [vmem:[%s622 + $0x2b8] sm:$0xff]
          %v1649 = vld [vmem:[%s622 + $0x2c0] sm:$0xff]
          %v1650 = vld [vmem:[%s622 + $0x2d0] sm:$0xff]
          %v1651 = vld [vmem:[%s622 + $0x2d8] sm:$0xff]
          %v1652 = vld [vmem:[%s622 + $0x2e8] sm:$0xff]
          %v1653 = vld [vmem:[%s622 + $0x2f0] sm:$0xff]
          %v1654 = vld [vmem:[%s622 + $0x300] sm:$0xff]
          %v1655 = vld [vmem:[%s622 + $0x308] sm:$0xff]
          %v1656 = vld [vmem:[%s622 + $0x318] sm:$0xff]
          %v1657 = vld [vmem:[%s622 + $0x320] sm:$0xff]
          %1722 = vrot.lane.b32.xlu0 %v1594, 24
          %v1723 = vpop.permute.xlu0 %1722
          %1724 = vrot.lane.b32.xlu0 %v1595, 24
          %v1725 = vpop.permute.xlu0 %1724
          %1726 = vrot.lane.b32.xlu0 %v1596, 24
          %v1727 = vpop.permute.xlu0 %1726
          %1728 = vrot.lane.b32.xlu0 %v1597, 24
          %v1729 = vpop.permute.xlu0 %1728
          %1730 = vrot.lane.b32.xlu0 %v1598, 24
          %v1731 = vpop.permute.xlu0 %1730
          %1732 = vrot.lane.b32.xlu0 %v1599, 24
          %v1733 = vpop.permute.xlu0 %1732
          %1734 = vrot.lane.b32.xlu0 %v1600, 24
          %v1735 = vpop.permute.xlu0 %1734
          %1736 = vrot.lane.b32.xlu0 %v1601, 24
          %v1737 = vpop.permute.xlu0 %1736
          %1738 = vrot.lane.b32.xlu0 %v1602, 24
          %v1739 = vpop.permute.xlu0 %1738
          %1740 = vrot.lane.b32.xlu0 %v1603, 24
          %v1741 = vpop.permute.xlu0 %1740
          %1742 = vrot.lane.b32.xlu0 %v1604, 24
          %v1743 = vpop.permute.xlu0 %1742
          %1744 = vrot.lane.b32.xlu0 %v1605, 24
          %v1745 = vpop.permute.xlu0 %1744
          %1746 = vrot.lane.b32.xlu0 %v1606, 24
          %v1747 = vpop.permute.xlu0 %1746
          %1748 = vrot.lane.b32.xlu0 %v1607, 24
          %v1749 = vpop.permute.xlu0 %1748
          %1750 = vrot.lane.b32.xlu0 %v1608, 24
          %v1751 = vpop.permute.xlu0 %1750
          %1752 = vrot.lane.b32.xlu0 %v1609, 24
          %v1753 = vpop.permute.xlu0 %1752
          %1754 = vrot.lane.b32.xlu0 %v1610, 24
          %v1755 = vpop.permute.xlu0 %1754
          %1756 = vrot.lane.b32.xlu0 %v1611, 24
          %v1757 = vpop.permute.xlu0 %1756
          %1758 = vrot.lane.b32.xlu0 %v1612, 24
          %v1759 = vpop.permute.xlu0 %1758
          %1760 = vrot.lane.b32.xlu0 %v1613, 24
          %v1761 = vpop.permute.xlu0 %1760
          %1762 = vrot.lane.b32.xlu0 %v1614, 24
          %v1763 = vpop.permute.xlu0 %1762
          %1764 = vrot.lane.b32.xlu0 %v1615, 24
          %v1765 = vpop.permute.xlu0 %1764
          %1766 = vrot.lane.b32.xlu0 %v1616, 24
          %v1767 = vpop.permute.xlu0 %1766
          %1768 = vrot.lane.b32.xlu0 %v1617, 24
          %v1769 = vpop.permute.xlu0 %1768
          %1770 = vrot.lane.b32.xlu0 %v1618, 24
          %v1771 = vpop.permute.xlu0 %1770
          %1772 = vrot.lane.b32.xlu0 %v1619, 24
          %v1773 = vpop.permute.xlu0 %1772
          %1774 = vrot.lane.b32.xlu0 %v1620, 24
          %v1775 = vpop.permute.xlu0 %1774
          %1776 = vrot.lane.b32.xlu0 %v1621, 24
          %v1777 = vpop.permute.xlu0 %1776
          %1778 = vrot.lane.b32.xlu0 %v1622, 24
          %v1779 = vpop.permute.xlu0 %1778
          %1780 = vrot.lane.b32.xlu0 %v1623, 24
          %v1781 = vpop.permute.xlu0 %1780
          %1782 = vrot.lane.b32.xlu0 %v1624, 24
          %v1783 = vpop.permute.xlu0 %1782
          %1784 = vrot.lane.b32.xlu0 %v1625, 24
          %v1785 = vpop.permute.xlu0 %1784
          %1786 = vrot.lane.b32.xlu0 %v1626, 24
          %v1787 = vpop.permute.xlu0 %1786
          %1788 = vrot.lane.b32.xlu0 %v1627, 24
          %v1789 = vpop.permute.xlu0 %1788
          %1790 = vrot.lane.b32.xlu0 %v1628, 24
          %v1791 = vpop.permute.xlu0 %1790
          %1792 = vrot.lane.b32.xlu0 %v1629, 24
          %v1793 = vpop.permute.xlu0 %1792
          %1794 = vrot.lane.b32.xlu0 %v1630, 24
          %v1795 = vpop.permute.xlu0 %1794
          %1796 = vrot.lane.b32.xlu0 %v1631, 24
          %v1797 = vpop.permute.xlu0 %1796
          %1798 = vrot.lane.b32.xlu0 %v1632, 24
          %v1799 = vpop.permute.xlu0 %1798
          %1800 = vrot.lane.b32.xlu0 %v1633, 24
          %v1801 = vpop.permute.xlu0 %1800
          %1802 = vrot.lane.b32.xlu0 %v1634, 24
          %v1803 = vpop.permute.xlu0 %1802
          %1804 = vrot.lane.b32.xlu0 %v1635, 24
          %v1805 = vpop.permute.xlu0 %1804
          %1806 = vrot.lane.b32.xlu0 %v1636, 24
          %v1807 = vpop.permute.xlu0 %1806
          %1808 = vrot.lane.b32.xlu0 %v1637, 24
          %v1809 = vpop.permute.xlu0 %1808
          %1810 = vrot.lane.b32.xlu0 %v1638, 24
          %v1811 = vpop.permute.xlu0 %1810
          %1812 = vrot.lane.b32.xlu0 %v1639, 24
          %v1813 = vpop.permute.xlu0 %1812
          %1814 = vrot.lane.b32.xlu0 %v1640, 24
          %v1815 = vpop.permute.xlu0 %1814
          %1816 = vrot.lane.b32.xlu0 %v1641, 24
          %v1817 = vpop.permute.xlu0 %1816
          %1818 = vrot.lane.b32.xlu0 %v1642, 24
          %v1819 = vpop.permute.xlu0 %1818
          %1820 = vrot.lane.b32.xlu0 %v1643, 24
          %v1821 = vpop.permute.xlu0 %1820
          %1822 = vrot.lane.b32.xlu0 %v1644, 24
          %v1823 = vpop.permute.xlu0 %1822
          %1824 = vrot.lane.b32.xlu0 %v1645, 24
          %v1825 = vpop.permute.xlu0 %1824
          %1826 = vrot.lane.b32.xlu0 %v1646, 24
          %v1827 = vpop.permute.xlu0 %1826
          %1828 = vrot.lane.b32.xlu0 %v1647, 24
          %v1829 = vpop.permute.xlu0 %1828
          %1830 = vrot.lane.b32.xlu0 %v1648, 24
          %v1831 = vpop.permute.xlu0 %1830
          %1832 = vrot.lane.b32.xlu0 %v1649, 24
          %v1833 = vpop.permute.xlu0 %1832
          %1834 = vrot.lane.b32.xlu0 %v1650, 24
          %v1835 = vpop.permute.xlu0 %1834
          %1836 = vrot.lane.b32.xlu0 %v1651, 24
          %v1837 = vpop.permute.xlu0 %1836
          %1838 = vrot.lane.b32.xlu0 %v1652, 24
          %v1839 = vpop.permute.xlu0 %1838
          %1840 = vrot.lane.b32.xlu0 %v1653, 24
          %v1841 = vpop.permute.xlu0 %1840
          %1842 = vrot.lane.b32.xlu0 %v1654, 24
          %v1843 = vpop.permute.xlu0 %1842
          %1844 = vrot.lane.b32.xlu0 %v1655, 24
          %v1845 = vpop.permute.xlu0 %1844
          %1846 = vrot.lane.b32.xlu0 %v1656, 24
          %v1847 = vpop.permute.xlu0 %1846
          %1848 = vrot.lane.b32.xlu0 %v1657, 24
          %v1849 = vpop.permute.xlu0 %1848
          %vm1914 = vcmask 261312
          %1915 = vst.msk [vmem:[#allocation5] sm:$0xff] %vm1914, %v1723
          %1916 = vst.msk [vmem:[#allocation5 + $0x8] sm:$0xff] %vm1914, %v1725
          %1917 = vst.msk [vmem:[#allocation5 + $0x10] sm:$0xff] %vm1914, %v1727
          %1918 = vst.msk [vmem:[#allocation5 + $0x18] sm:$0xff] %vm1914, %v1729
          %1919 = vst.msk [vmem:[#allocation5 + $0x20] sm:$0xff] %vm1914, %v1731
          %1920 = vst.msk [vmem:[#allocation5 + $0x28] sm:$0xff] %vm1914, %v1733
          %1921 = vst.msk [vmem:[#allocation5 + $0x30] sm:$0xff] %vm1914, %v1735
          %1922 = vst.msk [vmem:[#allocation5 + $0x38] sm:$0xff] %vm1914, %v1737
          %1923 = vst.msk [vmem:[#allocation5 + $0x40] sm:$0xff] %vm1914, %v1739
          %1924 = vst.msk [vmem:[#allocation5 + $0x48] sm:$0xff] %vm1914, %v1741
          %1925 = vst.msk [vmem:[#allocation5 + $0x50] sm:$0xff] %vm1914, %v1743
          %1926 = vst.msk [vmem:[#allocation5 + $0x58] sm:$0xff] %vm1914, %v1745
          %1927 = vst.msk [vmem:[#allocation5 + $0x60] sm:$0xff] %vm1914, %v1747
          %1928 = vst.msk [vmem:[#allocation5 + $0x68] sm:$0xff] %vm1914, %v1749
          %1929 = vst.msk [vmem:[#allocation5 + $0x70] sm:$0xff] %vm1914, %v1751
          %1930 = vst.msk [vmem:[#allocation5 + $0x78] sm:$0xff] %vm1914, %v1753
          %1931 = vst.msk [vmem:[#allocation5 + $0x80] sm:$0xff] %vm1914, %v1755
          %1932 = vst.msk [vmem:[#allocation5 + $0x88] sm:$0xff] %vm1914, %v1757
          %1933 = vst.msk [vmem:[#allocation5 + $0x90] sm:$0xff] %vm1914, %v1759
          %1934 = vst.msk [vmem:[#allocation5 + $0x98] sm:$0xff] %vm1914, %v1761
          %1935 = vst.msk [vmem:[#allocation5 + $0xa0] sm:$0xff] %vm1914, %v1763
          %1936 = vst.msk [vmem:[#allocation5 + $0xa8] sm:$0xff] %vm1914, %v1765
          %1937 = vst.msk [vmem:[#allocation5 + $0xb0] sm:$0xff] %vm1914, %v1767
          %1938 = vst.msk [vmem:[#allocation5 + $0xb8] sm:$0xff] %vm1914, %v1769
          %1939 = vst.msk [vmem:[#allocation5 + $0xc0] sm:$0xff] %vm1914, %v1771
          %1940 = vst.msk [vmem:[#allocation5 + $0xc8] sm:$0xff] %vm1914, %v1773
          %1941 = vst.msk [vmem:[#allocation5 + $0xd0] sm:$0xff] %vm1914, %v1775
          %1942 = vst.msk [vmem:[#allocation5 + $0xd8] sm:$0xff] %vm1914, %v1777
          %1943 = vst.msk [vmem:[#allocation5 + $0xe0] sm:$0xff] %vm1914, %v1779
          %1944 = vst.msk [vmem:[#allocation5 + $0xe8] sm:$0xff] %vm1914, %v1781
          %1945 = vst.msk [vmem:[#allocation5 + $0xf0] sm:$0xff] %vm1914, %v1783
          %1946 = vst.msk [vmem:[#allocation5 + $0xf8] sm:$0xff] %vm1914, %v1785
          %1947 = vst.msk [vmem:[#allocation5 + $0x100] sm:$0xff] %vm1914, %v1787
          %1948 = vst.msk [vmem:[#allocation5 + $0x108] sm:$0xff] %vm1914, %v1789
          %1949 = vst.msk [vmem:[#allocation5 + $0x110] sm:$0xff] %vm1914, %v1791
          %1950 = vst.msk [vmem:[#allocation5 + $0x118] sm:$0xff] %vm1914, %v1793
          %1951 = vst.msk [vmem:[#allocation5 + $0x120] sm:$0xff] %vm1914, %v1795
          %1952 = vst.msk [vmem:[#allocation5 + $0x128] sm:$0xff] %vm1914, %v1797
          %1953 = vst.msk [vmem:[#allocation5 + $0x130] sm:$0xff] %vm1914, %v1799
          %1954 = vst.msk [vmem:[#allocation5 + $0x138] sm:$0xff] %vm1914, %v1801
          %1955 = vst.msk [vmem:[#allocation5 + $0x140] sm:$0xff] %vm1914, %v1803
          %1956 = vst.msk [vmem:[#allocation5 + $0x148] sm:$0xff] %vm1914, %v1805
          %1957 = vst.msk [vmem:[#allocation5 + $0x150] sm:$0xff] %vm1914, %v1807
          %1958 = vst.msk [vmem:[#allocation5 + $0x158] sm:$0xff] %vm1914, %v1809
          %1959 = vst.msk [vmem:[#allocation5 + $0x160] sm:$0xff] %vm1914, %v1811
          %1960 = vst.msk [vmem:[#allocation5 + $0x168] sm:$0xff] %vm1914, %v1813
          %1961 = vst.msk [vmem:[#allocation5 + $0x170] sm:$0xff] %vm1914, %v1815
          %1962 = vst.msk [vmem:[#allocation5 + $0x178] sm:$0xff] %vm1914, %v1817
          %1963 = vst.msk [vmem:[#allocation5 + $0x180] sm:$0xff] %vm1914, %v1819
          %1964 = vst.msk [vmem:[#allocation5 + $0x188] sm:$0xff] %vm1914, %v1821
          %1965 = vst.msk [vmem:[#allocation5 + $0x190] sm:$0xff] %vm1914, %v1823
          %1966 = vst.msk [vmem:[#allocation5 + $0x198] sm:$0xff] %vm1914, %v1825
          %1967 = vst.msk [vmem:[#allocation5 + $0x1a0] sm:$0xff] %vm1914, %v1827
          %1968 = vst.msk [vmem:[#allocation5 + $0x1a8] sm:$0xff] %vm1914, %v1829
          %1969 = vst.msk [vmem:[#allocation5 + $0x1b0] sm:$0xff] %vm1914, %v1831
          %1970 = vst.msk [vmem:[#allocation5 + $0x1b8] sm:$0xff] %vm1914, %v1833
          %1971 = vst.msk [vmem:[#allocation5 + $0x1c0] sm:$0xff] %vm1914, %v1835
          %1972 = vst.msk [vmem:[#allocation5 + $0x1c8] sm:$0xff] %vm1914, %v1837
          %1973 = vst.msk [vmem:[#allocation5 + $0x1d0] sm:$0xff] %vm1914, %v1839
          %1974 = vst.msk [vmem:[#allocation5 + $0x1d8] sm:$0xff] %vm1914, %v1841
          %1975 = vst.msk [vmem:[#allocation5 + $0x1e0] sm:$0xff] %vm1914, %v1843
          %1976 = vst.msk [vmem:[#allocation5 + $0x1e8] sm:$0xff] %vm1914, %v1845
          %1977 = vst.msk [vmem:[#allocation5 + $0x1f0] sm:$0xff] %vm1914, %v1847
          %1978 = vst.msk [vmem:[#allocation5 + $0x1f8] sm:$0xff] %vm1914, %v1849
          %v1979 = vld [vmem:[%s622 + $0x1] sm:$0xff]
          %v1980 = vld [vmem:[%s622 + $0x9] sm:$0xff]
          %v1981 = vld [vmem:[%s622 + $0x19] sm:$0xff]
          %v1982 = vld [vmem:[%s622 + $0x21] sm:$0xff]
          %v1983 = vld [vmem:[%s622 + $0x31] sm:$0xff]
          %v1984 = vld [vmem:[%s622 + $0x39] sm:$0xff]
          %v1985 = vld [vmem:[%s622 + $0x49] sm:$0xff]
          %v1986 = vld [vmem:[%s622 + $0x51] sm:$0xff]
          %v1987 = vld [vmem:[%s622 + $0x61] sm:$0xff]
          %v1988 = vld [vmem:[%s622 + $0x69] sm:$0xff]
          %v1989 = vld [vmem:[%s622 + $0x79] sm:$0xff]
          %v1990 = vld [vmem:[%s622 + $0x81] sm:$0xff]
          %v1991 = vld [vmem:[%s622 + $0x91] sm:$0xff]
          %v1992 = vld [vmem:[%s622 + $0x99] sm:$0xff]
          %v1993 = vld [vmem:[%s622 + $0xa9] sm:$0xff]
          %v1994 = vld [vmem:[%s622 + $0xb1] sm:$0xff]
          %v1995 = vld [vmem:[%s622 + $0xc1] sm:$0xff]
          %v1996 = vld [vmem:[%s622 + $0xc9] sm:$0xff]
          %v1997 = vld [vmem:[%s622 + $0xd9] sm:$0xff]
          %v1998 = vld [vmem:[%s622 + $0xe1] sm:$0xff]
          %v1999 = vld [vmem:[%s622 + $0xf1] sm:$0xff]
          %v2000 = vld [vmem:[%s622 + $0xf9] sm:$0xff]
          %v2001 = vld [vmem:[%s622 + $0x109] sm:$0xff]
          %v2002 = vld [vmem:[%s622 + $0x111] sm:$0xff]
          %v2003 = vld [vmem:[%s622 + $0x121] sm:$0xff]
          %v2004 = vld [vmem:[%s622 + $0x129] sm:$0xff]
          %v2005 = vld [vmem:[%s622 + $0x139] sm:$0xff]
          %v2006 = vld [vmem:[%s622 + $0x141] sm:$0xff]
          %v2007 = vld [vmem:[%s622 + $0x151] sm:$0xff]
          %v2008 = vld [vmem:[%s622 + $0x159] sm:$0xff]
          %v2009 = vld [vmem:[%s622 + $0x169] sm:$0xff]
          %v2010 = vld [vmem:[%s622 + $0x171] sm:$0xff]
          %v2011 = vld [vmem:[%s622 + $0x1b1] sm:$0xff]
          %v2012 = vld [vmem:[%s622 + $0x1b9] sm:$0xff]
          %v2013 = vld [vmem:[%s622 + $0x1c9] sm:$0xff]
          %v2014 = vld [vmem:[%s622 + $0x1d1] sm:$0xff]
          %v2015 = vld [vmem:[%s622 + $0x1e1] sm:$0xff]
          %v2016 = vld [vmem:[%s622 + $0x1e9] sm:$0xff]
          %v2017 = vld [vmem:[%s622 + $0x1f9] sm:$0xff]
          %v2018 = vld [vmem:[%s622 + $0x201] sm:$0xff]
          %v2019 = vld [vmem:[%s622 + $0x211] sm:$0xff]
          %v2020 = vld [vmem:[%s622 + $0x219] sm:$0xff]
          %v2021 = vld [vmem:[%s622 + $0x229] sm:$0xff]
          %v2022 = vld [vmem:[%s622 + $0x231] sm:$0xff]
          %v2023 = vld [vmem:[%s622 + $0x241] sm:$0xff]
          %v2024 = vld [vmem:[%s622 + $0x249] sm:$0xff]
          %v2025 = vld [vmem:[%s622 + $0x259] sm:$0xff]
          %v2026 = vld [vmem:[%s622 + $0x261] sm:$0xff]
          %v2027 = vld [vmem:[%s622 + $0x271] sm:$0xff]
          %v2028 = vld [vmem:[%s622 + $0x279] sm:$0xff]
          %v2029 = vld [vmem:[%s622 + $0x289] sm:$0xff]
          %v2030 = vld [vmem:[%s622 + $0x291] sm:$0xff]
          %v2031 = vld [vmem:[%s622 + $0x2a1] sm:$0xff]
          %v2032 = vld [vmem:[%s622 + $0x2a9] sm:$0xff]
          %v2033 = vld [vmem:[%s622 + $0x2b9] sm:$0xff]
          %v2034 = vld [vmem:[%s622 + $0x2c1] sm:$0xff]
          %v2035 = vld [vmem:[%s622 + $0x2d1] sm:$0xff]
          %v2036 = vld [vmem:[%s622 + $0x2d9] sm:$0xff]
          %v2037 = vld [vmem:[%s622 + $0x2e9] sm:$0xff]
          %v2038 = vld [vmem:[%s622 + $0x2f1] sm:$0xff]
          %v2039 = vld [vmem:[%s622 + $0x301] sm:$0xff]
          %v2040 = vld [vmem:[%s622 + $0x309] sm:$0xff]
          %v2041 = vld [vmem:[%s622 + $0x319] sm:$0xff]
          %v2042 = vld [vmem:[%s622 + $0x321] sm:$0xff]
          %2107 = vrot.lane.b32.xlu0 %v1979, 32
          %v2108 = vpop.permute.xlu0 %2107
          %2109 = vrot.lane.b32.xlu0 %v1980, 32
          %v2110 = vpop.permute.xlu0 %2109
          %2111 = vrot.lane.b32.xlu0 %v1981, 32
          %v2112 = vpop.permute.xlu0 %2111
          %2113 = vrot.lane.b32.xlu0 %v1982, 32
          %v2114 = vpop.permute.xlu0 %2113
          %2115 = vrot.lane.b32.xlu0 %v1983, 32
          %v2116 = vpop.permute.xlu0 %2115
          %2117 = vrot.lane.b32.xlu0 %v1984, 32
          %v2118 = vpop.permute.xlu0 %2117
          %2119 = vrot.lane.b32.xlu0 %v1985, 32
          %v2120 = vpop.permute.xlu0 %2119
          %2121 = vrot.lane.b32.xlu0 %v1986, 32
          %v2122 = vpop.permute.xlu0 %2121
          %2123 = vrot.lane.b32.xlu0 %v1987, 32
          %v2124 = vpop.permute.xlu0 %2123
          %2125 = vrot.lane.b32.xlu0 %v1988, 32
          %v2126 = vpop.permute.xlu0 %2125
          %2127 = vrot.lane.b32.xlu0 %v1989, 32
          %v2128 = vpop.permute.xlu0 %2127
          %2129 = vrot.lane.b32.xlu0 %v1990, 32
          %v2130 = vpop.permute.xlu0 %2129
          %2131 = vrot.lane.b32.xlu0 %v1991, 32
          %v2132 = vpop.permute.xlu0 %2131
          %2133 = vrot.lane.b32.xlu0 %v1992, 32
          %v2134 = vpop.permute.xlu0 %2133
          %2135 = vrot.lane.b32.xlu0 %v1993, 32
          %v2136 = vpop.permute.xlu0 %2135
          %2137 = vrot.lane.b32.xlu0 %v1994, 32
          %v2138 = vpop.permute.xlu0 %2137
          %2139 = vrot.lane.b32.xlu0 %v1995, 32
          %v2140 = vpop.permute.xlu0 %2139
          %2141 = vrot.lane.b32.xlu0 %v1996, 32
          %v2142 = vpop.permute.xlu0 %2141
          %2143 = vrot.lane.b32.xlu0 %v1997, 32
          %v2144 = vpop.permute.xlu0 %2143
          %2145 = vrot.lane.b32.xlu0 %v1998, 32
          %v2146 = vpop.permute.xlu0 %2145
          %2147 = vrot.lane.b32.xlu0 %v1999, 32
          %v2148 = vpop.permute.xlu0 %2147
          %2149 = vrot.lane.b32.xlu0 %v2000, 32
          %v2150 = vpop.permute.xlu0 %2149
          %2151 = vrot.lane.b32.xlu0 %v2001, 32
          %v2152 = vpop.permute.xlu0 %2151
          %2153 = vrot.lane.b32.xlu0 %v2002, 32
          %v2154 = vpop.permute.xlu0 %2153
          %2155 = vrot.lane.b32.xlu0 %v2003, 32
          %v2156 = vpop.permute.xlu0 %2155
          %2157 = vrot.lane.b32.xlu0 %v2004, 32
          %v2158 = vpop.permute.xlu0 %2157
          %2159 = vrot.lane.b32.xlu0 %v2005, 32
          %v2160 = vpop.permute.xlu0 %2159
          %2161 = vrot.lane.b32.xlu0 %v2006, 32
          %v2162 = vpop.permute.xlu0 %2161
          %2163 = vrot.lane.b32.xlu0 %v2007, 32
          %v2164 = vpop.permute.xlu0 %2163
          %2165 = vrot.lane.b32.xlu0 %v2008, 32
          %v2166 = vpop.permute.xlu0 %2165
          %2167 = vrot.lane.b32.xlu0 %v2009, 32
          %v2168 = vpop.permute.xlu0 %2167
          %2169 = vrot.lane.b32.xlu0 %v2010, 32
          %v2170 = vpop.permute.xlu0 %2169
          %2171 = vrot.lane.b32.xlu0 %v2011, 32
          %v2172 = vpop.permute.xlu0 %2171
          %2173 = vrot.lane.b32.xlu0 %v2012, 32
          %v2174 = vpop.permute.xlu0 %2173
          %2175 = vrot.lane.b32.xlu0 %v2013, 32
          %v2176 = vpop.permute.xlu0 %2175
          %2177 = vrot.lane.b32.xlu0 %v2014, 32
          %v2178 = vpop.permute.xlu0 %2177
          %2179 = vrot.lane.b32.xlu0 %v2015, 32
          %v2180 = vpop.permute.xlu0 %2179
          %2181 = vrot.lane.b32.xlu0 %v2016, 32
          %v2182 = vpop.permute.xlu0 %2181
          %2183 = vrot.lane.b32.xlu0 %v2017, 32
          %v2184 = vpop.permute.xlu0 %2183
          %2185 = vrot.lane.b32.xlu0 %v2018, 32
          %v2186 = vpop.permute.xlu0 %2185
          %2187 = vrot.lane.b32.xlu0 %v2019, 32
          %v2188 = vpop.permute.xlu0 %2187
          %2189 = vrot.lane.b32.xlu0 %v2020, 32
          %v2190 = vpop.permute.xlu0 %2189
          %2191 = vrot.lane.b32.xlu0 %v2021, 32
          %v2192 = vpop.permute.xlu0 %2191
          %2193 = vrot.lane.b32.xlu0 %v2022, 32
          %v2194 = vpop.permute.xlu0 %2193
          %2195 = vrot.lane.b32.xlu0 %v2023, 32
          %v2196 = vpop.permute.xlu0 %2195
          %2197 = vrot.lane.b32.xlu0 %v2024, 32
          %v2198 = vpop.permute.xlu0 %2197
          %2199 = vrot.lane.b32.xlu0 %v2025, 32
          %v2200 = vpop.permute.xlu0 %2199
          %2201 = vrot.lane.b32.xlu0 %v2026, 32
          %v2202 = vpop.permute.xlu0 %2201
          %2203 = vrot.lane.b32.xlu0 %v2027, 32
          %v2204 = vpop.permute.xlu0 %2203
          %2205 = vrot.lane.b32.xlu0 %v2028, 32
          %v2206 = vpop.permute.xlu0 %2205
          %2207 = vrot.lane.b32.xlu0 %v2029, 32
          %v2208 = vpop.permute.xlu0 %2207
          %2209 = vrot.lane.b32.xlu0 %v2030, 32
          %v2210 = vpop.permute.xlu0 %2209
          %2211 = vrot.lane.b32.xlu0 %v2031, 32
          %v2212 = vpop.permute.xlu0 %2211
          %2213 = vrot.lane.b32.xlu0 %v2032, 32
          %v2214 = vpop.permute.xlu0 %2213
          %2215 = vrot.lane.b32.xlu0 %v2033, 32
          %v2216 = vpop.permute.xlu0 %2215
          %2217 = vrot.lane.b32.xlu0 %v2034, 32
          %v2218 = vpop.permute.xlu0 %2217
          %2219 = vrot.lane.b32.xlu0 %v2035, 32
          %v2220 = vpop.permute.xlu0 %2219
          %2221 = vrot.lane.b32.xlu0 %v2036, 32
          %v2222 = vpop.permute.xlu0 %2221
          %2223 = vrot.lane.b32.xlu0 %v2037, 32
          %v2224 = vpop.permute.xlu0 %2223
          %2225 = vrot.lane.b32.xlu0 %v2038, 32
          %v2226 = vpop.permute.xlu0 %2225
          %2227 = vrot.lane.b32.xlu0 %v2039, 32
          %v2228 = vpop.permute.xlu0 %2227
          %2229 = vrot.lane.b32.xlu0 %v2040, 32
          %v2230 = vpop.permute.xlu0 %2229
          %2231 = vrot.lane.b32.xlu0 %v2041, 32
          %v2232 = vpop.permute.xlu0 %2231
          %2233 = vrot.lane.b32.xlu0 %v2042, 32
          %v2234 = vpop.permute.xlu0 %2233
          %vm2299 = vcmask 326912
          %2300 = vst.msk [vmem:[#allocation5] sm:$0xff] %vm2299, %v2108
          %2301 = vst.msk [vmem:[#allocation5 + $0x8] sm:$0xff] %vm2299, %v2110
          %2302 = vst.msk [vmem:[#allocation5 + $0x10] sm:$0xff] %vm2299, %v2112
          %2303 = vst.msk [vmem:[#allocation5 + $0x18] sm:$0xff] %vm2299, %v2114
          %2304 = vst.msk [vmem:[#allocation5 + $0x20] sm:$0xff] %vm2299, %v2116
          %2305 = vst.msk [vmem:[#allocation5 + $0x28] sm:$0xff] %vm2299, %v2118
          %2306 = vst.msk [vmem:[#allocation5 + $0x30] sm:$0xff] %vm2299, %v2120
          %2307 = vst.msk [vmem:[#allocation5 + $0x38] sm:$0xff] %vm2299, %v2122
          %2308 = vst.msk [vmem:[#allocation5 + $0x40] sm:$0xff] %vm2299, %v2124
          %2309 = vst.msk [vmem:[#allocation5 + $0x48] sm:$0xff] %vm2299, %v2126
          %2310 = vst.msk [vmem:[#allocation5 + $0x50] sm:$0xff] %vm2299, %v2128
          %2311 = vst.msk [vmem:[#allocation5 + $0x58] sm:$0xff] %vm2299, %v2130
          %2312 = vst.msk [vmem:[#allocation5 + $0x60] sm:$0xff] %vm2299, %v2132
          %2313 = vst.msk [vmem:[#allocation5 + $0x68] sm:$0xff] %vm2299, %v2134
          %2314 = vst.msk [vmem:[#allocation5 + $0x70] sm:$0xff] %vm2299, %v2136
          %2315 = vst.msk [vmem:[#allocation5 + $0x78] sm:$0xff] %vm2299, %v2138
          %2316 = vst.msk [vmem:[#allocation5 + $0x80] sm:$0xff] %vm2299, %v2140
          %2317 = vst.msk [vmem:[#allocation5 + $0x88] sm:$0xff] %vm2299, %v2142
          %2318 = vst.msk [vmem:[#allocation5 + $0x90] sm:$0xff] %vm2299, %v2144
          %2319 = vst.msk [vmem:[#allocation5 + $0x98] sm:$0xff] %vm2299, %v2146
          %2320 = vst.msk [vmem:[#allocation5 + $0xa0] sm:$0xff] %vm2299, %v2148
          %2321 = vst.msk [vmem:[#allocation5 + $0xa8] sm:$0xff] %vm2299, %v2150
          %2322 = vst.msk [vmem:[#allocation5 + $0xb0] sm:$0xff] %vm2299, %v2152
          %2323 = vst.msk [vmem:[#allocation5 + $0xb8] sm:$0xff] %vm2299, %v2154
          %2324 = vst.msk [vmem:[#allocation5 + $0xc0] sm:$0xff] %vm2299, %v2156
          %2325 = vst.msk [vmem:[#allocation5 + $0xc8] sm:$0xff] %vm2299, %v2158
          %2326 = vst.msk [vmem:[#allocation5 + $0xd0] sm:$0xff] %vm2299, %v2160
          %2327 = vst.msk [vmem:[#allocation5 + $0xd8] sm:$0xff] %vm2299, %v2162
          %2328 = vst.msk [vmem:[#allocation5 + $0xe0] sm:$0xff] %vm2299, %v2164
          %2329 = vst.msk [vmem:[#allocation5 + $0xe8] sm:$0xff] %vm2299, %v2166
          %2330 = vst.msk [vmem:[#allocation5 + $0xf0] sm:$0xff] %vm2299, %v2168
          %2331 = vst.msk [vmem:[#allocation5 + $0xf8] sm:$0xff] %vm2299, %v2170
          %2332 = vst.msk [vmem:[#allocation5 + $0x100] sm:$0xff] %vm2299, %v2172
          %2333 = vst.msk [vmem:[#allocation5 + $0x108] sm:$0xff] %vm2299, %v2174
          %2334 = vst.msk [vmem:[#allocation5 + $0x110] sm:$0xff] %vm2299, %v2176
          %2335 = vst.msk [vmem:[#allocation5 + $0x118] sm:$0xff] %vm2299, %v2178
          %2336 = vst.msk [vmem:[#allocation5 + $0x120] sm:$0xff] %vm2299, %v2180
          %2337 = vst.msk [vmem:[#allocation5 + $0x128] sm:$0xff] %vm2299, %v2182
          %2338 = vst.msk [vmem:[#allocation5 + $0x130] sm:$0xff] %vm2299, %v2184
          %2339 = vst.msk [vmem:[#allocation5 + $0x138] sm:$0xff] %vm2299, %v2186
          %2340 = vst.msk [vmem:[#allocation5 + $0x140] sm:$0xff] %vm2299, %v2188
          %2341 = vst.msk [vmem:[#allocation5 + $0x148] sm:$0xff] %vm2299, %v2190
          %2342 = vst.msk [vmem:[#allocation5 + $0x150] sm:$0xff] %vm2299, %v2192
          %2343 = vst.msk [vmem:[#allocation5 + $0x158] sm:$0xff] %vm2299, %v2194
          %2344 = vst.msk [vmem:[#allocation5 + $0x160] sm:$0xff] %vm2299, %v2196
          %2345 = vst.msk [vmem:[#allocation5 + $0x168] sm:$0xff] %vm2299, %v2198
          %2346 = vst.msk [vmem:[#allocation5 + $0x170] sm:$0xff] %vm2299, %v2200
          %2347 = vst.msk [vmem:[#allocation5 + $0x178] sm:$0xff] %vm2299, %v2202
          %2348 = vst.msk [vmem:[#allocation5 + $0x180] sm:$0xff] %vm2299, %v2204
          %2349 = vst.msk [vmem:[#allocation5 + $0x188] sm:$0xff] %vm2299, %v2206
          %2350 = vst.msk [vmem:[#allocation5 + $0x190] sm:$0xff] %vm2299, %v2208
          %2351 = vst.msk [vmem:[#allocation5 + $0x198] sm:$0xff] %vm2299, %v2210
          %2352 = vst.msk [vmem:[#allocation5 + $0x1a0] sm:$0xff] %vm2299, %v2212
          %2353 = vst.msk [vmem:[#allocation5 + $0x1a8] sm:$0xff] %vm2299, %v2214
          %2354 = vst.msk [vmem:[#allocation5 + $0x1b0] sm:$0xff] %vm2299, %v2216
          %2355 = vst.msk [vmem:[#allocation5 + $0x1b8] sm:$0xff] %vm2299, %v2218
          %2356 = vst.msk [vmem:[#allocation5 + $0x1c0] sm:$0xff] %vm2299, %v2220
          %2357 = vst.msk [vmem:[#allocation5 + $0x1c8] sm:$0xff] %vm2299, %v2222
          %2358 = vst.msk [vmem:[#allocation5 + $0x1d0] sm:$0xff] %vm2299, %v2224
          %2359 = vst.msk [vmem:[#allocation5 + $0x1d8] sm:$0xff] %vm2299, %v2226
          %2360 = vst.msk [vmem:[#allocation5 + $0x1e0] sm:$0xff] %vm2299, %v2228
          %2361 = vst.msk [vmem:[#allocation5 + $0x1e8] sm:$0xff] %vm2299, %v2230
          %2362 = vst.msk [vmem:[#allocation5 + $0x1f0] sm:$0xff] %vm2299, %v2232
          %2363 = vst.msk [vmem:[#allocation5 + $0x1f8] sm:$0xff] %vm2299, %v2234
          %v2364 = vld [vmem:[%s622 + $0x2] sm:$0xff]
          %v2365 = vld [vmem:[%s622 + $0xa] sm:$0xff]
          %v2366 = vld [vmem:[%s622 + $0x1a] sm:$0xff]
          %v2367 = vld [vmem:[%s622 + $0x22] sm:$0xff]
          %v2368 = vld [vmem:[%s622 + $0x32] sm:$0xff]
          %v2369 = vld [vmem:[%s622 + $0x3a] sm:$0xff]
          %v2370 = vld [vmem:[%s622 + $0x4a] sm:$0xff]
          %v2371 = vld [vmem:[%s622 + $0x52] sm:$0xff]
          %v2372 = vld [vmem:[%s622 + $0x62] sm:$0xff]
          %v2373 = vld [vmem:[%s622 + $0x6a] sm:$0xff]
          %v2374 = vld [vmem:[%s622 + $0x7a] sm:$0xff]
          %v2375 = vld [vmem:[%s622 + $0x82] sm:$0xff]
          %v2376 = vld [vmem:[%s622 + $0x92] sm:$0xff]
          %v2377 = vld [vmem:[%s622 + $0x9a] sm:$0xff]
          %v2378 = vld [vmem:[%s622 + $0xaa] sm:$0xff]
          %v2379 = vld [vmem:[%s622 + $0xb2] sm:$0xff]
          %v2380 = vld [vmem:[%s622 + $0xc2] sm:$0xff]
          %v2381 = vld [vmem:[%s622 + $0xca] sm:$0xff]
          %v2382 = vld [vmem:[%s622 + $0xda] sm:$0xff]
          %v2383 = vld [vmem:[%s622 + $0xe2] sm:$0xff]
          %v2384 = vld [vmem:[%s622 + $0xf2] sm:$0xff]
          %v2385 = vld [vmem:[%s622 + $0xfa] sm:$0xff]
          %v2386 = vld [vmem:[%s622 + $0x10a] sm:$0xff]
          %v2387 = vld [vmem:[%s622 + $0x112] sm:$0xff]
          %v2388 = vld [vmem:[%s622 + $0x122] sm:$0xff]
          %v2389 = vld [vmem:[%s622 + $0x12a] sm:$0xff]
          %v2390 = vld [vmem:[%s622 + $0x13a] sm:$0xff]
          %v2391 = vld [vmem:[%s622 + $0x142] sm:$0xff]
          %v2392 = vld [vmem:[%s622 + $0x152] sm:$0xff]
          %v2393 = vld [vmem:[%s622 + $0x15a] sm:$0xff]
          %v2394 = vld [vmem:[%s622 + $0x16a] sm:$0xff]
          %v2395 = vld [vmem:[%s622 + $0x172] sm:$0xff]
          %v2396 = vld [vmem:[%s622 + $0x1b2] sm:$0xff]
          %v2397 = vld [vmem:[%s622 + $0x1ba] sm:$0xff]
          %v2398 = vld [vmem:[%s622 + $0x1ca] sm:$0xff]
          %v2399 = vld [vmem:[%s622 + $0x1d2] sm:$0xff]
          %v2400 = vld [vmem:[%s622 + $0x1e2] sm:$0xff]
          %v2401 = vld [vmem:[%s622 + $0x1ea] sm:$0xff]
          %v2402 = vld [vmem:[%s622 + $0x1fa] sm:$0xff]
          %v2403 = vld [vmem:[%s622 + $0x202] sm:$0xff]
          %v2404 = vld [vmem:[%s622 + $0x212] sm:$0xff]
          %v2405 = vld [vmem:[%s622 + $0x21a] sm:$0xff]
          %v2406 = vld [vmem:[%s622 + $0x22a] sm:$0xff]
          %v2407 = vld [vmem:[%s622 + $0x232] sm:$0xff]
          %v2408 = vld [vmem:[%s622 + $0x242] sm:$0xff]
          %v2409 = vld [vmem:[%s622 + $0x24a] sm:$0xff]
          %v2410 = vld [vmem:[%s622 + $0x25a] sm:$0xff]
          %v2411 = vld [vmem:[%s622 + $0x262] sm:$0xff]
          %v2412 = vld [vmem:[%s622 + $0x272] sm:$0xff]
          %v2413 = vld [vmem:[%s622 + $0x27a] sm:$0xff]
          %v2414 = vld [vmem:[%s622 + $0x28a] sm:$0xff]
          %v2415 = vld [vmem:[%s622 + $0x292] sm:$0xff]
          %v2416 = vld [vmem:[%s622 + $0x2a2] sm:$0xff]
          %v2417 = vld [vmem:[%s622 + $0x2aa] sm:$0xff]
          %v2418 = vld [vmem:[%s622 + $0x2ba] sm:$0xff]
          %v2419 = vld [vmem:[%s622 + $0x2c2] sm:$0xff]
          %v2420 = vld [vmem:[%s622 + $0x2d2] sm:$0xff]
          %v2421 = vld [vmem:[%s622 + $0x2da] sm:$0xff]
          %v2422 = vld [vmem:[%s622 + $0x2ea] sm:$0xff]
          %v2423 = vld [vmem:[%s622 + $0x2f2] sm:$0xff]
          %v2424 = vld [vmem:[%s622 + $0x302] sm:$0xff]
          %v2425 = vld [vmem:[%s622 + $0x30a] sm:$0xff]
          %v2426 = vld [vmem:[%s622 + $0x31a] sm:$0xff]
          %v2427 = vld [vmem:[%s622 + $0x322] sm:$0xff]
          %2492 = vrot.lane.b32.xlu0 %v2364, 40
          %v2493 = vpop.permute.xlu0 %2492
          %2494 = vrot.lane.b32.xlu0 %v2365, 40
          %v2495 = vpop.permute.xlu0 %2494
          %2496 = vrot.lane.b32.xlu0 %v2366, 40
          %v2497 = vpop.permute.xlu0 %2496
          %2498 = vrot.lane.b32.xlu0 %v2367, 40
          %v2499 = vpop.permute.xlu0 %2498
          %2500 = vrot.lane.b32.xlu0 %v2368, 40
          %v2501 = vpop.permute.xlu0 %2500
          %2502 = vrot.lane.b32.xlu0 %v2369, 40
          %v2503 = vpop.permute.xlu0 %2502
          %2504 = vrot.lane.b32.xlu0 %v2370, 40
          %v2505 = vpop.permute.xlu0 %2504
          %2506 = vrot.lane.b32.xlu0 %v2371, 40
          %v2507 = vpop.permute.xlu0 %2506
          %2508 = vrot.lane.b32.xlu0 %v2372, 40
          %v2509 = vpop.permute.xlu0 %2508
          %2510 = vrot.lane.b32.xlu0 %v2373, 40
          %v2511 = vpop.permute.xlu0 %2510
          %2512 = vrot.lane.b32.xlu0 %v2374, 40
          %v2513 = vpop.permute.xlu0 %2512
          %2514 = vrot.lane.b32.xlu0 %v2375, 40
          %v2515 = vpop.permute.xlu0 %2514
          %2516 = vrot.lane.b32.xlu0 %v2376, 40
          %v2517 = vpop.permute.xlu0 %2516
          %2518 = vrot.lane.b32.xlu0 %v2377, 40
          %v2519 = vpop.permute.xlu0 %2518
          %2520 = vrot.lane.b32.xlu0 %v2378, 40
          %v2521 = vpop.permute.xlu0 %2520
          %2522 = vrot.lane.b32.xlu0 %v2379, 40
          %v2523 = vpop.permute.xlu0 %2522
          %2524 = vrot.lane.b32.xlu0 %v2380, 40
          %v2525 = vpop.permute.xlu0 %2524
          %2526 = vrot.lane.b32.xlu0 %v2381, 40
          %v2527 = vpop.permute.xlu0 %2526
          %2528 = vrot.lane.b32.xlu0 %v2382, 40
          %v2529 = vpop.permute.xlu0 %2528
          %2530 = vrot.lane.b32.xlu0 %v2383, 40
          %v2531 = vpop.permute.xlu0 %2530
          %2532 = vrot.lane.b32.xlu0 %v2384, 40
          %v2533 = vpop.permute.xlu0 %2532
          %2534 = vrot.lane.b32.xlu0 %v2385, 40
          %v2535 = vpop.permute.xlu0 %2534
          %2536 = vrot.lane.b32.xlu0 %v2386, 40
          %v2537 = vpop.permute.xlu0 %2536
          %2538 = vrot.lane.b32.xlu0 %v2387, 40
          %v2539 = vpop.permute.xlu0 %2538
          %2540 = vrot.lane.b32.xlu0 %v2388, 40
          %v2541 = vpop.permute.xlu0 %2540
          %2542 = vrot.lane.b32.xlu0 %v2389, 40
          %v2543 = vpop.permute.xlu0 %2542
          %2544 = vrot.lane.b32.xlu0 %v2390, 40
          %v2545 = vpop.permute.xlu0 %2544
          %2546 = vrot.lane.b32.xlu0 %v2391, 40
          %v2547 = vpop.permute.xlu0 %2546
          %2548 = vrot.lane.b32.xlu0 %v2392, 40
          %v2549 = vpop.permute.xlu0 %2548
          %2550 = vrot.lane.b32.xlu0 %v2393, 40
          %v2551 = vpop.permute.xlu0 %2550
          %2552 = vrot.lane.b32.xlu0 %v2394, 40
          %v2553 = vpop.permute.xlu0 %2552
          %2554 = vrot.lane.b32.xlu0 %v2395, 40
          %v2555 = vpop.permute.xlu0 %2554
          %2556 = vrot.lane.b32.xlu0 %v2396, 40
          %v2557 = vpop.permute.xlu0 %2556
          %2558 = vrot.lane.b32.xlu0 %v2397, 40
          %v2559 = vpop.permute.xlu0 %2558
          %2560 = vrot.lane.b32.xlu0 %v2398, 40
          %v2561 = vpop.permute.xlu0 %2560
          %2562 = vrot.lane.b32.xlu0 %v2399, 40
          %v2563 = vpop.permute.xlu0 %2562
          %2564 = vrot.lane.b32.xlu0 %v2400, 40
          %v2565 = vpop.permute.xlu0 %2564
          %2566 = vrot.lane.b32.xlu0 %v2401, 40
          %v2567 = vpop.permute.xlu0 %2566
          %2568 = vrot.lane.b32.xlu0 %v2402, 40
          %v2569 = vpop.permute.xlu0 %2568
          %2570 = vrot.lane.b32.xlu0 %v2403, 40
          %v2571 = vpop.permute.xlu0 %2570
          %2572 = vrot.lane.b32.xlu0 %v2404, 40
          %v2573 = vpop.permute.xlu0 %2572
          %2574 = vrot.lane.b32.xlu0 %v2405, 40
          %v2575 = vpop.permute.xlu0 %2574
          %2576 = vrot.lane.b32.xlu0 %v2406, 40
          %v2577 = vpop.permute.xlu0 %2576
          %2578 = vrot.lane.b32.xlu0 %v2407, 40
          %v2579 = vpop.permute.xlu0 %2578
          %2580 = vrot.lane.b32.xlu0 %v2408, 40
          %v2581 = vpop.permute.xlu0 %2580
          %2582 = vrot.lane.b32.xlu0 %v2409, 40
          %v2583 = vpop.permute.xlu0 %2582
          %2584 = vrot.lane.b32.xlu0 %v2410, 40
          %v2585 = vpop.permute.xlu0 %2584
          %2586 = vrot.lane.b32.xlu0 %v2411, 40
          %v2587 = vpop.permute.xlu0 %2586
          %2588 = vrot.lane.b32.xlu0 %v2412, 40
          %v2589 = vpop.permute.xlu0 %2588
          %2590 = vrot.lane.b32.xlu0 %v2413, 40
          %v2591 = vpop.permute.xlu0 %2590
          %2592 = vrot.lane.b32.xlu0 %v2414, 40
          %v2593 = vpop.permute.xlu0 %2592
          %2594 = vrot.lane.b32.xlu0 %v2415, 40
          %v2595 = vpop.permute.xlu0 %2594
          %2596 = vrot.lane.b32.xlu0 %v2416, 40
          %v2597 = vpop.permute.xlu0 %2596
          %2598 = vrot.lane.b32.xlu0 %v2417, 40
          %v2599 = vpop.permute.xlu0 %2598
          %2600 = vrot.lane.b32.xlu0 %v2418, 40
          %v2601 = vpop.permute.xlu0 %2600
          %2602 = vrot.lane.b32.xlu0 %v2419, 40
          %v2603 = vpop.permute.xlu0 %2602
          %2604 = vrot.lane.b32.xlu0 %v2420, 40
          %v2605 = vpop.permute.xlu0 %2604
          %2606 = vrot.lane.b32.xlu0 %v2421, 40
          %v2607 = vpop.permute.xlu0 %2606
          %2608 = vrot.lane.b32.xlu0 %v2422, 40
          %v2609 = vpop.permute.xlu0 %2608
          %2610 = vrot.lane.b32.xlu0 %v2423, 40
          %v2611 = vpop.permute.xlu0 %2610
          %2612 = vrot.lane.b32.xlu0 %v2424, 40
          %v2613 = vpop.permute.xlu0 %2612
          %2614 = vrot.lane.b32.xlu0 %v2425, 40
          %v2615 = vpop.permute.xlu0 %2614
          %2616 = vrot.lane.b32.xlu0 %v2426, 40
          %v2617 = vpop.permute.xlu0 %2616
          %2618 = vrot.lane.b32.xlu0 %v2427, 40
          %v2619 = vpop.permute.xlu0 %2618
          %vm2684 = vcmask 392512
          %2685 = vst.msk [vmem:[#allocation5] sm:$0xff] %vm2684, %v2493
          %2686 = vst.msk [vmem:[#allocation5 + $0x8] sm:$0xff] %vm2684, %v2495
          %2687 = vst.msk [vmem:[#allocation5 + $0x10] sm:$0xff] %vm2684, %v2497
          %2688 = vst.msk [vmem:[#allocation5 + $0x18] sm:$0xff] %vm2684, %v2499
          %2689 = vst.msk [vmem:[#allocation5 + $0x20] sm:$0xff] %vm2684, %v2501
          %2690 = vst.msk [vmem:[#allocation5 + $0x28] sm:$0xff] %vm2684, %v2503
          %2691 = vst.msk [vmem:[#allocation5 + $0x30] sm:$0xff] %vm2684, %v2505
          %2692 = vst.msk [vmem:[#allocation5 + $0x38] sm:$0xff] %vm2684, %v2507
          %2693 = vst.msk [vmem:[#allocation5 + $0x40] sm:$0xff] %vm2684, %v2509
          %2694 = vst.msk [vmem:[#allocation5 + $0x48] sm:$0xff] %vm2684, %v2511
          %2695 = vst.msk [vmem:[#allocation5 + $0x50] sm:$0xff] %vm2684, %v2513
          %2696 = vst.msk [vmem:[#allocation5 + $0x58] sm:$0xff] %vm2684, %v2515
          %2697 = vst.msk [vmem:[#allocation5 + $0x60] sm:$0xff] %vm2684, %v2517
          %2698 = vst.msk [vmem:[#allocation5 + $0x68] sm:$0xff] %vm2684, %v2519
          %2699 = vst.msk [vmem:[#allocation5 + $0x70] sm:$0xff] %vm2684, %v2521
          %2700 = vst.msk [vmem:[#allocation5 + $0x78] sm:$0xff] %vm2684, %v2523
          %2701 = vst.msk [vmem:[#allocation5 + $0x80] sm:$0xff] %vm2684, %v2525
          %2702 = vst.msk [vmem:[#allocation5 + $0x88] sm:$0xff] %vm2684, %v2527
          %2703 = vst.msk [vmem:[#allocation5 + $0x90] sm:$0xff] %vm2684, %v2529
          %2704 = vst.msk [vmem:[#allocation5 + $0x98] sm:$0xff] %vm2684, %v2531
          %2705 = vst.msk [vmem:[#allocation5 + $0xa0] sm:$0xff] %vm2684, %v2533
          %2706 = vst.msk [vmem:[#allocation5 + $0xa8] sm:$0xff] %vm2684, %v2535
          %2707 = vst.msk [vmem:[#allocation5 + $0xb0] sm:$0xff] %vm2684, %v2537
          %2708 = vst.msk [vmem:[#allocation5 + $0xb8] sm:$0xff] %vm2684, %v2539
          %2709 = vst.msk [vmem:[#allocation5 + $0xc0] sm:$0xff] %vm2684, %v2541
          %2710 = vst.msk [vmem:[#allocation5 + $0xc8] sm:$0xff] %vm2684, %v2543
          %2711 = vst.msk [vmem:[#allocation5 + $0xd0] sm:$0xff] %vm2684, %v2545
          %2712 = vst.msk [vmem:[#allocation5 + $0xd8] sm:$0xff] %vm2684, %v2547
          %2713 = vst.msk [vmem:[#allocation5 + $0xe0] sm:$0xff] %vm2684, %v2549
          %2714 = vst.msk [vmem:[#allocation5 + $0xe8] sm:$0xff] %vm2684, %v2551
          %2715 = vst.msk [vmem:[#allocation5 + $0xf0] sm:$0xff] %vm2684, %v2553
          %2716 = vst.msk [vmem:[#allocation5 + $0xf8] sm:$0xff] %vm2684, %v2555
          %2717 = vst.msk [vmem:[#allocation5 + $0x100] sm:$0xff] %vm2684, %v2557
          %2718 = vst.msk [vmem:[#allocation5 + $0x108] sm:$0xff] %vm2684, %v2559
          %2719 = vst.msk [vmem:[#allocation5 + $0x110] sm:$0xff] %vm2684, %v2561
          %2720 = vst.msk [vmem:[#allocation5 + $0x118] sm:$0xff] %vm2684, %v2563
          %2721 = vst.msk [vmem:[#allocation5 + $0x120] sm:$0xff] %vm2684, %v2565
          %2722 = vst.msk [vmem:[#allocation5 + $0x128] sm:$0xff] %vm2684, %v2567
          %2723 = vst.msk [vmem:[#allocation5 + $0x130] sm:$0xff] %vm2684, %v2569
          %2724 = vst.msk [vmem:[#allocation5 + $0x138] sm:$0xff] %vm2684, %v2571
          %2725 = vst.msk [vmem:[#allocation5 + $0x140] sm:$0xff] %vm2684, %v2573
          %2726 = vst.msk [vmem:[#allocation5 + $0x148] sm:$0xff] %vm2684, %v2575
          %2727 = vst.msk [vmem:[#allocation5 + $0x150] sm:$0xff] %vm2684, %v2577
          %2728 = vst.msk [vmem:[#allocation5 + $0x158] sm:$0xff] %vm2684, %v2579
          %2729 = vst.msk [vmem:[#allocation5 + $0x160] sm:$0xff] %vm2684, %v2581
          %2730 = vst.msk [vmem:[#allocation5 + $0x168] sm:$0xff] %vm2684, %v2583
          %2731 = vst.msk [vmem:[#allocation5 + $0x170] sm:$0xff] %vm2684, %v2585
          %2732 = vst.msk [vmem:[#allocation5 + $0x178] sm:$0xff] %vm2684, %v2587
          %2733 = vst.msk [vmem:[#allocation5 + $0x180] sm:$0xff] %vm2684, %v2589
          %2734 = vst.msk [vmem:[#allocation5 + $0x188] sm:$0xff] %vm2684, %v2591
          %2735 = vst.msk [vmem:[#allocation5 + $0x190] sm:$0xff] %vm2684, %v2593
          %2736 = vst.msk [vmem:[#allocation5 + $0x198] sm:$0xff] %vm2684, %v2595
          %2737 = vst.msk [vmem:[#allocation5 + $0x1a0] sm:$0xff] %vm2684, %v2597
          %2738 = vst.msk [vmem:[#allocation5 + $0x1a8] sm:$0xff] %vm2684, %v2599
          %2739 = vst.msk [vmem:[#allocation5 + $0x1b0] sm:$0xff] %vm2684, %v2601
          %2740 = vst.msk [vmem:[#allocation5 + $0x1b8] sm:$0xff] %vm2684, %v2603
          %2741 = vst.msk [vmem:[#allocation5 + $0x1c0] sm:$0xff] %vm2684, %v2605
          %2742 = vst.msk [vmem:[#allocation5 + $0x1c8] sm:$0xff] %vm2684, %v2607
          %2743 = vst.msk [vmem:[#allocation5 + $0x1d0] sm:$0xff] %vm2684, %v2609
          %2744 = vst.msk [vmem:[#allocation5 + $0x1d8] sm:$0xff] %vm2684, %v2611
          %2745 = vst.msk [vmem:[#allocation5 + $0x1e0] sm:$0xff] %vm2684, %v2613
          %2746 = vst.msk [vmem:[#allocation5 + $0x1e8] sm:$0xff] %vm2684, %v2615
          %2747 = vst.msk [vmem:[#allocation5 + $0x1f0] sm:$0xff] %vm2684, %v2617
          %2748 = vst.msk [vmem:[#allocation5 + $0x1f8] sm:$0xff] %vm2684, %v2619
          %s2749 = scalar_lea.vmem [#allocation4], 48
          %v2750 = vld [vmem:[%s2749] sm:$0xff]
          %v2751 = vld [vmem:[%s2749 + $0x8] sm:$0xff]
          %v2752 = vld [vmem:[%s2749 + $0x18] sm:$0xff]
          %v2753 = vld [vmem:[%s2749 + $0x20] sm:$0xff]
          %v2754 = vld [vmem:[%s2749 + $0x30] sm:$0xff]
          %v2755 = vld [vmem:[%s2749 + $0x38] sm:$0xff]
          %v2756 = vld [vmem:[%s2749 + $0x48] sm:$0xff]
          %v2757 = vld [vmem:[%s2749 + $0x50] sm:$0xff]
          %v2758 = vld [vmem:[%s2749 + $0x60] sm:$0xff]
          %v2759 = vld [vmem:[%s2749 + $0x68] sm:$0xff]
          %v2760 = vld [vmem:[%s2749 + $0x78] sm:$0xff]
          %v2761 = vld [vmem:[%s2749 + $0x80] sm:$0xff]
          %v2762 = vld [vmem:[%s2749 + $0x90] sm:$0xff]
          %v2763 = vld [vmem:[%s2749 + $0x98] sm:$0xff]
          %v2764 = vld [vmem:[%s2749 + $0xa8] sm:$0xff]
          %v2765 = vld [vmem:[%s2749 + $0xb0] sm:$0xff]
          %v2766 = vld [vmem:[%s2749 + $0xc0] sm:$0xff]
          %v2767 = vld [vmem:[%s2749 + $0xc8] sm:$0xff]
          %v2768 = vld [vmem:[%s2749 + $0xd8] sm:$0xff]
          %v2769 = vld [vmem:[%s2749 + $0xe0] sm:$0xff]
          %v2770 = vld [vmem:[%s2749 + $0xf0] sm:$0xff]
          %v2771 = vld [vmem:[%s2749 + $0xf8] sm:$0xff]
          %v2772 = vld [vmem:[%s2749 + $0x108] sm:$0xff]
          %v2773 = vld [vmem:[%s2749 + $0x110] sm:$0xff]
          %v2774 = vld [vmem:[%s2749 + $0x120] sm:$0xff]
          %v2775 = vld [vmem:[%s2749 + $0x128] sm:$0xff]
          %v2776 = vld [vmem:[%s2749 + $0x138] sm:$0xff]
          %v2777 = vld [vmem:[%s2749 + $0x140] sm:$0xff]
          %v2778 = vld [vmem:[%s2749 + $0x150] sm:$0xff]
          %v2779 = vld [vmem:[%s2749 + $0x158] sm:$0xff]
          %v2780 = vld [vmem:[%s2749 + $0x168] sm:$0xff]
          %v2781 = vld [vmem:[%s2749 + $0x170] sm:$0xff]
          %v2782 = vld [vmem:[%s2749 + $0x1b0] sm:$0xff]
          %v2783 = vld [vmem:[%s2749 + $0x1b8] sm:$0xff]
          %v2784 = vld [vmem:[%s2749 + $0x1c8] sm:$0xff]
          %v2785 = vld [vmem:[%s2749 + $0x1d0] sm:$0xff]
          %v2786 = vld [vmem:[%s2749 + $0x1e0] sm:$0xff]
          %v2787 = vld [vmem:[%s2749 + $0x1e8] sm:$0xff]
          %v2788 = vld [vmem:[%s2749 + $0x1f8] sm:$0xff]
          %v2789 = vld [vmem:[%s2749 + $0x200] sm:$0xff]
          %v2790 = vld [vmem:[%s2749 + $0x210] sm:$0xff]
          %v2791 = vld [vmem:[%s2749 + $0x218] sm:$0xff]
          %v2792 = vld [vmem:[%s2749 + $0x228] sm:$0xff]
          %v2793 = vld [vmem:[%s2749 + $0x230] sm:$0xff]
          %v2794 = vld [vmem:[%s2749 + $0x240] sm:$0xff]
          %v2795 = vld [vmem:[%s2749 + $0x248] sm:$0xff]
          %v2796 = vld [vmem:[%s2749 + $0x258] sm:$0xff]
          %v2797 = vld [vmem:[%s2749 + $0x260] sm:$0xff]
          %v2798 = vld [vmem:[%s2749 + $0x270] sm:$0xff]
          %v2799 = vld [vmem:[%s2749 + $0x278] sm:$0xff]
          %v2800 = vld [vmem:[%s2749 + $0x288] sm:$0xff]
          %v2801 = vld [vmem:[%s2749 + $0x290] sm:$0xff]
          %v2802 = vld [vmem:[%s2749 + $0x2a0] sm:$0xff]
          %v2803 = vld [vmem:[%s2749 + $0x2a8] sm:$0xff]
          %v2804 = vld [vmem:[%s2749 + $0x2b8] sm:$0xff]
          %v2805 = vld [vmem:[%s2749 + $0x2c0] sm:$0xff]
          %v2806 = vld [vmem:[%s2749 + $0x2d0] sm:$0xff]
          %v2807 = vld [vmem:[%s2749 + $0x2d8] sm:$0xff]
          %v2808 = vld [vmem:[%s2749 + $0x2e8] sm:$0xff]
          %v2809 = vld [vmem:[%s2749 + $0x2f0] sm:$0xff]
          %v2810 = vld [vmem:[%s2749 + $0x300] sm:$0xff]
          %v2811 = vld [vmem:[%s2749 + $0x308] sm:$0xff]
          %v2812 = vld [vmem:[%s2749 + $0x318] sm:$0xff]
          %v2813 = vld [vmem:[%s2749 + $0x320] sm:$0xff]
          %2878 = vrot.lane.b32.xlu0 %v2750, 48
          %v2879 = vpop.permute.xlu0 %2878
          %2880 = vrot.lane.b32.xlu0 %v2751, 48
          %v2881 = vpop.permute.xlu0 %2880
          %2882 = vrot.lane.b32.xlu0 %v2752, 48
          %v2883 = vpop.permute.xlu0 %2882
          %2884 = vrot.lane.b32.xlu0 %v2753, 48
          %v2885 = vpop.permute.xlu0 %2884
          %2886 = vrot.lane.b32.xlu0 %v2754, 48
          %v2887 = vpop.permute.xlu0 %2886
          %2888 = vrot.lane.b32.xlu0 %v2755, 48
          %v2889 = vpop.permute.xlu0 %2888
          %2890 = vrot.lane.b32.xlu0 %v2756, 48
          %v2891 = vpop.permute.xlu0 %2890
          %2892 = vrot.lane.b32.xlu0 %v2757, 48
          %v2893 = vpop.permute.xlu0 %2892
          %2894 = vrot.lane.b32.xlu0 %v2758, 48
          %v2895 = vpop.permute.xlu0 %2894
          %2896 = vrot.lane.b32.xlu0 %v2759, 48
          %v2897 = vpop.permute.xlu0 %2896
          %2898 = vrot.lane.b32.xlu0 %v2760, 48
          %v2899 = vpop.permute.xlu0 %2898
          %2900 = vrot.lane.b32.xlu0 %v2761, 48
          %v2901 = vpop.permute.xlu0 %2900
          %2902 = vrot.lane.b32.xlu0 %v2762, 48
          %v2903 = vpop.permute.xlu0 %2902
          %2904 = vrot.lane.b32.xlu0 %v2763, 48
          %v2905 = vpop.permute.xlu0 %2904
          %2906 = vrot.lane.b32.xlu0 %v2764, 48
          %v2907 = vpop.permute.xlu0 %2906
          %2908 = vrot.lane.b32.xlu0 %v2765, 48
          %v2909 = vpop.permute.xlu0 %2908
          %2910 = vrot.lane.b32.xlu0 %v2766, 48
          %v2911 = vpop.permute.xlu0 %2910
          %2912 = vrot.lane.b32.xlu0 %v2767, 48
          %v2913 = vpop.permute.xlu0 %2912
          %2914 = vrot.lane.b32.xlu0 %v2768, 48
          %v2915 = vpop.permute.xlu0 %2914
          %2916 = vrot.lane.b32.xlu0 %v2769, 48
          %v2917 = vpop.permute.xlu0 %2916
          %2918 = vrot.lane.b32.xlu0 %v2770, 48
          %v2919 = vpop.permute.xlu0 %2918
          %2920 = vrot.lane.b32.xlu0 %v2771, 48
          %v2921 = vpop.permute.xlu0 %2920
          %2922 = vrot.lane.b32.xlu0 %v2772, 48
          %v2923 = vpop.permute.xlu0 %2922
          %2924 = vrot.lane.b32.xlu0 %v2773, 48
          %v2925 = vpop.permute.xlu0 %2924
          %2926 = vrot.lane.b32.xlu0 %v2774, 48
          %v2927 = vpop.permute.xlu0 %2926
          %2928 = vrot.lane.b32.xlu0 %v2775, 48
          %v2929 = vpop.permute.xlu0 %2928
          %2930 = vrot.lane.b32.xlu0 %v2776, 48
          %v2931 = vpop.permute.xlu0 %2930
          %2932 = vrot.lane.b32.xlu0 %v2777, 48
          %v2933 = vpop.permute.xlu0 %2932
          %2934 = vrot.lane.b32.xlu0 %v2778, 48
          %v2935 = vpop.permute.xlu0 %2934
          %2936 = vrot.lane.b32.xlu0 %v2779, 48
          %v2937 = vpop.permute.xlu0 %2936
          %2938 = vrot.lane.b32.xlu0 %v2780, 48
          %v2939 = vpop.permute.xlu0 %2938
          %2940 = vrot.lane.b32.xlu0 %v2781, 48
          %v2941 = vpop.permute.xlu0 %2940
          %2942 = vrot.lane.b32.xlu0 %v2782, 48
          %v2943 = vpop.permute.xlu0 %2942
          %2944 = vrot.lane.b32.xlu0 %v2783, 48
          %v2945 = vpop.permute.xlu0 %2944
          %2946 = vrot.lane.b32.xlu0 %v2784, 48
          %v2947 = vpop.permute.xlu0 %2946
          %2948 = vrot.lane.b32.xlu0 %v2785, 48
          %v2949 = vpop.permute.xlu0 %2948
          %2950 = vrot.lane.b32.xlu0 %v2786, 48
          %v2951 = vpop.permute.xlu0 %2950
          %2952 = vrot.lane.b32.xlu0 %v2787, 48
          %v2953 = vpop.permute.xlu0 %2952
          %2954 = vrot.lane.b32.xlu0 %v2788, 48
          %v2955 = vpop.permute.xlu0 %2954
          %2956 = vrot.lane.b32.xlu0 %v2789, 48
          %v2957 = vpop.permute.xlu0 %2956
          %2958 = vrot.lane.b32.xlu0 %v2790, 48
          %v2959 = vpop.permute.xlu0 %2958
          %2960 = vrot.lane.b32.xlu0 %v2791, 48
          %v2961 = vpop.permute.xlu0 %2960
          %2962 = vrot.lane.b32.xlu0 %v2792, 48
          %v2963 = vpop.permute.xlu0 %2962
          %2964 = vrot.lane.b32.xlu0 %v2793, 48
          %v2965 = vpop.permute.xlu0 %2964
          %2966 = vrot.lane.b32.xlu0 %v2794, 48
          %v2967 = vpop.permute.xlu0 %2966
          %2968 = vrot.lane.b32.xlu0 %v2795, 48
          %v2969 = vpop.permute.xlu0 %2968
          %2970 = vrot.lane.b32.xlu0 %v2796, 48
          %v2971 = vpop.permute.xlu0 %2970
          %2972 = vrot.lane.b32.xlu0 %v2797, 48
          %v2973 = vpop.permute.xlu0 %2972
          %2974 = vrot.lane.b32.xlu0 %v2798, 48
          %v2975 = vpop.permute.xlu0 %2974
          %2976 = vrot.lane.b32.xlu0 %v2799, 48
          %v2977 = vpop.permute.xlu0 %2976
          %2978 = vrot.lane.b32.xlu0 %v2800, 48
          %v2979 = vpop.permute.xlu0 %2978
          %2980 = vrot.lane.b32.xlu0 %v2801, 48
          %v2981 = vpop.permute.xlu0 %2980
          %2982 = vrot.lane.b32.xlu0 %v2802, 48
          %v2983 = vpop.permute.xlu0 %2982
          %2984 = vrot.lane.b32.xlu0 %v2803, 48
          %v2985 = vpop.permute.xlu0 %2984
          %2986 = vrot.lane.b32.xlu0 %v2804, 48
          %v2987 = vpop.permute.xlu0 %2986
          %2988 = vrot.lane.b32.xlu0 %v2805, 48
          %v2989 = vpop.permute.xlu0 %2988
          %2990 = vrot.lane.b32.xlu0 %v2806, 48
          %v2991 = vpop.permute.xlu0 %2990
          %2992 = vrot.lane.b32.xlu0 %v2807, 48
          %v2993 = vpop.permute.xlu0 %2992
          %2994 = vrot.lane.b32.xlu0 %v2808, 48
          %v2995 = vpop.permute.xlu0 %2994
          %2996 = vrot.lane.b32.xlu0 %v2809, 48
          %v2997 = vpop.permute.xlu0 %2996
          %2998 = vrot.lane.b32.xlu0 %v2810, 48
          %v2999 = vpop.permute.xlu0 %2998
          %3000 = vrot.lane.b32.xlu0 %v2811, 48
          %v3001 = vpop.permute.xlu0 %3000
          %3002 = vrot.lane.b32.xlu0 %v2812, 48
          %v3003 = vpop.permute.xlu0 %3002
          %3004 = vrot.lane.b32.xlu0 %v2813, 48
          %v3005 = vpop.permute.xlu0 %3004
          %vm3070 = vcmask 458112
          %3071 = vst.msk [vmem:[#allocation5] sm:$0xff] %vm3070, %v2879
          %3072 = vst.msk [vmem:[#allocation5 + $0x8] sm:$0xff] %vm3070, %v2881
          %3073 = vst.msk [vmem:[#allocation5 + $0x10] sm:$0xff] %vm3070, %v2883
          %3074 = vst.msk [vmem:[#allocation5 + $0x18] sm:$0xff] %vm3070, %v2885
          %3075 = vst.msk [vmem:[#allocation5 + $0x20] sm:$0xff] %vm3070, %v2887
          %3076 = vst.msk [vmem:[#allocation5 + $0x28] sm:$0xff] %vm3070, %v2889
          %3077 = vst.msk [vmem:[#allocation5 + $0x30] sm:$0xff] %vm3070, %v2891
          %3078 = vst.msk [vmem:[#allocation5 + $0x38] sm:$0xff] %vm3070, %v2893
          %3079 = vst.msk [vmem:[#allocation5 + $0x40] sm:$0xff] %vm3070, %v2895
          %3080 = vst.msk [vmem:[#allocation5 + $0x48] sm:$0xff] %vm3070, %v2897
          %3081 = vst.msk [vmem:[#allocation5 + $0x50] sm:$0xff] %vm3070, %v2899
          %3082 = vst.msk [vmem:[#allocation5 + $0x58] sm:$0xff] %vm3070, %v2901
          %3083 = vst.msk [vmem:[#allocation5 + $0x60] sm:$0xff] %vm3070, %v2903
          %3084 = vst.msk [vmem:[#allocation5 + $0x68] sm:$0xff] %vm3070, %v2905
          %3085 = vst.msk [vmem:[#allocation5 + $0x70] sm:$0xff] %vm3070, %v2907
          %3086 = vst.msk [vmem:[#allocation5 + $0x78] sm:$0xff] %vm3070, %v2909
          %3087 = vst.msk [vmem:[#allocation5 + $0x80] sm:$0xff] %vm3070, %v2911
          %3088 = vst.msk [vmem:[#allocation5 + $0x88] sm:$0xff] %vm3070, %v2913
          %3089 = vst.msk [vmem:[#allocation5 + $0x90] sm:$0xff] %vm3070, %v2915
          %3090 = vst.msk [vmem:[#allocation5 + $0x98] sm:$0xff] %vm3070, %v2917
          %3091 = vst.msk [vmem:[#allocation5 + $0xa0] sm:$0xff] %vm3070, %v2919
          %3092 = vst.msk [vmem:[#allocation5 + $0xa8] sm:$0xff] %vm3070, %v2921
          %3093 = vst.msk [vmem:[#allocation5 + $0xb0] sm:$0xff] %vm3070, %v2923
          %3094 = vst.msk [vmem:[#allocation5 + $0xb8] sm:$0xff] %vm3070, %v2925
          %3095 = vst.msk [vmem:[#allocation5 + $0xc0] sm:$0xff] %vm3070, %v2927
          %3096 = vst.msk [vmem:[#allocation5 + $0xc8] sm:$0xff] %vm3070, %v2929
          %3097 = vst.msk [vmem:[#allocation5 + $0xd0] sm:$0xff] %vm3070, %v2931
          %3098 = vst.msk [vmem:[#allocation5 + $0xd8] sm:$0xff] %vm3070, %v2933
          %3099 = vst.msk [vmem:[#allocation5 + $0xe0] sm:$0xff] %vm3070, %v2935
          %3100 = vst.msk [vmem:[#allocation5 + $0xe8] sm:$0xff] %vm3070, %v2937
          %3101 = vst.msk [vmem:[#allocation5 + $0xf0] sm:$0xff] %vm3070, %v2939
          %3102 = vst.msk [vmem:[#allocation5 + $0xf8] sm:$0xff] %vm3070, %v2941
          %3103 = vst.msk [vmem:[#allocation5 + $0x100] sm:$0xff] %vm3070, %v2943
          %3104 = vst.msk [vmem:[#allocation5 + $0x108] sm:$0xff] %vm3070, %v2945
          %3105 = vst.msk [vmem:[#allocation5 + $0x110] sm:$0xff] %vm3070, %v2947
          %3106 = vst.msk [vmem:[#allocation5 + $0x118] sm:$0xff] %vm3070, %v2949
          %3107 = vst.msk [vmem:[#allocation5 + $0x120] sm:$0xff] %vm3070, %v2951
          %3108 = vst.msk [vmem:[#allocation5 + $0x128] sm:$0xff] %vm3070, %v2953
          %3109 = vst.msk [vmem:[#allocation5 + $0x130] sm:$0xff] %vm3070, %v2955
          %3110 = vst.msk [vmem:[#allocation5 + $0x138] sm:$0xff] %vm3070, %v2957
          %3111 = vst.msk [vmem:[#allocation5 + $0x140] sm:$0xff] %vm3070, %v2959
          %3112 = vst.msk [vmem:[#allocation5 + $0x148] sm:$0xff] %vm3070, %v2961
          %3113 = vst.msk [vmem:[#allocation5 + $0x150] sm:$0xff] %vm3070, %v2963
          %3114 = vst.msk [vmem:[#allocation5 + $0x158] sm:$0xff] %vm3070, %v2965
          %3115 = vst.msk [vmem:[#allocation5 + $0x160] sm:$0xff] %vm3070, %v2967
          %3116 = vst.msk [vmem:[#allocation5 + $0x168] sm:$0xff] %vm3070, %v2969
          %3117 = vst.msk [vmem:[#allocation5 + $0x170] sm:$0xff] %vm3070, %v2971
          %3118 = vst.msk [vmem:[#allocation5 + $0x178] sm:$0xff] %vm3070, %v2973
          %3119 = vst.msk [vmem:[#allocation5 + $0x180] sm:$0xff] %vm3070, %v2975
          %3120 = vst.msk [vmem:[#allocation5 + $0x188] sm:$0xff] %vm3070, %v2977
          %3121 = vst.msk [vmem:[#allocation5 + $0x190] sm:$0xff] %vm3070, %v2979
          %3122 = vst.msk [vmem:[#allocation5 + $0x198] sm:$0xff] %vm3070, %v2981
          %3123 = vst.msk [vmem:[#allocation5 + $0x1a0] sm:$0xff] %vm3070, %v2983
          %3124 = vst.msk [vmem:[#allocation5 + $0x1a8] sm:$0xff] %vm3070, %v2985
          %3125 = vst.msk [vmem:[#allocation5 + $0x1b0] sm:$0xff] %vm3070, %v2987
          %3126 = vst.msk [vmem:[#allocation5 + $0x1b8] sm:$0xff] %vm3070, %v2989
          %3127 = vst.msk [vmem:[#allocation5 + $0x1c0] sm:$0xff] %vm3070, %v2991
          %3128 = vst.msk [vmem:[#allocation5 + $0x1c8] sm:$0xff] %vm3070, %v2993
          %3129 = vst.msk [vmem:[#allocation5 + $0x1d0] sm:$0xff] %vm3070, %v2995
          %3130 = vst.msk [vmem:[#allocation5 + $0x1d8] sm:$0xff] %vm3070, %v2997
          %3131 = vst.msk [vmem:[#allocation5 + $0x1e0] sm:$0xff] %vm3070, %v2999
          %3132 = vst.msk [vmem:[#allocation5 + $0x1e8] sm:$0xff] %vm3070, %v3001
          %3133 = vst.msk [vmem:[#allocation5 + $0x1f0] sm:$0xff] %vm3070, %v3003
          %3134 = vst.msk [vmem:[#allocation5 + $0x1f8] sm:$0xff] %vm3070, %v3005
          %v3135 = vld [vmem:[%s2749 + $0x1] sm:$0xff]
          %v3136 = vld [vmem:[%s2749 + $0x9] sm:$0xff]
          %v3137 = vld [vmem:[%s2749 + $0x19] sm:$0xff]
          %v3138 = vld [vmem:[%s2749 + $0x21] sm:$0xff]
          %v3139 = vld [vmem:[%s2749 + $0x31] sm:$0xff]
          %v3140 = vld [vmem:[%s2749 + $0x39] sm:$0xff]
          %v3141 = vld [vmem:[%s2749 + $0x49] sm:$0xff]
          %v3142 = vld [vmem:[%s2749 + $0x51] sm:$0xff]
          %v3143 = vld [vmem:[%s2749 + $0x61] sm:$0xff]
          %v3144 = vld [vmem:[%s2749 + $0x69] sm:$0xff]
          %v3145 = vld [vmem:[%s2749 + $0x79] sm:$0xff]
          %v3146 = vld [vmem:[%s2749 + $0x81] sm:$0xff]
          %v3147 = vld [vmem:[%s2749 + $0x91] sm:$0xff]
          %v3148 = vld [vmem:[%s2749 + $0x99] sm:$0xff]
          %v3149 = vld [vmem:[%s2749 + $0xa9] sm:$0xff]
          %v3150 = vld [vmem:[%s2749 + $0xb1] sm:$0xff]
          %v3151 = vld [vmem:[%s2749 + $0xc1] sm:$0xff]
          %v3152 = vld [vmem:[%s2749 + $0xc9] sm:$0xff]
          %v3153 = vld [vmem:[%s2749 + $0xd9] sm:$0xff]
          %v3154 = vld [vmem:[%s2749 + $0xe1] sm:$0xff]
          %v3155 = vld [vmem:[%s2749 + $0xf1] sm:$0xff]
          %v3156 = vld [vmem:[%s2749 + $0xf9] sm:$0xff]
          %v3157 = vld [vmem:[%s2749 + $0x109] sm:$0xff]
          %v3158 = vld [vmem:[%s2749 + $0x111] sm:$0xff]
          %v3159 = vld [vmem:[%s2749 + $0x121] sm:$0xff]
          %v3160 = vld [vmem:[%s2749 + $0x129] sm:$0xff]
          %v3161 = vld [vmem:[%s2749 + $0x139] sm:$0xff]
          %v3162 = vld [vmem:[%s2749 + $0x141] sm:$0xff]
          %v3163 = vld [vmem:[%s2749 + $0x151] sm:$0xff]
          %v3164 = vld [vmem:[%s2749 + $0x159] sm:$0xff]
          %v3165 = vld [vmem:[%s2749 + $0x169] sm:$0xff]
          %v3166 = vld [vmem:[%s2749 + $0x171] sm:$0xff]
          %v3167 = vld [vmem:[%s2749 + $0x1b1] sm:$0xff]
          %v3168 = vld [vmem:[%s2749 + $0x1b9] sm:$0xff]
          %v3169 = vld [vmem:[%s2749 + $0x1c9] sm:$0xff]
          %v3170 = vld [vmem:[%s2749 + $0x1d1] sm:$0xff]
          %v3171 = vld [vmem:[%s2749 + $0x1e1] sm:$0xff]
          %v3172 = vld [vmem:[%s2749 + $0x1e9] sm:$0xff]
          %v3173 = vld [vmem:[%s2749 + $0x1f9] sm:$0xff]
          %v3174 = vld [vmem:[%s2749 + $0x201] sm:$0xff]
          %v3175 = vld [vmem:[%s2749 + $0x211] sm:$0xff]
          %v3176 = vld [vmem:[%s2749 + $0x219] sm:$0xff]
          %v3177 = vld [vmem:[%s2749 + $0x229] sm:$0xff]
          %v3178 = vld [vmem:[%s2749 + $0x231] sm:$0xff]
          %v3179 = vld [vmem:[%s2749 + $0x241] sm:$0xff]
          %v3180 = vld [vmem:[%s2749 + $0x249] sm:$0xff]
          %v3181 = vld [vmem:[%s2749 + $0x259] sm:$0xff]
          %v3182 = vld [vmem:[%s2749 + $0x261] sm:$0xff]
          %v3183 = vld [vmem:[%s2749 + $0x271] sm:$0xff]
          %v3184 = vld [vmem:[%s2749 + $0x279] sm:$0xff]
          %v3185 = vld [vmem:[%s2749 + $0x289] sm:$0xff]
          %v3186 = vld [vmem:[%s2749 + $0x291] sm:$0xff]
          %v3187 = vld [vmem:[%s2749 + $0x2a1] sm:$0xff]
          %v3188 = vld [vmem:[%s2749 + $0x2a9] sm:$0xff]
          %v3189 = vld [vmem:[%s2749 + $0x2b9] sm:$0xff]
          %v3190 = vld [vmem:[%s2749 + $0x2c1] sm:$0xff]
          %v3191 = vld [vmem:[%s2749 + $0x2d1] sm:$0xff]
          %v3192 = vld [vmem:[%s2749 + $0x2d9] sm:$0xff]
          %v3193 = vld [vmem:[%s2749 + $0x2e9] sm:$0xff]
          %v3194 = vld [vmem:[%s2749 + $0x2f1] sm:$0xff]
          %v3195 = vld [vmem:[%s2749 + $0x301] sm:$0xff]
          %v3196 = vld [vmem:[%s2749 + $0x309] sm:$0xff]
          %v3197 = vld [vmem:[%s2749 + $0x319] sm:$0xff]
          %v3198 = vld [vmem:[%s2749 + $0x321] sm:$0xff]
          %3263 = vrot.lane.b32.xlu0 %v3135, 56
          %v3264 = vpop.permute.xlu0 %3263
          %3265 = vrot.lane.b32.xlu0 %v3136, 56
          %v3266 = vpop.permute.xlu0 %3265
          %3267 = vrot.lane.b32.xlu0 %v3137, 56
          %v3268 = vpop.permute.xlu0 %3267
          %3269 = vrot.lane.b32.xlu0 %v3138, 56
          %v3270 = vpop.permute.xlu0 %3269
          %3271 = vrot.lane.b32.xlu0 %v3139, 56
          %v3272 = vpop.permute.xlu0 %3271
          %3273 = vrot.lane.b32.xlu0 %v3140, 56
          %v3274 = vpop.permute.xlu0 %3273
          %3275 = vrot.lane.b32.xlu0 %v3141, 56
          %v3276 = vpop.permute.xlu0 %3275
          %3277 = vrot.lane.b32.xlu0 %v3142, 56
          %v3278 = vpop.permute.xlu0 %3277
          %3279 = vrot.lane.b32.xlu0 %v3143, 56
          %v3280 = vpop.permute.xlu0 %3279
          %3281 = vrot.lane.b32.xlu0 %v3144, 56
          %v3282 = vpop.permute.xlu0 %3281
          %3283 = vrot.lane.b32.xlu0 %v3145, 56
          %v3284 = vpop.permute.xlu0 %3283
          %3285 = vrot.lane.b32.xlu0 %v3146, 56
          %v3286 = vpop.permute.xlu0 %3285
          %3287 = vrot.lane.b32.xlu0 %v3147, 56
          %v3288 = vpop.permute.xlu0 %3287
          %3289 = vrot.lane.b32.xlu0 %v3148, 56
          %v3290 = vpop.permute.xlu0 %3289
          %3291 = vrot.lane.b32.xlu0 %v3149, 56
          %v3292 = vpop.permute.xlu0 %3291
          %3293 = vrot.lane.b32.xlu0 %v3150, 56
          %v3294 = vpop.permute.xlu0 %3293
          %3295 = vrot.lane.b32.xlu0 %v3151, 56
          %v3296 = vpop.permute.xlu0 %3295
          %3297 = vrot.lane.b32.xlu0 %v3152, 56
          %v3298 = vpop.permute.xlu0 %3297
          %3299 = vrot.lane.b32.xlu0 %v3153, 56
          %v3300 = vpop.permute.xlu0 %3299
          %3301 = vrot.lane.b32.xlu0 %v3154, 56
          %v3302 = vpop.permute.xlu0 %3301
          %3303 = vrot.lane.b32.xlu0 %v3155, 56
          %v3304 = vpop.permute.xlu0 %3303
          %3305 = vrot.lane.b32.xlu0 %v3156, 56
          %v3306 = vpop.permute.xlu0 %3305
          %3307 = vrot.lane.b32.xlu0 %v3157, 56
          %v3308 = vpop.permute.xlu0 %3307
          %3309 = vrot.lane.b32.xlu0 %v3158, 56
          %v3310 = vpop.permute.xlu0 %3309
          %3311 = vrot.lane.b32.xlu0 %v3159, 56
          %v3312 = vpop.permute.xlu0 %3311
          %3313 = vrot.lane.b32.xlu0 %v3160, 56
          %v3314 = vpop.permute.xlu0 %3313
          %3315 = vrot.lane.b32.xlu0 %v3161, 56
          %v3316 = vpop.permute.xlu0 %3315
          %3317 = vrot.lane.b32.xlu0 %v3162, 56
          %v3318 = vpop.permute.xlu0 %3317
          %3319 = vrot.lane.b32.xlu0 %v3163, 56
          %v3320 = vpop.permute.xlu0 %3319
          %3321 = vrot.lane.b32.xlu0 %v3164, 56
          %v3322 = vpop.permute.xlu0 %3321
          %3323 = vrot.lane.b32.xlu0 %v3165, 56
          %v3324 = vpop.permute.xlu0 %3323
          %3325 = vrot.lane.b32.xlu0 %v3166, 56
          %v3326 = vpop.permute.xlu0 %3325
          %3327 = vrot.lane.b32.xlu0 %v3167, 56
          %v3328 = vpop.permute.xlu0 %3327
          %3329 = vrot.lane.b32.xlu0 %v3168, 56
          %v3330 = vpop.permute.xlu0 %3329
          %3331 = vrot.lane.b32.xlu0 %v3169, 56
          %v3332 = vpop.permute.xlu0 %3331
          %3333 = vrot.lane.b32.xlu0 %v3170, 56
          %v3334 = vpop.permute.xlu0 %3333
          %3335 = vrot.lane.b32.xlu0 %v3171, 56
          %v3336 = vpop.permute.xlu0 %3335
          %3337 = vrot.lane.b32.xlu0 %v3172, 56
          %v3338 = vpop.permute.xlu0 %3337
          %3339 = vrot.lane.b32.xlu0 %v3173, 56
          %v3340 = vpop.permute.xlu0 %3339
          %3341 = vrot.lane.b32.xlu0 %v3174, 56
          %v3342 = vpop.permute.xlu0 %3341
          %3343 = vrot.lane.b32.xlu0 %v3175, 56
          %v3344 = vpop.permute.xlu0 %3343
          %3345 = vrot.lane.b32.xlu0 %v3176, 56
          %v3346 = vpop.permute.xlu0 %3345
          %3347 = vrot.lane.b32.xlu0 %v3177, 56
          %v3348 = vpop.permute.xlu0 %3347
          %3349 = vrot.lane.b32.xlu0 %v3178, 56
          %v3350 = vpop.permute.xlu0 %3349
          %3351 = vrot.lane.b32.xlu0 %v3179, 56
          %v3352 = vpop.permute.xlu0 %3351
          %3353 = vrot.lane.b32.xlu0 %v3180, 56
          %v3354 = vpop.permute.xlu0 %3353
          %3355 = vrot.lane.b32.xlu0 %v3181, 56
          %v3356 = vpop.permute.xlu0 %3355
          %3357 = vrot.lane.b32.xlu0 %v3182, 56
          %v3358 = vpop.permute.xlu0 %3357
          %3359 = vrot.lane.b32.xlu0 %v3183, 56
          %v3360 = vpop.permute.xlu0 %3359
          %3361 = vrot.lane.b32.xlu0 %v3184, 56
          %v3362 = vpop.permute.xlu0 %3361
          %3363 = vrot.lane.b32.xlu0 %v3185, 56
          %v3364 = vpop.permute.xlu0 %3363
          %3365 = vrot.lane.b32.xlu0 %v3186, 56
          %v3366 = vpop.permute.xlu0 %3365
          %3367 = vrot.lane.b32.xlu0 %v3187, 56
          %v3368 = vpop.permute.xlu0 %3367
          %3369 = vrot.lane.b32.xlu0 %v3188, 56
          %v3370 = vpop.permute.xlu0 %3369
          %3371 = vrot.lane.b32.xlu0 %v3189, 56
          %v3372 = vpop.permute.xlu0 %3371
          %3373 = vrot.lane.b32.xlu0 %v3190, 56
          %v3374 = vpop.permute.xlu0 %3373
          %3375 = vrot.lane.b32.xlu0 %v3191, 56
          %v3376 = vpop.permute.xlu0 %3375
          %3377 = vrot.lane.b32.xlu0 %v3192, 56
          %v3378 = vpop.permute.xlu0 %3377
          %3379 = vrot.lane.b32.xlu0 %v3193, 56
          %v3380 = vpop.permute.xlu0 %3379
          %3381 = vrot.lane.b32.xlu0 %v3194, 56
          %v3382 = vpop.permute.xlu0 %3381
          %3383 = vrot.lane.b32.xlu0 %v3195, 56
          %v3384 = vpop.permute.xlu0 %3383
          %3385 = vrot.lane.b32.xlu0 %v3196, 56
          %v3386 = vpop.permute.xlu0 %3385
          %3387 = vrot.lane.b32.xlu0 %v3197, 56
          %v3388 = vpop.permute.xlu0 %3387
          %3389 = vrot.lane.b32.xlu0 %v3198, 56
          %v3390 = vpop.permute.xlu0 %3389
          %vm3455 = vcmask 523712
          %3456 = vst.msk [vmem:[#allocation5] sm:$0xff] %vm3455, %v3264
          %3457 = vst.msk [vmem:[#allocation5 + $0x8] sm:$0xff] %vm3455, %v3266
          %3458 = vst.msk [vmem:[#allocation5 + $0x10] sm:$0xff] %vm3455, %v3268
          %3459 = vst.msk [vmem:[#allocation5 + $0x18] sm:$0xff] %vm3455, %v3270
          %3460 = vst.msk [vmem:[#allocation5 + $0x20] sm:$0xff] %vm3455, %v3272
          %3461 = vst.msk [vmem:[#allocation5 + $0x28] sm:$0xff] %vm3455, %v3274
          %3462 = vst.msk [vmem:[#allocation5 + $0x30] sm:$0xff] %vm3455, %v3276
          %3463 = vst.msk [vmem:[#allocation5 + $0x38] sm:$0xff] %vm3455, %v3278
          %3464 = vst.msk [vmem:[#allocation5 + $0x40] sm:$0xff] %vm3455, %v3280
          %3465 = vst.msk [vmem:[#allocation5 + $0x48] sm:$0xff] %vm3455, %v3282
          %3466 = vst.msk [vmem:[#allocation5 + $0x50] sm:$0xff] %vm3455, %v3284
          %3467 = vst.msk [vmem:[#allocation5 + $0x58] sm:$0xff] %vm3455, %v3286
          %3468 = vst.msk [vmem:[#allocation5 + $0x60] sm:$0xff] %vm3455, %v3288
          %3469 = vst.msk [vmem:[#allocation5 + $0x68] sm:$0xff] %vm3455, %v3290
          %3470 = vst.msk [vmem:[#allocation5 + $0x70] sm:$0xff] %vm3455, %v3292
          %3471 = vst.msk [vmem:[#allocation5 + $0x78] sm:$0xff] %vm3455, %v3294
          %3472 = vst.msk [vmem:[#allocation5 + $0x80] sm:$0xff] %vm3455, %v3296
          %3473 = vst.msk [vmem:[#allocation5 + $0x88] sm:$0xff] %vm3455, %v3298
          %3474 = vst.msk [vmem:[#allocation5 + $0x90] sm:$0xff] %vm3455, %v3300
          %3475 = vst.msk [vmem:[#allocation5 + $0x98] sm:$0xff] %vm3455, %v3302
          %3476 = vst.msk [vmem:[#allocation5 + $0xa0] sm:$0xff] %vm3455, %v3304
          %3477 = vst.msk [vmem:[#allocation5 + $0xa8] sm:$0xff] %vm3455, %v3306
          %3478 = vst.msk [vmem:[#allocation5 + $0xb0] sm:$0xff] %vm3455, %v3308
          %3479 = vst.msk [vmem:[#allocation5 + $0xb8] sm:$0xff] %vm3455, %v3310
          %3480 = vst.msk [vmem:[#allocation5 + $0xc0] sm:$0xff] %vm3455, %v3312
          %3481 = vst.msk [vmem:[#allocation5 + $0xc8] sm:$0xff] %vm3455, %v3314
          %3482 = vst.msk [vmem:[#allocation5 + $0xd0] sm:$0xff] %vm3455, %v3316
          %3483 = vst.msk [vmem:[#allocation5 + $0xd8] sm:$0xff] %vm3455, %v3318
          %3484 = vst.msk [vmem:[#allocation5 + $0xe0] sm:$0xff] %vm3455, %v3320
          %3485 = vst.msk [vmem:[#allocation5 + $0xe8] sm:$0xff] %vm3455, %v3322
          %3486 = vst.msk [vmem:[#allocation5 + $0xf0] sm:$0xff] %vm3455, %v3324
          %3487 = vst.msk [vmem:[#allocation5 + $0xf8] sm:$0xff] %vm3455, %v3326
          %3488 = vst.msk [vmem:[#allocation5 + $0x100] sm:$0xff] %vm3455, %v3328
          %3489 = vst.msk [vmem:[#allocation5 + $0x108] sm:$0xff] %vm3455, %v3330
          %3490 = vst.msk [vmem:[#allocation5 + $0x110] sm:$0xff] %vm3455, %v3332
          %3491 = vst.msk [vmem:[#allocation5 + $0x118] sm:$0xff] %vm3455, %v3334
          %3492 = vst.msk [vmem:[#allocation5 + $0x120] sm:$0xff] %vm3455, %v3336
          %3493 = vst.msk [vmem:[#allocation5 + $0x128] sm:$0xff] %vm3455, %v3338
          %3494 = vst.msk [vmem:[#allocation5 + $0x130] sm:$0xff] %vm3455, %v3340
          %3495 = vst.msk [vmem:[#allocation5 + $0x138] sm:$0xff] %vm3455, %v3342
          %3496 = vst.msk [vmem:[#allocation5 + $0x140] sm:$0xff] %vm3455, %v3344
          %3497 = vst.msk [vmem:[#allocation5 + $0x148] sm:$0xff] %vm3455, %v3346
          %3498 = vst.msk [vmem:[#allocation5 + $0x150] sm:$0xff] %vm3455, %v3348
          %3499 = vst.msk [vmem:[#allocation5 + $0x158] sm:$0xff] %vm3455, %v3350
          %3500 = vst.msk [vmem:[#allocation5 + $0x160] sm:$0xff] %vm3455, %v3352
          %3501 = vst.msk [vmem:[#allocation5 + $0x168] sm:$0xff] %vm3455, %v3354
          %3502 = vst.msk [vmem:[#allocation5 + $0x170] sm:$0xff] %vm3455, %v3356
          %3503 = vst.msk [vmem:[#allocation5 + $0x178] sm:$0xff] %vm3455, %v3358
          %3504 = vst.msk [vmem:[#allocation5 + $0x180] sm:$0xff] %vm3455, %v3360
          %3505 = vst.msk [vmem:[#allocation5 + $0x188] sm:$0xff] %vm3455, %v3362
          %3506 = vst.msk [vmem:[#allocation5 + $0x190] sm:$0xff] %vm3455, %v3364
          %3507 = vst.msk [vmem:[#allocation5 + $0x198] sm:$0xff] %vm3455, %v3366
          %3508 = vst.msk [vmem:[#allocation5 + $0x1a0] sm:$0xff] %vm3455, %v3368
          %3509 = vst.msk [vmem:[#allocation5 + $0x1a8] sm:$0xff] %vm3455, %v3370
          %3510 = vst.msk [vmem:[#allocation5 + $0x1b0] sm:$0xff] %vm3455, %v3372
          %3511 = vst.msk [vmem:[#allocation5 + $0x1b8] sm:$0xff] %vm3455, %v3374
          %3512 = vst.msk [vmem:[#allocation5 + $0x1c0] sm:$0xff] %vm3455, %v3376
          %3513 = vst.msk [vmem:[#allocation5 + $0x1c8] sm:$0xff] %vm3455, %v3378
          %3514 = vst.msk [vmem:[#allocation5 + $0x1d0] sm:$0xff] %vm3455, %v3380
          %3515 = vst.msk [vmem:[#allocation5 + $0x1d8] sm:$0xff] %vm3455, %v3382
          %3516 = vst.msk [vmem:[#allocation5 + $0x1e0] sm:$0xff] %vm3455, %v3384
          %3517 = vst.msk [vmem:[#allocation5 + $0x1e8] sm:$0xff] %vm3455, %v3386
          %3518 = vst.msk [vmem:[#allocation5 + $0x1f0] sm:$0xff] %vm3455, %v3388
          %3519 = vst.msk [vmem:[#allocation5 + $0x1f8] sm:$0xff] %vm3455, %v3390
          %v3520 = vld [vmem:[%s2749 + $0x2] sm:$0xff]
          %v3521 = vld [vmem:[%s2749 + $0xa] sm:$0xff]
          %v3522 = vld [vmem:[%s2749 + $0x1a] sm:$0xff]
          %v3523 = vld [vmem:[%s2749 + $0x22] sm:$0xff]
          %v3524 = vld [vmem:[%s2749 + $0x32] sm:$0xff]
          %v3525 = vld [vmem:[%s2749 + $0x3a] sm:$0xff]
          %v3526 = vld [vmem:[%s2749 + $0x4a] sm:$0xff]
          %v3527 = vld [vmem:[%s2749 + $0x52] sm:$0xff]
          %v3528 = vld [vmem:[%s2749 + $0x62] sm:$0xff]
          %v3529 = vld [vmem:[%s2749 + $0x6a] sm:$0xff]
          %v3530 = vld [vmem:[%s2749 + $0x7a] sm:$0xff]
          %v3531 = vld [vmem:[%s2749 + $0x82] sm:$0xff]
          %v3532 = vld [vmem:[%s2749 + $0x92] sm:$0xff]
          %v3533 = vld [vmem:[%s2749 + $0x9a] sm:$0xff]
          %v3534 = vld [vmem:[%s2749 + $0xaa] sm:$0xff]
          %v3535 = vld [vmem:[%s2749 + $0xb2] sm:$0xff]
          %v3536 = vld [vmem:[%s2749 + $0xc2] sm:$0xff]
          %v3537 = vld [vmem:[%s2749 + $0xca] sm:$0xff]
          %v3538 = vld [vmem:[%s2749 + $0xda] sm:$0xff]
          %v3539 = vld [vmem:[%s2749 + $0xe2] sm:$0xff]
          %v3540 = vld [vmem:[%s2749 + $0xf2] sm:$0xff]
          %v3541 = vld [vmem:[%s2749 + $0xfa] sm:$0xff]
          %v3542 = vld [vmem:[%s2749 + $0x10a] sm:$0xff]
          %v3543 = vld [vmem:[%s2749 + $0x112] sm:$0xff]
          %v3544 = vld [vmem:[%s2749 + $0x122] sm:$0xff]
          %v3545 = vld [vmem:[%s2749 + $0x12a] sm:$0xff]
          %v3546 = vld [vmem:[%s2749 + $0x13a] sm:$0xff]
          %v3547 = vld [vmem:[%s2749 + $0x142] sm:$0xff]
          %v3548 = vld [vmem:[%s2749 + $0x152] sm:$0xff]
          %v3549 = vld [vmem:[%s2749 + $0x15a] sm:$0xff]
          %v3550 = vld [vmem:[%s2749 + $0x16a] sm:$0xff]
          %v3551 = vld [vmem:[%s2749 + $0x172] sm:$0xff]
          %v3552 = vld [vmem:[%s2749 + $0x1b2] sm:$0xff]
          %v3553 = vld [vmem:[%s2749 + $0x1ba] sm:$0xff]
          %v3554 = vld [vmem:[%s2749 + $0x1ca] sm:$0xff]
          %v3555 = vld [vmem:[%s2749 + $0x1d2] sm:$0xff]
          %v3556 = vld [vmem:[%s2749 + $0x1e2] sm:$0xff]
          %v3557 = vld [vmem:[%s2749 + $0x1ea] sm:$0xff]
          %v3558 = vld [vmem:[%s2749 + $0x1fa] sm:$0xff]
          %v3559 = vld [vmem:[%s2749 + $0x202] sm:$0xff]
          %v3560 = vld [vmem:[%s2749 + $0x212] sm:$0xff]
          %v3561 = vld [vmem:[%s2749 + $0x21a] sm:$0xff]
          %v3562 = vld [vmem:[%s2749 + $0x22a] sm:$0xff]
          %v3563 = vld [vmem:[%s2749 + $0x232] sm:$0xff]
          %v3564 = vld [vmem:[%s2749 + $0x242] sm:$0xff]
          %v3565 = vld [vmem:[%s2749 + $0x24a] sm:$0xff]
          %v3566 = vld [vmem:[%s2749 + $0x25a] sm:$0xff]
          %v3567 = vld [vmem:[%s2749 + $0x262] sm:$0xff]
          %v3568 = vld [vmem:[%s2749 + $0x272] sm:$0xff]
          %v3569 = vld [vmem:[%s2749 + $0x27a] sm:$0xff]
          %v3570 = vld [vmem:[%s2749 + $0x28a] sm:$0xff]
          %v3571 = vld [vmem:[%s2749 + $0x292] sm:$0xff]
          %v3572 = vld [vmem:[%s2749 + $0x2a2] sm:$0xff]
          %v3573 = vld [vmem:[%s2749 + $0x2aa] sm:$0xff]
          %v3574 = vld [vmem:[%s2749 + $0x2ba] sm:$0xff]
          %v3575 = vld [vmem:[%s2749 + $0x2c2] sm:$0xff]
          %v3576 = vld [vmem:[%s2749 + $0x2d2] sm:$0xff]
          %v3577 = vld [vmem:[%s2749 + $0x2da] sm:$0xff]
          %v3578 = vld [vmem:[%s2749 + $0x2ea] sm:$0xff]
          %v3579 = vld [vmem:[%s2749 + $0x2f2] sm:$0xff]
          %v3580 = vld [vmem:[%s2749 + $0x302] sm:$0xff]
          %v3581 = vld [vmem:[%s2749 + $0x30a] sm:$0xff]
          %v3582 = vld [vmem:[%s2749 + $0x31a] sm:$0xff]
          %v3583 = vld [vmem:[%s2749 + $0x322] sm:$0xff]
          %3648 = vrot.lane.b32.xlu0 %v3520, 64
          %v3649 = vpop.permute.xlu0 %3648
          %3650 = vrot.lane.b32.xlu0 %v3521, 64
          %v3651 = vpop.permute.xlu0 %3650
          %3652 = vrot.lane.b32.xlu0 %v3522, 64
          %v3653 = vpop.permute.xlu0 %3652
          %3654 = vrot.lane.b32.xlu0 %v3523, 64
          %v3655 = vpop.permute.xlu0 %3654
          %3656 = vrot.lane.b32.xlu0 %v3524, 64
          %v3657 = vpop.permute.xlu0 %3656
          %3658 = vrot.lane.b32.xlu0 %v3525, 64
          %v3659 = vpop.permute.xlu0 %3658
          %3660 = vrot.lane.b32.xlu0 %v3526, 64
          %v3661 = vpop.permute.xlu0 %3660
          %3662 = vrot.lane.b32.xlu0 %v3527, 64
          %v3663 = vpop.permute.xlu0 %3662
          %3664 = vrot.lane.b32.xlu0 %v3528, 64
          %v3665 = vpop.permute.xlu0 %3664
          %3666 = vrot.lane.b32.xlu0 %v3529, 64
          %v3667 = vpop.permute.xlu0 %3666
          %3668 = vrot.lane.b32.xlu0 %v3530, 64
          %v3669 = vpop.permute.xlu0 %3668
          %3670 = vrot.lane.b32.xlu0 %v3531, 64
          %v3671 = vpop.permute.xlu0 %3670
          %3672 = vrot.lane.b32.xlu0 %v3532, 64
          %v3673 = vpop.permute.xlu0 %3672
          %3674 = vrot.lane.b32.xlu0 %v3533, 64
          %v3675 = vpop.permute.xlu0 %3674
          %3676 = vrot.lane.b32.xlu0 %v3534, 64
          %v3677 = vpop.permute.xlu0 %3676
          %3678 = vrot.lane.b32.xlu0 %v3535, 64
          %v3679 = vpop.permute.xlu0 %3678
          %3680 = vrot.lane.b32.xlu0 %v3536, 64
          %v3681 = vpop.permute.xlu0 %3680
          %3682 = vrot.lane.b32.xlu0 %v3537, 64
          %v3683 = vpop.permute.xlu0 %3682
          %3684 = vrot.lane.b32.xlu0 %v3538, 64
          %v3685 = vpop.permute.xlu0 %3684
          %3686 = vrot.lane.b32.xlu0 %v3539, 64
          %v3687 = vpop.permute.xlu0 %3686
          %3688 = vrot.lane.b32.xlu0 %v3540, 64
          %v3689 = vpop.permute.xlu0 %3688
          %3690 = vrot.lane.b32.xlu0 %v3541, 64
          %v3691 = vpop.permute.xlu0 %3690
          %3692 = vrot.lane.b32.xlu0 %v3542, 64
          %v3693 = vpop.permute.xlu0 %3692
          %3694 = vrot.lane.b32.xlu0 %v3543, 64
          %v3695 = vpop.permute.xlu0 %3694
          %3696 = vrot.lane.b32.xlu0 %v3544, 64
          %v3697 = vpop.permute.xlu0 %3696
          %3698 = vrot.lane.b32.xlu0 %v3545, 64
          %v3699 = vpop.permute.xlu0 %3698
          %3700 = vrot.lane.b32.xlu0 %v3546, 64
          %v3701 = vpop.permute.xlu0 %3700
          %3702 = vrot.lane.b32.xlu0 %v3547, 64
          %v3703 = vpop.permute.xlu0 %3702
          %3704 = vrot.lane.b32.xlu0 %v3548, 64
          %v3705 = vpop.permute.xlu0 %3704
          %3706 = vrot.lane.b32.xlu0 %v3549, 64
          %v3707 = vpop.permute.xlu0 %3706
          %3708 = vrot.lane.b32.xlu0 %v3550, 64
          %v3709 = vpop.permute.xlu0 %3708
          %3710 = vrot.lane.b32.xlu0 %v3551, 64
          %v3711 = vpop.permute.xlu0 %3710
          %3712 = vrot.lane.b32.xlu0 %v3552, 64
          %v3713 = vpop.permute.xlu0 %3712
          %3714 = vrot.lane.b32.xlu0 %v3553, 64
          %v3715 = vpop.permute.xlu0 %3714
          %3716 = vrot.lane.b32.xlu0 %v3554, 64
          %v3717 = vpop.permute.xlu0 %3716
          %3718 = vrot.lane.b32.xlu0 %v3555, 64
          %v3719 = vpop.permute.xlu0 %3718
          %3720 = vrot.lane.b32.xlu0 %v3556, 64
          %v3721 = vpop.permute.xlu0 %3720
          %3722 = vrot.lane.b32.xlu0 %v3557, 64
          %v3723 = vpop.permute.xlu0 %3722
          %3724 = vrot.lane.b32.xlu0 %v3558, 64
          %v3725 = vpop.permute.xlu0 %3724
          %3726 = vrot.lane.b32.xlu0 %v3559, 64
          %v3727 = vpop.permute.xlu0 %3726
          %3728 = vrot.lane.b32.xlu0 %v3560, 64
          %v3729 = vpop.permute.xlu0 %3728
          %3730 = vrot.lane.b32.xlu0 %v3561, 64
          %v3731 = vpop.permute.xlu0 %3730
          %3732 = vrot.lane.b32.xlu0 %v3562, 64
          %v3733 = vpop.permute.xlu0 %3732
          %3734 = vrot.lane.b32.xlu0 %v3563, 64
          %v3735 = vpop.permute.xlu0 %3734
          %3736 = vrot.lane.b32.xlu0 %v3564, 64
          %v3737 = vpop.permute.xlu0 %3736
          %3738 = vrot.lane.b32.xlu0 %v3565, 64
          %v3739 = vpop.permute.xlu0 %3738
          %3740 = vrot.lane.b32.xlu0 %v3566, 64
          %v3741 = vpop.permute.xlu0 %3740
          %3742 = vrot.lane.b32.xlu0 %v3567, 64
          %v3743 = vpop.permute.xlu0 %3742
          %3744 = vrot.lane.b32.xlu0 %v3568, 64
          %v3745 = vpop.permute.xlu0 %3744
          %3746 = vrot.lane.b32.xlu0 %v3569, 64
          %v3747 = vpop.permute.xlu0 %3746
          %3748 = vrot.lane.b32.xlu0 %v3570, 64
          %v3749 = vpop.permute.xlu0 %3748
          %3750 = vrot.lane.b32.xlu0 %v3571, 64
          %v3751 = vpop.permute.xlu0 %3750
          %3752 = vrot.lane.b32.xlu0 %v3572, 64
          %v3753 = vpop.permute.xlu0 %3752
          %3754 = vrot.lane.b32.xlu0 %v3573, 64
          %v3755 = vpop.permute.xlu0 %3754
          %3756 = vrot.lane.b32.xlu0 %v3574, 64
          %v3757 = vpop.permute.xlu0 %3756
          %3758 = vrot.lane.b32.xlu0 %v3575, 64
          %v3759 = vpop.permute.xlu0 %3758
          %3760 = vrot.lane.b32.xlu0 %v3576, 64
          %v3761 = vpop.permute.xlu0 %3760
          %3762 = vrot.lane.b32.xlu0 %v3577, 64
          %v3763 = vpop.permute.xlu0 %3762
          %3764 = vrot.lane.b32.xlu0 %v3578, 64
          %v3765 = vpop.permute.xlu0 %3764
          %3766 = vrot.lane.b32.xlu0 %v3579, 64
          %v3767 = vpop.permute.xlu0 %3766
          %3768 = vrot.lane.b32.xlu0 %v3580, 64
          %v3769 = vpop.permute.xlu0 %3768
          %3770 = vrot.lane.b32.xlu0 %v3581, 64
          %v3771 = vpop.permute.xlu0 %3770
          %3772 = vrot.lane.b32.xlu0 %v3582, 64
          %v3773 = vpop.permute.xlu0 %3772
          %3774 = vrot.lane.b32.xlu0 %v3583, 64
          %v3775 = vpop.permute.xlu0 %3774
          %vm3840 = vcmask 589312
          %3841 = vst.msk [vmem:[#allocation5] sm:$0xff] %vm3840, %v3649
          %3842 = vst.msk [vmem:[#allocation5 + $0x8] sm:$0xff] %vm3840, %v3651
          %3843 = vst.msk [vmem:[#allocation5 + $0x10] sm:$0xff] %vm3840, %v3653
          %3844 = vst.msk [vmem:[#allocation5 + $0x18] sm:$0xff] %vm3840, %v3655
          %3845 = vst.msk [vmem:[#allocation5 + $0x20] sm:$0xff] %vm3840, %v3657
          %3846 = vst.msk [vmem:[#allocation5 + $0x28] sm:$0xff] %vm3840, %v3659
          %3847 = vst.msk [vmem:[#allocation5 + $0x30] sm:$0xff] %vm3840, %v3661
          %3848 = vst.msk [vmem:[#allocation5 + $0x38] sm:$0xff] %vm3840, %v3663
          %3849 = vst.msk [vmem:[#allocation5 + $0x40] sm:$0xff] %vm3840, %v3665
          %3850 = vst.msk [vmem:[#allocation5 + $0x48] sm:$0xff] %vm3840, %v3667
          %3851 = vst.msk [vmem:[#allocation5 + $0x50] sm:$0xff] %vm3840, %v3669
          %3852 = vst.msk [vmem:[#allocation5 + $0x58] sm:$0xff] %vm3840, %v3671
          %3853 = vst.msk [vmem:[#allocation5 + $0x60] sm:$0xff] %vm3840, %v3673
          %3854 = vst.msk [vmem:[#allocation5 + $0x68] sm:$0xff] %vm3840, %v3675
          %3855 = vst.msk [vmem:[#allocation5 + $0x70] sm:$0xff] %vm3840, %v3677
          %3856 = vst.msk [vmem:[#allocation5 + $0x78] sm:$0xff] %vm3840, %v3679
          %3857 = vst.msk [vmem:[#allocation5 + $0x80] sm:$0xff] %vm3840, %v3681
          %3858 = vst.msk [vmem:[#allocation5 + $0x88] sm:$0xff] %vm3840, %v3683
          %3859 = vst.msk [vmem:[#allocation5 + $0x90] sm:$0xff] %vm3840, %v3685
          %3860 = vst.msk [vmem:[#allocation5 + $0x98] sm:$0xff] %vm3840, %v3687
          %3861 = vst.msk [vmem:[#allocation5 + $0xa0] sm:$0xff] %vm3840, %v3689
          %3862 = vst.msk [vmem:[#allocation5 + $0xa8] sm:$0xff] %vm3840, %v3691
          %3863 = vst.msk [vmem:[#allocation5 + $0xb0] sm:$0xff] %vm3840, %v3693
          %3864 = vst.msk [vmem:[#allocation5 + $0xb8] sm:$0xff] %vm3840, %v3695
          %3865 = vst.msk [vmem:[#allocation5 + $0xc0] sm:$0xff] %vm3840, %v3697
          %3866 = vst.msk [vmem:[#allocation5 + $0xc8] sm:$0xff] %vm3840, %v3699
          %3867 = vst.msk [vmem:[#allocation5 + $0xd0] sm:$0xff] %vm3840, %v3701
          %3868 = vst.msk [vmem:[#allocation5 + $0xd8] sm:$0xff] %vm3840, %v3703
          %3869 = vst.msk [vmem:[#allocation5 + $0xe0] sm:$0xff] %vm3840, %v3705
          %3870 = vst.msk [vmem:[#allocation5 + $0xe8] sm:$0xff] %vm3840, %v3707
          %3871 = vst.msk [vmem:[#allocation5 + $0xf0] sm:$0xff] %vm3840, %v3709
          %3872 = vst.msk [vmem:[#allocation5 + $0xf8] sm:$0xff] %vm3840, %v3711
          %3873 = vst.msk [vmem:[#allocation5 + $0x100] sm:$0xff] %vm3840, %v3713
          %3874 = vst.msk [vmem:[#allocation5 + $0x108] sm:$0xff] %vm3840, %v3715
          %3875 = vst.msk [vmem:[#allocation5 + $0x110] sm:$0xff] %vm3840, %v3717
          %3876 = vst.msk [vmem:[#allocation5 + $0x118] sm:$0xff] %vm3840, %v3719
          %3877 = vst.msk [vmem:[#allocation5 + $0x120] sm:$0xff] %vm3840, %v3721
          %3878 = vst.msk [vmem:[#allocation5 + $0x128] sm:$0xff] %vm3840, %v3723
          %3879 = vst.msk [vmem:[#allocation5 + $0x130] sm:$0xff] %vm3840, %v3725
          %3880 = vst.msk [vmem:[#allocation5 + $0x138] sm:$0xff] %vm3840, %v3727
          %3881 = vst.msk [vmem:[#allocation5 + $0x140] sm:$0xff] %vm3840, %v3729
          %3882 = vst.msk [vmem:[#allocation5 + $0x148] sm:$0xff] %vm3840, %v3731
          %3883 = vst.msk [vmem:[#allocation5 + $0x150] sm:$0xff] %vm3840, %v3733
          %3884 = vst.msk [vmem:[#allocation5 + $0x158] sm:$0xff] %vm3840, %v3735
          %3885 = vst.msk [vmem:[#allocation5 + $0x160] sm:$0xff] %vm3840, %v3737
          %3886 = vst.msk [vmem:[#allocation5 + $0x168] sm:$0xff] %vm3840, %v3739
          %3887 = vst.msk [vmem:[#allocation5 + $0x170] sm:$0xff] %vm3840, %v3741
          %3888 = vst.msk [vmem:[#allocation5 + $0x178] sm:$0xff] %vm3840, %v3743
          %3889 = vst.msk [vmem:[#allocation5 + $0x180] sm:$0xff] %vm3840, %v3745
          %3890 = vst.msk [vmem:[#allocation5 + $0x188] sm:$0xff] %vm3840, %v3747
          %3891 = vst.msk [vmem:[#allocation5 + $0x190] sm:$0xff] %vm3840, %v3749
          %3892 = vst.msk [vmem:[#allocation5 + $0x198] sm:$0xff] %vm3840, %v3751
          %3893 = vst.msk [vmem:[#allocation5 + $0x1a0] sm:$0xff] %vm3840, %v3753
          %3894 = vst.msk [vmem:[#allocation5 + $0x1a8] sm:$0xff] %vm3840, %v3755
          %3895 = vst.msk [vmem:[#allocation5 + $0x1b0] sm:$0xff] %vm3840, %v3757
          %3896 = vst.msk [vmem:[#allocation5 + $0x1b8] sm:$0xff] %vm3840, %v3759
          %3897 = vst.msk [vmem:[#allocation5 + $0x1c0] sm:$0xff] %vm3840, %v3761
          %3898 = vst.msk [vmem:[#allocation5 + $0x1c8] sm:$0xff] %vm3840, %v3763
          %3899 = vst.msk [vmem:[#allocation5 + $0x1d0] sm:$0xff] %vm3840, %v3765
          %3900 = vst.msk [vmem:[#allocation5 + $0x1d8] sm:$0xff] %vm3840, %v3767
          %3901 = vst.msk [vmem:[#allocation5 + $0x1e0] sm:$0xff] %vm3840, %v3769
          %3902 = vst.msk [vmem:[#allocation5 + $0x1e8] sm:$0xff] %vm3840, %v3771
          %3903 = vst.msk [vmem:[#allocation5 + $0x1f0] sm:$0xff] %vm3840, %v3773
          %3904 = vst.msk [vmem:[#allocation5 + $0x1f8] sm:$0xff] %vm3840, %v3775
          %v3905 = vld [vmem:[#allocation5] sm:$0xff]
          %v3906 = vld [vmem:[#allocation5 + $0x8] sm:$0xff]
          %v3907 = vld [vmem:[#allocation5 + $0x10] sm:$0xff]
          %v3908 = vld [vmem:[#allocation5 + $0x18] sm:$0xff]
          %v3909 = vld [vmem:[#allocation5 + $0x20] sm:$0xff]
          %v3910 = vld [vmem:[#allocation5 + $0x28] sm:$0xff]
          %v3911 = vld [vmem:[#allocation5 + $0x30] sm:$0xff]
          %v3912 = vld [vmem:[#allocation5 + $0x38] sm:$0xff]
          %v3913 = vld [vmem:[#allocation5 + $0x40] sm:$0xff]
          %v3914 = vld [vmem:[#allocation5 + $0x48] sm:$0xff]
          %v3915 = vld [vmem:[#allocation5 + $0x50] sm:$0xff]
          %v3916 = vld [vmem:[#allocation5 + $0x58] sm:$0xff]
          %v3917 = vld [vmem:[#allocation5 + $0x60] sm:$0xff]
          %v3918 = vld [vmem:[#allocation5 + $0x68] sm:$0xff]
          %v3919 = vld [vmem:[#allocation5 + $0x70] sm:$0xff]
          %v3920 = vld [vmem:[#allocation5 + $0x78] sm:$0xff]
          %v3921 = vld [vmem:[#allocation5 + $0x80] sm:$0xff]
          %v3922 = vld [vmem:[#allocation5 + $0x88] sm:$0xff]
          %v3923 = vld [vmem:[#allocation5 + $0x90] sm:$0xff]
          %v3924 = vld [vmem:[#allocation5 + $0x98] sm:$0xff]
          %v3925 = vld [vmem:[#allocation5 + $0xa0] sm:$0xff]
          %v3926 = vld [vmem:[#allocation5 + $0xa8] sm:$0xff]
          %v3927 = vld [vmem:[#allocation5 + $0xb0] sm:$0xff]
          %v3928 = vld [vmem:[#allocation5 + $0xb8] sm:$0xff]
          %v3929 = vld [vmem:[#allocation5 + $0xc0] sm:$0xff]
          %v3930 = vld [vmem:[#allocation5 + $0xc8] sm:$0xff]
          %v3931 = vld [vmem:[#allocation5 + $0xd0] sm:$0xff]
          %v3932 = vld [vmem:[#allocation5 + $0xd8] sm:$0xff]
          %v3933 = vld [vmem:[#allocation5 + $0xe0] sm:$0xff]
          %v3934 = vld [vmem:[#allocation5 + $0xe8] sm:$0xff]
          %v3935 = vld [vmem:[#allocation5 + $0xf0] sm:$0xff]
          %v3936 = vld [vmem:[#allocation5 + $0xf8] sm:$0xff]
          %v3937 = vld [vmem:[#allocation5 + $0x100] sm:$0xff]
          %v3938 = vld [vmem:[#allocation5 + $0x108] sm:$0xff]
          %v3939 = vld [vmem:[#allocation5 + $0x110] sm:$0xff]
          %v3940 = vld [vmem:[#allocation5 + $0x118] sm:$0xff]
          %v3941 = vld [vmem:[#allocation5 + $0x120] sm:$0xff]
          %v3942 = vld [vmem:[#allocation5 + $0x128] sm:$0xff]
          %v3943 = vld [vmem:[#allocation5 + $0x130] sm:$0xff]
          %v3944 = vld [vmem:[#allocation5 + $0x138] sm:$0xff]
          %v3945 = vld [vmem:[#allocation5 + $0x140] sm:$0xff]
          %v3946 = vld [vmem:[#allocation5 + $0x148] sm:$0xff]
          %v3947 = vld [vmem:[#allocation5 + $0x150] sm:$0xff]
          %v3948 = vld [vmem:[#allocation5 + $0x158] sm:$0xff]
          %v3949 = vld [vmem:[#allocation5 + $0x160] sm:$0xff]
          %v3950 = vld [vmem:[#allocation5 + $0x168] sm:$0xff]
          %v3951 = vld [vmem:[#allocation5 + $0x170] sm:$0xff]
          %v3952 = vld [vmem:[#allocation5 + $0x178] sm:$0xff]
          %v3953 = vld [vmem:[#allocation5 + $0x180] sm:$0xff]
          %v3954 = vld [vmem:[#allocation5 + $0x188] sm:$0xff]
          %v3955 = vld [vmem:[#allocation5 + $0x190] sm:$0xff]
          %v3956 = vld [vmem:[#allocation5 + $0x198] sm:$0xff]
          %v3957 = vld [vmem:[#allocation5 + $0x1a0] sm:$0xff]
          %v3958 = vld [vmem:[#allocation5 + $0x1a8] sm:$0xff]
          %v3959 = vld [vmem:[#allocation5 + $0x1b0] sm:$0xff]
          %v3960 = vld [vmem:[#allocation5 + $0x1b8] sm:$0xff]
          %v3961 = vld [vmem:[#allocation5 + $0x1c0] sm:$0xff]
          %v3962 = vld [vmem:[#allocation5 + $0x1c8] sm:$0xff]
          %v3963 = vld [vmem:[#allocation5 + $0x1d0] sm:$0xff]
          %v3964 = vld [vmem:[#allocation5 + $0x1d8] sm:$0xff]
          %v3965 = vld [vmem:[#allocation5 + $0x1e0] sm:$0xff]
          %v3966 = vld [vmem:[#allocation5 + $0x1e8] sm:$0xff]
          %v3967 = vld [vmem:[#allocation5 + $0x1f0] sm:$0xff]
          %v3968 = vld [vmem:[#allocation5 + $0x1f8] sm:$0xff]
          %vm3969 = vcmask 588800
          %v3971 = vsel %vm3969, %v3905, 0
          %v3974 = vsel %vm3969, %v3906, 0
          %v3977 = vsel %vm3969, %v3907, 0
          %v3980 = vsel %vm3969, %v3908, 0
          %v3983 = vsel %vm3969, %v3909, 0
          %v3986 = vsel %vm3969, %v3910, 0
          %v3989 = vsel %vm3969, %v3911, 0
          %v3992 = vsel %vm3969, %v3912, 0
          %v3995 = vsel %vm3969, %v3913, 0
          %v3998 = vsel %vm3969, %v3914, 0
          %v4001 = vsel %vm3969, %v3915, 0
          %v4004 = vsel %vm3969, %v3916, 0
          %v4007 = vsel %vm3969, %v3917, 0
          %v4010 = vsel %vm3969, %v3918, 0
          %v4013 = vsel %vm3969, %v3919, 0
          %v4016 = vsel %vm3969, %v3920, 0
          %v4019 = vsel %vm3969, %v3921, 0
          %v4022 = vsel %vm3969, %v3922, 0
          %v4025 = vsel %vm3969, %v3923, 0
          %v4028 = vsel %vm3969, %v3924, 0
          %v4031 = vsel %vm3969, %v3925, 0
          %v4034 = vsel %vm3969, %v3926, 0
          %v4037 = vsel %vm3969, %v3927, 0
          %v4040 = vsel %vm3969, %v3928, 0
          %v4043 = vsel %vm3969, %v3929, 0
          %v4046 = vsel %vm3969, %v3930, 0
          %v4049 = vsel %vm3969, %v3931, 0
          %v4052 = vsel %vm3969, %v3932, 0
          %v4055 = vsel %vm3969, %v3933, 0
          %v4058 = vsel %vm3969, %v3934, 0
          %v4061 = vsel %vm3969, %v3935, 0
          %v4064 = vsel %vm3969, %v3936, 0
          %v4067 = vsel %vm3969, %v3937, 0
          %v4070 = vsel %vm3969, %v3938, 0
          %v4073 = vsel %vm3969, %v3939, 0
          %v4076 = vsel %vm3969, %v3940, 0
          %v4079 = vsel %vm3969, %v3941, 0
          %v4082 = vsel %vm3969, %v3942, 0
          %v4085 = vsel %vm3969, %v3943, 0
          %v4088 = vsel %vm3969, %v3944, 0
          %v4091 = vsel %vm3969, %v3945, 0
          %v4094 = vsel %vm3969, %v3946, 0
          %v4097 = vsel %vm3969, %v3947, 0
          %v4100 = vsel %vm3969, %v3948, 0
          %v4103 = vsel %vm3969, %v3949, 0
          %v4106 = vsel %vm3969, %v3950, 0
          %v4109 = vsel %vm3969, %v3951, 0
          %v4112 = vsel %vm3969, %v3952, 0
          %v4115 = vsel %vm3969, %v3953, 0
          %v4118 = vsel %vm3969, %v3954, 0
          %v4121 = vsel %vm3969, %v3955, 0
          %v4124 = vsel %vm3969, %v3956, 0
          %v4127 = vsel %vm3969, %v3957, 0
          %v4130 = vsel %vm3969, %v3958, 0
          %v4133 = vsel %vm3969, %v3959, 0
          %v4136 = vsel %vm3969, %v3960, 0
          %v4139 = vsel %vm3969, %v3961, 0
          %v4142 = vsel %vm3969, %v3962, 0
          %v4145 = vsel %vm3969, %v3963, 0
          %v4148 = vsel %vm3969, %v3964, 0
          %v4151 = vsel %vm3969, %v3965, 0
          %v4154 = vsel %vm3969, %v3966, 0
          %v4157 = vsel %vm3969, %v3967, 0
          %v4160 = vsel %vm3969, %v3968, 0
          %4162 = vmatpush.msra.mxu0 0.0
          %4163 = vmatpush.msra.mxu0 0.0
          %4164 = vmatpush.msra.mxu0 0.0
          %4165 = vmatpush.msra.mxu0 0.0
          %4166 = vmatpush.msra.mxu0 0.0
          %4167 = vmatpush.msra.mxu0 0.0
          %4168 = vmatpush.msra.mxu0 0.0
          %4169 = vmatpush.msra.mxu0 %v695
          %4170 = vmatpush.msra.mxu0 %v694
          %4171 = vmatpush.msra.mxu0 %v693
          %4172 = vmatpush.msra.mxu0 %v692
          %4173 = vmatpush.msra.mxu0 %v691
          %4174 = vmatpush.msra.mxu0 %v690
          %4175 = vmatpush.msra.mxu0 %v689
          %4176 = vmatpush.msra.mxu0 %v688
          %4177 = vmatpush.msra.mxu0 %v687
          %4178 = vmatmul.f32.gmra.mxu0 %v3971
          %v4179 = vpop.f32.mrf.mxu0
          %v4180 = vadd.f32 0.0, %v4179
          %4181 = vmatmul.f32.gmra.mxu0 %v3974
          %v4182 = vpop.f32.mrf.mxu0
          %v4183 = vadd.f32 0.0, %v4182
          %4184 = vmatmul.f32.gmra.mxu0 %v3977
          %v4185 = vpop.f32.mrf.mxu0
          %v4186 = vadd.f32 0.0, %v4185
          %4187 = vmatmul.f32.gmra.mxu0 %v3980
          %v4188 = vpop.f32.mrf.mxu0
          %v4189 = vadd.f32 0.0, %v4188
          %4190 = vmatmul.f32.gmra.mxu0 %v3983
          %v4191 = vpop.f32.mrf.mxu0
          %v4192 = vadd.f32 0.0, %v4191
          %4193 = vmatmul.f32.gmra.mxu0 %v3986
          %v4194 = vpop.f32.mrf.mxu0
          %v4195 = vadd.f32 0.0, %v4194
          %4196 = vmatmul.f32.gmra.mxu0 %v3989
          %v4197 = vpop.f32.mrf.mxu0
          %v4198 = vadd.f32 0.0, %v4197
          %4199 = vmatmul.f32.gmra.mxu0 %v3992
          %v4200 = vpop.f32.mrf.mxu0
          %v4201 = vadd.f32 0.0, %v4200
          %4202 = vmatmul.f32.gmra.mxu0 %v3995
          %v4203 = vpop.f32.mrf.mxu0
          %v4204 = vadd.f32 0.0, %v4203
          %4205 = vmatmul.f32.gmra.mxu0 %v3998
          %v4206 = vpop.f32.mrf.mxu0
          %v4207 = vadd.f32 0.0, %v4206
          %4208 = vmatmul.f32.gmra.mxu0 %v4001
          %v4209 = vpop.f32.mrf.mxu0
          %v4210 = vadd.f32 0.0, %v4209
          %4211 = vmatmul.f32.gmra.mxu0 %v4004
          %v4212 = vpop.f32.mrf.mxu0
          %v4213 = vadd.f32 0.0, %v4212
          %4214 = vmatmul.f32.gmra.mxu0 %v4007
          %v4215 = vpop.f32.mrf.mxu0
          %v4216 = vadd.f32 0.0, %v4215
          %4217 = vmatmul.f32.gmra.mxu0 %v4010
          %v4218 = vpop.f32.mrf.mxu0
          %v4219 = vadd.f32 0.0, %v4218
          %4220 = vmatmul.f32.gmra.mxu0 %v4013
          %v4221 = vpop.f32.mrf.mxu0
          %v4222 = vadd.f32 0.0, %v4221
          %4223 = vmatmul.f32.gmra.mxu0 %v4016
          %v4224 = vpop.f32.mrf.mxu0
          %v4225 = vadd.f32 0.0, %v4224
          %4226 = vmatmul.f32.gmra.mxu0 %v4019
          %v4227 = vpop.f32.mrf.mxu0
          %v4228 = vadd.f32 0.0, %v4227
          %4229 = vmatmul.f32.gmra.mxu0 %v4022
          %v4230 = vpop.f32.mrf.mxu0
          %v4231 = vadd.f32 0.0, %v4230
          %4232 = vmatmul.f32.gmra.mxu0 %v4025
          %v4233 = vpop.f32.mrf.mxu0
          %v4234 = vadd.f32 0.0, %v4233
          %4235 = vmatmul.f32.gmra.mxu0 %v4028
          %v4236 = vpop.f32.mrf.mxu0
          %v4237 = vadd.f32 0.0, %v4236
          %4238 = vmatmul.f32.gmra.mxu0 %v4031
          %v4239 = vpop.f32.mrf.mxu0
          %v4240 = vadd.f32 0.0, %v4239
          %4241 = vmatmul.f32.gmra.mxu0 %v4034
          %v4242 = vpop.f32.mrf.mxu0
          %v4243 = vadd.f32 0.0, %v4242
          %4244 = vmatmul.f32.gmra.mxu0 %v4037
          %v4245 = vpop.f32.mrf.mxu0
          %v4246 = vadd.f32 0.0, %v4245
          %4247 = vmatmul.f32.gmra.mxu0 %v4040
          %v4248 = vpop.f32.mrf.mxu0
          %v4249 = vadd.f32 0.0, %v4248
          %4250 = vmatmul.f32.gmra.mxu0 %v4043
          %v4251 = vpop.f32.mrf.mxu0
          %v4252 = vadd.f32 0.0, %v4251
          %4253 = vmatmul.f32.gmra.mxu0 %v4046
          %v4254 = vpop.f32.mrf.mxu0
          %v4255 = vadd.f32 0.0, %v4254
          %4256 = vmatmul.f32.gmra.mxu0 %v4049
          %v4257 = vpop.f32.mrf.mxu0
          %v4258 = vadd.f32 0.0, %v4257
          %4259 = vmatmul.f32.gmra.mxu0 %v4052
          %v4260 = vpop.f32.mrf.mxu0
          %v4261 = vadd.f32 0.0, %v4260
          %4262 = vmatmul.f32.gmra.mxu0 %v4055
          %v4263 = vpop.f32.mrf.mxu0
          %v4264 = vadd.f32 0.0, %v4263
          %4265 = vmatmul.f32.gmra.mxu0 %v4058
          %v4266 = vpop.f32.mrf.mxu0
          %v4267 = vadd.f32 0.0, %v4266
          %4268 = vmatmul.f32.gmra.mxu0 %v4061
          %v4269 = vpop.f32.mrf.mxu0
          %v4270 = vadd.f32 0.0, %v4269
          %4271 = vmatmul.f32.gmra.mxu0 %v4064
          %v4272 = vpop.f32.mrf.mxu0
          %v4273 = vadd.f32 0.0, %v4272
          %4274 = vmatmul.f32.gmra.mxu0 %v4067
          %v4275 = vpop.f32.mrf.mxu0
          %v4276 = vadd.f32 0.0, %v4275
          %4277 = vmatmul.f32.gmra.mxu0 %v4070
          %v4278 = vpop.f32.mrf.mxu0
          %v4279 = vadd.f32 0.0, %v4278
          %4280 = vmatmul.f32.gmra.mxu0 %v4073
          %v4281 = vpop.f32.mrf.mxu0
          %v4282 = vadd.f32 0.0, %v4281
          %4283 = vmatmul.f32.gmra.mxu0 %v4076
          %v4284 = vpop.f32.mrf.mxu0
          %v4285 = vadd.f32 0.0, %v4284
          %4286 = vmatmul.f32.gmra.mxu0 %v4079
          %v4287 = vpop.f32.mrf.mxu0
          %v4288 = vadd.f32 0.0, %v4287
          %4289 = vmatmul.f32.gmra.mxu0 %v4082
          %v4290 = vpop.f32.mrf.mxu0
          %v4291 = vadd.f32 0.0, %v4290
          %4292 = vmatmul.f32.gmra.mxu0 %v4085
          %v4293 = vpop.f32.mrf.mxu0
          %v4294 = vadd.f32 0.0, %v4293
          %4295 = vmatmul.f32.gmra.mxu0 %v4088
          %v4296 = vpop.f32.mrf.mxu0
          %v4297 = vadd.f32 0.0, %v4296
          %4298 = vmatmul.f32.gmra.mxu0 %v4091
          %v4299 = vpop.f32.mrf.mxu0
          %v4300 = vadd.f32 0.0, %v4299
          %4301 = vmatmul.f32.gmra.mxu0 %v4094
          %v4302 = vpop.f32.mrf.mxu0
          %v4303 = vadd.f32 0.0, %v4302
          %4304 = vmatmul.f32.gmra.mxu0 %v4097
          %v4305 = vpop.f32.mrf.mxu0
          %v4306 = vadd.f32 0.0, %v4305
          %4307 = vmatmul.f32.gmra.mxu0 %v4100
          %v4308 = vpop.f32.mrf.mxu0
          %v4309 = vadd.f32 0.0, %v4308
          %4310 = vmatmul.f32.gmra.mxu0 %v4103
          %v4311 = vpop.f32.mrf.mxu0
          %v4312 = vadd.f32 0.0, %v4311
          %4313 = vmatmul.f32.gmra.mxu0 %v4106
          %v4314 = vpop.f32.mrf.mxu0
          %v4315 = vadd.f32 0.0, %v4314
          %4316 = vmatmul.f32.gmra.mxu0 %v4109
          %v4317 = vpop.f32.mrf.mxu0
          %v4318 = vadd.f32 0.0, %v4317
          %4319 = vmatmul.f32.gmra.mxu0 %v4112
          %v4320 = vpop.f32.mrf.mxu0
          %v4321 = vadd.f32 0.0, %v4320
          %4322 = vmatmul.f32.gmra.mxu0 %v4115
          %v4323 = vpop.f32.mrf.mxu0
          %v4324 = vadd.f32 0.0, %v4323
          %4325 = vmatmul.f32.gmra.mxu0 %v4118
          %v4326 = vpop.f32.mrf.mxu0
          %v4327 = vadd.f32 0.0, %v4326
          %4328 = vmatmul.f32.gmra.mxu0 %v4121
          %v4329 = vpop.f32.mrf.mxu0
          %v4330 = vadd.f32 0.0, %v4329
          %4331 = vmatmul.f32.gmra.mxu0 %v4124
          %v4332 = vpop.f32.mrf.mxu0
          %v4333 = vadd.f32 0.0, %v4332
          %4334 = vmatmul.f32.gmra.mxu0 %v4127
          %v4335 = vpop.f32.mrf.mxu0
          %v4336 = vadd.f32 0.0, %v4335
          %4337 = vmatmul.f32.gmra.mxu0 %v4130
          %v4338 = vpop.f32.mrf.mxu0
          %v4339 = vadd.f32 0.0, %v4338
          %4340 = vmatmul.f32.gmra.mxu0 %v4133
          %v4341 = vpop.f32.mrf.mxu0
          %v4342 = vadd.f32 0.0, %v4341
          %4343 = vmatmul.f32.gmra.mxu0 %v4136
          %v4344 = vpop.f32.mrf.mxu0
          %v4345 = vadd.f32 0.0, %v4344
          %4346 = vmatmul.f32.gmra.mxu0 %v4139
          %v4347 = vpop.f32.mrf.mxu0
          %v4348 = vadd.f32 0.0, %v4347
          %4349 = vmatmul.f32.gmra.mxu0 %v4142
          %v4350 = vpop.f32.mrf.mxu0
          %v4351 = vadd.f32 0.0, %v4350
          %4352 = vmatmul.f32.gmra.mxu0 %v4145
          %v4353 = vpop.f32.mrf.mxu0
          %v4354 = vadd.f32 0.0, %v4353
          %4355 = vmatmul.f32.gmra.mxu0 %v4148
          %v4356 = vpop.f32.mrf.mxu0
          %v4357 = vadd.f32 0.0, %v4356
          %4358 = vmatmul.f32.gmra.mxu0 %v4151
          %v4359 = vpop.f32.mrf.mxu0
          %v4360 = vadd.f32 0.0, %v4359
          %4361 = vmatmul.f32.gmra.mxu0 %v4154
          %v4362 = vpop.f32.mrf.mxu0
          %v4363 = vadd.f32 0.0, %v4362
          %4364 = vmatmul.f32.gmra.mxu0 %v4157
          %v4365 = vpop.f32.mrf.mxu0
          %v4366 = vadd.f32 0.0, %v4365
          %4367 = vmatmul.f32.gmra.mxu0 %v4160
          %v4368 = vpop.f32.mrf.mxu0
          %v4369 = vadd.f32 0.0, %v4368
          %4370 = vdwg.mxu0
          %v4371 = vld [vmem:[%s2] sm:$0x1]
          %v4372 = vld [vmem:[%s3] sm:$0x1]
          %v4373 = vsel %vm366, %v4180, 0.0
          %v4374 = vsel %vm366, %v4183, 0.0
          %v4375 = vadd.f32 %v4373, %v4374
          %v4376 = vsel %vm366, %v4186, 0.0
          %v4377 = vadd.f32 %v4375, %v4376
          %v4378 = vsel %vm366, %v4189, 0.0
          %v4379 = vadd.f32 %v4377, %v4378
          %v4380 = vsel %vm366, %v4192, 0.0
          %v4381 = vadd.f32 %v4379, %v4380
          %v4382 = vsel %vm366, %v4195, 0.0
          %v4383 = vadd.f32 %v4381, %v4382
          %v4384 = vsel %vm366, %v4198, 0.0
          %v4385 = vadd.f32 %v4383, %v4384
          %v4386 = vsel %vm366, %v4201, 0.0
          %v4387 = vadd.f32 %v4385, %v4386
          %v4388 = vsel %vm366, %v4204, 0.0
          %v4389 = vadd.f32 %v4387, %v4388
          %v4390 = vsel %vm366, %v4207, 0.0
          %v4391 = vadd.f32 %v4389, %v4390
          %v4392 = vsel %vm366, %v4210, 0.0
          %v4393 = vadd.f32 %v4391, %v4392
          %v4394 = vsel %vm366, %v4213, 0.0
          %v4395 = vadd.f32 %v4393, %v4394
          %v4396 = vsel %vm366, %v4216, 0.0
          %v4397 = vadd.f32 %v4395, %v4396
          %v4398 = vsel %vm366, %v4219, 0.0
          %v4399 = vadd.f32 %v4397, %v4398
          %v4400 = vsel %vm366, %v4222, 0.0
          %v4401 = vadd.f32 %v4399, %v4400
          %v4402 = vsel %vm366, %v4225, 0.0
          %v4403 = vadd.f32 %v4401, %v4402
          %v4404 = vsel %vm366, %v4228, 0.0
          %v4405 = vadd.f32 %v4403, %v4404
          %v4406 = vsel %vm366, %v4231, 0.0
          %v4407 = vadd.f32 %v4405, %v4406
          %v4408 = vsel %vm366, %v4234, 0.0
          %v4409 = vadd.f32 %v4407, %v4408
          %v4410 = vsel %vm366, %v4237, 0.0
          %v4411 = vadd.f32 %v4409, %v4410
          %v4412 = vsel %vm366, %v4240, 0.0
          %v4413 = vadd.f32 %v4411, %v4412
          %v4414 = vsel %vm366, %v4243, 0.0
          %v4415 = vadd.f32 %v4413, %v4414
          %v4416 = vsel %vm366, %v4246, 0.0
          %v4417 = vadd.f32 %v4415, %v4416
          %v4418 = vsel %vm366, %v4249, 0.0
          %v4419 = vadd.f32 %v4417, %v4418
          %v4420 = vsel %vm366, %v4252, 0.0
          %v4421 = vadd.f32 %v4419, %v4420
          %v4422 = vsel %vm366, %v4255, 0.0
          %v4423 = vadd.f32 %v4421, %v4422
          %v4424 = vsel %vm366, %v4258, 0.0
          %v4425 = vadd.f32 %v4423, %v4424
          %v4426 = vsel %vm366, %v4261, 0.0
          %v4427 = vadd.f32 %v4425, %v4426
          %v4428 = vsel %vm366, %v4264, 0.0
          %v4429 = vadd.f32 %v4427, %v4428
          %v4430 = vsel %vm366, %v4267, 0.0
          %v4431 = vadd.f32 %v4429, %v4430
          %v4432 = vsel %vm366, %v4270, 0.0
          %v4433 = vadd.f32 %v4431, %v4432
          %v4434 = vsel %vm366, %v4273, 0.0
          %v4435 = vadd.f32 %v4433, %v4434
          %v4436 = vsel %vm366, %v4276, 0.0
          %v4437 = vadd.f32 %v4435, %v4436
          %v4438 = vsel %vm366, %v4279, 0.0
          %v4439 = vadd.f32 %v4437, %v4438
          %v4440 = vsel %vm366, %v4282, 0.0
          %v4441 = vadd.f32 %v4439, %v4440
          %v4442 = vsel %vm366, %v4285, 0.0
          %v4443 = vadd.f32 %v4441, %v4442
          %v4444 = vsel %vm366, %v4288, 0.0
          %v4445 = vadd.f32 %v4443, %v4444
          %v4446 = vsel %vm366, %v4291, 0.0
          %v4447 = vadd.f32 %v4445, %v4446
          %v4448 = vsel %vm366, %v4294, 0.0
          %v4449 = vadd.f32 %v4447, %v4448
          %v4450 = vsel %vm366, %v4297, 0.0
          %v4451 = vadd.f32 %v4449, %v4450
          %v4452 = vsel %vm366, %v4300, 0.0
          %v4453 = vadd.f32 %v4451, %v4452
          %v4454 = vsel %vm366, %v4303, 0.0
          %v4455 = vadd.f32 %v4453, %v4454
          %v4456 = vsel %vm366, %v4306, 0.0
          %v4457 = vadd.f32 %v4455, %v4456
          %v4458 = vsel %vm366, %v4309, 0.0
          %v4459 = vadd.f32 %v4457, %v4458
          %v4460 = vsel %vm366, %v4312, 0.0
          %v4461 = vadd.f32 %v4459, %v4460
          %v4462 = vsel %vm366, %v4315, 0.0
          %v4463 = vadd.f32 %v4461, %v4462
          %v4464 = vsel %vm366, %v4318, 0.0
          %v4465 = vadd.f32 %v4463, %v4464
          %v4466 = vsel %vm366, %v4321, 0.0
          %v4467 = vadd.f32 %v4465, %v4466
          %v4468 = vsel %vm366, %v4324, 0.0
          %v4469 = vadd.f32 %v4467, %v4468
          %v4470 = vsel %vm366, %v4327, 0.0
          %v4471 = vadd.f32 %v4469, %v4470
          %v4472 = vsel %vm366, %v4330, 0.0
          %v4473 = vadd.f32 %v4471, %v4472
          %v4474 = vsel %vm366, %v4333, 0.0
          %v4475 = vadd.f32 %v4473, %v4474
          %v4476 = vsel %vm366, %v4336, 0.0
          %v4477 = vadd.f32 %v4475, %v4476
          %v4478 = vsel %vm366, %v4339, 0.0
          %v4479 = vadd.f32 %v4477, %v4478
          %v4480 = vsel %vm366, %v4342, 0.0
          %v4481 = vadd.f32 %v4479, %v4480
          %v4482 = vsel %vm366, %v4345, 0.0
          %v4483 = vadd.f32 %v4481, %v4482
          %v4484 = vsel %vm366, %v4348, 0.0
          %v4485 = vadd.f32 %v4483, %v4484
          %v4486 = vsel %vm366, %v4351, 0.0
          %v4487 = vadd.f32 %v4485, %v4486
          %v4488 = vsel %vm366, %v4354, 0.0
          %v4489 = vadd.f32 %v4487, %v4488
          %v4490 = vsel %vm366, %v4357, 0.0
          %v4491 = vadd.f32 %v4489, %v4490
          %v4492 = vsel %vm366, %v4360, 0.0
          %v4493 = vadd.f32 %v4491, %v4492
          %v4494 = vsel %vm366, %v4363, 0.0
          %v4495 = vadd.f32 %v4493, %v4494
          %v4496 = vsel %vm366, %v4366, 0.0
          %v4497 = vadd.f32 %v4495, %v4496
          %v4498 = vsel %vm366, %v4369, 0.0
          %v4499 = vadd.f32 %v4497, %v4498
          %v4500 = vrot.slane %v4499, 4
          %v4501 = vadd.f32 %v4499, %v4500
          %v4502 = vrot.slane %v4501, 2
          %v4503 = vadd.f32 %v4501, %v4502
          %v4504 = vrot.slane %v4503, 1
          %v4505 = vadd.f32 %v4503, %v4504
          %v4506 = vrcp.pop 512.0
          %v4507 = vmul.f32 512.0, %v4506
          %v4508 = vsub.f32 1.0, %v4507
          %v4509 = vmul.f32 %v4506, %v4508
          %v4510 = vadd.f32 %v4506, %v4509
          %vm4511 = vweird.f32 %v4506
          %v4512 = vsel %vm4511, %v4506, %v4510
          %v4513 = vmul.f32 %v4505, %v4512
          %v4514 = vsub.f32 %v4180, %v4513
          %v4515 = vsub.f32 %v4183, %v4513
          %v4516 = vsub.f32 %v4186, %v4513
          %v4517 = vsub.f32 %v4189, %v4513
          %v4518 = vsub.f32 %v4192, %v4513
          %v4519 = vsub.f32 %v4195, %v4513
          %v4520 = vsub.f32 %v4198, %v4513
          %v4521 = vsub.f32 %v4201, %v4513
          %v4522 = vsub.f32 %v4204, %v4513
          %v4523 = vsub.f32 %v4207, %v4513
          %v4524 = vsub.f32 %v4210, %v4513
          %v4525 = vsub.f32 %v4213, %v4513
          %v4526 = vsub.f32 %v4216, %v4513
          %v4527 = vsub.f32 %v4219, %v4513
          %v4528 = vsub.f32 %v4222, %v4513
          %v4529 = vsub.f32 %v4225, %v4513
          %v4530 = vsub.f32 %v4228, %v4513
          %v4531 = vsub.f32 %v4231, %v4513
          %v4532 = vsub.f32 %v4234, %v4513
          %v4533 = vsub.f32 %v4237, %v4513
          %v4534 = vsub.f32 %v4240, %v4513
          %v4535 = vsub.f32 %v4243, %v4513
          %v4536 = vsub.f32 %v4246, %v4513
          %v4537 = vsub.f32 %v4249, %v4513
          %v4538 = vsub.f32 %v4252, %v4513
          %v4539 = vsub.f32 %v4255, %v4513
          %v4540 = vsub.f32 %v4258, %v4513
          %v4541 = vsub.f32 %v4261, %v4513
          %v4542 = vsub.f32 %v4264, %v4513
          %v4543 = vsub.f32 %v4267, %v4513
          %v4544 = vsub.f32 %v4270, %v4513
          %v4545 = vsub.f32 %v4273, %v4513
          %v4546 = vsub.f32 %v4276, %v4513
          %v4547 = vsub.f32 %v4279, %v4513
          %v4548 = vsub.f32 %v4282, %v4513
          %v4549 = vsub.f32 %v4285, %v4513
          %v4550 = vsub.f32 %v4288, %v4513
          %v4551 = vsub.f32 %v4291, %v4513
          %v4552 = vsub.f32 %v4294, %v4513
          %v4553 = vsub.f32 %v4297, %v4513
          %v4554 = vsub.f32 %v4300, %v4513
          %v4555 = vsub.f32 %v4303, %v4513
          %v4556 = vsub.f32 %v4306, %v4513
          %v4557 = vsub.f32 %v4309, %v4513
          %v4558 = vsub.f32 %v4312, %v4513
          %v4559 = vsub.f32 %v4315, %v4513
          %v4560 = vsub.f32 %v4318, %v4513
          %v4561 = vsub.f32 %v4321, %v4513
          %v4562 = vsub.f32 %v4324, %v4513
          %v4563 = vsub.f32 %v4327, %v4513
          %v4564 = vsub.f32 %v4330, %v4513
          %v4565 = vsub.f32 %v4333, %v4513
          %v4566 = vsub.f32 %v4336, %v4513
          %v4567 = vsub.f32 %v4339, %v4513
          %v4568 = vsub.f32 %v4342, %v4513
          %v4569 = vsub.f32 %v4345, %v4513
          %v4570 = vsub.f32 %v4348, %v4513
          %v4571 = vsub.f32 %v4351, %v4513
          %v4572 = vsub.f32 %v4354, %v4513
          %v4573 = vsub.f32 %v4357, %v4513
          %v4574 = vsub.f32 %v4360, %v4513
          %v4575 = vsub.f32 %v4363, %v4513
          %v4576 = vsub.f32 %v4366, %v4513
          %v4577 = vsub.f32 %v4369, %v4513
          %v4578 = vmul.f32 %v4514, %v4514
          %v4579 = vmul.f32 %v4515, %v4515
          %v4580 = vmul.f32 %v4516, %v4516
          %v4581 = vmul.f32 %v4517, %v4517
          %v4582 = vmul.f32 %v4518, %v4518
          %v4583 = vmul.f32 %v4519, %v4519
          %v4584 = vmul.f32 %v4520, %v4520
          %v4585 = vmul.f32 %v4521, %v4521
          %v4586 = vmul.f32 %v4522, %v4522
          %v4587 = vmul.f32 %v4523, %v4523
          %v4588 = vmul.f32 %v4524, %v4524
          %v4589 = vmul.f32 %v4525, %v4525
          %v4590 = vmul.f32 %v4526, %v4526
          %v4591 = vmul.f32 %v4527, %v4527
          %v4592 = vmul.f32 %v4528, %v4528
          %v4593 = vmul.f32 %v4529, %v4529
          %v4594 = vmul.f32 %v4530, %v4530
          %v4595 = vmul.f32 %v4531, %v4531
          %v4596 = vmul.f32 %v4532, %v4532
          %v4597 = vmul.f32 %v4533, %v4533
          %v4598 = vmul.f32 %v4534, %v4534
          %v4599 = vmul.f32 %v4535, %v4535
          %v4600 = vmul.f32 %v4536, %v4536
          %v4601 = vmul.f32 %v4537, %v4537
          %v4602 = vmul.f32 %v4538, %v4538
          %v4603 = vmul.f32 %v4539, %v4539
          %v4604 = vmul.f32 %v4540, %v4540
          %v4605 = vmul.f32 %v4541, %v4541
          %v4606 = vmul.f32 %v4542, %v4542
          %v4607 = vmul.f32 %v4543, %v4543
          %v4608 = vmul.f32 %v4544, %v4544
          %v4609 = vmul.f32 %v4545, %v4545
          %v4610 = vmul.f32 %v4546, %v4546
          %v4611 = vmul.f32 %v4547, %v4547
          %v4612 = vmul.f32 %v4548, %v4548
          %v4613 = vmul.f32 %v4549, %v4549
          %v4614 = vmul.f32 %v4550, %v4550
          %v4615 = vmul.f32 %v4551, %v4551
          %v4616 = vmul.f32 %v4552, %v4552
          %v4617 = vmul.f32 %v4553, %v4553
          %v4618 = vmul.f32 %v4554, %v4554
          %v4619 = vmul.f32 %v4555, %v4555
          %v4620 = vmul.f32 %v4556, %v4556
          %v4621 = vmul.f32 %v4557, %v4557
          %v4622 = vmul.f32 %v4558, %v4558
          %v4623 = vmul.f32 %v4559, %v4559
          %v4624 = vmul.f32 %v4560, %v4560
          %v4625 = vmul.f32 %v4561, %v4561
          %v4626 = vmul.f32 %v4562, %v4562
          %v4627 = vmul.f32 %v4563, %v4563
          %v4628 = vmul.f32 %v4564, %v4564
          %v4629 = vmul.f32 %v4565, %v4565
          %v4630 = vmul.f32 %v4566, %v4566
          %v4631 = vmul.f32 %v4567, %v4567
          %v4632 = vmul.f32 %v4568, %v4568
          %v4633 = vmul.f32 %v4569, %v4569
          %v4634 = vmul.f32 %v4570, %v4570
          %v4635 = vmul.f32 %v4571, %v4571
          %v4636 = vmul.f32 %v4572, %v4572
          %v4637 = vmul.f32 %v4573, %v4573
          %v4638 = vmul.f32 %v4574, %v4574
          %v4639 = vmul.f32 %v4575, %v4575
          %v4640 = vmul.f32 %v4576, %v4576
          %v4641 = vmul.f32 %v4577, %v4577
          %v4642 = vsel %vm366, %v4578, 0.0
          %v4643 = vsel %vm366, %v4579, 0.0
          %v4644 = vadd.f32 %v4642, %v4643
          %v4645 = vsel %vm366, %v4580, 0.0
          %v4646 = vadd.f32 %v4644, %v4645
          %v4647 = vsel %vm366, %v4581, 0.0
          %v4648 = vadd.f32 %v4646, %v4647
          %v4649 = vsel %vm366, %v4582, 0.0
          %v4650 = vadd.f32 %v4648, %v4649
          %v4651 = vsel %vm366, %v4583, 0.0
          %v4652 = vadd.f32 %v4650, %v4651
          %v4653 = vsel %vm366, %v4584, 0.0
          %v4654 = vadd.f32 %v4652, %v4653
          %v4655 = vsel %vm366, %v4585, 0.0
          %v4656 = vadd.f32 %v4654, %v4655
          %v4657 = vsel %vm366, %v4586, 0.0
          %v4658 = vadd.f32 %v4656, %v4657
          %v4659 = vsel %vm366, %v4587, 0.0
          %v4660 = vadd.f32 %v4658, %v4659
          %v4661 = vsel %vm366, %v4588, 0.0
          %v4662 = vadd.f32 %v4660, %v4661
          %v4663 = vsel %vm366, %v4589, 0.0
          %v4664 = vadd.f32 %v4662, %v4663
          %v4665 = vsel %vm366, %v4590, 0.0
          %v4666 = vadd.f32 %v4664, %v4665
          %v4667 = vsel %vm366, %v4591, 0.0
          %v4668 = vadd.f32 %v4666, %v4667
          %v4669 = vsel %vm366, %v4592, 0.0
          %v4670 = vadd.f32 %v4668, %v4669
          %v4671 = vsel %vm366, %v4593, 0.0
          %v4672 = vadd.f32 %v4670, %v4671
          %v4673 = vsel %vm366, %v4594, 0.0
          %v4674 = vadd.f32 %v4672, %v4673
          %v4675 = vsel %vm366, %v4595, 0.0
          %v4676 = vadd.f32 %v4674, %v4675
          %v4677 = vsel %vm366, %v4596, 0.0
          %v4678 = vadd.f32 %v4676, %v4677
          %v4679 = vsel %vm366, %v4597, 0.0
          %v4680 = vadd.f32 %v4678, %v4679
          %v4681 = vsel %vm366, %v4598, 0.0
          %v4682 = vadd.f32 %v4680, %v4681
          %v4683 = vsel %vm366, %v4599, 0.0
          %v4684 = vadd.f32 %v4682, %v4683
          %v4685 = vsel %vm366, %v4600, 0.0
          %v4686 = vadd.f32 %v4684, %v4685
          %v4687 = vsel %vm366, %v4601, 0.0
          %v4688 = vadd.f32 %v4686, %v4687
          %v4689 = vsel %vm366, %v4602, 0.0
          %v4690 = vadd.f32 %v4688, %v4689
          %v4691 = vsel %vm366, %v4603, 0.0
          %v4692 = vadd.f32 %v4690, %v4691
          %v4693 = vsel %vm366, %v4604, 0.0
          %v4694 = vadd.f32 %v4692, %v4693
          %v4695 = vsel %vm366, %v4605, 0.0
          %v4696 = vadd.f32 %v4694, %v4695
          %v4697 = vsel %vm366, %v4606, 0.0
          %v4698 = vadd.f32 %v4696, %v4697
          %v4699 = vsel %vm366, %v4607, 0.0
          %v4700 = vadd.f32 %v4698, %v4699
          %v4701 = vsel %vm366, %v4608, 0.0
          %v4702 = vadd.f32 %v4700, %v4701
          %v4703 = vsel %vm366, %v4609, 0.0
          %v4704 = vadd.f32 %v4702, %v4703
          %v4705 = vsel %vm366, %v4610, 0.0
          %v4706 = vadd.f32 %v4704, %v4705
          %v4707 = vsel %vm366, %v4611, 0.0
          %v4708 = vadd.f32 %v4706, %v4707
          %v4709 = vsel %vm366, %v4612, 0.0
          %v4710 = vadd.f32 %v4708, %v4709
          %v4711 = vsel %vm366, %v4613, 0.0
          %v4712 = vadd.f32 %v4710, %v4711
          %v4713 = vsel %vm366, %v4614, 0.0
          %v4714 = vadd.f32 %v4712, %v4713
          %v4715 = vsel %vm366, %v4615, 0.0
          %v4716 = vadd.f32 %v4714, %v4715
          %v4717 = vsel %vm366, %v4616, 0.0
          %v4718 = vadd.f32 %v4716, %v4717
          %v4719 = vsel %vm366, %v4617, 0.0
          %v4720 = vadd.f32 %v4718, %v4719
          %v4721 = vsel %vm366, %v4618, 0.0
          %v4722 = vadd.f32 %v4720, %v4721
          %v4723 = vsel %vm366, %v4619, 0.0
          %v4724 = vadd.f32 %v4722, %v4723
          %v4725 = vsel %vm366, %v4620, 0.0
          %v4726 = vadd.f32 %v4724, %v4725
          %v4727 = vsel %vm366, %v4621, 0.0
          %v4728 = vadd.f32 %v4726, %v4727
          %v4729 = vsel %vm366, %v4622, 0.0
          %v4730 = vadd.f32 %v4728, %v4729
          %v4731 = vsel %vm366, %v4623, 0.0
          %v4732 = vadd.f32 %v4730, %v4731
          %v4733 = vsel %vm366, %v4624, 0.0
          %v4734 = vadd.f32 %v4732, %v4733
          %v4735 = vsel %vm366, %v4625, 0.0
          %v4736 = vadd.f32 %v4734, %v4735
          %v4737 = vsel %vm366, %v4626, 0.0
          %v4738 = vadd.f32 %v4736, %v4737
          %v4739 = vsel %vm366, %v4627, 0.0
          %v4740 = vadd.f32 %v4738, %v4739
          %v4741 = vsel %vm366, %v4628, 0.0
          %v4742 = vadd.f32 %v4740, %v4741
          %v4743 = vsel %vm366, %v4629, 0.0
          %v4744 = vadd.f32 %v4742, %v4743
          %v4745 = vsel %vm366, %v4630, 0.0
          %v4746 = vadd.f32 %v4744, %v4745
          %v4747 = vsel %vm366, %v4631, 0.0
          %v4748 = vadd.f32 %v4746, %v4747
          %v4749 = vsel %vm366, %v4632, 0.0
          %v4750 = vadd.f32 %v4748, %v4749
          %v4751 = vsel %vm366, %v4633, 0.0
          %v4752 = vadd.f32 %v4750, %v4751
          %v4753 = vsel %vm366, %v4634, 0.0
          %v4754 = vadd.f32 %v4752, %v4753
          %v4755 = vsel %vm366, %v4635, 0.0
          %v4756 = vadd.f32 %v4754, %v4755
          %v4757 = vsel %vm366, %v4636, 0.0
          %v4758 = vadd.f32 %v4756, %v4757
          %v4759 = vsel %vm366, %v4637, 0.0
          %v4760 = vadd.f32 %v4758, %v4759
          %v4761 = vsel %vm366, %v4638, 0.0
          %v4762 = vadd.f32 %v4760, %v4761
          %v4763 = vsel %vm366, %v4639, 0.0
          %v4764 = vadd.f32 %v4762, %v4763
          %v4765 = vsel %vm366, %v4640, 0.0
          %v4766 = vadd.f32 %v4764, %v4765
          %v4767 = vsel %vm366, %v4641, 0.0
          %v4768 = vadd.f32 %v4766, %v4767
          %v4769 = vrot.slane %v4768, 4
          %v4770 = vadd.f32 %v4768, %v4769
          %v4771 = vrot.slane %v4770, 2
          %v4772 = vadd.f32 %v4770, %v4771
          %v4773 = vrot.slane %v4772, 1
          %v4774 = vadd.f32 %v4772, %v4773
          %v4775 = vmul.f32 %v4774, %v4512
          %v4776 = vadd.f32 %v4775, 1e-05
          %v4777 = vrsqrt.pop %v4776
          %v4778 = vmul.f32 %v4777, %v4776
          %v4779 = vmul.f32 %v4778, %v4777
          %v4780 = vmul.f32 0.5, %v4779
          %v4781 = vsub.f32 1.5, %v4780
          %v4782 = vmul.f32 %v4777, %v4781
          %vm4783 = vweird.f32 %v4776
          %vm4784 = vweird.f32 %v4777
          %vm4785 = vmor %vm4783, %vm4784
          %v4786 = vsel %vm4785, %v4777, %v4782
          %v4787 = vmul.f32 %v4371, %v4786
          %v4788 = vmul.f32 %v4513, %v4787
          %v4789 = vsub.f32 %v4372, %v4788
          %v4791 = vperm.slane %v4787, 0
          %v4793 = vmul.f32 %v4180, %v4791
          %v4794 = vmul.f32 %v4183, %v4791
          %v4795 = vmul.f32 %v4186, %v4791
          %v4796 = vmul.f32 %v4189, %v4791
          %v4797 = vmul.f32 %v4192, %v4791
          %v4798 = vmul.f32 %v4195, %v4791
          %v4799 = vmul.f32 %v4198, %v4791
          %v4800 = vmul.f32 %v4201, %v4791
          %v4801 = vmul.f32 %v4204, %v4791
          %v4802 = vmul.f32 %v4207, %v4791
          %v4803 = vmul.f32 %v4210, %v4791
          %v4804 = vmul.f32 %v4213, %v4791
          %v4805 = vmul.f32 %v4216, %v4791
          %v4806 = vmul.f32 %v4219, %v4791
          %v4807 = vmul.f32 %v4222, %v4791
          %v4808 = vmul.f32 %v4225, %v4791
          %v4809 = vmul.f32 %v4228, %v4791
          %v4810 = vmul.f32 %v4231, %v4791
          %v4811 = vmul.f32 %v4234, %v4791
          %v4812 = vmul.f32 %v4237, %v4791
          %v4813 = vmul.f32 %v4240, %v4791
          %v4814 = vmul.f32 %v4243, %v4791
          %v4815 = vmul.f32 %v4246, %v4791
          %v4816 = vmul.f32 %v4249, %v4791
          %v4817 = vmul.f32 %v4252, %v4791
          %v4818 = vmul.f32 %v4255, %v4791
          %v4819 = vmul.f32 %v4258, %v4791
          %v4820 = vmul.f32 %v4261, %v4791
          %v4821 = vmul.f32 %v4264, %v4791
          %v4822 = vmul.f32 %v4267, %v4791
          %v4823 = vmul.f32 %v4270, %v4791
          %v4824 = vmul.f32 %v4273, %v4791
          %v4825 = vmul.f32 %v4276, %v4791
          %v4826 = vmul.f32 %v4279, %v4791
          %v4827 = vmul.f32 %v4282, %v4791
          %v4828 = vmul.f32 %v4285, %v4791
          %v4829 = vmul.f32 %v4288, %v4791
          %v4830 = vmul.f32 %v4291, %v4791
          %v4831 = vmul.f32 %v4294, %v4791
          %v4832 = vmul.f32 %v4297, %v4791
          %v4833 = vmul.f32 %v4300, %v4791
          %v4834 = vmul.f32 %v4303, %v4791
          %v4835 = vmul.f32 %v4306, %v4791
          %v4836 = vmul.f32 %v4309, %v4791
          %v4837 = vmul.f32 %v4312, %v4791
          %v4838 = vmul.f32 %v4315, %v4791
          %v4839 = vmul.f32 %v4318, %v4791
          %v4840 = vmul.f32 %v4321, %v4791
          %v4841 = vmul.f32 %v4324, %v4791
          %v4842 = vmul.f32 %v4327, %v4791
          %v4843 = vmul.f32 %v4330, %v4791
          %v4844 = vmul.f32 %v4333, %v4791
          %v4845 = vmul.f32 %v4336, %v4791
          %v4846 = vmul.f32 %v4339, %v4791
          %v4847 = vmul.f32 %v4342, %v4791
          %v4848 = vmul.f32 %v4345, %v4791
          %v4849 = vmul.f32 %v4348, %v4791
          %v4850 = vmul.f32 %v4351, %v4791
          %v4851 = vmul.f32 %v4354, %v4791
          %v4852 = vmul.f32 %v4357, %v4791
          %v4853 = vmul.f32 %v4360, %v4791
          %v4854 = vmul.f32 %v4363, %v4791
          %v4855 = vmul.f32 %v4366, %v4791
          %v4856 = vmul.f32 %v4369, %v4791
          %v4858 = vperm.slane %v4789, 0
          %v4860 = vadd.f32 %v4793, %v4858
          %v4861 = vadd.f32 %v4794, %v4858
          %v4862 = vadd.f32 %v4795, %v4858
          %v4863 = vadd.f32 %v4796, %v4858
          %v4864 = vadd.f32 %v4797, %v4858
          %v4865 = vadd.f32 %v4798, %v4858
          %v4866 = vadd.f32 %v4799, %v4858
          %v4867 = vadd.f32 %v4800, %v4858
          %v4868 = vadd.f32 %v4801, %v4858
          %v4869 = vadd.f32 %v4802, %v4858
          %v4870 = vadd.f32 %v4803, %v4858
          %v4871 = vadd.f32 %v4804, %v4858
          %v4872 = vadd.f32 %v4805, %v4858
          %v4873 = vadd.f32 %v4806, %v4858
          %v4874 = vadd.f32 %v4807, %v4858
          %v4875 = vadd.f32 %v4808, %v4858
          %v4876 = vadd.f32 %v4809, %v4858
          %v4877 = vadd.f32 %v4810, %v4858
          %v4878 = vadd.f32 %v4811, %v4858
          %v4879 = vadd.f32 %v4812, %v4858
          %v4880 = vadd.f32 %v4813, %v4858
          %v4881 = vadd.f32 %v4814, %v4858
          %v4882 = vadd.f32 %v4815, %v4858
          %v4883 = vadd.f32 %v4816, %v4858
          %v4884 = vadd.f32 %v4817, %v4858
          %v4885 = vadd.f32 %v4818, %v4858
          %v4886 = vadd.f32 %v4819, %v4858
          %v4887 = vadd.f32 %v4820, %v4858
          %v4888 = vadd.f32 %v4821, %v4858
          %v4889 = vadd.f32 %v4822, %v4858
          %v4890 = vadd.f32 %v4823, %v4858
          %v4891 = vadd.f32 %v4824, %v4858
          %v4892 = vadd.f32 %v4825, %v4858
          %v4893 = vadd.f32 %v4826, %v4858
          %v4894 = vadd.f32 %v4827, %v4858
          %v4895 = vadd.f32 %v4828, %v4858
          %v4896 = vadd.f32 %v4829, %v4858
          %v4897 = vadd.f32 %v4830, %v4858
          %v4898 = vadd.f32 %v4831, %v4858
          %v4899 = vadd.f32 %v4832, %v4858
          %v4900 = vadd.f32 %v4833, %v4858
          %v4901 = vadd.f32 %v4834, %v4858
          %v4902 = vadd.f32 %v4835, %v4858
          %v4903 = vadd.f32 %v4836, %v4858
          %v4904 = vadd.f32 %v4837, %v4858
          %v4905 = vadd.f32 %v4838, %v4858
          %v4906 = vadd.f32 %v4839, %v4858
          %v4907 = vadd.f32 %v4840, %v4858
          %v4908 = vadd.f32 %v4841, %v4858
          %v4909 = vadd.f32 %v4842, %v4858
          %v4910 = vadd.f32 %v4843, %v4858
          %v4911 = vadd.f32 %v4844, %v4858
          %v4912 = vadd.f32 %v4845, %v4858
          %v4913 = vadd.f32 %v4846, %v4858
          %v4914 = vadd.f32 %v4847, %v4858
          %v4915 = vadd.f32 %v4848, %v4858
          %v4916 = vadd.f32 %v4849, %v4858
          %v4917 = vadd.f32 %v4850, %v4858
          %v4918 = vadd.f32 %v4851, %v4858
          %v4919 = vadd.f32 %v4852, %v4858
          %v4920 = vadd.f32 %v4853, %v4858
          %v4921 = vadd.f32 %v4854, %v4858
          %v4922 = vadd.f32 %v4855, %v4858
          %v4923 = vadd.f32 %v4856, %v4858
          %v4924 = vmax.f32 %v4860, 0.0
          %v4925 = vmax.f32 %v4861, 0.0
          %v4926 = vmax.f32 %v4862, 0.0
          %v4927 = vmax.f32 %v4863, 0.0
          %v4928 = vmax.f32 %v4864, 0.0
          %v4929 = vmax.f32 %v4865, 0.0
          %v4930 = vmax.f32 %v4866, 0.0
          %v4931 = vmax.f32 %v4867, 0.0
          %v4932 = vmax.f32 %v4868, 0.0
          %v4933 = vmax.f32 %v4869, 0.0
          %v4934 = vmax.f32 %v4870, 0.0
          %v4935 = vmax.f32 %v4871, 0.0
          %v4936 = vmax.f32 %v4872, 0.0
          %v4937 = vmax.f32 %v4873, 0.0
          %v4938 = vmax.f32 %v4874, 0.0
          %v4939 = vmax.f32 %v4875, 0.0
          %v4940 = vmax.f32 %v4876, 0.0
          %v4941 = vmax.f32 %v4877, 0.0
          %v4942 = vmax.f32 %v4878, 0.0
          %v4943 = vmax.f32 %v4879, 0.0
          %v4944 = vmax.f32 %v4880, 0.0
          %v4945 = vmax.f32 %v4881, 0.0
          %v4946 = vmax.f32 %v4882, 0.0
          %v4947 = vmax.f32 %v4883, 0.0
          %v4948 = vmax.f32 %v4884, 0.0
          %v4949 = vmax.f32 %v4885, 0.0
          %v4950 = vmax.f32 %v4886, 0.0
          %v4951 = vmax.f32 %v4887, 0.0
          %v4952 = vmax.f32 %v4888, 0.0
          %v4953 = vmax.f32 %v4889, 0.0
          %v4954 = vmax.f32 %v4890, 0.0
          %v4955 = vmax.f32 %v4891, 0.0
          %v4956 = vmax.f32 %v4892, 0.0
          %v4957 = vmax.f32 %v4893, 0.0
          %v4958 = vmax.f32 %v4894, 0.0
          %v4959 = vmax.f32 %v4895, 0.0
          %v4960 = vmax.f32 %v4896, 0.0
          %v4961 = vmax.f32 %v4897, 0.0
          %v4962 = vmax.f32 %v4898, 0.0
          %v4963 = vmax.f32 %v4899, 0.0
          %v4964 = vmax.f32 %v4900, 0.0
          %v4965 = vmax.f32 %v4901, 0.0
          %v4966 = vmax.f32 %v4902, 0.0
          %v4967 = vmax.f32 %v4903, 0.0
          %v4968 = vmax.f32 %v4904, 0.0
          %v4969 = vmax.f32 %v4905, 0.0
          %v4970 = vmax.f32 %v4906, 0.0
          %v4971 = vmax.f32 %v4907, 0.0
          %v4972 = vmax.f32 %v4908, 0.0
          %v4973 = vmax.f32 %v4909, 0.0
          %v4974 = vmax.f32 %v4910, 0.0
          %v4975 = vmax.f32 %v4911, 0.0
          %v4976 = vmax.f32 %v4912, 0.0
          %v4977 = vmax.f32 %v4913, 0.0
          %v4978 = vmax.f32 %v4914, 0.0
          %v4979 = vmax.f32 %v4915, 0.0
          %v4980 = vmax.f32 %v4916, 0.0
          %v4981 = vmax.f32 %v4917, 0.0
          %v4982 = vmax.f32 %v4918, 0.0
          %v4983 = vmax.f32 %v4919, 0.0
          %v4984 = vmax.f32 %v4920, 0.0
          %v4985 = vmax.f32 %v4921, 0.0
          %v4986 = vmax.f32 %v4922, 0.0
          %v4987 = vmax.f32 %v4923, 0.0
          %v5052 = vrot.slane %v4924, 2
          %v5053 = vrot.slane %v4924, 4
          %v5054 = vrot.slane %v4924, 6
          %v5055 = vrot.slane %v4925, 2
          %v5056 = vrot.slane %v4925, 4
          %v5057 = vrot.slane %v4925, 6
          %v5058 = vrot.slane %v4926, 2
          %v5059 = vrot.slane %v4926, 4
          %v5060 = vrot.slane %v4926, 6
          %v5061 = vrot.slane %v4927, 2
          %v5062 = vrot.slane %v4927, 4
          %v5063 = vrot.slane %v4927, 6
          %v5064 = vrot.slane %v4928, 2
          %v5065 = vrot.slane %v4928, 4
          %v5066 = vrot.slane %v4928, 6
          %v5067 = vrot.slane %v4929, 2
          %v5068 = vrot.slane %v4929, 4
          %v5069 = vrot.slane %v4929, 6
          %v5070 = vrot.slane %v4930, 2
          %v5071 = vrot.slane %v4930, 4
          %v5072 = vrot.slane %v4930, 6
          %v5073 = vrot.slane %v4931, 2
          %v5074 = vrot.slane %v4931, 4
          %v5075 = vrot.slane %v4931, 6
          %v5076 = vrot.slane %v4932, 2
          %v5077 = vrot.slane %v4932, 4
          %v5078 = vrot.slane %v4932, 6
          %v5079 = vrot.slane %v4933, 2
          %v5080 = vrot.slane %v4933, 4
          %v5081 = vrot.slane %v4933, 6
          %v5082 = vrot.slane %v4934, 2
          %v5083 = vrot.slane %v4934, 4
          %v5084 = vrot.slane %v4934, 6
          %v5085 = vrot.slane %v4935, 2
          %v5086 = vrot.slane %v4935, 4
          %v5087 = vrot.slane %v4935, 6
          %v5088 = vrot.slane %v4936, 2
          %v5089 = vrot.slane %v4936, 4
          %v5090 = vrot.slane %v4936, 6
          %v5091 = vrot.slane %v4937, 2
          %v5092 = vrot.slane %v4937, 4
          %v5093 = vrot.slane %v4937, 6
          %v5094 = vrot.slane %v4938, 2
          %v5095 = vrot.slane %v4938, 4
          %v5096 = vrot.slane %v4938, 6
          %v5097 = vrot.slane %v4939, 2
          %v5098 = vrot.slane %v4939, 4
          %v5099 = vrot.slane %v4939, 6
          %v5100 = vrot.slane %v4940, 2
          %v5101 = vrot.slane %v4940, 4
          %v5102 = vrot.slane %v4940, 6
          %v5103 = vrot.slane %v4941, 2
          %v5104 = vrot.slane %v4941, 4
          %v5105 = vrot.slane %v4941, 6
          %v5106 = vrot.slane %v4942, 2
          %v5107 = vrot.slane %v4942, 4
          %v5108 = vrot.slane %v4942, 6
          %v5109 = vrot.slane %v4943, 2
          %v5110 = vrot.slane %v4943, 4
          %v5111 = vrot.slane %v4943, 6
          %v5112 = vrot.slane %v4944, 2
          %v5113 = vrot.slane %v4944, 4
          %v5114 = vrot.slane %v4944, 6
          %v5115 = vrot.slane %v4945, 2
          %v5116 = vrot.slane %v4945, 4
          %v5117 = vrot.slane %v4945, 6
          %v5118 = vrot.slane %v4946, 2
          %v5119 = vrot.slane %v4946, 4
          %v5120 = vrot.slane %v4946, 6
          %v5121 = vrot.slane %v4947, 2
          %v5122 = vrot.slane %v4947, 4
          %v5123 = vrot.slane %v4947, 6
          %v5124 = vrot.slane %v4948, 2
          %v5125 = vrot.slane %v4948, 4
          %v5126 = vrot.slane %v4948, 6
          %v5127 = vrot.slane %v4949, 2
          %v5128 = vrot.slane %v4949, 4
          %v5129 = vrot.slane %v4949, 6
          %v5130 = vrot.slane %v4950, 2
          %v5131 = vrot.slane %v4950, 4
          %v5132 = vrot.slane %v4950, 6
          %v5133 = vrot.slane %v4951, 2
          %v5134 = vrot.slane %v4951, 4
          %v5135 = vrot.slane %v4951, 6
          %v5136 = vrot.slane %v4952, 2
          %v5137 = vrot.slane %v4952, 4
          %v5138 = vrot.slane %v4952, 6
          %v5139 = vrot.slane %v4953, 2
          %v5140 = vrot.slane %v4953, 4
          %v5141 = vrot.slane %v4953, 6
          %v5142 = vrot.slane %v4954, 2
          %v5143 = vrot.slane %v4954, 4
          %v5144 = vrot.slane %v4954, 6
          %v5145 = vrot.slane %v4955, 2
          %v5146 = vrot.slane %v4955, 4
          %v5147 = vrot.slane %v4955, 6
          %v5148 = vrot.slane %v4956, 2
          %v5149 = vrot.slane %v4956, 4
          %v5150 = vrot.slane %v4956, 6
          %v5151 = vrot.slane %v4957, 2
          %v5152 = vrot.slane %v4957, 4
          %v5153 = vrot.slane %v4957, 6
          %v5154 = vrot.slane %v4958, 2
          %v5155 = vrot.slane %v4958, 4
          %v5156 = vrot.slane %v4958, 6
          %v5157 = vrot.slane %v4959, 2
          %v5158 = vrot.slane %v4959, 4
          %v5159 = vrot.slane %v4959, 6
          %v5160 = vrot.slane %v4960, 2
          %v5161 = vrot.slane %v4960, 4
          %v5162 = vrot.slane %v4960, 6
          %v5163 = vrot.slane %v4961, 2
          %v5164 = vrot.slane %v4961, 4
          %v5165 = vrot.slane %v4961, 6
          %v5166 = vrot.slane %v4962, 2
          %v5167 = vrot.slane %v4962, 4
          %v5168 = vrot.slane %v4962, 6
          %v5169 = vrot.slane %v4963, 2
          %v5170 = vrot.slane %v4963, 4
          %v5171 = vrot.slane %v4963, 6
          %v5172 = vrot.slane %v4964, 2
          %v5173 = vrot.slane %v4964, 4
          %v5174 = vrot.slane %v4964, 6
          %v5175 = vrot.slane %v4965, 2
          %v5176 = vrot.slane %v4965, 4
          %v5177 = vrot.slane %v4965, 6
          %v5178 = vrot.slane %v4966, 2
          %v5179 = vrot.slane %v4966, 4
          %v5180 = vrot.slane %v4966, 6
          %v5181 = vrot.slane %v4967, 2
          %v5182 = vrot.slane %v4967, 4
          %v5183 = vrot.slane %v4967, 6
          %v5184 = vrot.slane %v4968, 2
          %v5185 = vrot.slane %v4968, 4
          %v5186 = vrot.slane %v4968, 6
          %v5187 = vrot.slane %v4969, 2
          %v5188 = vrot.slane %v4969, 4
          %v5189 = vrot.slane %v4969, 6
          %v5190 = vrot.slane %v4970, 2
          %v5191 = vrot.slane %v4970, 4
          %v5192 = vrot.slane %v4970, 6
          %v5193 = vrot.slane %v4971, 2
          %v5194 = vrot.slane %v4971, 4
          %v5195 = vrot.slane %v4971, 6
          %v5196 = vrot.slane %v4972, 2
          %v5197 = vrot.slane %v4972, 4
          %v5198 = vrot.slane %v4972, 6
          %v5199 = vrot.slane %v4973, 2
          %v5200 = vrot.slane %v4973, 4
          %v5201 = vrot.slane %v4973, 6
          %v5202 = vrot.slane %v4974, 2
          %v5203 = vrot.slane %v4974, 4
          %v5204 = vrot.slane %v4974, 6
          %v5205 = vrot.slane %v4975, 2
          %v5206 = vrot.slane %v4975, 4
          %v5207 = vrot.slane %v4975, 6
          %v5208 = vrot.slane %v4976, 2
          %v5209 = vrot.slane %v4976, 4
          %v5210 = vrot.slane %v4976, 6
          %v5211 = vrot.slane %v4977, 2
          %v5212 = vrot.slane %v4977, 4
          %v5213 = vrot.slane %v4977, 6
          %v5214 = vrot.slane %v4978, 2
          %v5215 = vrot.slane %v4978, 4
          %v5216 = vrot.slane %v4978, 6
          %v5217 = vrot.slane %v4979, 2
          %v5218 = vrot.slane %v4979, 4
          %v5219 = vrot.slane %v4979, 6
          %v5220 = vrot.slane %v4980, 2
          %v5221 = vrot.slane %v4980, 4
          %v5222 = vrot.slane %v4980, 6
          %v5223 = vrot.slane %v4981, 2
          %v5224 = vrot.slane %v4981, 4
          %v5225 = vrot.slane %v4981, 6
          %v5226 = vrot.slane %v4982, 2
          %v5227 = vrot.slane %v4982, 4
          %v5228 = vrot.slane %v4982, 6
          %v5229 = vrot.slane %v4983, 2
          %v5230 = vrot.slane %v4983, 4
          %v5231 = vrot.slane %v4983, 6
          %v5232 = vrot.slane %v4984, 2
          %v5233 = vrot.slane %v4984, 4
          %v5234 = vrot.slane %v4984, 6
          %v5235 = vrot.slane %v4985, 2
          %v5236 = vrot.slane %v4985, 4
          %v5237 = vrot.slane %v4985, 6
          %v5238 = vrot.slane %v4986, 2
          %v5239 = vrot.slane %v4986, 4
          %v5240 = vrot.slane %v4986, 6
          %v5241 = vrot.slane %v4987, 2
          %v5242 = vrot.slane %v4987, 4
          %v5243 = vrot.slane %v4987, 6
          %v5436 = vrot.slane %v4924, 7
          %v5437 = vrot.slane %v5436, 2
          %v5438 = vrot.slane %v5052, 7
          %v5439 = vrot.slane %v5438, 2
          %v5440 = vrot.slane %v5053, 7
          %v5441 = vrot.slane %v5440, 2
          %v5442 = vrot.slane %v5054, 7
          %v5443 = vrot.slane %v5442, 2
          %v5444 = vrot.slane %v4925, 7
          %v5445 = vrot.slane %v5444, 2
          %v5446 = vrot.slane %v5055, 7
          %v5447 = vrot.slane %v5446, 2
          %v5448 = vrot.slane %v5056, 7
          %v5449 = vrot.slane %v5448, 2
          %v5450 = vrot.slane %v5057, 7
          %v5451 = vrot.slane %v5450, 2
          %v5452 = vrot.slane %v4926, 7
          %v5453 = vrot.slane %v5452, 2
          %v5454 = vrot.slane %v5058, 7
          %v5455 = vrot.slane %v5454, 2
          %v5456 = vrot.slane %v5059, 7
          %v5457 = vrot.slane %v5456, 2
          %v5458 = vrot.slane %v5060, 7
          %v5459 = vrot.slane %v5458, 2
          %v5460 = vrot.slane %v4927, 7
          %v5461 = vrot.slane %v5460, 2
          %v5462 = vrot.slane %v5061, 7
          %v5463 = vrot.slane %v5462, 2
          %v5464 = vrot.slane %v5062, 7
          %v5465 = vrot.slane %v5464, 2
          %v5466 = vrot.slane %v5063, 7
          %v5467 = vrot.slane %v5466, 2
          %v5468 = vrot.slane %v4928, 7
          %v5469 = vrot.slane %v5468, 2
          %v5470 = vrot.slane %v5064, 7
          %v5471 = vrot.slane %v5470, 2
          %v5472 = vrot.slane %v5065, 7
          %v5473 = vrot.slane %v5472, 2
          %v5474 = vrot.slane %v5066, 7
          %v5475 = vrot.slane %v5474, 2
          %v5476 = vrot.slane %v4929, 7
          %v5477 = vrot.slane %v5476, 2
          %v5478 = vrot.slane %v5067, 7
          %v5479 = vrot.slane %v5478, 2
          %v5480 = vrot.slane %v5068, 7
          %v5481 = vrot.slane %v5480, 2
          %v5482 = vrot.slane %v5069, 7
          %v5483 = vrot.slane %v5482, 2
          %v5484 = vrot.slane %v4930, 7
          %v5485 = vrot.slane %v5484, 2
          %v5486 = vrot.slane %v5070, 7
          %v5487 = vrot.slane %v5486, 2
          %v5488 = vrot.slane %v5071, 7
          %v5489 = vrot.slane %v5488, 2
          %v5490 = vrot.slane %v5072, 7
          %v5491 = vrot.slane %v5490, 2
          %v5492 = vrot.slane %v4931, 7
          %v5493 = vrot.slane %v5492, 2
          %v5494 = vrot.slane %v5073, 7
          %v5495 = vrot.slane %v5494, 2
          %v5496 = vrot.slane %v5074, 7
          %v5497 = vrot.slane %v5496, 2
          %v5498 = vrot.slane %v5075, 7
          %v5499 = vrot.slane %v5498, 2
          %v5500 = vrot.slane %v4932, 7
          %v5501 = vrot.slane %v5500, 2
          %v5502 = vrot.slane %v5076, 7
          %v5503 = vrot.slane %v5502, 2
          %v5504 = vrot.slane %v5077, 7
          %v5505 = vrot.slane %v5504, 2
          %v5506 = vrot.slane %v5078, 7
          %v5507 = vrot.slane %v5506, 2
          %v5508 = vrot.slane %v4933, 7
          %v5509 = vrot.slane %v5508, 2
          %v5510 = vrot.slane %v5079, 7
          %v5511 = vrot.slane %v5510, 2
          %v5512 = vrot.slane %v5080, 7
          %v5513 = vrot.slane %v5512, 2
          %v5514 = vrot.slane %v5081, 7
          %v5515 = vrot.slane %v5514, 2
          %v5516 = vrot.slane %v4934, 7
          %v5517 = vrot.slane %v5516, 2
          %v5518 = vrot.slane %v5082, 7
          %v5519 = vrot.slane %v5518, 2
          %v5520 = vrot.slane %v5083, 7
          %v5521 = vrot.slane %v5520, 2
          %v5522 = vrot.slane %v5084, 7
          %v5523 = vrot.slane %v5522, 2
          %v5524 = vrot.slane %v4935, 7
          %v5525 = vrot.slane %v5524, 2
          %v5526 = vrot.slane %v5085, 7
          %v5527 = vrot.slane %v5526, 2
          %v5528 = vrot.slane %v5086, 7
          %v5529 = vrot.slane %v5528, 2
          %v5530 = vrot.slane %v5087, 7
          %v5531 = vrot.slane %v5530, 2
          %v5532 = vrot.slane %v4936, 7
          %v5533 = vrot.slane %v5532, 2
          %v5534 = vrot.slane %v5088, 7
          %v5535 = vrot.slane %v5534, 2
          %v5536 = vrot.slane %v5089, 7
          %v5537 = vrot.slane %v5536, 2
          %v5538 = vrot.slane %v5090, 7
          %v5539 = vrot.slane %v5538, 2
          %v5540 = vrot.slane %v4937, 7
          %v5541 = vrot.slane %v5540, 2
          %v5542 = vrot.slane %v5091, 7
          %v5543 = vrot.slane %v5542, 2
          %v5544 = vrot.slane %v5092, 7
          %v5545 = vrot.slane %v5544, 2
          %v5546 = vrot.slane %v5093, 7
          %v5547 = vrot.slane %v5546, 2
          %v5548 = vrot.slane %v4938, 7
          %v5549 = vrot.slane %v5548, 2
          %v5550 = vrot.slane %v5094, 7
          %v5551 = vrot.slane %v5550, 2
          %v5552 = vrot.slane %v5095, 7
          %v5553 = vrot.slane %v5552, 2
          %v5554 = vrot.slane %v5096, 7
          %v5555 = vrot.slane %v5554, 2
          %v5556 = vrot.slane %v4939, 7
          %v5557 = vrot.slane %v5556, 2
          %v5558 = vrot.slane %v5097, 7
          %v5559 = vrot.slane %v5558, 2
          %v5560 = vrot.slane %v5098, 7
          %v5561 = vrot.slane %v5560, 2
          %v5562 = vrot.slane %v5099, 7
          %v5563 = vrot.slane %v5562, 2
          %v5564 = vrot.slane %v4940, 7
          %v5565 = vrot.slane %v5564, 2
          %v5566 = vrot.slane %v5100, 7
          %v5567 = vrot.slane %v5566, 2
          %v5568 = vrot.slane %v5101, 7
          %v5569 = vrot.slane %v5568, 2
          %v5570 = vrot.slane %v5102, 7
          %v5571 = vrot.slane %v5570, 2
          %v5572 = vrot.slane %v4941, 7
          %v5573 = vrot.slane %v5572, 2
          %v5574 = vrot.slane %v5103, 7
          %v5575 = vrot.slane %v5574, 2
          %v5576 = vrot.slane %v5104, 7
          %v5577 = vrot.slane %v5576, 2
          %v5578 = vrot.slane %v5105, 7
          %v5579 = vrot.slane %v5578, 2
          %v5580 = vrot.slane %v4942, 7
          %v5581 = vrot.slane %v5580, 2
          %v5582 = vrot.slane %v5106, 7
          %v5583 = vrot.slane %v5582, 2
          %v5584 = vrot.slane %v5107, 7
          %v5585 = vrot.slane %v5584, 2
          %v5586 = vrot.slane %v5108, 7
          %v5587 = vrot.slane %v5586, 2
          %v5588 = vrot.slane %v4943, 7
          %v5589 = vrot.slane %v5588, 2
          %v5590 = vrot.slane %v5109, 7
          %v5591 = vrot.slane %v5590, 2
          %v5592 = vrot.slane %v5110, 7
          %v5593 = vrot.slane %v5592, 2
          %v5594 = vrot.slane %v5111, 7
          %v5595 = vrot.slane %v5594, 2
          %v5596 = vrot.slane %v4944, 7
          %v5597 = vrot.slane %v5596, 2
          %v5598 = vrot.slane %v5112, 7
          %v5599 = vrot.slane %v5598, 2
          %v5600 = vrot.slane %v5113, 7
          %v5601 = vrot.slane %v5600, 2
          %v5602 = vrot.slane %v5114, 7
          %v5603 = vrot.slane %v5602, 2
          %v5604 = vrot.slane %v4945, 7
          %v5605 = vrot.slane %v5604, 2
          %v5606 = vrot.slane %v5115, 7
          %v5607 = vrot.slane %v5606, 2
          %v5608 = vrot.slane %v5116, 7
          %v5609 = vrot.slane %v5608, 2
          %v5610 = vrot.slane %v5117, 7
          %v5611 = vrot.slane %v5610, 2
          %v5612 = vrot.slane %v4946, 7
          %v5613 = vrot.slane %v5612, 2
          %v5614 = vrot.slane %v5118, 7
          %v5615 = vrot.slane %v5614, 2
          %v5616 = vrot.slane %v5119, 7
          %v5617 = vrot.slane %v5616, 2
          %v5618 = vrot.slane %v5120, 7
          %v5619 = vrot.slane %v5618, 2
          %v5620 = vrot.slane %v4947, 7
          %v5621 = vrot.slane %v5620, 2
          %v5622 = vrot.slane %v5121, 7
          %v5623 = vrot.slane %v5622, 2
          %v5624 = vrot.slane %v5122, 7
          %v5625 = vrot.slane %v5624, 2
          %v5626 = vrot.slane %v5123, 7
          %v5627 = vrot.slane %v5626, 2
          %v5628 = vrot.slane %v4948, 7
          %v5629 = vrot.slane %v5628, 2
          %v5630 = vrot.slane %v5124, 7
          %v5631 = vrot.slane %v5630, 2
          %v5632 = vrot.slane %v5125, 7
          %v5633 = vrot.slane %v5632, 2
          %v5634 = vrot.slane %v5126, 7
          %v5635 = vrot.slane %v5634, 2
          %v5636 = vrot.slane %v4949, 7
          %v5637 = vrot.slane %v5636, 2
          %v5638 = vrot.slane %v5127, 7
          %v5639 = vrot.slane %v5638, 2
          %v5640 = vrot.slane %v5128, 7
          %v5641 = vrot.slane %v5640, 2
          %v5642 = vrot.slane %v5129, 7
          %v5643 = vrot.slane %v5642, 2
          %v5644 = vrot.slane %v4950, 7
          %v5645 = vrot.slane %v5644, 2
          %v5646 = vrot.slane %v5130, 7
          %v5647 = vrot.slane %v5646, 2
          %v5648 = vrot.slane %v5131, 7
          %v5649 = vrot.slane %v5648, 2
          %v5650 = vrot.slane %v5132, 7
          %v5651 = vrot.slane %v5650, 2
          %v5652 = vrot.slane %v4951, 7
          %v5653 = vrot.slane %v5652, 2
          %v5654 = vrot.slane %v5133, 7
          %v5655 = vrot.slane %v5654, 2
          %v5656 = vrot.slane %v5134, 7
          %v5657 = vrot.slane %v5656, 2
          %v5658 = vrot.slane %v5135, 7
          %v5659 = vrot.slane %v5658, 2
          %v5660 = vrot.slane %v4952, 7
          %v5661 = vrot.slane %v5660, 2
          %v5662 = vrot.slane %v5136, 7
          %v5663 = vrot.slane %v5662, 2
          %v5664 = vrot.slane %v5137, 7
          %v5665 = vrot.slane %v5664, 2
          %v5666 = vrot.slane %v5138, 7
          %v5667 = vrot.slane %v5666, 2
          %v5668 = vrot.slane %v4953, 7
          %v5669 = vrot.slane %v5668, 2
          %v5670 = vrot.slane %v5139, 7
          %v5671 = vrot.slane %v5670, 2
          %v5672 = vrot.slane %v5140, 7
          %v5673 = vrot.slane %v5672, 2
          %v5674 = vrot.slane %v5141, 7
          %v5675 = vrot.slane %v5674, 2
          %v5676 = vrot.slane %v4954, 7
          %v5677 = vrot.slane %v5676, 2
          %v5678 = vrot.slane %v5142, 7
          %v5679 = vrot.slane %v5678, 2
          %v5680 = vrot.slane %v5143, 7
          %v5681 = vrot.slane %v5680, 2
          %v5682 = vrot.slane %v5144, 7
          %v5683 = vrot.slane %v5682, 2
          %v5684 = vrot.slane %v4955, 7
          %v5685 = vrot.slane %v5684, 2
          %v5686 = vrot.slane %v5145, 7
          %v5687 = vrot.slane %v5686, 2
          %v5688 = vrot.slane %v5146, 7
          %v5689 = vrot.slane %v5688, 2
          %v5690 = vrot.slane %v5147, 7
          %v5691 = vrot.slane %v5690, 2
          %v5692 = vrot.slane %v4956, 7
          %v5693 = vrot.slane %v5692, 2
          %v5694 = vrot.slane %v5148, 7
          %v5695 = vrot.slane %v5694, 2
          %v5696 = vrot.slane %v5149, 7
          %v5697 = vrot.slane %v5696, 2
          %v5698 = vrot.slane %v5150, 7
          %v5699 = vrot.slane %v5698, 2
          %v5700 = vrot.slane %v4957, 7
          %v5701 = vrot.slane %v5700, 2
          %v5702 = vrot.slane %v5151, 7
          %v5703 = vrot.slane %v5702, 2
          %v5704 = vrot.slane %v5152, 7
          %v5705 = vrot.slane %v5704, 2
          %v5706 = vrot.slane %v5153, 7
          %v5707 = vrot.slane %v5706, 2
          %v5708 = vrot.slane %v4958, 7
          %v5709 = vrot.slane %v5708, 2
          %v5710 = vrot.slane %v5154, 7
          %v5711 = vrot.slane %v5710, 2
          %v5712 = vrot.slane %v5155, 7
          %v5713 = vrot.slane %v5712, 2
          %v5714 = vrot.slane %v5156, 7
          %v5715 = vrot.slane %v5714, 2
          %v5716 = vrot.slane %v4959, 7
          %v5717 = vrot.slane %v5716, 2
          %v5718 = vrot.slane %v5157, 7
          %v5719 = vrot.slane %v5718, 2
          %v5720 = vrot.slane %v5158, 7
          %v5721 = vrot.slane %v5720, 2
          %v5722 = vrot.slane %v5159, 7
          %v5723 = vrot.slane %v5722, 2
          %v5724 = vrot.slane %v4960, 7
          %v5725 = vrot.slane %v5724, 2
          %v5726 = vrot.slane %v5160, 7
          %v5727 = vrot.slane %v5726, 2
          %v5728 = vrot.slane %v5161, 7
          %v5729 = vrot.slane %v5728, 2
          %v5730 = vrot.slane %v5162, 7
          %v5731 = vrot.slane %v5730, 2
          %v5732 = vrot.slane %v4961, 7
          %v5733 = vrot.slane %v5732, 2
          %v5734 = vrot.slane %v5163, 7
          %v5735 = vrot.slane %v5734, 2
          %v5736 = vrot.slane %v5164, 7
          %v5737 = vrot.slane %v5736, 2
          %v5738 = vrot.slane %v5165, 7
          %v5739 = vrot.slane %v5738, 2
          %v5740 = vrot.slane %v4962, 7
          %v5741 = vrot.slane %v5740, 2
          %v5742 = vrot.slane %v5166, 7
          %v5743 = vrot.slane %v5742, 2
          %v5744 = vrot.slane %v5167, 7
          %v5745 = vrot.slane %v5744, 2
          %v5746 = vrot.slane %v5168, 7
          %v5747 = vrot.slane %v5746, 2
          %v5748 = vrot.slane %v4963, 7
          %v5749 = vrot.slane %v5748, 2
          %v5750 = vrot.slane %v5169, 7
          %v5751 = vrot.slane %v5750, 2
          %v5752 = vrot.slane %v5170, 7
          %v5753 = vrot.slane %v5752, 2
          %v5754 = vrot.slane %v5171, 7
          %v5755 = vrot.slane %v5754, 2
          %v5756 = vrot.slane %v4964, 7
          %v5757 = vrot.slane %v5756, 2
          %v5758 = vrot.slane %v5172, 7
          %v5759 = vrot.slane %v5758, 2
          %v5760 = vrot.slane %v5173, 7
          %v5761 = vrot.slane %v5760, 2
          %v5762 = vrot.slane %v5174, 7
          %v5763 = vrot.slane %v5762, 2
          %v5764 = vrot.slane %v4965, 7
          %v5765 = vrot.slane %v5764, 2
          %v5766 = vrot.slane %v5175, 7
          %v5767 = vrot.slane %v5766, 2
          %v5768 = vrot.slane %v5176, 7
          %v5769 = vrot.slane %v5768, 2
          %v5770 = vrot.slane %v5177, 7
          %v5771 = vrot.slane %v5770, 2
          %v5772 = vrot.slane %v4966, 7
          %v5773 = vrot.slane %v5772, 2
          %v5774 = vrot.slane %v5178, 7
          %v5775 = vrot.slane %v5774, 2
          %v5776 = vrot.slane %v5179, 7
          %v5777 = vrot.slane %v5776, 2
          %v5778 = vrot.slane %v5180, 7
          %v5779 = vrot.slane %v5778, 2
          %v5780 = vrot.slane %v4967, 7
          %v5781 = vrot.slane %v5780, 2
          %v5782 = vrot.slane %v5181, 7
          %v5783 = vrot.slane %v5782, 2
          %v5784 = vrot.slane %v5182, 7
          %v5785 = vrot.slane %v5784, 2
          %v5786 = vrot.slane %v5183, 7
          %v5787 = vrot.slane %v5786, 2
          %v5788 = vrot.slane %v4968, 7
          %v5789 = vrot.slane %v5788, 2
          %v5790 = vrot.slane %v5184, 7
          %v5791 = vrot.slane %v5790, 2
          %v5792 = vrot.slane %v5185, 7
          %v5793 = vrot.slane %v5792, 2
          %v5794 = vrot.slane %v5186, 7
          %v5795 = vrot.slane %v5794, 2
          %v5796 = vrot.slane %v4969, 7
          %v5797 = vrot.slane %v5796, 2
          %v5798 = vrot.slane %v5187, 7
          %v5799 = vrot.slane %v5798, 2
          %v5800 = vrot.slane %v5188, 7
          %v5801 = vrot.slane %v5800, 2
          %v5802 = vrot.slane %v5189, 7
          %v5803 = vrot.slane %v5802, 2
          %v5804 = vrot.slane %v4970, 7
          %v5805 = vrot.slane %v5804, 2
          %v5806 = vrot.slane %v5190, 7
          %v5807 = vrot.slane %v5806, 2
          %v5808 = vrot.slane %v5191, 7
          %v5809 = vrot.slane %v5808, 2
          %v5810 = vrot.slane %v5192, 7
          %v5811 = vrot.slane %v5810, 2
          %v5812 = vrot.slane %v4971, 7
          %v5813 = vrot.slane %v5812, 2
          %v5814 = vrot.slane %v5193, 7
          %v5815 = vrot.slane %v5814, 2
          %v5816 = vrot.slane %v5194, 7
          %v5817 = vrot.slane %v5816, 2
          %v5818 = vrot.slane %v5195, 7
          %v5819 = vrot.slane %v5818, 2
          %v5820 = vrot.slane %v4972, 7
          %v5821 = vrot.slane %v5820, 2
          %v5822 = vrot.slane %v5196, 7
          %v5823 = vrot.slane %v5822, 2
          %v5824 = vrot.slane %v5197, 7
          %v5825 = vrot.slane %v5824, 2
          %v5826 = vrot.slane %v5198, 7
          %v5827 = vrot.slane %v5826, 2
          %v5828 = vrot.slane %v4973, 7
          %v5829 = vrot.slane %v5828, 2
          %v5830 = vrot.slane %v5199, 7
          %v5831 = vrot.slane %v5830, 2
          %v5832 = vrot.slane %v5200, 7
          %v5833 = vrot.slane %v5832, 2
          %v5834 = vrot.slane %v5201, 7
          %v5835 = vrot.slane %v5834, 2
          %v5836 = vrot.slane %v4974, 7
          %v5837 = vrot.slane %v5836, 2
          %v5838 = vrot.slane %v5202, 7
          %v5839 = vrot.slane %v5838, 2
          %v5840 = vrot.slane %v5203, 7
          %v5841 = vrot.slane %v5840, 2
          %v5842 = vrot.slane %v5204, 7
          %v5843 = vrot.slane %v5842, 2
          %v5844 = vrot.slane %v4975, 7
          %v5845 = vrot.slane %v5844, 2
          %v5846 = vrot.slane %v5205, 7
          %v5847 = vrot.slane %v5846, 2
          %v5848 = vrot.slane %v5206, 7
          %v5849 = vrot.slane %v5848, 2
          %v5850 = vrot.slane %v5207, 7
          %v5851 = vrot.slane %v5850, 2
          %v5852 = vrot.slane %v4976, 7
          %v5853 = vrot.slane %v5852, 2
          %v5854 = vrot.slane %v5208, 7
          %v5855 = vrot.slane %v5854, 2
          %v5856 = vrot.slane %v5209, 7
          %v5857 = vrot.slane %v5856, 2
          %v5858 = vrot.slane %v5210, 7
          %v5859 = vrot.slane %v5858, 2
          %v5860 = vrot.slane %v4977, 7
          %v5861 = vrot.slane %v5860, 2
          %v5862 = vrot.slane %v5211, 7
          %v5863 = vrot.slane %v5862, 2
          %v5864 = vrot.slane %v5212, 7
          %v5865 = vrot.slane %v5864, 2
          %v5866 = vrot.slane %v5213, 7
          %v5867 = vrot.slane %v5866, 2
          %v5868 = vrot.slane %v4978, 7
          %v5869 = vrot.slane %v5868, 2
          %v5870 = vrot.slane %v5214, 7
          %v5871 = vrot.slane %v5870, 2
          %v5872 = vrot.slane %v5215, 7
          %v5873 = vrot.slane %v5872, 2
          %v5874 = vrot.slane %v5216, 7
          %v5875 = vrot.slane %v5874, 2
          %v5876 = vrot.slane %v4979, 7
          %v5877 = vrot.slane %v5876, 2
          %v5878 = vrot.slane %v5217, 7
          %v5879 = vrot.slane %v5878, 2
          %v5880 = vrot.slane %v5218, 7
          %v5881 = vrot.slane %v5880, 2
          %v5882 = vrot.slane %v5219, 7
          %v5883 = vrot.slane %v5882, 2
          %v5884 = vrot.slane %v4980, 7
          %v5885 = vrot.slane %v5884, 2
          %v5886 = vrot.slane %v5220, 7
          %v5887 = vrot.slane %v5886, 2
          %v5888 = vrot.slane %v5221, 7
          %v5889 = vrot.slane %v5888, 2
          %v5890 = vrot.slane %v5222, 7
          %v5891 = vrot.slane %v5890, 2
          %v5892 = vrot.slane %v4981, 7
          %v5893 = vrot.slane %v5892, 2
          %v5894 = vrot.slane %v5223, 7
          %v5895 = vrot.slane %v5894, 2
          %v5896 = vrot.slane %v5224, 7
          %v5897 = vrot.slane %v5896, 2
          %v5898 = vrot.slane %v5225, 7
          %v5899 = vrot.slane %v5898, 2
          %v5900 = vrot.slane %v4982, 7
          %v5901 = vrot.slane %v5900, 2
          %v5902 = vrot.slane %v5226, 7
          %v5903 = vrot.slane %v5902, 2
          %v5904 = vrot.slane %v5227, 7
          %v5905 = vrot.slane %v5904, 2
          %v5906 = vrot.slane %v5228, 7
          %v5907 = vrot.slane %v5906, 2
          %v5908 = vrot.slane %v4983, 7
          %v5909 = vrot.slane %v5908, 2
          %v5910 = vrot.slane %v5229, 7
          %v5911 = vrot.slane %v5910, 2
          %v5912 = vrot.slane %v5230, 7
          %v5913 = vrot.slane %v5912, 2
          %v5914 = vrot.slane %v5231, 7
          %v5915 = vrot.slane %v5914, 2
          %v5916 = vrot.slane %v4984, 7
          %v5917 = vrot.slane %v5916, 2
          %v5918 = vrot.slane %v5232, 7
          %v5919 = vrot.slane %v5918, 2
          %v5920 = vrot.slane %v5233, 7
          %v5921 = vrot.slane %v5920, 2
          %v5922 = vrot.slane %v5234, 7
          %v5923 = vrot.slane %v5922, 2
          %v5924 = vrot.slane %v4985, 7
          %v5925 = vrot.slane %v5924, 2
          %v5926 = vrot.slane %v5235, 7
          %v5927 = vrot.slane %v5926, 2
          %v5928 = vrot.slane %v5236, 7
          %v5929 = vrot.slane %v5928, 2
          %v5930 = vrot.slane %v5237, 7
          %v5931 = vrot.slane %v5930, 2
          %v5932 = vrot.slane %v4986, 7
          %v5933 = vrot.slane %v5932, 2
          %v5934 = vrot.slane %v5238, 7
          %v5935 = vrot.slane %v5934, 2
          %v5936 = vrot.slane %v5239, 7
          %v5937 = vrot.slane %v5936, 2
          %v5938 = vrot.slane %v5240, 7
          %v5939 = vrot.slane %v5938, 2
          %v5940 = vrot.slane %v4987, 7
          %v5941 = vrot.slane %v5940, 2
          %v5942 = vrot.slane %v5241, 7
          %v5943 = vrot.slane %v5942, 2
          %v5944 = vrot.slane %v5242, 7
          %v5945 = vrot.slane %v5944, 2
          %v5946 = vrot.slane %v5243, 7
          %v5947 = vrot.slane %v5946, 2
          %v6204 = vmax.f32 %v4924, %v5437
          %v6205 = vmax.f32 %v5052, %v5439
          %v6206 = vmax.f32 %v5053, %v5441
          %v6207 = vmax.f32 %v5054, %v5443
          %v6208 = vmax.f32 %v4925, %v5445
          %v6209 = vmax.f32 %v5055, %v5447
          %v6210 = vmax.f32 %v5056, %v5449
          %v6211 = vmax.f32 %v5057, %v5451
          %v6212 = vmax.f32 %v4926, %v5453
          %v6213 = vmax.f32 %v5058, %v5455
          %v6214 = vmax.f32 %v5059, %v5457
          %v6215 = vmax.f32 %v5060, %v5459
          %v6216 = vmax.f32 %v4927, %v5461
          %v6217 = vmax.f32 %v5061, %v5463
          %v6218 = vmax.f32 %v5062, %v5465
          %v6219 = vmax.f32 %v5063, %v5467
          %v6220 = vmax.f32 %v4928, %v5469
          %v6221 = vmax.f32 %v5064, %v5471
          %v6222 = vmax.f32 %v5065, %v5473
          %v6223 = vmax.f32 %v5066, %v5475
          %v6224 = vmax.f32 %v4929, %v5477
          %v6225 = vmax.f32 %v5067, %v5479
          %v6226 = vmax.f32 %v5068, %v5481
          %v6227 = vmax.f32 %v5069, %v5483
          %v6228 = vmax.f32 %v4930, %v5485
          %v6229 = vmax.f32 %v5070, %v5487
          %v6230 = vmax.f32 %v5071, %v5489
          %v6231 = vmax.f32 %v5072, %v5491
          %v6232 = vmax.f32 %v4931, %v5493
          %v6233 = vmax.f32 %v5073, %v5495
          %v6234 = vmax.f32 %v5074, %v5497
          %v6235 = vmax.f32 %v5075, %v5499
          %v6236 = vmax.f32 %v4932, %v5501
          %v6237 = vmax.f32 %v5076, %v5503
          %v6238 = vmax.f32 %v5077, %v5505
          %v6239 = vmax.f32 %v5078, %v5507
          %v6240 = vmax.f32 %v4933, %v5509
          %v6241 = vmax.f32 %v5079, %v5511
          %v6242 = vmax.f32 %v5080, %v5513
          %v6243 = vmax.f32 %v5081, %v5515
          %v6244 = vmax.f32 %v4934, %v5517
          %v6245 = vmax.f32 %v5082, %v5519
          %v6246 = vmax.f32 %v5083, %v5521
          %v6247 = vmax.f32 %v5084, %v5523
          %v6248 = vmax.f32 %v4935, %v5525
          %v6249 = vmax.f32 %v5085, %v5527
          %v6250 = vmax.f32 %v5086, %v5529
          %v6251 = vmax.f32 %v5087, %v5531
          %v6252 = vmax.f32 %v4936, %v5533
          %v6253 = vmax.f32 %v5088, %v5535
          %v6254 = vmax.f32 %v5089, %v5537
          %v6255 = vmax.f32 %v5090, %v5539
          %v6256 = vmax.f32 %v4937, %v5541
          %v6257 = vmax.f32 %v5091, %v5543
          %v6258 = vmax.f32 %v5092, %v5545
          %v6259 = vmax.f32 %v5093, %v5547
          %v6260 = vmax.f32 %v4938, %v5549
          %v6261 = vmax.f32 %v5094, %v5551
          %v6262 = vmax.f32 %v5095, %v5553
          %v6263 = vmax.f32 %v5096, %v5555
          %v6264 = vmax.f32 %v4939, %v5557
          %v6265 = vmax.f32 %v5097, %v5559
          %v6266 = vmax.f32 %v5098, %v5561
          %v6267 = vmax.f32 %v5099, %v5563
          %v6268 = vmax.f32 %v4940, %v5565
          %v6269 = vmax.f32 %v5100, %v5567
          %v6270 = vmax.f32 %v5101, %v5569
          %v6271 = vmax.f32 %v5102, %v5571
          %v6272 = vmax.f32 %v4941, %v5573
          %v6273 = vmax.f32 %v5103, %v5575
          %v6274 = vmax.f32 %v5104, %v5577
          %v6275 = vmax.f32 %v5105, %v5579
          %v6276 = vmax.f32 %v4942, %v5581
          %v6277 = vmax.f32 %v5106, %v5583
          %v6278 = vmax.f32 %v5107, %v5585
          %v6279 = vmax.f32 %v5108, %v5587
          %v6280 = vmax.f32 %v4943, %v5589
          %v6281 = vmax.f32 %v5109, %v5591
          %v6282 = vmax.f32 %v5110, %v5593
          %v6283 = vmax.f32 %v5111, %v5595
          %v6284 = vmax.f32 %v4944, %v5597
          %v6285 = vmax.f32 %v5112, %v5599
          %v6286 = vmax.f32 %v5113, %v5601
          %v6287 = vmax.f32 %v5114, %v5603
          %v6288 = vmax.f32 %v4945, %v5605
          %v6289 = vmax.f32 %v5115, %v5607
          %v6290 = vmax.f32 %v5116, %v5609
          %v6291 = vmax.f32 %v5117, %v5611
          %v6292 = vmax.f32 %v4946, %v5613
          %v6293 = vmax.f32 %v5118, %v5615
          %v6294 = vmax.f32 %v5119, %v5617
          %v6295 = vmax.f32 %v5120, %v5619
          %v6296 = vmax.f32 %v4947, %v5621
          %v6297 = vmax.f32 %v5121, %v5623
          %v6298 = vmax.f32 %v5122, %v5625
          %v6299 = vmax.f32 %v5123, %v5627
          %v6300 = vmax.f32 %v4948, %v5629
          %v6301 = vmax.f32 %v5124, %v5631
          %v6302 = vmax.f32 %v5125, %v5633
          %v6303 = vmax.f32 %v5126, %v5635
          %v6304 = vmax.f32 %v4949, %v5637
          %v6305 = vmax.f32 %v5127, %v5639
          %v6306 = vmax.f32 %v5128, %v5641
          %v6307 = vmax.f32 %v5129, %v5643
          %v6308 = vmax.f32 %v4950, %v5645
          %v6309 = vmax.f32 %v5130, %v5647
          %v6310 = vmax.f32 %v5131, %v5649
          %v6311 = vmax.f32 %v5132, %v5651
          %v6312 = vmax.f32 %v4951, %v5653
          %v6313 = vmax.f32 %v5133, %v5655
          %v6314 = vmax.f32 %v5134, %v5657
          %v6315 = vmax.f32 %v5135, %v5659
          %v6316 = vmax.f32 %v4952, %v5661
          %v6317 = vmax.f32 %v5136, %v5663
          %v6318 = vmax.f32 %v5137, %v5665
          %v6319 = vmax.f32 %v5138, %v5667
          %v6320 = vmax.f32 %v4953, %v5669
          %v6321 = vmax.f32 %v5139, %v5671
          %v6322 = vmax.f32 %v5140, %v5673
          %v6323 = vmax.f32 %v5141, %v5675
          %v6324 = vmax.f32 %v4954, %v5677
          %v6325 = vmax.f32 %v5142, %v5679
          %v6326 = vmax.f32 %v5143, %v5681
          %v6327 = vmax.f32 %v5144, %v5683
          %v6328 = vmax.f32 %v4955, %v5685
          %v6329 = vmax.f32 %v5145, %v5687
          %v6330 = vmax.f32 %v5146, %v5689
          %v6331 = vmax.f32 %v5147, %v5691
          %v6332 = vmax.f32 %v4956, %v5693
          %v6333 = vmax.f32 %v5148, %v5695
          %v6334 = vmax.f32 %v5149, %v5697
          %v6335 = vmax.f32 %v5150, %v5699
          %v6336 = vmax.f32 %v4957, %v5701
          %v6337 = vmax.f32 %v5151, %v5703
          %v6338 = vmax.f32 %v5152, %v5705
          %v6339 = vmax.f32 %v5153, %v5707
          %v6340 = vmax.f32 %v4958, %v5709
          %v6341 = vmax.f32 %v5154, %v5711
          %v6342 = vmax.f32 %v5155, %v5713
          %v6343 = vmax.f32 %v5156, %v5715
          %v6344 = vmax.f32 %v4959, %v5717
          %v6345 = vmax.f32 %v5157, %v5719
          %v6346 = vmax.f32 %v5158, %v5721
          %v6347 = vmax.f32 %v5159, %v5723
          %v6348 = vmax.f32 %v4960, %v5725
          %v6349 = vmax.f32 %v5160, %v5727
          %v6350 = vmax.f32 %v5161, %v5729
          %v6351 = vmax.f32 %v5162, %v5731
          %v6352 = vmax.f32 %v4961, %v5733
          %v6353 = vmax.f32 %v5163, %v5735
          %v6354 = vmax.f32 %v5164, %v5737
          %v6355 = vmax.f32 %v5165, %v5739
          %v6356 = vmax.f32 %v4962, %v5741
          %v6357 = vmax.f32 %v5166, %v5743
          %v6358 = vmax.f32 %v5167, %v5745
          %v6359 = vmax.f32 %v5168, %v5747
          %v6360 = vmax.f32 %v4963, %v5749
          %v6361 = vmax.f32 %v5169, %v5751
          %v6362 = vmax.f32 %v5170, %v5753
          %v6363 = vmax.f32 %v5171, %v5755
          %v6364 = vmax.f32 %v4964, %v5757
          %v6365 = vmax.f32 %v5172, %v5759
          %v6366 = vmax.f32 %v5173, %v5761
          %v6367 = vmax.f32 %v5174, %v5763
          %v6368 = vmax.f32 %v4965, %v5765
          %v6369 = vmax.f32 %v5175, %v5767
          %v6370 = vmax.f32 %v5176, %v5769
          %v6371 = vmax.f32 %v5177, %v5771
          %v6372 = vmax.f32 %v4966, %v5773
          %v6373 = vmax.f32 %v5178, %v5775
          %v6374 = vmax.f32 %v5179, %v5777
          %v6375 = vmax.f32 %v5180, %v5779
          %v6376 = vmax.f32 %v4967, %v5781
          %v6377 = vmax.f32 %v5181, %v5783
          %v6378 = vmax.f32 %v5182, %v5785
          %v6379 = vmax.f32 %v5183, %v5787
          %v6380 = vmax.f32 %v4968, %v5789
          %v6381 = vmax.f32 %v5184, %v5791
          %v6382 = vmax.f32 %v5185, %v5793
          %v6383 = vmax.f32 %v5186, %v5795
          %v6384 = vmax.f32 %v4969, %v5797
          %v6385 = vmax.f32 %v5187, %v5799
          %v6386 = vmax.f32 %v5188, %v5801
          %v6387 = vmax.f32 %v5189, %v5803
          %v6388 = vmax.f32 %v4970, %v5805
          %v6389 = vmax.f32 %v5190, %v5807
          %v6390 = vmax.f32 %v5191, %v5809
          %v6391 = vmax.f32 %v5192, %v5811
          %v6392 = vmax.f32 %v4971, %v5813
          %v6393 = vmax.f32 %v5193, %v5815
          %v6394 = vmax.f32 %v5194, %v5817
          %v6395 = vmax.f32 %v5195, %v5819
          %v6396 = vmax.f32 %v4972, %v5821
          %v6397 = vmax.f32 %v5196, %v5823
          %v6398 = vmax.f32 %v5197, %v5825
          %v6399 = vmax.f32 %v5198, %v5827
          %v6400 = vmax.f32 %v4973, %v5829
          %v6401 = vmax.f32 %v5199, %v5831
          %v6402 = vmax.f32 %v5200, %v5833
          %v6403 = vmax.f32 %v5201, %v5835
          %v6404 = vmax.f32 %v4974, %v5837
          %v6405 = vmax.f32 %v5202, %v5839
          %v6406 = vmax.f32 %v5203, %v5841
          %v6407 = vmax.f32 %v5204, %v5843
          %v6408 = vmax.f32 %v4975, %v5845
          %v6409 = vmax.f32 %v5205, %v5847
          %v6410 = vmax.f32 %v5206, %v5849
          %v6411 = vmax.f32 %v5207, %v5851
          %v6412 = vmax.f32 %v4976, %v5853
          %v6413 = vmax.f32 %v5208, %v5855
          %v6414 = vmax.f32 %v5209, %v5857
          %v6415 = vmax.f32 %v5210, %v5859
          %v6416 = vmax.f32 %v4977, %v5861
          %v6417 = vmax.f32 %v5211, %v5863
          %v6418 = vmax.f32 %v5212, %v5865
          %v6419 = vmax.f32 %v5213, %v5867
          %v6420 = vmax.f32 %v4978, %v5869
          %v6421 = vmax.f32 %v5214, %v5871
          %v6422 = vmax.f32 %v5215, %v5873
          %v6423 = vmax.f32 %v5216, %v5875
          %v6424 = vmax.f32 %v4979, %v5877
          %v6425 = vmax.f32 %v5217, %v5879
          %v6426 = vmax.f32 %v5218, %v5881
          %v6427 = vmax.f32 %v5219, %v5883
          %v6428 = vmax.f32 %v4980, %v5885
          %v6429 = vmax.f32 %v5220, %v5887
          %v6430 = vmax.f32 %v5221, %v5889
          %v6431 = vmax.f32 %v5222, %v5891
          %v6432 = vmax.f32 %v4981, %v5893
          %v6433 = vmax.f32 %v5223, %v5895
          %v6434 = vmax.f32 %v5224, %v5897
          %v6435 = vmax.f32 %v5225, %v5899
          %v6436 = vmax.f32 %v4982, %v5901
          %v6437 = vmax.f32 %v5226, %v5903
          %v6438 = vmax.f32 %v5227, %v5905
          %v6439 = vmax.f32 %v5228, %v5907
          %v6440 = vmax.f32 %v4983, %v5909
          %v6441 = vmax.f32 %v5229, %v5911
          %v6442 = vmax.f32 %v5230, %v5913
          %v6443 = vmax.f32 %v5231, %v5915
          %v6444 = vmax.f32 %v4984, %v5917
          %v6445 = vmax.f32 %v5232, %v5919
          %v6446 = vmax.f32 %v5233, %v5921
          %v6447 = vmax.f32 %v5234, %v5923
          %v6448 = vmax.f32 %v4985, %v5925
          %v6449 = vmax.f32 %v5235, %v5927
          %v6450 = vmax.f32 %v5236, %v5929
          %v6451 = vmax.f32 %v5237, %v5931
          %v6452 = vmax.f32 %v4986, %v5933
          %v6453 = vmax.f32 %v5238, %v5935
          %v6454 = vmax.f32 %v5239, %v5937
          %v6455 = vmax.f32 %v5240, %v5939
          %v6456 = vmax.f32 %v4987, %v5941
          %v6457 = vmax.f32 %v5241, %v5943
          %v6458 = vmax.f32 %v5242, %v5945
          %v6459 = vmax.f32 %v5243, %v5947
          %v6460 = vmax.f32 %v6204, %v6212
          %v6461 = vmax.f32 %v6205, %v6213
          %v6462 = vmax.f32 %v6206, %v6214
          %v6463 = vmax.f32 %v6207, %v6215
          %v6464 = vmax.f32 %v6208, %v6216
          %v6465 = vmax.f32 %v6209, %v6217
          %v6466 = vmax.f32 %v6210, %v6218
          %v6467 = vmax.f32 %v6211, %v6219
          %v6468 = vmax.f32 %v6220, %v6228
          %v6469 = vmax.f32 %v6221, %v6229
          %v6470 = vmax.f32 %v6222, %v6230
          %v6471 = vmax.f32 %v6223, %v6231
          %v6472 = vmax.f32 %v6224, %v6232
          %v6473 = vmax.f32 %v6225, %v6233
          %v6474 = vmax.f32 %v6226, %v6234
          %v6475 = vmax.f32 %v6227, %v6235
          %v6476 = vmax.f32 %v6236, %v6244
          %v6477 = vmax.f32 %v6237, %v6245
          %v6478 = vmax.f32 %v6238, %v6246
          %v6479 = vmax.f32 %v6239, %v6247
          %v6480 = vmax.f32 %v6240, %v6248
          %v6481 = vmax.f32 %v6241, %v6249
          %v6482 = vmax.f32 %v6242, %v6250
          %v6483 = vmax.f32 %v6243, %v6251
          %v6484 = vmax.f32 %v6252, %v6260
          %v6485 = vmax.f32 %v6253, %v6261
          %v6486 = vmax.f32 %v6254, %v6262
          %v6487 = vmax.f32 %v6255, %v6263
          %v6488 = vmax.f32 %v6256, %v6264
          %v6489 = vmax.f32 %v6257, %v6265
          %v6490 = vmax.f32 %v6258, %v6266
          %v6491 = vmax.f32 %v6259, %v6267
          %v6492 = vmax.f32 %v6268, %v6276
          %v6493 = vmax.f32 %v6269, %v6277
          %v6494 = vmax.f32 %v6270, %v6278
          %v6495 = vmax.f32 %v6271, %v6279
          %v6496 = vmax.f32 %v6272, %v6280
          %v6497 = vmax.f32 %v6273, %v6281
          %v6498 = vmax.f32 %v6274, %v6282
          %v6499 = vmax.f32 %v6275, %v6283
          %v6500 = vmax.f32 %v6284, %v6292
          %v6501 = vmax.f32 %v6285, %v6293
          %v6502 = vmax.f32 %v6286, %v6294
          %v6503 = vmax.f32 %v6287, %v6295
          %v6504 = vmax.f32 %v6288, %v6296
          %v6505 = vmax.f32 %v6289, %v6297
          %v6506 = vmax.f32 %v6290, %v6298
          %v6507 = vmax.f32 %v6291, %v6299
          %v6508 = vmax.f32 %v6300, %v6308
          %v6509 = vmax.f32 %v6301, %v6309
          %v6510 = vmax.f32 %v6302, %v6310
          %v6511 = vmax.f32 %v6303, %v6311
          %v6512 = vmax.f32 %v6304, %v6312
          %v6513 = vmax.f32 %v6305, %v6313
          %v6514 = vmax.f32 %v6306, %v6314
          %v6515 = vmax.f32 %v6307, %v6315
          %v6516 = vmax.f32 %v6316, %v6324
          %v6517 = vmax.f32 %v6317, %v6325
          %v6518 = vmax.f32 %v6318, %v6326
          %v6519 = vmax.f32 %v6319, %v6327
          %v6520 = vmax.f32 %v6320, %v6328
          %v6521 = vmax.f32 %v6321, %v6329
          %v6522 = vmax.f32 %v6322, %v6330
          %v6523 = vmax.f32 %v6323, %v6331
          %v6524 = vmax.f32 %v6332, %v6340
          %v6525 = vmax.f32 %v6333, %v6341
          %v6526 = vmax.f32 %v6334, %v6342
          %v6527 = vmax.f32 %v6335, %v6343
          %v6528 = vmax.f32 %v6336, %v6344
          %v6529 = vmax.f32 %v6337, %v6345
          %v6530 = vmax.f32 %v6338, %v6346
          %v6531 = vmax.f32 %v6339, %v6347
          %v6532 = vmax.f32 %v6348, %v6356
          %v6533 = vmax.f32 %v6349, %v6357
          %v6534 = vmax.f32 %v6350, %v6358
          %v6535 = vmax.f32 %v6351, %v6359
          %v6536 = vmax.f32 %v6352, %v6360
          %v6537 = vmax.f32 %v6353, %v6361
          %v6538 = vmax.f32 %v6354, %v6362
          %v6539 = vmax.f32 %v6355, %v6363
          %v6540 = vmax.f32 %v6364, %v6372
          %v6541 = vmax.f32 %v6365, %v6373
          %v6542 = vmax.f32 %v6366, %v6374
          %v6543 = vmax.f32 %v6367, %v6375
          %v6544 = vmax.f32 %v6368, %v6376
          %v6545 = vmax.f32 %v6369, %v6377
          %v6546 = vmax.f32 %v6370, %v6378
          %v6547 = vmax.f32 %v6371, %v6379
          %v6548 = vmax.f32 %v6380, %v6388
          %v6549 = vmax.f32 %v6381, %v6389
          %v6550 = vmax.f32 %v6382, %v6390
          %v6551 = vmax.f32 %v6383, %v6391
          %v6552 = vmax.f32 %v6384, %v6392
          %v6553 = vmax.f32 %v6385, %v6393
          %v6554 = vmax.f32 %v6386, %v6394
          %v6555 = vmax.f32 %v6387, %v6395
          %v6556 = vmax.f32 %v6396, %v6404
          %v6557 = vmax.f32 %v6397, %v6405
          %v6558 = vmax.f32 %v6398, %v6406
          %v6559 = vmax.f32 %v6399, %v6407
          %v6560 = vmax.f32 %v6400, %v6408
          %v6561 = vmax.f32 %v6401, %v6409
          %v6562 = vmax.f32 %v6402, %v6410
          %v6563 = vmax.f32 %v6403, %v6411
          %v6564 = vmax.f32 %v6412, %v6420
          %v6565 = vmax.f32 %v6413, %v6421
          %v6566 = vmax.f32 %v6414, %v6422
          %v6567 = vmax.f32 %v6415, %v6423
          %v6568 = vmax.f32 %v6416, %v6424
          %v6569 = vmax.f32 %v6417, %v6425
          %v6570 = vmax.f32 %v6418, %v6426
          %v6571 = vmax.f32 %v6419, %v6427
          %v6572 = vmax.f32 %v6428, %v6436
          %v6573 = vmax.f32 %v6429, %v6437
          %v6574 = vmax.f32 %v6430, %v6438
          %v6575 = vmax.f32 %v6431, %v6439
          %v6576 = vmax.f32 %v6432, %v6440
          %v6577 = vmax.f32 %v6433, %v6441
          %v6578 = vmax.f32 %v6434, %v6442
          %v6579 = vmax.f32 %v6435, %v6443
          %v6580 = vmax.f32 %v6444, %v6452
          %v6581 = vmax.f32 %v6445, %v6453
          %v6582 = vmax.f32 %v6446, %v6454
          %v6583 = vmax.f32 %v6447, %v6455
          %v6584 = vmax.f32 %v6448, %v6456
          %v6585 = vmax.f32 %v6449, %v6457
          %v6586 = vmax.f32 %v6450, %v6458
          %v6587 = vmax.f32 %v6451, %v6459
          %v6716 = vperm.slane %v6460, 0
          %v6717 = vperm.slane %v6461, 0
          %v6718 = vperm.slane %v6462, 0
          %v6719 = vperm.slane %v6463, 0
          %v6720 = vperm.slane %v6464, 0
          %v6721 = vperm.slane %v6465, 0
          %v6722 = vperm.slane %v6466, 0
          %v6723 = vperm.slane %v6467, 0
          %v6724 = vperm.slane %v6468, 0
          %v6725 = vperm.slane %v6469, 0
          %v6726 = vperm.slane %v6470, 0
          %v6727 = vperm.slane %v6471, 0
          %v6728 = vperm.slane %v6472, 0
          %v6729 = vperm.slane %v6473, 0
          %v6730 = vperm.slane %v6474, 0
          %v6731 = vperm.slane %v6475, 0
          %v6732 = vperm.slane %v6476, 0
          %v6733 = vperm.slane %v6477, 0
          %v6734 = vperm.slane %v6478, 0
          %v6735 = vperm.slane %v6479, 0
          %v6736 = vperm.slane %v6480, 0
          %v6737 = vperm.slane %v6481, 0
          %v6738 = vperm.slane %v6482, 0
          %v6739 = vperm.slane %v6483, 0
          %v6740 = vperm.slane %v6484, 0
          %v6741 = vperm.slane %v6485, 0
          %v6742 = vperm.slane %v6486, 0
          %v6743 = vperm.slane %v6487, 0
          %v6744 = vperm.slane %v6488, 0
          %v6745 = vperm.slane %v6489, 0
          %v6746 = vperm.slane %v6490, 0
          %v6747 = vperm.slane %v6491, 0
          %v6748 = vperm.slane %v6492, 0
          %v6749 = vperm.slane %v6493, 0
          %v6750 = vperm.slane %v6494, 0
          %v6751 = vperm.slane %v6495, 0
          %v6752 = vperm.slane %v6496, 0
          %v6753 = vperm.slane %v6497, 0
          %v6754 = vperm.slane %v6498, 0
          %v6755 = vperm.slane %v6499, 0
          %v6756 = vperm.slane %v6500, 0
          %v6757 = vperm.slane %v6501, 0
          %v6758 = vperm.slane %v6502, 0
          %v6759 = vperm.slane %v6503, 0
          %v6760 = vperm.slane %v6504, 0
          %v6761 = vperm.slane %v6505, 0
          %v6762 = vperm.slane %v6506, 0
          %v6763 = vperm.slane %v6507, 0
          %v6764 = vperm.slane %v6508, 0
          %v6765 = vperm.slane %v6509, 0
          %v6766 = vperm.slane %v6510, 0
          %v6767 = vperm.slane %v6511, 0
          %v6768 = vperm.slane %v6512, 0
          %v6769 = vperm.slane %v6513, 0
          %v6770 = vperm.slane %v6514, 0
          %v6771 = vperm.slane %v6515, 0
          %v6772 = vperm.slane %v6516, 0
          %v6773 = vperm.slane %v6517, 0
          %v6774 = vperm.slane %v6518, 0
          %v6775 = vperm.slane %v6519, 0
          %v6776 = vperm.slane %v6520, 0
          %v6777 = vperm.slane %v6521, 0
          %v6778 = vperm.slane %v6522, 0
          %v6779 = vperm.slane %v6523, 0
          %v6780 = vperm.slane %v6524, 0
          %v6781 = vperm.slane %v6525, 0
          %v6782 = vperm.slane %v6526, 0
          %v6783 = vperm.slane %v6527, 0
          %v6784 = vperm.slane %v6528, 0
          %v6785 = vperm.slane %v6529, 0
          %v6786 = vperm.slane %v6530, 0
          %v6787 = vperm.slane %v6531, 0
          %v6788 = vperm.slane %v6532, 0
          %v6789 = vperm.slane %v6533, 0
          %v6790 = vperm.slane %v6534, 0
          %v6791 = vperm.slane %v6535, 0
          %v6792 = vperm.slane %v6536, 0
          %v6793 = vperm.slane %v6537, 0
          %v6794 = vperm.slane %v6538, 0
          %v6795 = vperm.slane %v6539, 0
          %v6796 = vperm.slane %v6540, 0
          %v6797 = vperm.slane %v6541, 0
          %v6798 = vperm.slane %v6542, 0
          %v6799 = vperm.slane %v6543, 0
          %v6800 = vperm.slane %v6544, 0
          %v6801 = vperm.slane %v6545, 0
          %v6802 = vperm.slane %v6546, 0
          %v6803 = vperm.slane %v6547, 0
          %v6804 = vperm.slane %v6548, 0
          %v6805 = vperm.slane %v6549, 0
          %v6806 = vperm.slane %v6550, 0
          %v6807 = vperm.slane %v6551, 0
          %v6808 = vperm.slane %v6552, 0
          %v6809 = vperm.slane %v6553, 0
          %v6810 = vperm.slane %v6554, 0
          %v6811 = vperm.slane %v6555, 0
          %v6812 = vperm.slane %v6556, 0
          %v6813 = vperm.slane %v6557, 0
          %v6814 = vperm.slane %v6558, 0
          %v6815 = vperm.slane %v6559, 0
          %v6816 = vperm.slane %v6560, 0
          %v6817 = vperm.slane %v6561, 0
          %v6818 = vperm.slane %v6562, 0
          %v6819 = vperm.slane %v6563, 0
          %v6820 = vperm.slane %v6564, 0
          %v6821 = vperm.slane %v6565, 0
          %v6822 = vperm.slane %v6566, 0
          %v6823 = vperm.slane %v6567, 0
          %v6824 = vperm.slane %v6568, 0
          %v6825 = vperm.slane %v6569, 0
          %v6826 = vperm.slane %v6570, 0
          %v6827 = vperm.slane %v6571, 0
          %v6828 = vperm.slane %v6572, 0
          %v6829 = vperm.slane %v6573, 0
          %v6830 = vperm.slane %v6574, 0
          %v6831 = vperm.slane %v6575, 0
          %v6832 = vperm.slane %v6576, 0
          %v6833 = vperm.slane %v6577, 0
          %v6834 = vperm.slane %v6578, 0
          %v6835 = vperm.slane %v6579, 0
          %v6836 = vperm.slane %v6580, 0
          %v6837 = vperm.slane %v6581, 0
          %v6838 = vperm.slane %v6582, 0
          %v6839 = vperm.slane %v6583, 0
          %v6840 = vperm.slane %v6584, 0
          %v6841 = vperm.slane %v6585, 0
          %v6842 = vperm.slane %v6586, 0
          %v6843 = vperm.slane %v6587, 0
          %vm6844 = vcmask 1041409
          %v6845 = vsel %vm6844, %v6717, %v6716
          %vm6846 = vcmask 1042434
          %v6847 = vsel %vm6846, %v6718, %v6845
          %vm6848 = vcmask 1043459
          %v6849 = vsel %vm6848, %v6719, %v6847
          %vm6850 = vcmask 1044484
          %v6851 = vsel %vm6850, %v6720, %v6849
          %vm6852 = vcmask 1045509
          %v6853 = vsel %vm6852, %v6721, %v6851
          %vm6854 = vcmask 1046534
          %v6855 = vsel %vm6854, %v6722, %v6853
          %vm6856 = vcmask 1047559
          %v6857 = vsel %vm6856, %v6723, %v6855
          %v6858 = vsel %vm6844, %v6725, %v6724
          %v6859 = vsel %vm6846, %v6726, %v6858
          %v6860 = vsel %vm6848, %v6727, %v6859
          %v6861 = vsel %vm6850, %v6728, %v6860
          %v6862 = vsel %vm6852, %v6729, %v6861
          %v6863 = vsel %vm6854, %v6730, %v6862
          %v6864 = vsel %vm6856, %v6731, %v6863
          %v6865 = vsel %vm6844, %v6733, %v6732
          %v6866 = vsel %vm6846, %v6734, %v6865
          %v6867 = vsel %vm6848, %v6735, %v6866
          %v6868 = vsel %vm6850, %v6736, %v6867
          %v6869 = vsel %vm6852, %v6737, %v6868
          %v6870 = vsel %vm6854, %v6738, %v6869
          %v6871 = vsel %vm6856, %v6739, %v6870
          %v6872 = vsel %vm6844, %v6741, %v6740
          %v6873 = vsel %vm6846, %v6742, %v6872
          %v6874 = vsel %vm6848, %v6743, %v6873
          %v6875 = vsel %vm6850, %v6744, %v6874
          %v6876 = vsel %vm6852, %v6745, %v6875
          %v6877 = vsel %vm6854, %v6746, %v6876
          %v6878 = vsel %vm6856, %v6747, %v6877
          %v6879 = vsel %vm6844, %v6749, %v6748
          %v6880 = vsel %vm6846, %v6750, %v6879
          %v6881 = vsel %vm6848, %v6751, %v6880
          %v6882 = vsel %vm6850, %v6752, %v6881
          %v6883 = vsel %vm6852, %v6753, %v6882
          %v6884 = vsel %vm6854, %v6754, %v6883
          %v6885 = vsel %vm6856, %v6755, %v6884
          %v6886 = vsel %vm6844, %v6757, %v6756
          %v6887 = vsel %vm6846, %v6758, %v6886
          %v6888 = vsel %vm6848, %v6759, %v6887
          %v6889 = vsel %vm6850, %v6760, %v6888
          %v6890 = vsel %vm6852, %v6761, %v6889
          %v6891 = vsel %vm6854, %v6762, %v6890
          %v6892 = vsel %vm6856, %v6763, %v6891
          %v6893 = vsel %vm6844, %v6765, %v6764
          %v6894 = vsel %vm6846, %v6766, %v6893
          %v6895 = vsel %vm6848, %v6767, %v6894
          %v6896 = vsel %vm6850, %v6768, %v6895
          %v6897 = vsel %vm6852, %v6769, %v6896
          %v6898 = vsel %vm6854, %v6770, %v6897
          %v6899 = vsel %vm6856, %v6771, %v6898
          %v6900 = vsel %vm6844, %v6773, %v6772
          %v6901 = vsel %vm6846, %v6774, %v6900
          %v6902 = vsel %vm6848, %v6775, %v6901
          %v6903 = vsel %vm6850, %v6776, %v6902
          %v6904 = vsel %vm6852, %v6777, %v6903
          %v6905 = vsel %vm6854, %v6778, %v6904
          %v6906 = vsel %vm6856, %v6779, %v6905
          %v6907 = vsel %vm6844, %v6781, %v6780
          %v6908 = vsel %vm6846, %v6782, %v6907
          %v6909 = vsel %vm6848, %v6783, %v6908
          %v6910 = vsel %vm6850, %v6784, %v6909
          %v6911 = vsel %vm6852, %v6785, %v6910
          %v6912 = vsel %vm6854, %v6786, %v6911
          %v6913 = vsel %vm6856, %v6787, %v6912
          %v6914 = vsel %vm6844, %v6789, %v6788
          %v6915 = vsel %vm6846, %v6790, %v6914
          %v6916 = vsel %vm6848, %v6791, %v6915
          %v6917 = vsel %vm6850, %v6792, %v6916
          %v6918 = vsel %vm6852, %v6793, %v6917
          %v6919 = vsel %vm6854, %v6794, %v6918
          %v6920 = vsel %vm6856, %v6795, %v6919
          %v6921 = vsel %vm6844, %v6797, %v6796
          %v6922 = vsel %vm6846, %v6798, %v6921
          %v6923 = vsel %vm6848, %v6799, %v6922
          %v6924 = vsel %vm6850, %v6800, %v6923
          %v6925 = vsel %vm6852, %v6801, %v6924
          %v6926 = vsel %vm6854, %v6802, %v6925
          %v6927 = vsel %vm6856, %v6803, %v6926
          %v6928 = vsel %vm6844, %v6805, %v6804
          %v6929 = vsel %vm6846, %v6806, %v6928
          %v6930 = vsel %vm6848, %v6807, %v6929
          %v6931 = vsel %vm6850, %v6808, %v6930
          %v6932 = vsel %vm6852, %v6809, %v6931
          %v6933 = vsel %vm6854, %v6810, %v6932
          %v6934 = vsel %vm6856, %v6811, %v6933
          %v6935 = vsel %vm6844, %v6813, %v6812
          %v6936 = vsel %vm6846, %v6814, %v6935
          %v6937 = vsel %vm6848, %v6815, %v6936
          %v6938 = vsel %vm6850, %v6816, %v6937
          %v6939 = vsel %vm6852, %v6817, %v6938
          %v6940 = vsel %vm6854, %v6818, %v6939
          %v6941 = vsel %vm6856, %v6819, %v6940
          %v6942 = vsel %vm6844, %v6821, %v6820
          %v6943 = vsel %vm6846, %v6822, %v6942
          %v6944 = vsel %vm6848, %v6823, %v6943
          %v6945 = vsel %vm6850, %v6824, %v6944
          %v6946 = vsel %vm6852, %v6825, %v6945
          %v6947 = vsel %vm6854, %v6826, %v6946
          %v6948 = vsel %vm6856, %v6827, %v6947
          %v6949 = vsel %vm6844, %v6829, %v6828
          %v6950 = vsel %vm6846, %v6830, %v6949
          %v6951 = vsel %vm6848, %v6831, %v6950
          %v6952 = vsel %vm6850, %v6832, %v6951
          %v6953 = vsel %vm6852, %v6833, %v6952
          %v6954 = vsel %vm6854, %v6834, %v6953
          %v6955 = vsel %vm6856, %v6835, %v6954
          %v6956 = vsel %vm6844, %v6837, %v6836
          %v6957 = vsel %vm6846, %v6838, %v6956
          %v6958 = vsel %vm6848, %v6839, %v6957
          %v6959 = vsel %vm6850, %v6840, %v6958
          %v6960 = vsel %vm6852, %v6841, %v6959
          %v6961 = vsel %vm6854, %v6842, %v6960
          %v6962 = vsel %vm6856, %v6843, %v6961
          %s6979 = scalar_lea.vmem [#allocation2], 16
          %6980 = vst.msk [vmem:[%s6979 + $0x1] sm:$0xff] %vm366, %v6857
          %6981 = vst.msk [vmem:[%s6979 + $0x11] sm:$0xff] %vm366, %v6864
          %6982 = vst.msk [vmem:[%s6979 + $0x21] sm:$0xff] %vm366, %v6871
          %6983 = vst.msk [vmem:[%s6979 + $0x31] sm:$0xff] %vm366, %v6878
          %6984 = vst.msk [vmem:[%s6979 + $0x41] sm:$0xff] %vm366, %v6885
          %6985 = vst.msk [vmem:[%s6979 + $0x51] sm:$0xff] %vm366, %v6892
          %6986 = vst.msk [vmem:[%s6979 + $0x61] sm:$0xff] %vm366, %v6899
          %6987 = vst.msk [vmem:[%s6979 + $0x71] sm:$0xff] %vm366, %v6906
          %6988 = vst.msk [vmem:[%s6979 + $0xa1] sm:$0xff] %vm366, %v6913
          %6989 = vst.msk [vmem:[%s6979 + $0xb1] sm:$0xff] %vm366, %v6920
          %6990 = vst.msk [vmem:[%s6979 + $0xc1] sm:$0xff] %vm366, %v6927
          %6991 = vst.msk [vmem:[%s6979 + $0xd1] sm:$0xff] %vm366, %v6934
          %6992 = vst.msk [vmem:[%s6979 + $0xe1] sm:$0xff] %vm366, %v6941
          %6993 = vst.msk [vmem:[%s6979 + $0xf1] sm:$0xff] %vm366, %v6948
          %6994 = vst.msk [vmem:[%s6979 + $0x101] sm:$0xff] %vm366, %v6955
          %6995 = vst.msk [vmem:[%s6979 + $0x111] sm:$0xff] %vm366, %v6962
        $region60: #{mini_resnet_forward.1} parent=55 // pred_fallthru
          _
        %s6996 = scalar_lea.vmem [#allocation2], 16
        %v6997 = vld [vmem:[%s6996 + $0x1] sm:$0xff]
        %v6998 = vld [vmem:[%s6996 + $0x11] sm:$0xff]
        %v6999 = vld [vmem:[%s6996 + $0x21] sm:$0xff]
        %v7000 = vld [vmem:[%s6996 + $0x31] sm:$0xff]
        %v7001 = vld [vmem:[%s6996 + $0x41] sm:$0xff]
        %v7002 = vld [vmem:[%s6996 + $0x51] sm:$0xff]
        %v7003 = vld [vmem:[%s6996 + $0x61] sm:$0xff]
        %v7004 = vld [vmem:[%s6996 + $0x71] sm:$0xff]
        %v7005 = vld [vmem:[%s6996 + $0xa1] sm:$0xff]
        %v7006 = vld [vmem:[%s6996 + $0xb1] sm:$0xff]
        %v7007 = vld [vmem:[%s6996 + $0xc1] sm:$0xff]
        %v7008 = vld [vmem:[%s6996 + $0xd1] sm:$0xff]
        %v7009 = vld [vmem:[%s6996 + $0xe1] sm:$0xff]
        %v7010 = vld [vmem:[%s6996 + $0xf1] sm:$0xff]
        %v7011 = vld [vmem:[%s6996 + $0x101] sm:$0xff]
        %v7012 = vld [vmem:[%s6996 + $0x111] sm:$0xff]
        %v7013 = vld [vmem:[%s350] sm:$0xff]
        %v7014 = vld [vmem:[%s350 + $0x8] sm:$0xff]
        %v7015 = vld [vmem:[%s350 + $0x10] sm:$0xff]
        %v7016 = vld [vmem:[%s350 + $0x18] sm:$0xff]
        %v7017 = vld [vmem:[%s350 + $0x20] sm:$0xff]
        %v7018 = vld [vmem:[%s350 + $0x28] sm:$0xff]
        %v7019 = vld [vmem:[%s350 + $0x30] sm:$0xff]
        %v7020 = vld [vmem:[%s350 + $0x38] sm:$0xff]
        %v7021 = vld [vmem:[%s350 + $0x40] sm:$0xff]
        %v7022 = vld [vmem:[%s350 + $0x48] sm:$0xff]
        %v7023 = vld [vmem:[%s350 + $0x50] sm:$0xff]
        %v7024 = vld [vmem:[%s350 + $0x58] sm:$0xff]
        %v7025 = vld [vmem:[%s350 + $0x60] sm:$0xff]
        %v7026 = vld [vmem:[%s350 + $0x68] sm:$0xff]
        %v7027 = vld [vmem:[%s350 + $0x70] sm:$0xff]
        %v7028 = vld [vmem:[%s350 + $0x78] sm:$0xff]
        %v7029 = vld [vmem:[%s350 + $0x80] sm:$0xff]
        %v7030 = vld [vmem:[%s350 + $0x88] sm:$0xff]
        %v7031 = vld [vmem:[%s350 + $0x90] sm:$0xff]
        %v7032 = vld [vmem:[%s350 + $0x98] sm:$0xff]
        %v7033 = vld [vmem:[%s350 + $0xa0] sm:$0xff]
        %v7034 = vld [vmem:[%s350 + $0xa8] sm:$0xff]
        %v7035 = vld [vmem:[%s350 + $0xb0] sm:$0xff]
        %v7036 = vld [vmem:[%s350 + $0xb8] sm:$0xff]
        %v7037 = vld [vmem:[%s350 + $0xc0] sm:$0xff]
        %v7038 = vld [vmem:[%s350 + $0xc8] sm:$0xff]
        %v7039 = vld [vmem:[%s350 + $0xd0] sm:$0xff]
        %v7040 = vld [vmem:[%s350 + $0xd8] sm:$0xff]
        %v7041 = vld [vmem:[%s350 + $0xe0] sm:$0xff]
        %v7042 = vld [vmem:[%s350 + $0xe8] sm:$0xff]
        %v7043 = vld [vmem:[%s350 + $0xf0] sm:$0xff]
        %v7044 = vld [vmem:[%s350 + $0xf8] sm:$0xff]
        %v7045 = vld [vmem:[%s350 + $0x100] sm:$0xff]
        %v7046 = vld [vmem:[%s350 + $0x108] sm:$0xff]
        %v7047 = vld [vmem:[%s350 + $0x110] sm:$0xff]
        %v7048 = vld [vmem:[%s350 + $0x118] sm:$0xff]
        %v7049 = vld [vmem:[%s350 + $0x120] sm:$0xff]
        %v7050 = vld [vmem:[%s350 + $0x128] sm:$0xff]
        %v7051 = vld [vmem:[%s350 + $0x130] sm:$0xff]
        %v7052 = vld [vmem:[%s350 + $0x138] sm:$0xff]
        %v7053 = vld [vmem:[%s350 + $0x140] sm:$0xff]
        %v7054 = vld [vmem:[%s350 + $0x148] sm:$0xff]
        %v7055 = vld [vmem:[%s350 + $0x150] sm:$0xff]
        %v7056 = vld [vmem:[%s350 + $0x158] sm:$0xff]
        %v7057 = vld [vmem:[%s350 + $0x160] sm:$0xff]
        %v7058 = vld [vmem:[%s350 + $0x168] sm:$0xff]
        %v7059 = vld [vmem:[%s350 + $0x170] sm:$0xff]
        %v7060 = vld [vmem:[%s350 + $0x178] sm:$0xff]
        %v7061 = vld [vmem:[%s350 + $0x180] sm:$0xff]
        %v7062 = vld [vmem:[%s350 + $0x188] sm:$0xff]
        %v7063 = vld [vmem:[%s350 + $0x190] sm:$0xff]
        %v7064 = vld [vmem:[%s350 + $0x198] sm:$0xff]
        %v7065 = vld [vmem:[%s350 + $0x1a0] sm:$0xff]
        %v7066 = vld [vmem:[%s350 + $0x1a8] sm:$0xff]
        %v7067 = vld [vmem:[%s350 + $0x1b0] sm:$0xff]
        %v7068 = vld [vmem:[%s350 + $0x1b8] sm:$0xff]
        %v7069 = vld [vmem:[%s350 + $0x1c0] sm:$0xff]
        %v7070 = vld [vmem:[%s350 + $0x1c8] sm:$0xff]
        %v7071 = vld [vmem:[%s350 + $0x1d0] sm:$0xff]
        %v7072 = vld [vmem:[%s350 + $0x1d8] sm:$0xff]
        %v7073 = vld [vmem:[%s350 + $0x1e0] sm:$0xff]
        %v7074 = vld [vmem:[%s350 + $0x1e8] sm:$0xff]
        %v7075 = vld [vmem:[%s350 + $0x1f0] sm:$0xff]
        %v7076 = vld [vmem:[%s350 + $0x1f8] sm:$0xff]
        %v7077 = vld [vmem:[%s350 + $0x200] sm:$0xff]
        %v7078 = vld [vmem:[%s350 + $0x208] sm:$0xff]
        %v7079 = vld [vmem:[%s350 + $0x210] sm:$0xff]
        %v7080 = vld [vmem:[%s350 + $0x218] sm:$0xff]
        %v7081 = vld [vmem:[%s350 + $0x220] sm:$0xff]
        %v7082 = vld [vmem:[%s350 + $0x228] sm:$0xff]
        %v7083 = vld [vmem:[%s350 + $0x230] sm:$0xff]
        %v7084 = vld [vmem:[%s350 + $0x238] sm:$0xff]
        %v7085 = vld [vmem:[#allocation2] sm:$0xff]
        %v7086 = vld [vmem:[#allocation2 + $0x10] sm:$0xff]
        %v7087 = vld [vmem:[#allocation2 + $0x20] sm:$0xff]
        %v7088 = vld [vmem:[#allocation2 + $0x30] sm:$0xff]
        %v7089 = vld [vmem:[#allocation2 + $0x40] sm:$0xff]
        %v7090 = vld [vmem:[#allocation2 + $0x50] sm:$0xff]
        %v7091 = vld [vmem:[#allocation2 + $0x60] sm:$0xff]
        %v7092 = vld [vmem:[#allocation2 + $0x70] sm:$0xff]
        %v7093 = vld [vmem:[#allocation2 + $0xa0] sm:$0xff]
        %v7094 = vld [vmem:[#allocation2 + $0xb0] sm:$0xff]
        %v7095 = vld [vmem:[#allocation2 + $0xc0] sm:$0xff]
        %v7096 = vld [vmem:[#allocation2 + $0xd0] sm:$0xff]
        %v7097 = vld [vmem:[#allocation2 + $0xe0] sm:$0xff]
        %v7098 = vld [vmem:[#allocation2 + $0xf0] sm:$0xff]
        %v7099 = vld [vmem:[#allocation2 + $0x100] sm:$0xff]
        %v7100 = vld [vmem:[#allocation2 + $0x110] sm:$0xff]
        %vm7101 = vcmask 523264
        %7102 = vst.msk [vmem:[#allocation6] sm:$0xff] %vm7101, %v7085
        %7103 = vst.msk [vmem:[#allocation6 + $0x28] sm:$0xff] %vm7101, %v7086
        %7104 = vst.msk [vmem:[#allocation6 + $0x50] sm:$0xff] %vm7101, %v7087
        %7105 = vst.msk [vmem:[#allocation6 + $0x78] sm:$0xff] %vm7101, %v7088
        %7106 = vst.msk [vmem:[#allocation6 + $0xa0] sm:$0xff] %vm7101, %v7089
        %7107 = vst.msk [vmem:[#allocation6 + $0xc8] sm:$0xff] %vm7101, %v7090
        %7108 = vst.msk [vmem:[#allocation6 + $0xf0] sm:$0xff] %vm7101, %v7091
        %7109 = vst.msk [vmem:[#allocation6 + $0x118] sm:$0xff] %vm7101, %v7092
        %7110 = vst.msk [vmem:[#allocation6 + $0x140] sm:$0xff] %vm7101, %v7093
        %7111 = vst.msk [vmem:[#allocation6 + $0x168] sm:$0xff] %vm7101, %v7094
        %7112 = vst.msk [vmem:[#allocation6 + $0x190] sm:$0xff] %vm7101, %v7095
        %7113 = vst.msk [vmem:[#allocation6 + $0x1b8] sm:$0xff] %vm7101, %v7096
        %7114 = vst.msk [vmem:[#allocation6 + $0x1e0] sm:$0xff] %vm7101, %v7097
        %7115 = vst.msk [vmem:[#allocation6 + $0x208] sm:$0xff] %vm7101, %v7098
        %7116 = vst.msk [vmem:[#allocation6 + $0x230] sm:$0xff] %vm7101, %v7099
        %7117 = vst.msk [vmem:[#allocation6 + $0x258] sm:$0xff] %vm7101, %v7100
        %v7118 = vld [vmem:[#allocation2 + $0x1] sm:$0xff]
        %v7119 = vld [vmem:[#allocation2 + $0x11] sm:$0xff]
        %v7120 = vld [vmem:[#allocation2 + $0x21] sm:$0xff]
        %v7121 = vld [vmem:[#allocation2 + $0x31] sm:$0xff]
        %v7122 = vld [vmem:[#allocation2 + $0x41] sm:$0xff]
        %v7123 = vld [vmem:[#allocation2 + $0x51] sm:$0xff]
        %v7124 = vld [vmem:[#allocation2 + $0x61] sm:$0xff]
        %v7125 = vld [vmem:[#allocation2 + $0x71] sm:$0xff]
        %v7126 = vld [vmem:[#allocation2 + $0xa1] sm:$0xff]
        %v7127 = vld [vmem:[#allocation2 + $0xb1] sm:$0xff]
        %v7128 = vld [vmem:[#allocation2 + $0xc1] sm:$0xff]
        %v7129 = vld [vmem:[#allocation2 + $0xd1] sm:$0xff]
        %v7130 = vld [vmem:[#allocation2 + $0xe1] sm:$0xff]
        %v7131 = vld [vmem:[#allocation2 + $0xf1] sm:$0xff]
        %v7132 = vld [vmem:[#allocation2 + $0x101] sm:$0xff]
        %v7133 = vld [vmem:[#allocation2 + $0x111] sm:$0xff]
        %7150 = vrot.lane.b32.xlu0 %v7118, 64
        %v7151 = vpop.permute.xlu0 %7150
        %7152 = vrot.lane.b32.xlu0 %v7119, 64
        %v7153 = vpop.permute.xlu0 %7152
        %7154 = vrot.lane.b32.xlu0 %v7120, 64
        %v7155 = vpop.permute.xlu0 %7154
        %7156 = vrot.lane.b32.xlu0 %v7121, 64
        %v7157 = vpop.permute.xlu0 %7156
        %7158 = vrot.lane.b32.xlu0 %v7122, 64
        %v7159 = vpop.permute.xlu0 %7158
        %7160 = vrot.lane.b32.xlu0 %v7123, 64
        %v7161 = vpop.permute.xlu0 %7160
        %7162 = vrot.lane.b32.xlu0 %v7124, 64
        %v7163 = vpop.permute.xlu0 %7162
        %7164 = vrot.lane.b32.xlu0 %v7125, 64
        %v7165 = vpop.permute.xlu0 %7164
        %7166 = vrot.lane.b32.xlu0 %v7126, 64
        %v7167 = vpop.permute.xlu0 %7166
        %7168 = vrot.lane.b32.xlu0 %v7127, 64
        %v7169 = vpop.permute.xlu0 %7168
        %7170 = vrot.lane.b32.xlu0 %v7128, 64
        %v7171 = vpop.permute.xlu0 %7170
        %7172 = vrot.lane.b32.xlu0 %v7129, 64
        %v7173 = vpop.permute.xlu0 %7172
        %7174 = vrot.lane.b32.xlu0 %v7130, 64
        %v7175 = vpop.permute.xlu0 %7174
        %7176 = vrot.lane.b32.xlu0 %v7131, 64
        %v7177 = vpop.permute.xlu0 %7176
        %7178 = vrot.lane.b32.xlu0 %v7132, 64
        %v7179 = vpop.permute.xlu0 %7178
        %7180 = vrot.lane.b32.xlu0 %v7133, 64
        %v7181 = vpop.permute.xlu0 %7180
        %vm7198 = vcmask 1048064
        %7199 = vst.msk [vmem:[#allocation6] sm:$0xff] %vm7198, %v7151
        %7200 = vst.msk [vmem:[#allocation6 + $0x28] sm:$0xff] %vm7198, %v7153
        %7201 = vst.msk [vmem:[#allocation6 + $0x50] sm:$0xff] %vm7198, %v7155
        %7202 = vst.msk [vmem:[#allocation6 + $0x78] sm:$0xff] %vm7198, %v7157
        %7203 = vst.msk [vmem:[#allocation6 + $0xa0] sm:$0xff] %vm7198, %v7159
        %7204 = vst.msk [vmem:[#allocation6 + $0xc8] sm:$0xff] %vm7198, %v7161
        %7205 = vst.msk [vmem:[#allocation6 + $0xf0] sm:$0xff] %vm7198, %v7163
        %7206 = vst.msk [vmem:[#allocation6 + $0x118] sm:$0xff] %vm7198, %v7165
        %7207 = vst.msk [vmem:[#allocation6 + $0x140] sm:$0xff] %vm7198, %v7167
        %7208 = vst.msk [vmem:[#allocation6 + $0x168] sm:$0xff] %vm7198, %v7169
        %7209 = vst.msk [vmem:[#allocation6 + $0x190] sm:$0xff] %vm7198, %v7171
        %7210 = vst.msk [vmem:[#allocation6 + $0x1b8] sm:$0xff] %vm7198, %v7173
        %7211 = vst.msk [vmem:[#allocation6 + $0x1e0] sm:$0xff] %vm7198, %v7175
        %7212 = vst.msk [vmem:[#allocation6 + $0x208] sm:$0xff] %vm7198, %v7177
        %7213 = vst.msk [vmem:[#allocation6 + $0x230] sm:$0xff] %vm7198, %v7179
        %7214 = vst.msk [vmem:[#allocation6 + $0x258] sm:$0xff] %vm7198, %v7181
        %v7215 = vld [vmem:[#allocation2 + $0x2] sm:$0xff]
        %v7216 = vld [vmem:[#allocation2 + $0x12] sm:$0xff]
        %v7217 = vld [vmem:[#allocation2 + $0x22] sm:$0xff]
        %v7218 = vld [vmem:[#allocation2 + $0x32] sm:$0xff]
        %v7219 = vld [vmem:[#allocation2 + $0x42] sm:$0xff]
        %v7220 = vld [vmem:[#allocation2 + $0x52] sm:$0xff]
        %v7221 = vld [vmem:[#allocation2 + $0x62] sm:$0xff]
        %v7222 = vld [vmem:[#allocation2 + $0x72] sm:$0xff]
        %v7223 = vld [vmem:[#allocation2 + $0xa2] sm:$0xff]
        %v7224 = vld [vmem:[#allocation2 + $0xb2] sm:$0xff]
        %v7225 = vld [vmem:[#allocation2 + $0xc2] sm:$0xff]
        %v7226 = vld [vmem:[#allocation2 + $0xd2] sm:$0xff]
        %v7227 = vld [vmem:[#allocation2 + $0xe2] sm:$0xff]
        %v7228 = vld [vmem:[#allocation2 + $0xf2] sm:$0xff]
        %v7229 = vld [vmem:[#allocation2 + $0x102] sm:$0xff]
        %v7230 = vld [vmem:[#allocation2 + $0x112] sm:$0xff]
        %7231 = vst.msk [vmem:[#allocation6 + $0x8] sm:$0xff] %vm7101, %v7215
        %7232 = vst.msk [vmem:[#allocation6 + $0x30] sm:$0xff] %vm7101, %v7216
        %7233 = vst.msk [vmem:[#allocation6 + $0x58] sm:$0xff] %vm7101, %v7217
        %7234 = vst.msk [vmem:[#allocation6 + $0x80] sm:$0xff] %vm7101, %v7218
        %7235 = vst.msk [vmem:[#allocation6 + $0xa8] sm:$0xff] %vm7101, %v7219
        %7236 = vst.msk [vmem:[#allocation6 + $0xd0] sm:$0xff] %vm7101, %v7220
        %7237 = vst.msk [vmem:[#allocation6 + $0xf8] sm:$0xff] %vm7101, %v7221
        %7238 = vst.msk [vmem:[#allocation6 + $0x120] sm:$0xff] %vm7101, %v7222
        %7239 = vst.msk [vmem:[#allocation6 + $0x148] sm:$0xff] %vm7101, %v7223
        %7240 = vst.msk [vmem:[#allocation6 + $0x170] sm:$0xff] %vm7101, %v7224
        %7241 = vst.msk [vmem:[#allocation6 + $0x198] sm:$0xff] %vm7101, %v7225
        %7242 = vst.msk [vmem:[#allocation6 + $0x1c0] sm:$0xff] %vm7101, %v7226
        %7243 = vst.msk [vmem:[#allocation6 + $0x1e8] sm:$0xff] %vm7101, %v7227
        %7244 = vst.msk [vmem:[#allocation6 + $0x210] sm:$0xff] %vm7101, %v7228
        %7245 = vst.msk [vmem:[#allocation6 + $0x238] sm:$0xff] %vm7101, %v7229
        %7246 = vst.msk [vmem:[#allocation6 + $0x260] sm:$0xff] %vm7101, %v7230
        %v7247 = vld [vmem:[%s6996] sm:$0xff]
        %v7248 = vld [vmem:[%s6996 + $0x10] sm:$0xff]
        %v7249 = vld [vmem:[%s6996 + $0x20] sm:$0xff]
        %v7250 = vld [vmem:[%s6996 + $0x30] sm:$0xff]
        %v7251 = vld [vmem:[%s6996 + $0x40] sm:$0xff]
        %v7252 = vld [vmem:[%s6996 + $0x50] sm:$0xff]
        %v7253 = vld [vmem:[%s6996 + $0x60] sm:$0xff]
        %v7254 = vld [vmem:[%s6996 + $0x70] sm:$0xff]
        %v7255 = vld [vmem:[%s6996 + $0xa0] sm:$0xff]
        %v7256 = vld [vmem:[%s6996 + $0xb0] sm:$0xff]
        %v7257 = vld [vmem:[%s6996 + $0xc0] sm:$0xff]
        %v7258 = vld [vmem:[%s6996 + $0xd0] sm:$0xff]
        %v7259 = vld [vmem:[%s6996 + $0xe0] sm:$0xff]
        %v7260 = vld [vmem:[%s6996 + $0xf0] sm:$0xff]
        %v7261 = vld [vmem:[%s6996 + $0x100] sm:$0xff]
        %v7262 = vld [vmem:[%s6996 + $0x110] sm:$0xff]
        %7279 = vrot.lane.b32.xlu0 %v7247, 64
        %v7280 = vpop.permute.xlu0 %7279
        %7281 = vrot.lane.b32.xlu0 %v7248, 64
        %v7282 = vpop.permute.xlu0 %7281
        %7283 = vrot.lane.b32.xlu0 %v7249, 64
        %v7284 = vpop.permute.xlu0 %7283
        %7285 = vrot.lane.b32.xlu0 %v7250, 64
        %v7286 = vpop.permute.xlu0 %7285
        %7287 = vrot.lane.b32.xlu0 %v7251, 64
        %v7288 = vpop.permute.xlu0 %7287
        %7289 = vrot.lane.b32.xlu0 %v7252, 64
        %v7290 = vpop.permute.xlu0 %7289
        %7291 = vrot.lane.b32.xlu0 %v7253, 64
        %v7292 = vpop.permute.xlu0 %7291
        %7293 = vrot.lane.b32.xlu0 %v7254, 64
        %v7294 = vpop.permute.xlu0 %7293
        %7295 = vrot.lane.b32.xlu0 %v7255, 64
        %v7296 = vpop.permute.xlu0 %7295
        %7297 = vrot.lane.b32.xlu0 %v7256, 64
        %v7298 = vpop.permute.xlu0 %7297
        %7299 = vrot.lane.b32.xlu0 %v7257, 64
        %v7300 = vpop.permute.xlu0 %7299
        %7301 = vrot.lane.b32.xlu0 %v7258, 64
        %v7302 = vpop.permute.xlu0 %7301
        %7303 = vrot.lane.b32.xlu0 %v7259, 64
        %v7304 = vpop.permute.xlu0 %7303
        %7305 = vrot.lane.b32.xlu0 %v7260, 64
        %v7306 = vpop.permute.xlu0 %7305
        %7307 = vrot.lane.b32.xlu0 %v7261, 64
        %v7308 = vpop.permute.xlu0 %7307
        %7309 = vrot.lane.b32.xlu0 %v7262, 64
        %v7310 = vpop.permute.xlu0 %7309
        %7327 = vst.msk [vmem:[#allocation6 + $0x8] sm:$0xff] %vm7198, %v7280
        %7328 = vst.msk [vmem:[#allocation6 + $0x30] sm:$0xff] %vm7198, %v7282
        %7329 = vst.msk [vmem:[#allocation6 + $0x58] sm:$0xff] %vm7198, %v7284
        %7330 = vst.msk [vmem:[#allocation6 + $0x80] sm:$0xff] %vm7198, %v7286
        %7331 = vst.msk [vmem:[#allocation6 + $0xa8] sm:$0xff] %vm7198, %v7288
        %7332 = vst.msk [vmem:[#allocation6 + $0xd0] sm:$0xff] %vm7198, %v7290
        %7333 = vst.msk [vmem:[#allocation6 + $0xf8] sm:$0xff] %vm7198, %v7292
        %7334 = vst.msk [vmem:[#allocation6 + $0x120] sm:$0xff] %vm7198, %v7294
        %7335 = vst.msk [vmem:[#allocation6 + $0x148] sm:$0xff] %vm7198, %v7296
        %7336 = vst.msk [vmem:[#allocation6 + $0x170] sm:$0xff] %vm7198, %v7298
        %7337 = vst.msk [vmem:[#allocation6 + $0x198] sm:$0xff] %vm7198, %v7300
        %7338 = vst.msk [vmem:[#allocation6 + $0x1c0] sm:$0xff] %vm7198, %v7302
        %7339 = vst.msk [vmem:[#allocation6 + $0x1e8] sm:$0xff] %vm7198, %v7304
        %7340 = vst.msk [vmem:[#allocation6 + $0x210] sm:$0xff] %vm7198, %v7306
        %7341 = vst.msk [vmem:[#allocation6 + $0x238] sm:$0xff] %vm7198, %v7308
        %7342 = vst.msk [vmem:[#allocation6 + $0x260] sm:$0xff] %vm7198, %v7310
        %v7343 = vld [vmem:[%s6996 + $0x1] sm:$0xff]
        %v7344 = vld [vmem:[%s6996 + $0x11] sm:$0xff]
        %v7345 = vld [vmem:[%s6996 + $0x21] sm:$0xff]
        %v7346 = vld [vmem:[%s6996 + $0x31] sm:$0xff]
        %v7347 = vld [vmem:[%s6996 + $0x41] sm:$0xff]
        %v7348 = vld [vmem:[%s6996 + $0x51] sm:$0xff]
        %v7349 = vld [vmem:[%s6996 + $0x61] sm:$0xff]
        %v7350 = vld [vmem:[%s6996 + $0x71] sm:$0xff]
        %v7351 = vld [vmem:[%s6996 + $0xa1] sm:$0xff]
        %v7352 = vld [vmem:[%s6996 + $0xb1] sm:$0xff]
        %v7353 = vld [vmem:[%s6996 + $0xc1] sm:$0xff]
        %v7354 = vld [vmem:[%s6996 + $0xd1] sm:$0xff]
        %v7355 = vld [vmem:[%s6996 + $0xe1] sm:$0xff]
        %v7356 = vld [vmem:[%s6996 + $0xf1] sm:$0xff]
        %v7357 = vld [vmem:[%s6996 + $0x101] sm:$0xff]
        %v7358 = vld [vmem:[%s6996 + $0x111] sm:$0xff]
        %7359 = vst.msk [vmem:[#allocation6 + $0x10] sm:$0xff] %vm7101, %v7343
        %7360 = vst.msk [vmem:[#allocation6 + $0x38] sm:$0xff] %vm7101, %v7344
        %7361 = vst.msk [vmem:[#allocation6 + $0x60] sm:$0xff] %vm7101, %v7345
        %7362 = vst.msk [vmem:[#allocation6 + $0x88] sm:$0xff] %vm7101, %v7346
        %7363 = vst.msk [vmem:[#allocation6 + $0xb0] sm:$0xff] %vm7101, %v7347
        %7364 = vst.msk [vmem:[#allocation6 + $0xd8] sm:$0xff] %vm7101, %v7348
        %7365 = vst.msk [vmem:[#allocation6 + $0x100] sm:$0xff] %vm7101, %v7349
        %7366 = vst.msk [vmem:[#allocation6 + $0x128] sm:$0xff] %vm7101, %v7350
        %7367 = vst.msk [vmem:[#allocation6 + $0x150] sm:$0xff] %vm7101, %v7351
        %7368 = vst.msk [vmem:[#allocation6 + $0x178] sm:$0xff] %vm7101, %v7352
        %7369 = vst.msk [vmem:[#allocation6 + $0x1a0] sm:$0xff] %vm7101, %v7353
        %7370 = vst.msk [vmem:[#allocation6 + $0x1c8] sm:$0xff] %vm7101, %v7354
        %7371 = vst.msk [vmem:[#allocation6 + $0x1f0] sm:$0xff] %vm7101, %v7355
        %7372 = vst.msk [vmem:[#allocation6 + $0x218] sm:$0xff] %vm7101, %v7356
        %7373 = vst.msk [vmem:[#allocation6 + $0x240] sm:$0xff] %vm7101, %v7357
        %7374 = vst.msk [vmem:[#allocation6 + $0x268] sm:$0xff] %vm7101, %v7358
        %v7375 = vld [vmem:[%s6996 + $0x2] sm:$0xff]
        %v7376 = vld [vmem:[%s6996 + $0x12] sm:$0xff]
        %v7377 = vld [vmem:[%s6996 + $0x22] sm:$0xff]
        %v7378 = vld [vmem:[%s6996 + $0x32] sm:$0xff]
        %v7379 = vld [vmem:[%s6996 + $0x42] sm:$0xff]
        %v7380 = vld [vmem:[%s6996 + $0x52] sm:$0xff]
        %v7381 = vld [vmem:[%s6996 + $0x62] sm:$0xff]
        %v7382 = vld [vmem:[%s6996 + $0x72] sm:$0xff]
        %v7383 = vld [vmem:[%s6996 + $0xa2] sm:$0xff]
        %v7384 = vld [vmem:[%s6996 + $0xb2] sm:$0xff]
        %v7385 = vld [vmem:[%s6996 + $0xc2] sm:$0xff]
        %v7386 = vld [vmem:[%s6996 + $0xd2] sm:$0xff]
        %v7387 = vld [vmem:[%s6996 + $0xe2] sm:$0xff]
        %v7388 = vld [vmem:[%s6996 + $0xf2] sm:$0xff]
        %v7389 = vld [vmem:[%s6996 + $0x102] sm:$0xff]
        %v7390 = vld [vmem:[%s6996 + $0x112] sm:$0xff]
        %7407 = vrot.lane.b32.xlu0 %v7375, 64
        %v7408 = vpop.permute.xlu0 %7407
        %7409 = vrot.lane.b32.xlu0 %v7376, 64
        %v7410 = vpop.permute.xlu0 %7409
        %7411 = vrot.lane.b32.xlu0 %v7377, 64
        %v7412 = vpop.permute.xlu0 %7411
        %7413 = vrot.lane.b32.xlu0 %v7378, 64
        %v7414 = vpop.permute.xlu0 %7413
        %7415 = vrot.lane.b32.xlu0 %v7379, 64
        %v7416 = vpop.permute.xlu0 %7415
        %7417 = vrot.lane.b32.xlu0 %v7380, 64
        %v7418 = vpop.permute.xlu0 %7417
        %7419 = vrot.lane.b32.xlu0 %v7381, 64
        %v7420 = vpop.permute.xlu0 %7419
        %7421 = vrot.lane.b32.xlu0 %v7382, 64
        %v7422 = vpop.permute.xlu0 %7421
        %7423 = vrot.lane.b32.xlu0 %v7383, 64
        %v7424 = vpop.permute.xlu0 %7423
        %7425 = vrot.lane.b32.xlu0 %v7384, 64
        %v7426 = vpop.permute.xlu0 %7425
        %7427 = vrot.lane.b32.xlu0 %v7385, 64
        %v7428 = vpop.permute.xlu0 %7427
        %7429 = vrot.lane.b32.xlu0 %v7386, 64
        %v7430 = vpop.permute.xlu0 %7429
        %7431 = vrot.lane.b32.xlu0 %v7387, 64
        %v7432 = vpop.permute.xlu0 %7431
        %7433 = vrot.lane.b32.xlu0 %v7388, 64
        %v7434 = vpop.permute.xlu0 %7433
        %7435 = vrot.lane.b32.xlu0 %v7389, 64
        %v7436 = vpop.permute.xlu0 %7435
        %7437 = vrot.lane.b32.xlu0 %v7390, 64
        %v7438 = vpop.permute.xlu0 %7437
        %7455 = vst.msk [vmem:[#allocation6 + $0x10] sm:$0xff] %vm7198, %v7408
        %7456 = vst.msk [vmem:[#allocation6 + $0x38] sm:$0xff] %vm7198, %v7410
        %7457 = vst.msk [vmem:[#allocation6 + $0x60] sm:$0xff] %vm7198, %v7412
        %7458 = vst.msk [vmem:[#allocation6 + $0x88] sm:$0xff] %vm7198, %v7414
        %7459 = vst.msk [vmem:[#allocation6 + $0xb0] sm:$0xff] %vm7198, %v7416
        %7460 = vst.msk [vmem:[#allocation6 + $0xd8] sm:$0xff] %vm7198, %v7418
        %7461 = vst.msk [vmem:[#allocation6 + $0x100] sm:$0xff] %vm7198, %v7420
        %7462 = vst.msk [vmem:[#allocation6 + $0x128] sm:$0xff] %vm7198, %v7422
        %7463 = vst.msk [vmem:[#allocation6 + $0x150] sm:$0xff] %vm7198, %v7424
        %7464 = vst.msk [vmem:[#allocation6 + $0x178] sm:$0xff] %vm7198, %v7426
        %7465 = vst.msk [vmem:[#allocation6 + $0x1a0] sm:$0xff] %vm7198, %v7428
        %7466 = vst.msk [vmem:[#allocation6 + $0x1c8] sm:$0xff] %vm7198, %v7430
        %7467 = vst.msk [vmem:[#allocation6 + $0x1f0] sm:$0xff] %vm7198, %v7432
        %7468 = vst.msk [vmem:[#allocation6 + $0x218] sm:$0xff] %vm7198, %v7434
        %7469 = vst.msk [vmem:[#allocation6 + $0x240] sm:$0xff] %vm7198, %v7436
        %7470 = vst.msk [vmem:[#allocation6 + $0x268] sm:$0xff] %vm7198, %v7438
        %s7471 = scalar_lea.vmem [#allocation2], 32
        %v7472 = vld [vmem:[%s7471] sm:$0xff]
        %v7473 = vld [vmem:[%s7471 + $0x10] sm:$0xff]
        %v7474 = vld [vmem:[%s7471 + $0x20] sm:$0xff]
        %v7475 = vld [vmem:[%s7471 + $0x30] sm:$0xff]
        %v7476 = vld [vmem:[%s7471 + $0x40] sm:$0xff]
        %v7477 = vld [vmem:[%s7471 + $0x50] sm:$0xff]
        %v7478 = vld [vmem:[%s7471 + $0x60] sm:$0xff]
        %v7479 = vld [vmem:[%s7471 + $0x70] sm:$0xff]
        %v7480 = vld [vmem:[%s7471 + $0xa0] sm:$0xff]
        %v7481 = vld [vmem:[%s7471 + $0xb0] sm:$0xff]
        %v7482 = vld [vmem:[%s7471 + $0xc0] sm:$0xff]
        %v7483 = vld [vmem:[%s7471 + $0xd0] sm:$0xff]
        %v7484 = vld [vmem:[%s7471 + $0xe0] sm:$0xff]
        %v7485 = vld [vmem:[%s7471 + $0xf0] sm:$0xff]
        %v7486 = vld [vmem:[%s7471 + $0x100] sm:$0xff]
        %v7487 = vld [vmem:[%s7471 + $0x110] sm:$0xff]
        %7488 = vst.msk [vmem:[#allocation6 + $0x18] sm:$0xff] %vm7101, %v7472
        %7489 = vst.msk [vmem:[#allocation6 + $0x40] sm:$0xff] %vm7101, %v7473
        %7490 = vst.msk [vmem:[#allocation6 + $0x68] sm:$0xff] %vm7101, %v7474
        %7491 = vst.msk [vmem:[#allocation6 + $0x90] sm:$0xff] %vm7101, %v7475
        %7492 = vst.msk [vmem:[#allocation6 + $0xb8] sm:$0xff] %vm7101, %v7476
        %7493 = vst.msk [vmem:[#allocation6 + $0xe0] sm:$0xff] %vm7101, %v7477
        %7494 = vst.msk [vmem:[#allocation6 + $0x108] sm:$0xff] %vm7101, %v7478
        %7495 = vst.msk [vmem:[#allocation6 + $0x130] sm:$0xff] %vm7101, %v7479
        %7496 = vst.msk [vmem:[#allocation6 + $0x158] sm:$0xff] %vm7101, %v7480
        %7497 = vst.msk [vmem:[#allocation6 + $0x180] sm:$0xff] %vm7101, %v7481
        %7498 = vst.msk [vmem:[#allocation6 + $0x1a8] sm:$0xff] %vm7101, %v7482
        %7499 = vst.msk [vmem:[#allocation6 + $0x1d0] sm:$0xff] %vm7101, %v7483
        %7500 = vst.msk [vmem:[#allocation6 + $0x1f8] sm:$0xff] %vm7101, %v7484
        %7501 = vst.msk [vmem:[#allocation6 + $0x220] sm:$0xff] %vm7101, %v7485
        %7502 = vst.msk [vmem:[#allocation6 + $0x248] sm:$0xff] %vm7101, %v7486
        %7503 = vst.msk [vmem:[#allocation6 + $0x270] sm:$0xff] %vm7101, %v7487
        %v7504 = vld [vmem:[%s7471 + $0x1] sm:$0xff]
        %v7505 = vld [vmem:[%s7471 + $0x11] sm:$0xff]
        %v7506 = vld [vmem:[%s7471 + $0x21] sm:$0xff]
        %v7507 = vld [vmem:[%s7471 + $0x31] sm:$0xff]
        %v7508 = vld [vmem:[%s7471 + $0x41] sm:$0xff]
        %v7509 = vld [vmem:[%s7471 + $0x51] sm:$0xff]
        %v7510 = vld [vmem:[%s7471 + $0x61] sm:$0xff]
        %v7511 = vld [vmem:[%s7471 + $0x71] sm:$0xff]
        %v7512 = vld [vmem:[%s7471 + $0xa1] sm:$0xff]
        %v7513 = vld [vmem:[%s7471 + $0xb1] sm:$0xff]
        %v7514 = vld [vmem:[%s7471 + $0xc1] sm:$0xff]
        %v7515 = vld [vmem:[%s7471 + $0xd1] sm:$0xff]
        %v7516 = vld [vmem:[%s7471 + $0xe1] sm:$0xff]
        %v7517 = vld [vmem:[%s7471 + $0xf1] sm:$0xff]
        %v7518 = vld [vmem:[%s7471 + $0x101] sm:$0xff]
        %v7519 = vld [vmem:[%s7471 + $0x111] sm:$0xff]
        %7536 = vrot.lane.b32.xlu0 %v7504, 64
        %v7537 = vpop.permute.xlu0 %7536
        %7538 = vrot.lane.b32.xlu0 %v7505, 64
        %v7539 = vpop.permute.xlu0 %7538
        %7540 = vrot.lane.b32.xlu0 %v7506, 64
        %v7541 = vpop.permute.xlu0 %7540
        %7542 = vrot.lane.b32.xlu0 %v7507, 64
        %v7543 = vpop.permute.xlu0 %7542
        %7544 = vrot.lane.b32.xlu0 %v7508, 64
        %v7545 = vpop.permute.xlu0 %7544
        %7546 = vrot.lane.b32.xlu0 %v7509, 64
        %v7547 = vpop.permute.xlu0 %7546
        %7548 = vrot.lane.b32.xlu0 %v7510, 64
        %v7549 = vpop.permute.xlu0 %7548
        %7550 = vrot.lane.b32.xlu0 %v7511, 64
        %v7551 = vpop.permute.xlu0 %7550
        %7552 = vrot.lane.b32.xlu0 %v7512, 64
        %v7553 = vpop.permute.xlu0 %7552
        %7554 = vrot.lane.b32.xlu0 %v7513, 64
        %v7555 = vpop.permute.xlu0 %7554
        %7556 = vrot.lane.b32.xlu0 %v7514, 64
        %v7557 = vpop.permute.xlu0 %7556
        %7558 = vrot.lane.b32.xlu0 %v7515, 64
        %v7559 = vpop.permute.xlu0 %7558
        %7560 = vrot.lane.b32.xlu0 %v7516, 64
        %v7561 = vpop.permute.xlu0 %7560
        %7562 = vrot.lane.b32.xlu0 %v7517, 64
        %v7563 = vpop.permute.xlu0 %7562
        %7564 = vrot.lane.b32.xlu0 %v7518, 64
        %v7565 = vpop.permute.xlu0 %7564
        %7566 = vrot.lane.b32.xlu0 %v7519, 64
        %v7567 = vpop.permute.xlu0 %7566
        %7584 = vst.msk [vmem:[#allocation6 + $0x18] sm:$0xff] %vm7198, %v7537
        %7585 = vst.msk [vmem:[#allocation6 + $0x40] sm:$0xff] %vm7198, %v7539
        %7586 = vst.msk [vmem:[#allocation6 + $0x68] sm:$0xff] %vm7198, %v7541
        %7587 = vst.msk [vmem:[#allocation6 + $0x90] sm:$0xff] %vm7198, %v7543
        %7588 = vst.msk [vmem:[#allocation6 + $0xb8] sm:$0xff] %vm7198, %v7545
        %7589 = vst.msk [vmem:[#allocation6 + $0xe0] sm:$0xff] %vm7198, %v7547
        %7590 = vst.msk [vmem:[#allocation6 + $0x108] sm:$0xff] %vm7198, %v7549
        %7591 = vst.msk [vmem:[#allocation6 + $0x130] sm:$0xff] %vm7198, %v7551
        %7592 = vst.msk [vmem:[#allocation6 + $0x158] sm:$0xff] %vm7198, %v7553
        %7593 = vst.msk [vmem:[#allocation6 + $0x180] sm:$0xff] %vm7198, %v7555
        %7594 = vst.msk [vmem:[#allocation6 + $0x1a8] sm:$0xff] %vm7198, %v7557
        %7595 = vst.msk [vmem:[#allocation6 + $0x1d0] sm:$0xff] %vm7198, %v7559
        %7596 = vst.msk [vmem:[#allocation6 + $0x1f8] sm:$0xff] %vm7198, %v7561
        %7597 = vst.msk [vmem:[#allocation6 + $0x220] sm:$0xff] %vm7198, %v7563
        %7598 = vst.msk [vmem:[#allocation6 + $0x248] sm:$0xff] %vm7198, %v7565
        %7599 = vst.msk [vmem:[#allocation6 + $0x270] sm:$0xff] %vm7198, %v7567
        %v7600 = vld [vmem:[%s7471 + $0x2] sm:$0xff]
        %v7601 = vld [vmem:[%s7471 + $0x12] sm:$0xff]
        %v7602 = vld [vmem:[%s7471 + $0x22] sm:$0xff]
        %v7603 = vld [vmem:[%s7471 + $0x32] sm:$0xff]
        %v7604 = vld [vmem:[%s7471 + $0x42] sm:$0xff]
        %v7605 = vld [vmem:[%s7471 + $0x52] sm:$0xff]
        %v7606 = vld [vmem:[%s7471 + $0x62] sm:$0xff]
        %v7607 = vld [vmem:[%s7471 + $0x72] sm:$0xff]
        %v7608 = vld [vmem:[%s7471 + $0xa2] sm:$0xff]
        %v7609 = vld [vmem:[%s7471 + $0xb2] sm:$0xff]
        %v7610 = vld [vmem:[%s7471 + $0xc2] sm:$0xff]
        %v7611 = vld [vmem:[%s7471 + $0xd2] sm:$0xff]
        %v7612 = vld [vmem:[%s7471 + $0xe2] sm:$0xff]
        %v7613 = vld [vmem:[%s7471 + $0xf2] sm:$0xff]
        %v7614 = vld [vmem:[%s7471 + $0x102] sm:$0xff]
        %v7615 = vld [vmem:[%s7471 + $0x112] sm:$0xff]
        %7616 = vst.msk [vmem:[#allocation6 + $0x20] sm:$0xff] %vm7101, %v7600
        %7617 = vst.msk [vmem:[#allocation6 + $0x48] sm:$0xff] %vm7101, %v7601
        %7618 = vst.msk [vmem:[#allocation6 + $0x70] sm:$0xff] %vm7101, %v7602
        %7619 = vst.msk [vmem:[#allocation6 + $0x98] sm:$0xff] %vm7101, %v7603
        %7620 = vst.msk [vmem:[#allocation6 + $0xc0] sm:$0xff] %vm7101, %v7604
        %7621 = vst.msk [vmem:[#allocation6 + $0xe8] sm:$0xff] %vm7101, %v7605
        %7622 = vst.msk [vmem:[#allocation6 + $0x110] sm:$0xff] %vm7101, %v7606
        %7623 = vst.msk [vmem:[#allocation6 + $0x138] sm:$0xff] %vm7101, %v7607
        %7624 = vst.msk [vmem:[#allocation6 + $0x160] sm:$0xff] %vm7101, %v7608
        %7625 = vst.msk [vmem:[#allocation6 + $0x188] sm:$0xff] %vm7101, %v7609
        %7626 = vst.msk [vmem:[#allocation6 + $0x1b0] sm:$0xff] %vm7101, %v7610
        %7627 = vst.msk [vmem:[#allocation6 + $0x1d8] sm:$0xff] %vm7101, %v7611
        %7628 = vst.msk [vmem:[#allocation6 + $0x200] sm:$0xff] %vm7101, %v7612
        %7629 = vst.msk [vmem:[#allocation6 + $0x228] sm:$0xff] %vm7101, %v7613
        %7630 = vst.msk [vmem:[#allocation6 + $0x250] sm:$0xff] %vm7101, %v7614
        %7631 = vst.msk [vmem:[#allocation6 + $0x278] sm:$0xff] %vm7101, %v7615
        %v7632 = vld [vmem:[#allocation6] sm:$0xff]
        %v7633 = vld [vmem:[#allocation6 + $0x8] sm:$0xff]
        %v7634 = vld [vmem:[#allocation6 + $0x10] sm:$0xff]
        %v7635 = vld [vmem:[#allocation6 + $0x18] sm:$0xff]
        %v7636 = vld [vmem:[#allocation6 + $0x20] sm:$0xff]
        %v7637 = vld [vmem:[#allocation6 + $0x28] sm:$0xff]
        %v7638 = vld [vmem:[#allocation6 + $0x30] sm:$0xff]
        %v7639 = vld [vmem:[#allocation6 + $0x38] sm:$0xff]
        %v7640 = vld [vmem:[#allocation6 + $0x40] sm:$0xff]
        %v7641 = vld [vmem:[#allocation6 + $0x48] sm:$0xff]
        %v7642 = vld [vmem:[#allocation6 + $0x50] sm:$0xff]
        %v7643 = vld [vmem:[#allocation6 + $0x58] sm:$0xff]
        %v7644 = vld [vmem:[#allocation6 + $0x60] sm:$0xff]
        %v7645 = vld [vmem:[#allocation6 + $0x68] sm:$0xff]
        %v7646 = vld [vmem:[#allocation6 + $0x70] sm:$0xff]
        %v7647 = vld [vmem:[#allocation6 + $0x78] sm:$0xff]
        %v7648 = vld [vmem:[#allocation6 + $0x80] sm:$0xff]
        %v7649 = vld [vmem:[#allocation6 + $0x88] sm:$0xff]
        %v7650 = vld [vmem:[#allocation6 + $0x90] sm:$0xff]
        %v7651 = vld [vmem:[#allocation6 + $0x98] sm:$0xff]
        %v7652 = vld [vmem:[#allocation6 + $0xa0] sm:$0xff]
        %v7653 = vld [vmem:[#allocation6 + $0xa8] sm:$0xff]
        %v7654 = vld [vmem:[#allocation6 + $0xb0] sm:$0xff]
        %v7655 = vld [vmem:[#allocation6 + $0xb8] sm:$0xff]
        %v7656 = vld [vmem:[#allocation6 + $0xc0] sm:$0xff]
        %v7657 = vld [vmem:[#allocation6 + $0xc8] sm:$0xff]
        %v7658 = vld [vmem:[#allocation6 + $0xd0] sm:$0xff]
        %v7659 = vld [vmem:[#allocation6 + $0xd8] sm:$0xff]
        %v7660 = vld [vmem:[#allocation6 + $0xe0] sm:$0xff]
        %v7661 = vld [vmem:[#allocation6 + $0xe8] sm:$0xff]
        %v7662 = vld [vmem:[#allocation6 + $0xf0] sm:$0xff]
        %v7663 = vld [vmem:[#allocation6 + $0xf8] sm:$0xff]
        %v7664 = vld [vmem:[#allocation6 + $0x100] sm:$0xff]
        %v7665 = vld [vmem:[#allocation6 + $0x108] sm:$0xff]
        %v7666 = vld [vmem:[#allocation6 + $0x110] sm:$0xff]
        %v7667 = vld [vmem:[#allocation6 + $0x118] sm:$0xff]
        %v7668 = vld [vmem:[#allocation6 + $0x120] sm:$0xff]
        %v7669 = vld [vmem:[#allocation6 + $0x128] sm:$0xff]
        %v7670 = vld [vmem:[#allocation6 + $0x130] sm:$0xff]
        %v7671 = vld [vmem:[#allocation6 + $0x138] sm:$0xff]
        %v7672 = vld [vmem:[#allocation6 + $0x140] sm:$0xff]
        %v7673 = vld [vmem:[#allocation6 + $0x148] sm:$0xff]
        %v7674 = vld [vmem:[#allocation6 + $0x150] sm:$0xff]
        %v7675 = vld [vmem:[#allocation6 + $0x158] sm:$0xff]
        %v7676 = vld [vmem:[#allocation6 + $0x160] sm:$0xff]
        %v7677 = vld [vmem:[#allocation6 + $0x168] sm:$0xff]
        %v7678 = vld [vmem:[#allocation6 + $0x170] sm:$0xff]
        %v7679 = vld [vmem:[#allocation6 + $0x178] sm:$0xff]
        %v7680 = vld [vmem:[#allocation6 + $0x180] sm:$0xff]
        %v7681 = vld [vmem:[#allocation6 + $0x188] sm:$0xff]
        %v7682 = vld [vmem:[#allocation6 + $0x190] sm:$0xff]
        %v7683 = vld [vmem:[#allocation6 + $0x198] sm:$0xff]
        %v7684 = vld [vmem:[#allocation6 + $0x1a0] sm:$0xff]
        %v7685 = vld [vmem:[#allocation6 + $0x1a8] sm:$0xff]
        %v7686 = vld [vmem:[#allocation6 + $0x1b0] sm:$0xff]
        %v7687 = vld [vmem:[#allocation6 + $0x1b8] sm:$0xff]
        %v7688 = vld [vmem:[#allocation6 + $0x1c0] sm:$0xff]
        %v7689 = vld [vmem:[#allocation6 + $0x1c8] sm:$0xff]
        %v7690 = vld [vmem:[#allocation6 + $0x1d0] sm:$0xff]
        %v7691 = vld [vmem:[#allocation6 + $0x1d8] sm:$0xff]
        %v7692 = vld [vmem:[#allocation6 + $0x1e0] sm:$0xff]
        %v7693 = vld [vmem:[#allocation6 + $0x1e8] sm:$0xff]
        %v7694 = vld [vmem:[#allocation6 + $0x1f0] sm:$0xff]
        %v7695 = vld [vmem:[#allocation6 + $0x1f8] sm:$0xff]
        %v7696 = vld [vmem:[#allocation6 + $0x200] sm:$0xff]
        %v7697 = vld [vmem:[#allocation6 + $0x208] sm:$0xff]
        %v7698 = vld [vmem:[#allocation6 + $0x210] sm:$0xff]
        %v7699 = vld [vmem:[#allocation6 + $0x218] sm:$0xff]
        %v7700 = vld [vmem:[#allocation6 + $0x220] sm:$0xff]
        %v7701 = vld [vmem:[#allocation6 + $0x228] sm:$0xff]
        %v7702 = vld [vmem:[#allocation6 + $0x230] sm:$0xff]
        %v7703 = vld [vmem:[#allocation6 + $0x238] sm:$0xff]
        %v7704 = vld [vmem:[#allocation6 + $0x240] sm:$0xff]
        %v7705 = vld [vmem:[#allocation6 + $0x248] sm:$0xff]
        %v7706 = vld [vmem:[#allocation6 + $0x250] sm:$0xff]
        %v7707 = vld [vmem:[#allocation6 + $0x258] sm:$0xff]
        %v7708 = vld [vmem:[#allocation6 + $0x260] sm:$0xff]
        %v7709 = vld [vmem:[#allocation6 + $0x268] sm:$0xff]
        %v7710 = vld [vmem:[#allocation6 + $0x270] sm:$0xff]
        %v7711 = vld [vmem:[#allocation6 + $0x278] sm:$0xff]
        %v7713 = vsel %vm7101, %v7636, 0
        %v7716 = vsel %vm7101, %v7641, 0
        %v7719 = vsel %vm7101, %v7646, 0
        %v7722 = vsel %vm7101, %v7651, 0
        %v7725 = vsel %vm7101, %v7656, 0
        %v7728 = vsel %vm7101, %v7661, 0
        %v7731 = vsel %vm7101, %v7666, 0
        %v7734 = vsel %vm7101, %v7671, 0
        %v7737 = vsel %vm7101, %v7676, 0
        %v7740 = vsel %vm7101, %v7681, 0
        %v7743 = vsel %vm7101, %v7686, 0
        %v7746 = vsel %vm7101, %v7691, 0
        %v7749 = vsel %vm7101, %v7696, 0
        %v7752 = vsel %vm7101, %v7701, 0
        %v7755 = vsel %vm7101, %v7706, 0
        %v7758 = vsel %vm7101, %v7711, 0
        %7760 = vmatpush.msra.mxu0 %v7028
        %7761 = vmatpush.msra.mxu0 %v7027
        %7762 = vmatpush.msra.mxu0 %v7026
        %7763 = vmatpush.msra.mxu0 %v7025
        %7764 = vmatpush.msra.mxu0 %v7024
        %7765 = vmatpush.msra.mxu0 %v7023
        %7766 = vmatpush.msra.mxu0 %v7022
        %7767 = vmatpush.msra.mxu0 %v7021
        %7768 = vmatpush.msra.mxu0 %v7020
        %7769 = vmatpush.msra.mxu0 %v7019
        %7770 = vmatpush.msra.mxu0 %v7018
        %7771 = vmatpush.msra.mxu0 %v7017
        %7772 = vmatpush.msra.mxu0 %v7016
        %7773 = vmatpush.msra.mxu0 %v7015
        %7774 = vmatpush.msra.mxu0 %v7014
        %7775 = vmatpush.msra.mxu0 %v7013
        %7776 = vmatmul.f32.gmra.mxu0 %v7632
        %v7777 = vpop.f32.mrf.mxu0
        %v7778 = vadd.f32 0.0, %v7777
        %7779 = vmatmul.f32.gmra.mxu0 %v7637
        %v7780 = vpop.f32.mrf.mxu0
        %v7781 = vadd.f32 0.0, %v7780
        %7782 = vmatmul.f32.gmra.mxu0 %v7642
        %v7783 = vpop.f32.mrf.mxu0
        %v7784 = vadd.f32 0.0, %v7783
        %7785 = vmatmul.f32.gmra.mxu0 %v7647
        %v7786 = vpop.f32.mrf.mxu0
        %v7787 = vadd.f32 0.0, %v7786
        %7788 = vmatmul.f32.gmra.mxu0 %v7652
        %v7789 = vpop.f32.mrf.mxu0
        %v7790 = vadd.f32 0.0, %v7789
        %7791 = vmatmul.f32.gmra.mxu0 %v7657
        %v7792 = vpop.f32.mrf.mxu0
        %v7793 = vadd.f32 0.0, %v7792
        %7794 = vmatmul.f32.gmra.mxu0 %v7662
        %v7795 = vpop.f32.mrf.mxu0
        %v7796 = vadd.f32 0.0, %v7795
        %7797 = vmatmul.f32.gmra.mxu0 %v7667
        %v7798 = vpop.f32.mrf.mxu0
        %v7799 = vadd.f32 0.0, %v7798
        %7800 = vmatmul.f32.gmra.mxu0 %v7672
        %v7801 = vpop.f32.mrf.mxu0
        %v7802 = vadd.f32 0.0, %v7801
        %7803 = vmatmul.f32.gmra.mxu0 %v7677
        %v7804 = vpop.f32.mrf.mxu0
        %v7805 = vadd.f32 0.0, %v7804
        %7806 = vmatmul.f32.gmra.mxu0 %v7682
        %v7807 = vpop.f32.mrf.mxu0
        %v7808 = vadd.f32 0.0, %v7807
        %7809 = vmatmul.f32.gmra.mxu0 %v7687
        %v7810 = vpop.f32.mrf.mxu0
        %v7811 = vadd.f32 0.0, %v7810
        %7812 = vmatmul.f32.gmra.mxu0 %v7692
        %v7813 = vpop.f32.mrf.mxu0
        %v7814 = vadd.f32 0.0, %v7813
        %7815 = vmatmul.f32.gmra.mxu0 %v7697
        %v7816 = vpop.f32.mrf.mxu0
        %v7817 = vadd.f32 0.0, %v7816
        %7818 = vmatmul.f32.gmra.mxu0 %v7702
        %v7819 = vpop.f32.mrf.mxu0
        %v7820 = vadd.f32 0.0, %v7819
        %7821 = vmatmul.f32.gmra.mxu0 %v7707
        %v7822 = vpop.f32.mrf.mxu0
        %v7823 = vadd.f32 0.0, %v7822
        %7824 = vdwg.mxu0
        %7825 = vmatpush.msra.mxu0 %v7044
        %7826 = vmatpush.msra.mxu0 %v7043
        %7827 = vmatpush.msra.mxu0 %v7042
        %7828 = vmatpush.msra.mxu0 %v7041
        %7829 = vmatpush.msra.mxu0 %v7040
        %7830 = vmatpush.msra.mxu0 %v7039
        %7831 = vmatpush.msra.mxu0 %v7038
        %7832 = vmatpush.msra.mxu0 %v7037
        %7833 = vmatpush.msra.mxu0 %v7036
        %7834 = vmatpush.msra.mxu0 %v7035
        %7835 = vmatpush.msra.mxu0 %v7034
        %7836 = vmatpush.msra.mxu0 %v7033
        %7837 = vmatpush.msra.mxu0 %v7032
        %7838 = vmatpush.msra.mxu0 %v7031
        %7839 = vmatpush.msra.mxu0 %v7030
        %7840 = vmatpush.msra.mxu0 %v7029
        %7841 = vmatmul.f32.gmra.mxu0 %v7633
        %v7842 = vpop.f32.mrf.mxu0
        %v7843 = vadd.f32 %v7778, %v7842
        %7844 = vmatmul.f32.gmra.mxu0 %v7638
        %v7845 = vpop.f32.mrf.mxu0
        %v7846 = vadd.f32 %v7781, %v7845
        %7847 = vmatmul.f32.gmra.mxu0 %v7643
        %v7848 = vpop.f32.mrf.mxu0
        %v7849 = vadd.f32 %v7784, %v7848
        %7850 = vmatmul.f32.gmra.mxu0 %v7648
        %v7851 = vpop.f32.mrf.mxu0
        %v7852 = vadd.f32 %v7787, %v7851
        %7853 = vmatmul.f32.gmra.mxu0 %v7653
        %v7854 = vpop.f32.mrf.mxu0
        %v7855 = vadd.f32 %v7790, %v7854
        %7856 = vmatmul.f32.gmra.mxu0 %v7658
        %v7857 = vpop.f32.mrf.mxu0
        %v7858 = vadd.f32 %v7793, %v7857
        %7859 = vmatmul.f32.gmra.mxu0 %v7663
        %v7860 = vpop.f32.mrf.mxu0
        %v7861 = vadd.f32 %v7796, %v7860
        %7862 = vmatmul.f32.gmra.mxu0 %v7668
        %v7863 = vpop.f32.mrf.mxu0
        %v7864 = vadd.f32 %v7799, %v7863
        %7865 = vmatmul.f32.gmra.mxu0 %v7673
        %v7866 = vpop.f32.mrf.mxu0
        %v7867 = vadd.f32 %v7802, %v7866
        %7868 = vmatmul.f32.gmra.mxu0 %v7678
        %v7869 = vpop.f32.mrf.mxu0
        %v7870 = vadd.f32 %v7805, %v7869
        %7871 = vmatmul.f32.gmra.mxu0 %v7683
        %v7872 = vpop.f32.mrf.mxu0
        %v7873 = vadd.f32 %v7808, %v7872
        %7874 = vmatmul.f32.gmra.mxu0 %v7688
        %v7875 = vpop.f32.mrf.mxu0
        %v7876 = vadd.f32 %v7811, %v7875
        %7877 = vmatmul.f32.gmra.mxu0 %v7693
        %v7878 = vpop.f32.mrf.mxu0
        %v7879 = vadd.f32 %v7814, %v7878
        %7880 = vmatmul.f32.gmra.mxu0 %v7698
        %v7881 = vpop.f32.mrf.mxu0
        %v7882 = vadd.f32 %v7817, %v7881
        %7883 = vmatmul.f32.gmra.mxu0 %v7703
        %v7884 = vpop.f32.mrf.mxu0
        %v7885 = vadd.f32 %v7820, %v7884
        %7886 = vmatmul.f32.gmra.mxu0 %v7708
        %v7887 = vpop.f32.mrf.mxu0
        %v7888 = vadd.f32 %v7823, %v7887
        %7889 = vdwg.mxu0
        %7890 = vmatpush.msra.mxu0 %v7060
        %7891 = vmatpush.msra.mxu0 %v7059
        %7892 = vmatpush.msra.mxu0 %v7058
        %7893 = vmatpush.msra.mxu0 %v7057
        %7894 = vmatpush.msra.mxu0 %v7056
        %7895 = vmatpush.msra.mxu0 %v7055
        %7896 = vmatpush.msra.mxu0 %v7054
        %7897 = vmatpush.msra.mxu0 %v7053
        %7898 = vmatpush.msra.mxu0 %v7052
        %7899 = vmatpush.msra.mxu0 %v7051
        %7900 = vmatpush.msra.mxu0 %v7050
        %7901 = vmatpush.msra.mxu0 %v7049
        %7902 = vmatpush.msra.mxu0 %v7048
        %7903 = vmatpush.msra.mxu0 %v7047
        %7904 = vmatpush.msra.mxu0 %v7046
        %7905 = vmatpush.msra.mxu0 %v7045
        %7906 = vmatmul.f32.gmra.mxu0 %v7634
        %v7907 = vpop.f32.mrf.mxu0
        %v7908 = vadd.f32 %v7843, %v7907
        %7909 = vmatmul.f32.gmra.mxu0 %v7639
        %v7910 = vpop.f32.mrf.mxu0
        %v7911 = vadd.f32 %v7846, %v7910
        %7912 = vmatmul.f32.gmra.mxu0 %v7644
        %v7913 = vpop.f32.mrf.mxu0
        %v7914 = vadd.f32 %v7849, %v7913
        %7915 = vmatmul.f32.gmra.mxu0 %v7649
        %v7916 = vpop.f32.mrf.mxu0
        %v7917 = vadd.f32 %v7852, %v7916
        %7918 = vmatmul.f32.gmra.mxu0 %v7654
        %v7919 = vpop.f32.mrf.mxu0
        %v7920 = vadd.f32 %v7855, %v7919
        %7921 = vmatmul.f32.gmra.mxu0 %v7659
        %v7922 = vpop.f32.mrf.mxu0
        %v7923 = vadd.f32 %v7858, %v7922
        %7924 = vmatmul.f32.gmra.mxu0 %v7664
        %v7925 = vpop.f32.mrf.mxu0
        %v7926 = vadd.f32 %v7861, %v7925
        %7927 = vmatmul.f32.gmra.mxu0 %v7669
        %v7928 = vpop.f32.mrf.mxu0
        %v7929 = vadd.f32 %v7864, %v7928
        %7930 = vmatmul.f32.gmra.mxu0 %v7674
        %v7931 = vpop.f32.mrf.mxu0
        %v7932 = vadd.f32 %v7867, %v7931
        %7933 = vmatmul.f32.gmra.mxu0 %v7679
        %v7934 = vpop.f32.mrf.mxu0
        %v7935 = vadd.f32 %v7870, %v7934
        %7936 = vmatmul.f32.gmra.mxu0 %v7684
        %v7937 = vpop.f32.mrf.mxu0
        %v7938 = vadd.f32 %v7873, %v7937
        %7939 = vmatmul.f32.gmra.mxu0 %v7689
        %v7940 = vpop.f32.mrf.mxu0
        %v7941 = vadd.f32 %v7876, %v7940
        %7942 = vmatmul.f32.gmra.mxu0 %v7694
        %v7943 = vpop.f32.mrf.mxu0
        %v7944 = vadd.f32 %v7879, %v7943
        %7945 = vmatmul.f32.gmra.mxu0 %v7699
        %v7946 = vpop.f32.mrf.mxu0
        %v7947 = vadd.f32 %v7882, %v7946
        %7948 = vmatmul.f32.gmra.mxu0 %v7704
        %v7949 = vpop.f32.mrf.mxu0
        %v7950 = vadd.f32 %v7885, %v7949
        %7951 = vmatmul.f32.gmra.mxu0 %v7709
        %v7952 = vpop.f32.mrf.mxu0
        %v7953 = vadd.f32 %v7888, %v7952
        %7954 = vdwg.mxu0
        %7955 = vmatpush.msra.mxu0 %v7076
        %7956 = vmatpush.msra.mxu0 %v7075
        %7957 = vmatpush.msra.mxu0 %v7074
        %7958 = vmatpush.msra.mxu0 %v7073
        %7959 = vmatpush.msra.mxu0 %v7072
        %7960 = vmatpush.msra.mxu0 %v7071
        %7961 = vmatpush.msra.mxu0 %v7070
        %7962 = vmatpush.msra.mxu0 %v7069
        %7963 = vmatpush.msra.mxu0 %v7068
        %7964 = vmatpush.msra.mxu0 %v7067
        %7965 = vmatpush.msra.mxu0 %v7066
        %7966 = vmatpush.msra.mxu0 %v7065
        %7967 = vmatpush.msra.mxu0 %v7064
        %7968 = vmatpush.msra.mxu0 %v7063
        %7969 = vmatpush.msra.mxu0 %v7062
        %7970 = vmatpush.msra.mxu0 %v7061
        %7971 = vmatmul.f32.gmra.mxu0 %v7635
        %v7972 = vpop.f32.mrf.mxu0
        %v7973 = vadd.f32 %v7908, %v7972
        %7974 = vmatmul.f32.gmra.mxu0 %v7640
        %v7975 = vpop.f32.mrf.mxu0
        %v7976 = vadd.f32 %v7911, %v7975
        %7977 = vmatmul.f32.gmra.mxu0 %v7645
        %v7978 = vpop.f32.mrf.mxu0
        %v7979 = vadd.f32 %v7914, %v7978
        %7980 = vmatmul.f32.gmra.mxu0 %v7650
        %v7981 = vpop.f32.mrf.mxu0
        %v7982 = vadd.f32 %v7917, %v7981
        %7983 = vmatmul.f32.gmra.mxu0 %v7655
        %v7984 = vpop.f32.mrf.mxu0
        %v7985 = vadd.f32 %v7920, %v7984
        %7986 = vmatmul.f32.gmra.mxu0 %v7660
        %v7987 = vpop.f32.mrf.mxu0
        %v7988 = vadd.f32 %v7923, %v7987
        %7989 = vmatmul.f32.gmra.mxu0 %v7665
        %v7990 = vpop.f32.mrf.mxu0
        %v7991 = vadd.f32 %v7926, %v7990
        %7992 = vmatmul.f32.gmra.mxu0 %v7670
        %v7993 = vpop.f32.mrf.mxu0
        %v7994 = vadd.f32 %v7929, %v7993
        %7995 = vmatmul.f32.gmra.mxu0 %v7675
        %v7996 = vpop.f32.mrf.mxu0
        %v7997 = vadd.f32 %v7932, %v7996
        %7998 = vmatmul.f32.gmra.mxu0 %v7680
        %v7999 = vpop.f32.mrf.mxu0
        %v8000 = vadd.f32 %v7935, %v7999
        %8001 = vmatmul.f32.gmra.mxu0 %v7685
        %v8002 = vpop.f32.mrf.mxu0
        %v8003 = vadd.f32 %v7938, %v8002
        %8004 = vmatmul.f32.gmra.mxu0 %v7690
        %v8005 = vpop.f32.mrf.mxu0
        %v8006 = vadd.f32 %v7941, %v8005
        %8007 = vmatmul.f32.gmra.mxu0 %v7695
        %v8008 = vpop.f32.mrf.mxu0
        %v8009 = vadd.f32 %v7944, %v8008
        %8010 = vmatmul.f32.gmra.mxu0 %v7700
        %v8011 = vpop.f32.mrf.mxu0
        %v8012 = vadd.f32 %v7947, %v8011
        %8013 = vmatmul.f32.gmra.mxu0 %v7705
        %v8014 = vpop.f32.mrf.mxu0
        %v8015 = vadd.f32 %v7950, %v8014
        %8016 = vmatmul.f32.gmra.mxu0 %v7710
        %v8017 = vpop.f32.mrf.mxu0
        %v8018 = vadd.f32 %v7953, %v8017
        %8019 = vdwg.mxu0
        %8020 = vmatpush.msra.mxu0 0.0
        %8021 = vmatpush.msra.mxu0 0.0
        %8022 = vmatpush.msra.mxu0 0.0
        %8023 = vmatpush.msra.mxu0 0.0
        %8024 = vmatpush.msra.mxu0 0.0
        %8025 = vmatpush.msra.mxu0 0.0
        %8026 = vmatpush.msra.mxu0 0.0
        %8027 = vmatpush.msra.mxu0 0.0
        %8028 = vmatpush.msra.mxu0 %v7084
        %8029 = vmatpush.msra.mxu0 %v7083
        %8030 = vmatpush.msra.mxu0 %v7082
        %8031 = vmatpush.msra.mxu0 %v7081
        %8032 = vmatpush.msra.mxu0 %v7080
        %8033 = vmatpush.msra.mxu0 %v7079
        %8034 = vmatpush.msra.mxu0 %v7078
        %8035 = vmatpush.msra.mxu0 %v7077
        %8036 = vmatmul.f32.gmra.mxu0 %v7713
        %v8037 = vpop.f32.mrf.mxu0
        %v8038 = vadd.f32 %v7973, %v8037
        %8039 = vmatmul.f32.gmra.mxu0 %v7716
        %v8040 = vpop.f32.mrf.mxu0
        %v8041 = vadd.f32 %v7976, %v8040
        %8042 = vmatmul.f32.gmra.mxu0 %v7719
        %v8043 = vpop.f32.mrf.mxu0
        %v8044 = vadd.f32 %v7979, %v8043
        %8045 = vmatmul.f32.gmra.mxu0 %v7722
        %v8046 = vpop.f32.mrf.mxu0
        %v8047 = vadd.f32 %v7982, %v8046
        %8048 = vmatmul.f32.gmra.mxu0 %v7725
        %v8049 = vpop.f32.mrf.mxu0
        %v8050 = vadd.f32 %v7985, %v8049
        %8051 = vmatmul.f32.gmra.mxu0 %v7728
        %v8052 = vpop.f32.mrf.mxu0
        %v8053 = vadd.f32 %v7988, %v8052
        %8054 = vmatmul.f32.gmra.mxu0 %v7731
        %v8055 = vpop.f32.mrf.mxu0
        %v8056 = vadd.f32 %v7991, %v8055
        %8057 = vmatmul.f32.gmra.mxu0 %v7734
        %v8058 = vpop.f32.mrf.mxu0
        %v8059 = vadd.f32 %v7994, %v8058
        %8060 = vmatmul.f32.gmra.mxu0 %v7737
        %v8061 = vpop.f32.mrf.mxu0
        %v8062 = vadd.f32 %v7997, %v8061
        %8063 = vmatmul.f32.gmra.mxu0 %v7740
        %v8064 = vpop.f32.mrf.mxu0
        %v8065 = vadd.f32 %v8000, %v8064
        %8066 = vmatmul.f32.gmra.mxu0 %v7743
        %v8067 = vpop.f32.mrf.mxu0
        %v8068 = vadd.f32 %v8003, %v8067
        %8069 = vmatmul.f32.gmra.mxu0 %v7746
        %v8070 = vpop.f32.mrf.mxu0
        %v8071 = vadd.f32 %v8006, %v8070
        %8072 = vmatmul.f32.gmra.mxu0 %v7749
        %v8073 = vpop.f32.mrf.mxu0
        %v8074 = vadd.f32 %v8009, %v8073
        %8075 = vmatmul.f32.gmra.mxu0 %v7752
        %v8076 = vpop.f32.mrf.mxu0
        %v8077 = vadd.f32 %v8012, %v8076
        %8078 = vmatmul.f32.gmra.mxu0 %v7755
        %v8079 = vpop.f32.mrf.mxu0
        %v8080 = vadd.f32 %v8015, %v8079
        %8081 = vmatmul.f32.gmra.mxu0 %v7758
        %v8082 = vpop.f32.mrf.mxu0
        %v8083 = vadd.f32 %v8018, %v8082
        %8084 = vdwg.mxu0
        %v8085 = vld [vmem:[%s355] sm:$0x1]
        %v8086 = vld [vmem:[%s360] sm:$0x1]
        %v8087 = vsel %vm7101, %v8038, 0.0
        %v8088 = vsel %vm7101, %v8041, 0.0
        %v8089 = vadd.f32 %v8087, %v8088
        %v8090 = vsel %vm7101, %v8044, 0.0
        %v8091 = vadd.f32 %v8089, %v8090
        %v8092 = vsel %vm7101, %v8047, 0.0
        %v8093 = vadd.f32 %v8091, %v8092
        %v8094 = vsel %vm7101, %v8050, 0.0
        %v8095 = vadd.f32 %v8093, %v8094
        %v8096 = vsel %vm7101, %v8053, 0.0
        %v8097 = vadd.f32 %v8095, %v8096
        %v8098 = vsel %vm7101, %v8056, 0.0
        %v8099 = vadd.f32 %v8097, %v8098
        %v8100 = vsel %vm7101, %v8059, 0.0
        %v8101 = vadd.f32 %v8099, %v8100
        %v8102 = vsel %vm7101, %v8062, 0.0
        %v8103 = vadd.f32 %v8101, %v8102
        %v8104 = vsel %vm7101, %v8065, 0.0
        %v8105 = vadd.f32 %v8103, %v8104
        %v8106 = vsel %vm7101, %v8068, 0.0
        %v8107 = vadd.f32 %v8105, %v8106
        %v8108 = vsel %vm7101, %v8071, 0.0
        %v8109 = vadd.f32 %v8107, %v8108
        %v8110 = vsel %vm7101, %v8074, 0.0
        %v8111 = vadd.f32 %v8109, %v8110
        %v8112 = vsel %vm7101, %v8077, 0.0
        %v8113 = vadd.f32 %v8111, %v8112
        %v8114 = vsel %vm7101, %v8080, 0.0
        %v8115 = vadd.f32 %v8113, %v8114
        %v8116 = vsel %vm7101, %v8083, 0.0
        %v8117 = vadd.f32 %v8115, %v8116
        %v8118 = vrot.slane %v8117, 4
        %v8119 = vadd.f32 %v8117, %v8118
        %v8120 = vrot.slane %v8119, 2
        %v8121 = vadd.f32 %v8119, %v8120
        %v8122 = vrot.slane %v8121, 1
        %v8123 = vadd.f32 %v8121, %v8122
        %v8124 = vrcp.pop 128.0
        %v8125 = vmul.f32 128.0, %v8124
        %v8126 = vsub.f32 1.0, %v8125
        %v8127 = vmul.f32 %v8124, %v8126
        %v8128 = vadd.f32 %v8124, %v8127
        %vm8129 = vweird.f32 %v8124
        %v8130 = vsel %vm8129, %v8124, %v8128
        %v8131 = vmul.f32 %v8123, %v8130
        %v8132 = vsub.f32 %v8038, %v8131
        %v8133 = vsub.f32 %v8041, %v8131
        %v8134 = vsub.f32 %v8044, %v8131
        %v8135 = vsub.f32 %v8047, %v8131
        %v8136 = vsub.f32 %v8050, %v8131
        %v8137 = vsub.f32 %v8053, %v8131
        %v8138 = vsub.f32 %v8056, %v8131
        %v8139 = vsub.f32 %v8059, %v8131
        %v8140 = vsub.f32 %v8062, %v8131
        %v8141 = vsub.f32 %v8065, %v8131
        %v8142 = vsub.f32 %v8068, %v8131
        %v8143 = vsub.f32 %v8071, %v8131
        %v8144 = vsub.f32 %v8074, %v8131
        %v8145 = vsub.f32 %v8077, %v8131
        %v8146 = vsub.f32 %v8080, %v8131
        %v8147 = vsub.f32 %v8083, %v8131
        %v8148 = vmul.f32 %v8132, %v8132
        %v8149 = vmul.f32 %v8133, %v8133
        %v8150 = vmul.f32 %v8134, %v8134
        %v8151 = vmul.f32 %v8135, %v8135
        %v8152 = vmul.f32 %v8136, %v8136
        %v8153 = vmul.f32 %v8137, %v8137
        %v8154 = vmul.f32 %v8138, %v8138
        %v8155 = vmul.f32 %v8139, %v8139
        %v8156 = vmul.f32 %v8140, %v8140
        %v8157 = vmul.f32 %v8141, %v8141
        %v8158 = vmul.f32 %v8142, %v8142
        %v8159 = vmul.f32 %v8143, %v8143
        %v8160 = vmul.f32 %v8144, %v8144
        %v8161 = vmul.f32 %v8145, %v8145
        %v8162 = vmul.f32 %v8146, %v8146
        %v8163 = vmul.f32 %v8147, %v8147
        %v8164 = vsel %vm7101, %v8148, 0.0
        %v8165 = vsel %vm7101, %v8149, 0.0
        %v8166 = vadd.f32 %v8164, %v8165
        %v8167 = vsel %vm7101, %v8150, 0.0
        %v8168 = vadd.f32 %v8166, %v8167
        %v8169 = vsel %vm7101, %v8151, 0.0
        %v8170 = vadd.f32 %v8168, %v8169
        %v8171 = vsel %vm7101, %v8152, 0.0
        %v8172 = vadd.f32 %v8170, %v8171
        %v8173 = vsel %vm7101, %v8153, 0.0
        %v8174 = vadd.f32 %v8172, %v8173
        %v8175 = vsel %vm7101, %v8154, 0.0
        %v8176 = vadd.f32 %v8174, %v8175
        %v8177 = vsel %vm7101, %v8155, 0.0
        %v8178 = vadd.f32 %v8176, %v8177
        %v8179 = vsel %vm7101, %v8156, 0.0
        %v8180 = vadd.f32 %v8178, %v8179
        %v8181 = vsel %vm7101, %v8157, 0.0
        %v8182 = vadd.f32 %v8180, %v8181
        %v8183 = vsel %vm7101, %v8158, 0.0
        %v8184 = vadd.f32 %v8182, %v8183
        %v8185 = vsel %vm7101, %v8159, 0.0
        %v8186 = vadd.f32 %v8184, %v8185
        %v8187 = vsel %vm7101, %v8160, 0.0
        %v8188 = vadd.f32 %v8186, %v8187
        %v8189 = vsel %vm7101, %v8161, 0.0
        %v8190 = vadd.f32 %v8188, %v8189
        %v8191 = vsel %vm7101, %v8162, 0.0
        %v8192 = vadd.f32 %v8190, %v8191
        %v8193 = vsel %vm7101, %v8163, 0.0
        %v8194 = vadd.f32 %v8192, %v8193
        %v8195 = vrot.slane %v8194, 4
        %v8196 = vadd.f32 %v8194, %v8195
        %v8197 = vrot.slane %v8196, 2
        %v8198 = vadd.f32 %v8196, %v8197
        %v8199 = vrot.slane %v8198, 1
        %v8200 = vadd.f32 %v8198, %v8199
        %v8201 = vmul.f32 %v8200, %v8130
        %v8202 = vadd.f32 %v8201, 1e-05
        %v8203 = vrsqrt.pop %v8202
        %v8204 = vmul.f32 %v8203, %v8202
        %v8205 = vmul.f32 %v8204, %v8203
        %v8206 = vmul.f32 0.5, %v8205
        %v8207 = vsub.f32 1.5, %v8206
        %v8208 = vmul.f32 %v8203, %v8207
        %vm8209 = vweird.f32 %v8202
        %vm8210 = vweird.f32 %v8203
        %vm8211 = vmor %vm8209, %vm8210
        %v8212 = vsel %vm8211, %v8203, %v8208
        %v8213 = vmul.f32 %v8085, %v8212
        %v8214 = vmul.f32 %v8131, %v8213
        %v8215 = vsub.f32 %v8086, %v8214
        %v8217 = vperm.slane %v8213, 0
        %v8219 = vmul.f32 %v8038, %v8217
        %v8220 = vmul.f32 %v8041, %v8217
        %v8221 = vmul.f32 %v8044, %v8217
        %v8222 = vmul.f32 %v8047, %v8217
        %v8223 = vmul.f32 %v8050, %v8217
        %v8224 = vmul.f32 %v8053, %v8217
        %v8225 = vmul.f32 %v8056, %v8217
        %v8226 = vmul.f32 %v8059, %v8217
        %v8227 = vmul.f32 %v8062, %v8217
        %v8228 = vmul.f32 %v8065, %v8217
        %v8229 = vmul.f32 %v8068, %v8217
        %v8230 = vmul.f32 %v8071, %v8217
        %v8231 = vmul.f32 %v8074, %v8217
        %v8232 = vmul.f32 %v8077, %v8217
        %v8233 = vmul.f32 %v8080, %v8217
        %v8234 = vmul.f32 %v8083, %v8217
        %v8236 = vperm.slane %v8215, 0
        %v8238 = vadd.f32 %v8219, %v8236
        %v8239 = vadd.f32 %v8220, %v8236
        %v8240 = vadd.f32 %v8221, %v8236
        %v8241 = vadd.f32 %v8222, %v8236
        %v8242 = vadd.f32 %v8223, %v8236
        %v8243 = vadd.f32 %v8224, %v8236
        %v8244 = vadd.f32 %v8225, %v8236
        %v8245 = vadd.f32 %v8226, %v8236
        %v8246 = vadd.f32 %v8227, %v8236
        %v8247 = vadd.f32 %v8228, %v8236
        %v8248 = vadd.f32 %v8229, %v8236
        %v8249 = vadd.f32 %v8230, %v8236
        %v8250 = vadd.f32 %v8231, %v8236
        %v8251 = vadd.f32 %v8232, %v8236
        %v8252 = vadd.f32 %v8233, %v8236
        %v8253 = vadd.f32 %v8234, %v8236
        %v8254 = vmax.f32 %v8238, 0.0
        %v8255 = vmax.f32 %v8239, 0.0
        %v8256 = vmax.f32 %v8240, 0.0
        %v8257 = vmax.f32 %v8241, 0.0
        %v8258 = vmax.f32 %v8242, 0.0
        %v8259 = vmax.f32 %v8243, 0.0
        %v8260 = vmax.f32 %v8244, 0.0
        %v8261 = vmax.f32 %v8245, 0.0
        %v8262 = vmax.f32 %v8246, 0.0
        %v8263 = vmax.f32 %v8247, 0.0
        %v8264 = vmax.f32 %v8248, 0.0
        %v8265 = vmax.f32 %v8249, 0.0
        %v8266 = vmax.f32 %v8250, 0.0
        %v8267 = vmax.f32 %v8251, 0.0
        %v8268 = vmax.f32 %v8252, 0.0
        %v8269 = vmax.f32 %v8253, 0.0
        %s8270 = scalar_lea.vmem [#allocation3], 16
        %8271 = vst.msk [vmem:[%s8270 + $0x1] sm:$0xff] %vm7101, %v8254
        %8272 = vst.msk [vmem:[%s8270 + $0x11] sm:$0xff] %vm7101, %v8255
        %8273 = vst.msk [vmem:[%s8270 + $0x21] sm:$0xff] %vm7101, %v8256
        %8274 = vst.msk [vmem:[%s8270 + $0x31] sm:$0xff] %vm7101, %v8257
        %8275 = vst.msk [vmem:[%s8270 + $0x41] sm:$0xff] %vm7101, %v8258
        %8276 = vst.msk [vmem:[%s8270 + $0x51] sm:$0xff] %vm7101, %v8259
        %8277 = vst.msk [vmem:[%s8270 + $0x61] sm:$0xff] %vm7101, %v8260
        %8278 = vst.msk [vmem:[%s8270 + $0x71] sm:$0xff] %vm7101, %v8261
        %8279 = vst.msk [vmem:[%s8270 + $0xa1] sm:$0xff] %vm7101, %v8262
        %8280 = vst.msk [vmem:[%s8270 + $0xb1] sm:$0xff] %vm7101, %v8263
        %8281 = vst.msk [vmem:[%s8270 + $0xc1] sm:$0xff] %vm7101, %v8264
        %8282 = vst.msk [vmem:[%s8270 + $0xd1] sm:$0xff] %vm7101, %v8265
        %8283 = vst.msk [vmem:[%s8270 + $0xe1] sm:$0xff] %vm7101, %v8266
        %8284 = vst.msk [vmem:[%s8270 + $0xf1] sm:$0xff] %vm7101, %v8267
        %8285 = vst.msk [vmem:[%s8270 + $0x101] sm:$0xff] %vm7101, %v8268
        %8286 = vst.msk [vmem:[%s8270 + $0x111] sm:$0xff] %vm7101, %v8269
        %s8287 = scalar_lea.vmem %s350, 576
        %v8288 = vld [vmem:[%s8287] sm:$0xff]
        %v8289 = vld [vmem:[%s8287 + $0x8] sm:$0xff]
        %v8290 = vld [vmem:[%s8287 + $0x10] sm:$0xff]
        %v8291 = vld [vmem:[%s8287 + $0x18] sm:$0xff]
        %v8292 = vld [vmem:[%s8287 + $0x20] sm:$0xff]
        %v8293 = vld [vmem:[%s8287 + $0x28] sm:$0xff]
        %v8294 = vld [vmem:[%s8287 + $0x30] sm:$0xff]
        %v8295 = vld [vmem:[%s8287 + $0x38] sm:$0xff]
        %v8296 = vld [vmem:[%s8287 + $0x40] sm:$0xff]
        %v8297 = vld [vmem:[%s8287 + $0x48] sm:$0xff]
        %v8298 = vld [vmem:[%s8287 + $0x50] sm:$0xff]
        %v8299 = vld [vmem:[%s8287 + $0x58] sm:$0xff]
        %v8300 = vld [vmem:[%s8287 + $0x60] sm:$0xff]
        %v8301 = vld [vmem:[%s8287 + $0x68] sm:$0xff]
        %v8302 = vld [vmem:[%s8287 + $0x70] sm:$0xff]
        %v8303 = vld [vmem:[%s8287 + $0x78] sm:$0xff]
        %v8304 = vld [vmem:[%s8287 + $0x80] sm:$0xff]
        %v8305 = vld [vmem:[%s8287 + $0x88] sm:$0xff]
        %v8306 = vld [vmem:[%s8287 + $0x90] sm:$0xff]
        %v8307 = vld [vmem:[%s8287 + $0x98] sm:$0xff]
        %v8308 = vld [vmem:[%s8287 + $0xa0] sm:$0xff]
        %v8309 = vld [vmem:[%s8287 + $0xa8] sm:$0xff]
        %v8310 = vld [vmem:[%s8287 + $0xb0] sm:$0xff]
        %v8311 = vld [vmem:[%s8287 + $0xb8] sm:$0xff]
        %v8312 = vld [vmem:[%s8287 + $0xc0] sm:$0xff]
        %v8313 = vld [vmem:[%s8287 + $0xc8] sm:$0xff]
        %v8314 = vld [vmem:[%s8287 + $0xd0] sm:$0xff]
        %v8315 = vld [vmem:[%s8287 + $0xd8] sm:$0xff]
        %v8316 = vld [vmem:[%s8287 + $0xe0] sm:$0xff]
        %v8317 = vld [vmem:[%s8287 + $0xe8] sm:$0xff]
        %v8318 = vld [vmem:[%s8287 + $0xf0] sm:$0xff]
        %v8319 = vld [vmem:[%s8287 + $0xf8] sm:$0xff]
        %v8320 = vld [vmem:[%s8287 + $0x100] sm:$0xff]
        %v8321 = vld [vmem:[%s8287 + $0x108] sm:$0xff]
        %v8322 = vld [vmem:[%s8287 + $0x110] sm:$0xff]
        %v8323 = vld [vmem:[%s8287 + $0x118] sm:$0xff]
        %v8324 = vld [vmem:[%s8287 + $0x120] sm:$0xff]
        %v8325 = vld [vmem:[%s8287 + $0x128] sm:$0xff]
        %v8326 = vld [vmem:[%s8287 + $0x130] sm:$0xff]
        %v8327 = vld [vmem:[%s8287 + $0x138] sm:$0xff]
        %v8328 = vld [vmem:[%s8287 + $0x140] sm:$0xff]
        %v8329 = vld [vmem:[%s8287 + $0x148] sm:$0xff]
        %v8330 = vld [vmem:[%s8287 + $0x150] sm:$0xff]
        %v8331 = vld [vmem:[%s8287 + $0x158] sm:$0xff]
        %v8332 = vld [vmem:[%s8287 + $0x160] sm:$0xff]
        %v8333 = vld [vmem:[%s8287 + $0x168] sm:$0xff]
        %v8334 = vld [vmem:[%s8287 + $0x170] sm:$0xff]
        %v8335 = vld [vmem:[%s8287 + $0x178] sm:$0xff]
        %v8336 = vld [vmem:[%s8287 + $0x180] sm:$0xff]
        %v8337 = vld [vmem:[%s8287 + $0x188] sm:$0xff]
        %v8338 = vld [vmem:[%s8287 + $0x190] sm:$0xff]
        %v8339 = vld [vmem:[%s8287 + $0x198] sm:$0xff]
        %v8340 = vld [vmem:[%s8287 + $0x1a0] sm:$0xff]
        %v8341 = vld [vmem:[%s8287 + $0x1a8] sm:$0xff]
        %v8342 = vld [vmem:[%s8287 + $0x1b0] sm:$0xff]
        %v8343 = vld [vmem:[%s8287 + $0x1b8] sm:$0xff]
        %v8344 = vld [vmem:[%s8287 + $0x1c0] sm:$0xff]
        %v8345 = vld [vmem:[%s8287 + $0x1c8] sm:$0xff]
        %v8346 = vld [vmem:[%s8287 + $0x1d0] sm:$0xff]
        %v8347 = vld [vmem:[%s8287 + $0x1d8] sm:$0xff]
        %v8348 = vld [vmem:[%s8287 + $0x1e0] sm:$0xff]
        %v8349 = vld [vmem:[%s8287 + $0x1e8] sm:$0xff]
        %v8350 = vld [vmem:[%s8287 + $0x1f0] sm:$0xff]
        %v8351 = vld [vmem:[%s8287 + $0x1f8] sm:$0xff]
        %v8352 = vld [vmem:[%s8287 + $0x200] sm:$0xff]
        %v8353 = vld [vmem:[%s8287 + $0x208] sm:$0xff]
        %v8354 = vld [vmem:[%s8287 + $0x210] sm:$0xff]
        %v8355 = vld [vmem:[%s8287 + $0x218] sm:$0xff]
        %v8356 = vld [vmem:[%s8287 + $0x220] sm:$0xff]
        %v8357 = vld [vmem:[%s8287 + $0x228] sm:$0xff]
        %v8358 = vld [vmem:[%s8287 + $0x230] sm:$0xff]
        %v8359 = vld [vmem:[%s8287 + $0x238] sm:$0xff]
        %v8360 = vld [vmem:[#allocation3] sm:$0xff]
        %v8361 = vld [vmem:[#allocation3 + $0x10] sm:$0xff]
        %v8362 = vld [vmem:[#allocation3 + $0x20] sm:$0xff]
        %v8363 = vld [vmem:[#allocation3 + $0x30] sm:$0xff]
        %v8364 = vld [vmem:[#allocation3 + $0x40] sm:$0xff]
        %v8365 = vld [vmem:[#allocation3 + $0x50] sm:$0xff]
        %v8366 = vld [vmem:[#allocation3 + $0x60] sm:$0xff]
        %v8367 = vld [vmem:[#allocation3 + $0x70] sm:$0xff]
        %v8368 = vld [vmem:[#allocation3 + $0xa0] sm:$0xff]
        %v8369 = vld [vmem:[#allocation3 + $0xb0] sm:$0xff]
        %v8370 = vld [vmem:[#allocation3 + $0xc0] sm:$0xff]
        %v8371 = vld [vmem:[#allocation3 + $0xd0] sm:$0xff]
        %v8372 = vld [vmem:[#allocation3 + $0xe0] sm:$0xff]
        %v8373 = vld [vmem:[#allocation3 + $0xf0] sm:$0xff]
        %v8374 = vld [vmem:[#allocation3 + $0x100] sm:$0xff]
        %v8375 = vld [vmem:[#allocation3 + $0x110] sm:$0xff]
        %8376 = vst.msk [vmem:[#allocation6] sm:$0xff] %vm7101, %v8360
        %8377 = vst.msk [vmem:[#allocation6 + $0x28] sm:$0xff] %vm7101, %v8361
        %8378 = vst.msk [vmem:[#allocation6 + $0x50] sm:$0xff] %vm7101, %v8362
        %8379 = vst.msk [vmem:[#allocation6 + $0x78] sm:$0xff] %vm7101, %v8363
        %8380 = vst.msk [vmem:[#allocation6 + $0xa0] sm:$0xff] %vm7101, %v8364
        %8381 = vst.msk [vmem:[#allocation6 + $0xc8] sm:$0xff] %vm7101, %v8365
        %8382 = vst.msk [vmem:[#allocation6 + $0xf0] sm:$0xff] %vm7101, %v8366
        %8383 = vst.msk [vmem:[#allocation6 + $0x118] sm:$0xff] %vm7101, %v8367
        %8384 = vst.msk [vmem:[#allocation6 + $0x140] sm:$0xff] %vm7101, %v8368
        %8385 = vst.msk [vmem:[#allocation6 + $0x168] sm:$0xff] %vm7101, %v8369
        %8386 = vst.msk [vmem:[#allocation6 + $0x190] sm:$0xff] %vm7101, %v8370
        %8387 = vst.msk [vmem:[#allocation6 + $0x1b8] sm:$0xff] %vm7101, %v8371
        %8388 = vst.msk [vmem:[#allocation6 + $0x1e0] sm:$0xff] %vm7101, %v8372
        %8389 = vst.msk [vmem:[#allocation6 + $0x208] sm:$0xff] %vm7101, %v8373
        %8390 = vst.msk [vmem:[#allocation6 + $0x230] sm:$0xff] %vm7101, %v8374
        %8391 = vst.msk [vmem:[#allocation6 + $0x258] sm:$0xff] %vm7101, %v8375
        %v8392 = vld [vmem:[#allocation3 + $0x1] sm:$0xff]
        %v8393 = vld [vmem:[#allocation3 + $0x11] sm:$0xff]
        %v8394 = vld [vmem:[#allocation3 + $0x21] sm:$0xff]
        %v8395 = vld [vmem:[#allocation3 + $0x31] sm:$0xff]
        %v8396 = vld [vmem:[#allocation3 + $0x41] sm:$0xff]
        %v8397 = vld [vmem:[#allocation3 + $0x51] sm:$0xff]
        %v8398 = vld [vmem:[#allocation3 + $0x61] sm:$0xff]
        %v8399 = vld [vmem:[#allocation3 + $0x71] sm:$0xff]
        %v8400 = vld [vmem:[#allocation3 + $0xa1] sm:$0xff]
        %v8401 = vld [vmem:[#allocation3 + $0xb1] sm:$0xff]
        %v8402 = vld [vmem:[#allocation3 + $0xc1] sm:$0xff]
        %v8403 = vld [vmem:[#allocation3 + $0xd1] sm:$0xff]
        %v8404 = vld [vmem:[#allocation3 + $0xe1] sm:$0xff]
        %v8405 = vld [vmem:[#allocation3 + $0xf1] sm:$0xff]
        %v8406 = vld [vmem:[#allocation3 + $0x101] sm:$0xff]
        %v8407 = vld [vmem:[#allocation3 + $0x111] sm:$0xff]
        %8424 = vrot.lane.b32.xlu0 %v8392, 64
        %v8425 = vpop.permute.xlu0 %8424
        %8426 = vrot.lane.b32.xlu0 %v8393, 64
        %v8427 = vpop.permute.xlu0 %8426
        %8428 = vrot.lane.b32.xlu0 %v8394, 64
        %v8429 = vpop.permute.xlu0 %8428
        %8430 = vrot.lane.b32.xlu0 %v8395, 64
        %v8431 = vpop.permute.xlu0 %8430
        %8432 = vrot.lane.b32.xlu0 %v8396, 64
        %v8433 = vpop.permute.xlu0 %8432
        %8434 = vrot.lane.b32.xlu0 %v8397, 64
        %v8435 = vpop.permute.xlu0 %8434
        %8436 = vrot.lane.b32.xlu0 %v8398, 64
        %v8437 = vpop.permute.xlu0 %8436
        %8438 = vrot.lane.b32.xlu0 %v8399, 64
        %v8439 = vpop.permute.xlu0 %8438
        %8440 = vrot.lane.b32.xlu0 %v8400, 64
        %v8441 = vpop.permute.xlu0 %8440
        %8442 = vrot.lane.b32.xlu0 %v8401, 64
        %v8443 = vpop.permute.xlu0 %8442
        %8444 = vrot.lane.b32.xlu0 %v8402, 64
        %v8445 = vpop.permute.xlu0 %8444
        %8446 = vrot.lane.b32.xlu0 %v8403, 64
        %v8447 = vpop.permute.xlu0 %8446
        %8448 = vrot.lane.b32.xlu0 %v8404, 64
        %v8449 = vpop.permute.xlu0 %8448
        %8450 = vrot.lane.b32.xlu0 %v8405, 64
        %v8451 = vpop.permute.xlu0 %8450
        %8452 = vrot.lane.b32.xlu0 %v8406, 64
        %v8453 = vpop.permute.xlu0 %8452
        %8454 = vrot.lane.b32.xlu0 %v8407, 64
        %v8455 = vpop.permute.xlu0 %8454
        %8472 = vst.msk [vmem:[#allocation6] sm:$0xff] %vm7198, %v8425
        %8473 = vst.msk [vmem:[#allocation6 + $0x28] sm:$0xff] %vm7198, %v8427
        %8474 = vst.msk [vmem:[#allocation6 + $0x50] sm:$0xff] %vm7198, %v8429
        %8475 = vst.msk [vmem:[#allocation6 + $0x78] sm:$0xff] %vm7198, %v8431
        %8476 = vst.msk [vmem:[#allocation6 + $0xa0] sm:$0xff] %vm7198, %v8433
        %8477 = vst.msk [vmem:[#allocation6 + $0xc8] sm:$0xff] %vm7198, %v8435
        %8478 = vst.msk [vmem:[#allocation6 + $0xf0] sm:$0xff] %vm7198, %v8437
        %8479 = vst.msk [vmem:[#allocation6 + $0x118] sm:$0xff] %vm7198, %v8439
        %8480 = vst.msk [vmem:[#allocation6 + $0x140] sm:$0xff] %vm7198, %v8441
        %8481 = vst.msk [vmem:[#allocation6 + $0x168] sm:$0xff] %vm7198, %v8443
        %8482 = vst.msk [vmem:[#allocation6 + $0x190] sm:$0xff] %vm7198, %v8445
        %8483 = vst.msk [vmem:[#allocation6 + $0x1b8] sm:$0xff] %vm7198, %v8447
        %8484 = vst.msk [vmem:[#allocation6 + $0x1e0] sm:$0xff] %vm7198, %v8449
        %8485 = vst.msk [vmem:[#allocation6 + $0x208] sm:$0xff] %vm7198, %v8451
        %8486 = vst.msk [vmem:[#allocation6 + $0x230] sm:$0xff] %vm7198, %v8453
        %8487 = vst.msk [vmem:[#allocation6 + $0x258] sm:$0xff] %vm7198, %v8455
        %v8488 = vld [vmem:[#allocation3 + $0x2] sm:$0xff]
        %v8489 = vld [vmem:[#allocation3 + $0x12] sm:$0xff]
        %v8490 = vld [vmem:[#allocation3 + $0x22] sm:$0xff]
        %v8491 = vld [vmem:[#allocation3 + $0x32] sm:$0xff]
        %v8492 = vld [vmem:[#allocation3 + $0x42] sm:$0xff]
        %v8493 = vld [vmem:[#allocation3 + $0x52] sm:$0xff]
        %v8494 = vld [vmem:[#allocation3 + $0x62] sm:$0xff]
        %v8495 = vld [vmem:[#allocation3 + $0x72] sm:$0xff]
        %v8496 = vld [vmem:[#allocation3 + $0xa2] sm:$0xff]
        %v8497 = vld [vmem:[#allocation3 + $0xb2] sm:$0xff]
        %v8498 = vld [vmem:[#allocation3 + $0xc2] sm:$0xff]
        %v8499 = vld [vmem:[#allocation3 + $0xd2] sm:$0xff]
        %v8500 = vld [vmem:[#allocation3 + $0xe2] sm:$0xff]
        %v8501 = vld [vmem:[#allocation3 + $0xf2] sm:$0xff]
        %v8502 = vld [vmem:[#allocation3 + $0x102] sm:$0xff]
        %v8503 = vld [vmem:[#allocation3 + $0x112] sm:$0xff]
        %8504 = vst.msk [vmem:[#allocation6 + $0x8] sm:$0xff] %vm7101, %v8488
        %8505 = vst.msk [vmem:[#allocation6 + $0x30] sm:$0xff] %vm7101, %v8489
        %8506 = vst.msk [vmem:[#allocation6 + $0x58] sm:$0xff] %vm7101, %v8490
        %8507 = vst.msk [vmem:[#allocation6 + $0x80] sm:$0xff] %vm7101, %v8491
        %8508 = vst.msk [vmem:[#allocation6 + $0xa8] sm:$0xff] %vm7101, %v8492
        %8509 = vst.msk [vmem:[#allocation6 + $0xd0] sm:$0xff] %vm7101, %v8493
        %8510 = vst.msk [vmem:[#allocation6 + $0xf8] sm:$0xff] %vm7101, %v8494
        %8511 = vst.msk [vmem:[#allocation6 + $0x120] sm:$0xff] %vm7101, %v8495
        %8512 = vst.msk [vmem:[#allocation6 + $0x148] sm:$0xff] %vm7101, %v8496
        %8513 = vst.msk [vmem:[#allocation6 + $0x170] sm:$0xff] %vm7101, %v8497
        %8514 = vst.msk [vmem:[#allocation6 + $0x198] sm:$0xff] %vm7101, %v8498
        %8515 = vst.msk [vmem:[#allocation6 + $0x1c0] sm:$0xff] %vm7101, %v8499
        %8516 = vst.msk [vmem:[#allocation6 + $0x1e8] sm:$0xff] %vm7101, %v8500
        %8517 = vst.msk [vmem:[#allocation6 + $0x210] sm:$0xff] %vm7101, %v8501
        %8518 = vst.msk [vmem:[#allocation6 + $0x238] sm:$0xff] %vm7101, %v8502
        %8519 = vst.msk [vmem:[#allocation6 + $0x260] sm:$0xff] %vm7101, %v8503
        %v8520 = vld [vmem:[%s8270] sm:$0xff]
        %v8521 = vld [vmem:[%s8270 + $0x10] sm:$0xff]
        %v8522 = vld [vmem:[%s8270 + $0x20] sm:$0xff]
        %v8523 = vld [vmem:[%s8270 + $0x30] sm:$0xff]
        %v8524 = vld [vmem:[%s8270 + $0x40] sm:$0xff]
        %v8525 = vld [vmem:[%s8270 + $0x50] sm:$0xff]
        %v8526 = vld [vmem:[%s8270 + $0x60] sm:$0xff]
        %v8527 = vld [vmem:[%s8270 + $0x70] sm:$0xff]
        %v8528 = vld [vmem:[%s8270 + $0xa0] sm:$0xff]
        %v8529 = vld [vmem:[%s8270 + $0xb0] sm:$0xff]
        %v8530 = vld [vmem:[%s8270 + $0xc0] sm:$0xff]
        %v8531 = vld [vmem:[%s8270 + $0xd0] sm:$0xff]
        %v8532 = vld [vmem:[%s8270 + $0xe0] sm:$0xff]
        %v8533 = vld [vmem:[%s8270 + $0xf0] sm:$0xff]
        %v8534 = vld [vmem:[%s8270 + $0x100] sm:$0xff]
        %v8535 = vld [vmem:[%s8270 + $0x110] sm:$0xff]
        %8552 = vrot.lane.b32.xlu0 %v8520, 64
        %v8553 = vpop.permute.xlu0 %8552
        %8554 = vrot.lane.b32.xlu0 %v8521, 64
        %v8555 = vpop.permute.xlu0 %8554
        %8556 = vrot.lane.b32.xlu0 %v8522, 64
        %v8557 = vpop.permute.xlu0 %8556
        %8558 = vrot.lane.b32.xlu0 %v8523, 64
        %v8559 = vpop.permute.xlu0 %8558
        %8560 = vrot.lane.b32.xlu0 %v8524, 64
        %v8561 = vpop.permute.xlu0 %8560
        %8562 = vrot.lane.b32.xlu0 %v8525, 64
        %v8563 = vpop.permute.xlu0 %8562
        %8564 = vrot.lane.b32.xlu0 %v8526, 64
        %v8565 = vpop.permute.xlu0 %8564
        %8566 = vrot.lane.b32.xlu0 %v8527, 64
        %v8567 = vpop.permute.xlu0 %8566
        %8568 = vrot.lane.b32.xlu0 %v8528, 64
        %v8569 = vpop.permute.xlu0 %8568
        %8570 = vrot.lane.b32.xlu0 %v8529, 64
        %v8571 = vpop.permute.xlu0 %8570
        %8572 = vrot.lane.b32.xlu0 %v8530, 64
        %v8573 = vpop.permute.xlu0 %8572
        %8574 = vrot.lane.b32.xlu0 %v8531, 64
        %v8575 = vpop.permute.xlu0 %8574
        %8576 = vrot.lane.b32.xlu0 %v8532, 64
        %v8577 = vpop.permute.xlu0 %8576
        %8578 = vrot.lane.b32.xlu0 %v8533, 64
        %v8579 = vpop.permute.xlu0 %8578
        %8580 = vrot.lane.b32.xlu0 %v8534, 64
        %v8581 = vpop.permute.xlu0 %8580
        %8582 = vrot.lane.b32.xlu0 %v8535, 64
        %v8583 = vpop.permute.xlu0 %8582
        %8600 = vst.msk [vmem:[#allocation6 + $0x8] sm:$0xff] %vm7198, %v8553
        %8601 = vst.msk [vmem:[#allocation6 + $0x30] sm:$0xff] %vm7198, %v8555
        %8602 = vst.msk [vmem:[#allocation6 + $0x58] sm:$0xff] %vm7198, %v8557
        %8603 = vst.msk [vmem:[#allocation6 + $0x80] sm:$0xff] %vm7198, %v8559
        %8604 = vst.msk [vmem:[#allocation6 + $0xa8] sm:$0xff] %vm7198, %v8561
        %8605 = vst.msk [vmem:[#allocation6 + $0xd0] sm:$0xff] %vm7198, %v8563
        %8606 = vst.msk [vmem:[#allocation6 + $0xf8] sm:$0xff] %vm7198, %v8565
        %8607 = vst.msk [vmem:[#allocation6 + $0x120] sm:$0xff] %vm7198, %v8567
        %8608 = vst.msk [vmem:[#allocation6 + $0x148] sm:$0xff] %vm7198, %v8569
        %8609 = vst.msk [vmem:[#allocation6 + $0x170] sm:$0xff] %vm7198, %v8571
        %8610 = vst.msk [vmem:[#allocation6 + $0x198] sm:$0xff] %vm7198, %v8573
        %8611 = vst.msk [vmem:[#allocation6 + $0x1c0] sm:$0xff] %vm7198, %v8575
        %8612 = vst.msk [vmem:[#allocation6 + $0x1e8] sm:$0xff] %vm7198, %v8577
        %8613 = vst.msk [vmem:[#allocation6 + $0x210] sm:$0xff] %vm7198, %v8579
        %8614 = vst.msk [vmem:[#allocation6 + $0x238] sm:$0xff] %vm7198, %v8581
        %8615 = vst.msk [vmem:[#allocation6 + $0x260] sm:$0xff] %vm7198, %v8583
        %v8616 = vld [vmem:[%s8270 + $0x1] sm:$0xff]
        %v8617 = vld [vmem:[%s8270 + $0x11] sm:$0xff]
        %v8618 = vld [vmem:[%s8270 + $0x21] sm:$0xff]
        %v8619 = vld [vmem:[%s8270 + $0x31] sm:$0xff]
        %v8620 = vld [vmem:[%s8270 + $0x41] sm:$0xff]
        %v8621 = vld [vmem:[%s8270 + $0x51] sm:$0xff]
        %v8622 = vld [vmem:[%s8270 + $0x61] sm:$0xff]
        %v8623 = vld [vmem:[%s8270 + $0x71] sm:$0xff]
        %v8624 = vld [vmem:[%s8270 + $0xa1] sm:$0xff]
        %v8625 = vld [vmem:[%s8270 + $0xb1] sm:$0xff]
        %v8626 = vld [vmem:[%s8270 + $0xc1] sm:$0xff]
        %v8627 = vld [vmem:[%s8270 + $0xd1] sm:$0xff]
        %v8628 = vld [vmem:[%s8270 + $0xe1] sm:$0xff]
        %v8629 = vld [vmem:[%s8270 + $0xf1] sm:$0xff]
        %v8630 = vld [vmem:[%s8270 + $0x101] sm:$0xff]
        %v8631 = vld [vmem:[%s8270 + $0x111] sm:$0xff]
        %8632 = vst.msk [vmem:[#allocation6 + $0x10] sm:$0xff] %vm7101, %v8616
        %8633 = vst.msk [vmem:[#allocation6 + $0x38] sm:$0xff] %vm7101, %v8617
        %8634 = vst.msk [vmem:[#allocation6 + $0x60] sm:$0xff] %vm7101, %v8618
        %8635 = vst.msk [vmem:[#allocation6 + $0x88] sm:$0xff] %vm7101, %v8619
        %8636 = vst.msk [vmem:[#allocation6 + $0xb0] sm:$0xff] %vm7101, %v8620
        %8637 = vst.msk [vmem:[#allocation6 + $0xd8] sm:$0xff] %vm7101, %v8621
        %8638 = vst.msk [vmem:[#allocation6 + $0x100] sm:$0xff] %vm7101, %v8622
        %8639 = vst.msk [vmem:[#allocation6 + $0x128] sm:$0xff] %vm7101, %v8623
        %8640 = vst.msk [vmem:[#allocation6 + $0x150] sm:$0xff] %vm7101, %v8624
        %8641 = vst.msk [vmem:[#allocation6 + $0x178] sm:$0xff] %vm7101, %v8625
        %8642 = vst.msk [vmem:[#allocation6 + $0x1a0] sm:$0xff] %vm7101, %v8626
        %8643 = vst.msk [vmem:[#allocation6 + $0x1c8] sm:$0xff] %vm7101, %v8627
        %8644 = vst.msk [vmem:[#allocation6 + $0x1f0] sm:$0xff] %vm7101, %v8628
        %8645 = vst.msk [vmem:[#allocation6 + $0x218] sm:$0xff] %vm7101, %v8629
        %8646 = vst.msk [vmem:[#allocation6 + $0x240] sm:$0xff] %vm7101, %v8630
        %8647 = vst.msk [vmem:[#allocation6 + $0x268] sm:$0xff] %vm7101, %v8631
        %v8648 = vld [vmem:[%s8270 + $0x2] sm:$0xff]
        %v8649 = vld [vmem:[%s8270 + $0x12] sm:$0xff]
        %v8650 = vld [vmem:[%s8270 + $0x22] sm:$0xff]
        %v8651 = vld [vmem:[%s8270 + $0x32] sm:$0xff]
        %v8652 = vld [vmem:[%s8270 + $0x42] sm:$0xff]
        %v8653 = vld [vmem:[%s8270 + $0x52] sm:$0xff]
        %v8654 = vld [vmem:[%s8270 + $0x62] sm:$0xff]
        %v8655 = vld [vmem:[%s8270 + $0x72] sm:$0xff]
        %v8656 = vld [vmem:[%s8270 + $0xa2] sm:$0xff]
        %v8657 = vld [vmem:[%s8270 + $0xb2] sm:$0xff]
        %v8658 = vld [vmem:[%s8270 + $0xc2] sm:$0xff]
        %v8659 = vld [vmem:[%s8270 + $0xd2] sm:$0xff]
        %v8660 = vld [vmem:[%s8270 + $0xe2] sm:$0xff]
        %v8661 = vld [vmem:[%s8270 + $0xf2] sm:$0xff]
        %v8662 = vld [vmem:[%s8270 + $0x102] sm:$0xff]
        %v8663 = vld [vmem:[%s8270 + $0x112] sm:$0xff]
        %8680 = vrot.lane.b32.xlu0 %v8648, 64
        %v8681 = vpop.permute.xlu0 %8680
        %8682 = vrot.lane.b32.xlu0 %v8649, 64
        %v8683 = vpop.permute.xlu0 %8682
        %8684 = vrot.lane.b32.xlu0 %v8650, 64
        %v8685 = vpop.permute.xlu0 %8684
        %8686 = vrot.lane.b32.xlu0 %v8651, 64
        %v8687 = vpop.permute.xlu0 %8686
        %8688 = vrot.lane.b32.xlu0 %v8652, 64
        %v8689 = vpop.permute.xlu0 %8688
        %8690 = vrot.lane.b32.xlu0 %v8653, 64
        %v8691 = vpop.permute.xlu0 %8690
        %8692 = vrot.lane.b32.xlu0 %v8654, 64
        %v8693 = vpop.permute.xlu0 %8692
        %8694 = vrot.lane.b32.xlu0 %v8655, 64
        %v8695 = vpop.permute.xlu0 %8694
        %8696 = vrot.lane.b32.xlu0 %v8656, 64
        %v8697 = vpop.permute.xlu0 %8696
        %8698 = vrot.lane.b32.xlu0 %v8657, 64
        %v8699 = vpop.permute.xlu0 %8698
        %8700 = vrot.lane.b32.xlu0 %v8658, 64
        %v8701 = vpop.permute.xlu0 %8700
        %8702 = vrot.lane.b32.xlu0 %v8659, 64
        %v8703 = vpop.permute.xlu0 %8702
        %8704 = vrot.lane.b32.xlu0 %v8660, 64
        %v8705 = vpop.permute.xlu0 %8704
        %8706 = vrot.lane.b32.xlu0 %v8661, 64
        %v8707 = vpop.permute.xlu0 %8706
        %8708 = vrot.lane.b32.xlu0 %v8662, 64
        %v8709 = vpop.permute.xlu0 %8708
        %8710 = vrot.lane.b32.xlu0 %v8663, 64
        %v8711 = vpop.permute.xlu0 %8710
        %8728 = vst.msk [vmem:[#allocation6 + $0x10] sm:$0xff] %vm7198, %v8681
        %8729 = vst.msk [vmem:[#allocation6 + $0x38] sm:$0xff] %vm7198, %v8683
        %8730 = vst.msk [vmem:[#allocation6 + $0x60] sm:$0xff] %vm7198, %v8685
        %8731 = vst.msk [vmem:[#allocation6 + $0x88] sm:$0xff] %vm7198, %v8687
        %8732 = vst.msk [vmem:[#allocation6 + $0xb0] sm:$0xff] %vm7198, %v8689
        %8733 = vst.msk [vmem:[#allocation6 + $0xd8] sm:$0xff] %vm7198, %v8691
        %8734 = vst.msk [vmem:[#allocation6 + $0x100] sm:$0xff] %vm7198, %v8693
        %8735 = vst.msk [vmem:[#allocation6 + $0x128] sm:$0xff] %vm7198, %v8695
        %8736 = vst.msk [vmem:[#allocation6 + $0x150] sm:$0xff] %vm7198, %v8697
        %8737 = vst.msk [vmem:[#allocation6 + $0x178] sm:$0xff] %vm7198, %v8699
        %8738 = vst.msk [vmem:[#allocation6 + $0x1a0] sm:$0xff] %vm7198, %v8701
        %8739 = vst.msk [vmem:[#allocation6 + $0x1c8] sm:$0xff] %vm7198, %v8703
        %8740 = vst.msk [vmem:[#allocation6 + $0x1f0] sm:$0xff] %vm7198, %v8705
        %8741 = vst.msk [vmem:[#allocation6 + $0x218] sm:$0xff] %vm7198, %v8707
        %8742 = vst.msk [vmem:[#allocation6 + $0x240] sm:$0xff] %vm7198, %v8709
        %8743 = vst.msk [vmem:[#allocation6 + $0x268] sm:$0xff] %vm7198, %v8711
        %s8744 = scalar_lea.vmem [#allocation3], 32
        %v8745 = vld [vmem:[%s8744] sm:$0xff]
        %v8746 = vld [vmem:[%s8744 + $0x10] sm:$0xff]
        %v8747 = vld [vmem:[%s8744 + $0x20] sm:$0xff]
        %v8748 = vld [vmem:[%s8744 + $0x30] sm:$0xff]
        %v8749 = vld [vmem:[%s8744 + $0x40] sm:$0xff]
        %v8750 = vld [vmem:[%s8744 + $0x50] sm:$0xff]
        %v8751 = vld [vmem:[%s8744 + $0x60] sm:$0xff]
        %v8752 = vld [vmem:[%s8744 + $0x70] sm:$0xff]
        %v8753 = vld [vmem:[%s8744 + $0xa0] sm:$0xff]
        %v8754 = vld [vmem:[%s8744 + $0xb0] sm:$0xff]
        %v8755 = vld [vmem:[%s8744 + $0xc0] sm:$0xff]
        %v8756 = vld [vmem:[%s8744 + $0xd0] sm:$0xff]
        %v8757 = vld [vmem:[%s8744 + $0xe0] sm:$0xff]
        %v8758 = vld [vmem:[%s8744 + $0xf0] sm:$0xff]
        %v8759 = vld [vmem:[%s8744 + $0x100] sm:$0xff]
        %v8760 = vld [vmem:[%s8744 + $0x110] sm:$0xff]
        %8761 = vst.msk [vmem:[#allocation6 + $0x18] sm:$0xff] %vm7101, %v8745
        %8762 = vst.msk [vmem:[#allocation6 + $0x40] sm:$0xff] %vm7101, %v8746
        %8763 = vst.msk [vmem:[#allocation6 + $0x68] sm:$0xff] %vm7101, %v8747
        %8764 = vst.msk [vmem:[#allocation6 + $0x90] sm:$0xff] %vm7101, %v8748
        %8765 = vst.msk [vmem:[#allocation6 + $0xb8] sm:$0xff] %vm7101, %v8749
        %8766 = vst.msk [vmem:[#allocation6 + $0xe0] sm:$0xff] %vm7101, %v8750
        %8767 = vst.msk [vmem:[#allocation6 + $0x108] sm:$0xff] %vm7101, %v8751
        %8768 = vst.msk [vmem:[#allocation6 + $0x130] sm:$0xff] %vm7101, %v8752
        %8769 = vst.msk [vmem:[#allocation6 + $0x158] sm:$0xff] %vm7101, %v8753
        %8770 = vst.msk [vmem:[#allocation6 + $0x180] sm:$0xff] %vm7101, %v8754
        %8771 = vst.msk [vmem:[#allocation6 + $0x1a8] sm:$0xff] %vm7101, %v8755
        %8772 = vst.msk [vmem:[#allocation6 + $0x1d0] sm:$0xff] %vm7101, %v8756
        %8773 = vst.msk [vmem:[#allocation6 + $0x1f8] sm:$0xff] %vm7101, %v8757
        %8774 = vst.msk [vmem:[#allocation6 + $0x220] sm:$0xff] %vm7101, %v8758
        %8775 = vst.msk [vmem:[#allocation6 + $0x248] sm:$0xff] %vm7101, %v8759
        %8776 = vst.msk [vmem:[#allocation6 + $0x270] sm:$0xff] %vm7101, %v8760
        %v8777 = vld [vmem:[%s8744 + $0x1] sm:$0xff]
        %v8778 = vld [vmem:[%s8744 + $0x11] sm:$0xff]
        %v8779 = vld [vmem:[%s8744 + $0x21] sm:$0xff]
        %v8780 = vld [vmem:[%s8744 + $0x31] sm:$0xff]
        %v8781 = vld [vmem:[%s8744 + $0x41] sm:$0xff]
        %v8782 = vld [vmem:[%s8744 + $0x51] sm:$0xff]
        %v8783 = vld [vmem:[%s8744 + $0x61] sm:$0xff]
        %v8784 = vld [vmem:[%s8744 + $0x71] sm:$0xff]
        %v8785 = vld [vmem:[%s8744 + $0xa1] sm:$0xff]
        %v8786 = vld [vmem:[%s8744 + $0xb1] sm:$0xff]
        %v8787 = vld [vmem:[%s8744 + $0xc1] sm:$0xff]
        %v8788 = vld [vmem:[%s8744 + $0xd1] sm:$0xff]
        %v8789 = vld [vmem:[%s8744 + $0xe1] sm:$0xff]
        %v8790 = vld [vmem:[%s8744 + $0xf1] sm:$0xff]
        %v8791 = vld [vmem:[%s8744 + $0x101] sm:$0xff]
        %v8792 = vld [vmem:[%s8744 + $0x111] sm:$0xff]
        %8809 = vrot.lane.b32.xlu0 %v8777, 64
        %v8810 = vpop.permute.xlu0 %8809
        %8811 = vrot.lane.b32.xlu0 %v8778, 64
        %v8812 = vpop.permute.xlu0 %8811
        %8813 = vrot.lane.b32.xlu0 %v8779, 64
        %v8814 = vpop.permute.xlu0 %8813
        %8815 = vrot.lane.b32.xlu0 %v8780, 64
        %v8816 = vpop.permute.xlu0 %8815
        %8817 = vrot.lane.b32.xlu0 %v8781, 64
        %v8818 = vpop.permute.xlu0 %8817
        %8819 = vrot.lane.b32.xlu0 %v8782, 64
        %v8820 = vpop.permute.xlu0 %8819
        %8821 = vrot.lane.b32.xlu0 %v8783, 64
        %v8822 = vpop.permute.xlu0 %8821
        %8823 = vrot.lane.b32.xlu0 %v8784, 64
        %v8824 = vpop.permute.xlu0 %8823
        %8825 = vrot.lane.b32.xlu0 %v8785, 64
        %v8826 = vpop.permute.xlu0 %8825
        %8827 = vrot.lane.b32.xlu0 %v8786, 64
        %v8828 = vpop.permute.xlu0 %8827
        %8829 = vrot.lane.b32.xlu0 %v8787, 64
        %v8830 = vpop.permute.xlu0 %8829
        %8831 = vrot.lane.b32.xlu0 %v8788, 64
        %v8832 = vpop.permute.xlu0 %8831
        %8833 = vrot.lane.b32.xlu0 %v8789, 64
        %v8834 = vpop.permute.xlu0 %8833
        %8835 = vrot.lane.b32.xlu0 %v8790, 64
        %v8836 = vpop.permute.xlu0 %8835
        %8837 = vrot.lane.b32.xlu0 %v8791, 64
        %v8838 = vpop.permute.xlu0 %8837
        %8839 = vrot.lane.b32.xlu0 %v8792, 64
        %v8840 = vpop.permute.xlu0 %8839
        %8857 = vst.msk [vmem:[#allocation6 + $0x18] sm:$0xff] %vm7198, %v8810
        %8858 = vst.msk [vmem:[#allocation6 + $0x40] sm:$0xff] %vm7198, %v8812
        %8859 = vst.msk [vmem:[#allocation6 + $0x68] sm:$0xff] %vm7198, %v8814
        %8860 = vst.msk [vmem:[#allocation6 + $0x90] sm:$0xff] %vm7198, %v8816
        %8861 = vst.msk [vmem:[#allocation6 + $0xb8] sm:$0xff] %vm7198, %v8818
        %8862 = vst.msk [vmem:[#allocation6 + $0xe0] sm:$0xff] %vm7198, %v8820
        %8863 = vst.msk [vmem:[#allocation6 + $0x108] sm:$0xff] %vm7198, %v8822
        %8864 = vst.msk [vmem:[#allocation6 + $0x130] sm:$0xff] %vm7198, %v8824
        %8865 = vst.msk [vmem:[#allocation6 + $0x158] sm:$0xff] %vm7198, %v8826
        %8866 = vst.msk [vmem:[#allocation6 + $0x180] sm:$0xff] %vm7198, %v8828
        %8867 = vst.msk [vmem:[#allocation6 + $0x1a8] sm:$0xff] %vm7198, %v8830
        %8868 = vst.msk [vmem:[#allocation6 + $0x1d0] sm:$0xff] %vm7198, %v8832
        %8869 = vst.msk [vmem:[#allocation6 + $0x1f8] sm:$0xff] %vm7198, %v8834
        %8870 = vst.msk [vmem:[#allocation6 + $0x220] sm:$0xff] %vm7198, %v8836
        %8871 = vst.msk [vmem:[#allocation6 + $0x248] sm:$0xff] %vm7198, %v8838
        %8872 = vst.msk [vmem:[#allocation6 + $0x270] sm:$0xff] %vm7198, %v8840
        %v8873 = vld [vmem:[%s8744 + $0x2] sm:$0xff]
        %v8874 = vld [vmem:[%s8744 + $0x12] sm:$0xff]
        %v8875 = vld [vmem:[%s8744 + $0x22] sm:$0xff]
        %v8876 = vld [vmem:[%s8744 + $0x32] sm:$0xff]
        %v8877 = vld [vmem:[%s8744 + $0x42] sm:$0xff]
        %v8878 = vld [vmem:[%s8744 + $0x52] sm:$0xff]
        %v8879 = vld [vmem:[%s8744 + $0x62] sm:$0xff]
        %v8880 = vld [vmem:[%s8744 + $0x72] sm:$0xff]
        %v8881 = vld [vmem:[%s8744 + $0xa2] sm:$0xff]
        %v8882 = vld [vmem:[%s8744 + $0xb2] sm:$0xff]
        %v8883 = vld [vmem:[%s8744 + $0xc2] sm:$0xff]
        %v8884 = vld [vmem:[%s8744 + $0xd2] sm:$0xff]
        %v8885 = vld [vmem:[%s8744 + $0xe2] sm:$0xff]
        %v8886 = vld [vmem:[%s8744 + $0xf2] sm:$0xff]
        %v8887 = vld [vmem:[%s8744 + $0x102] sm:$0xff]
        %v8888 = vld [vmem:[%s8744 + $0x112] sm:$0xff]
        %8889 = vst.msk [vmem:[#allocation6 + $0x20] sm:$0xff] %vm7101, %v8873
        %8890 = vst.msk [vmem:[#allocation6 + $0x48] sm:$0xff] %vm7101, %v8874
        %8891 = vst.msk [vmem:[#allocation6 + $0x70] sm:$0xff] %vm7101, %v8875
        %8892 = vst.msk [vmem:[#allocation6 + $0x98] sm:$0xff] %vm7101, %v8876
        %8893 = vst.msk [vmem:[#allocation6 + $0xc0] sm:$0xff] %vm7101, %v8877
        %8894 = vst.msk [vmem:[#allocation6 + $0xe8] sm:$0xff] %vm7101, %v8878
        %8895 = vst.msk [vmem:[#allocation6 + $0x110] sm:$0xff] %vm7101, %v8879
        %8896 = vst.msk [vmem:[#allocation6 + $0x138] sm:$0xff] %vm7101, %v8880
        %8897 = vst.msk [vmem:[#allocation6 + $0x160] sm:$0xff] %vm7101, %v8881
        %8898 = vst.msk [vmem:[#allocation6 + $0x188] sm:$0xff] %vm7101, %v8882
        %8899 = vst.msk [vmem:[#allocation6 + $0x1b0] sm:$0xff] %vm7101, %v8883
        %8900 = vst.msk [vmem:[#allocation6 + $0x1d8] sm:$0xff] %vm7101, %v8884
        %8901 = vst.msk [vmem:[#allocation6 + $0x200] sm:$0xff] %vm7101, %v8885
        %8902 = vst.msk [vmem:[#allocation6 + $0x228] sm:$0xff] %vm7101, %v8886
        %8903 = vst.msk [vmem:[#allocation6 + $0x250] sm:$0xff] %vm7101, %v8887
        %8904 = vst.msk [vmem:[#allocation6 + $0x278] sm:$0xff] %vm7101, %v8888
        %v8905 = vld [vmem:[#allocation6] sm:$0xff]
        %v8906 = vld [vmem:[#allocation6 + $0x8] sm:$0xff]
        %v8907 = vld [vmem:[#allocation6 + $0x10] sm:$0xff]
        %v8908 = vld [vmem:[#allocation6 + $0x18] sm:$0xff]
        %v8909 = vld [vmem:[#allocation6 + $0x20] sm:$0xff]
        %v8910 = vld [vmem:[#allocation6 + $0x28] sm:$0xff]
        %v8911 = vld [vmem:[#allocation6 + $0x30] sm:$0xff]
        %v8912 = vld [vmem:[#allocation6 + $0x38] sm:$0xff]
        %v8913 = vld [vmem:[#allocation6 + $0x40] sm:$0xff]
        %v8914 = vld [vmem:[#allocation6 + $0x48] sm:$0xff]
        %v8915 = vld [vmem:[#allocation6 + $0x50] sm:$0xff]
        %v8916 = vld [vmem:[#allocation6 + $0x58] sm:$0xff]
        %v8917 = vld [vmem:[#allocation6 + $0x60] sm:$0xff]
        %v8918 = vld [vmem:[#allocation6 + $0x68] sm:$0xff]
        %v8919 = vld [vmem:[#allocation6 + $0x70] sm:$0xff]
        %v8920 = vld [vmem:[#allocation6 + $0x78] sm:$0xff]
        %v8921 = vld [vmem:[#allocation6 + $0x80] sm:$0xff]
        %v8922 = vld [vmem:[#allocation6 + $0x88] sm:$0xff]
        %v8923 = vld [vmem:[#allocation6 + $0x90] sm:$0xff]
        %v8924 = vld [vmem:[#allocation6 + $0x98] sm:$0xff]
        %v8925 = vld [vmem:[#allocation6 + $0xa0] sm:$0xff]
        %v8926 = vld [vmem:[#allocation6 + $0xa8] sm:$0xff]
        %v8927 = vld [vmem:[#allocation6 + $0xb0] sm:$0xff]
        %v8928 = vld [vmem:[#allocation6 + $0xb8] sm:$0xff]
        %v8929 = vld [vmem:[#allocation6 + $0xc0] sm:$0xff]
        %v8930 = vld [vmem:[#allocation6 + $0xc8] sm:$0xff]
        %v8931 = vld [vmem:[#allocation6 + $0xd0] sm:$0xff]
        %v8932 = vld [vmem:[#allocation6 + $0xd8] sm:$0xff]
        %v8933 = vld [vmem:[#allocation6 + $0xe0] sm:$0xff]
        %v8934 = vld [vmem:[#allocation6 + $0xe8] sm:$0xff]
        %v8935 = vld [vmem:[#allocation6 + $0xf0] sm:$0xff]
        %v8936 = vld [vmem:[#allocation6 + $0xf8] sm:$0xff]
        %v8937 = vld [vmem:[#allocation6 + $0x100] sm:$0xff]
        %v8938 = vld [vmem:[#allocation6 + $0x108] sm:$0xff]
        %v8939 = vld [vmem:[#allocation6 + $0x110] sm:$0xff]
        %v8940 = vld [vmem:[#allocation6 + $0x118] sm:$0xff]
        %v8941 = vld [vmem:[#allocation6 + $0x120] sm:$0xff]
        %v8942 = vld [vmem:[#allocation6 + $0x128] sm:$0xff]
        %v8943 = vld [vmem:[#allocation6 + $0x130] sm:$0xff]
        %v8944 = vld [vmem:[#allocation6 + $0x138] sm:$0xff]
        %v8945 = vld [vmem:[#allocation6 + $0x140] sm:$0xff]
        %v8946 = vld [vmem:[#allocation6 + $0x148] sm:$0xff]
        %v8947 = vld [vmem:[#allocation6 + $0x150] sm:$0xff]
        %v8948 = vld [vmem:[#allocation6 + $0x158] sm:$0xff]
        %v8949 = vld [vmem:[#allocation6 + $0x160] sm:$0xff]
        %v8950 = vld [vmem:[#allocation6 + $0x168] sm:$0xff]
        %v8951 = vld [vmem:[#allocation6 + $0x170] sm:$0xff]
        %v8952 = vld [vmem:[#allocation6 + $0x178] sm:$0xff]
        %v8953 = vld [vmem:[#allocation6 + $0x180] sm:$0xff]
        %v8954 = vld [vmem:[#allocation6 + $0x188] sm:$0xff]
        %v8955 = vld [vmem:[#allocation6 + $0x190] sm:$0xff]
        %v8956 = vld [vmem:[#allocation6 + $0x198] sm:$0xff]
        %v8957 = vld [vmem:[#allocation6 + $0x1a0] sm:$0xff]
        %v8958 = vld [vmem:[#allocation6 + $0x1a8] sm:$0xff]
        %v8959 = vld [vmem:[#allocation6 + $0x1b0] sm:$0xff]
        %v8960 = vld [vmem:[#allocation6 + $0x1b8] sm:$0xff]
        %v8961 = vld [vmem:[#allocation6 + $0x1c0] sm:$0xff]
        %v8962 = vld [vmem:[#allocation6 + $0x1c8] sm:$0xff]
        %v8963 = vld [vmem:[#allocation6 + $0x1d0] sm:$0xff]
        %v8964 = vld [vmem:[#allocation6 + $0x1d8] sm:$0xff]
        %v8965 = vld [vmem:[#allocation6 + $0x1e0] sm:$0xff]
        %v8966 = vld [vmem:[#allocation6 + $0x1e8] sm:$0xff]
        %v8967 = vld [vmem:[#allocation6 + $0x1f0] sm:$0xff]
        %v8968 = vld [vmem:[#allocation6 + $0x1f8] sm:$0xff]
        %v8969 = vld [vmem:[#allocation6 + $0x200] sm:$0xff]
        %v8970 = vld [vmem:[#allocation6 + $0x208] sm:$0xff]
        %v8971 = vld [vmem:[#allocation6 + $0x210] sm:$0xff]
        %v8972 = vld [vmem:[#allocation6 + $0x218] sm:$0xff]
        %v8973 = vld [vmem:[#allocation6 + $0x220] sm:$0xff]
        %v8974 = vld [vmem:[#allocation6 + $0x228] sm:$0xff]
        %v8975 = vld [vmem:[#allocation6 + $0x230] sm:$0xff]
        %v8976 = vld [vmem:[#allocation6 + $0x238] sm:$0xff]
        %v8977 = vld [vmem:[#allocation6 + $0x240] sm:$0xff]
        %v8978 = vld [vmem:[#allocation6 + $0x248] sm:$0xff]
        %v8979 = vld [vmem:[#allocation6 + $0x250] sm:$0xff]
        %v8980 = vld [vmem:[#allocation6 + $0x258] sm:$0xff]
        %v8981 = vld [vmem:[#allocation6 + $0x260] sm:$0xff]
        %v8982 = vld [vmem:[#allocation6 + $0x268] sm:$0xff]
        %v8983 = vld [vmem:[#allocation6 + $0x270] sm:$0xff]
        %v8984 = vld [vmem:[#allocation6 + $0x278] sm:$0xff]
        %v8986 = vsel %vm7101, %v8909, 0
        %v8989 = vsel %vm7101, %v8914, 0
        %v8992 = vsel %vm7101, %v8919, 0
        %v8995 = vsel %vm7101, %v8924, 0
        %v8998 = vsel %vm7101, %v8929, 0
        %v9001 = vsel %vm7101, %v8934, 0
        %v9004 = vsel %vm7101, %v8939, 0
        %v9007 = vsel %vm7101, %v8944, 0
        %v9010 = vsel %vm7101, %v8949, 0
        %v9013 = vsel %vm7101, %v8954, 0
        %v9016 = vsel %vm7101, %v8959, 0
        %v9019 = vsel %vm7101, %v8964, 0
        %v9022 = vsel %vm7101, %v8969, 0
        %v9025 = vsel %vm7101, %v8974, 0
        %v9028 = vsel %vm7101, %v8979, 0
        %v9031 = vsel %vm7101, %v8984, 0
        %9033 = vmatpush.msra.mxu0 %v8303
        %9034 = vmatpush.msra.mxu0 %v8302
        %9035 = vmatpush.msra.mxu0 %v8301
        %9036 = vmatpush.msra.mxu0 %v8300
        %9037 = vmatpush.msra.mxu0 %v8299
        %9038 = vmatpush.msra.mxu0 %v8298
        %9039 = vmatpush.msra.mxu0 %v8297
        %9040 = vmatpush.msra.mxu0 %v8296
        %9041 = vmatpush.msra.mxu0 %v8295
        %9042 = vmatpush.msra.mxu0 %v8294
        %9043 = vmatpush.msra.mxu0 %v8293
        %9044 = vmatpush.msra.mxu0 %v8292
        %9045 = vmatpush.msra.mxu0 %v8291
        %9046 = vmatpush.msra.mxu0 %v8290
        %9047 = vmatpush.msra.mxu0 %v8289
        %9048 = vmatpush.msra.mxu0 %v8288
        %9049 = vmatmul.f32.gmra.mxu0 %v8905
        %v9050 = vpop.f32.mrf.mxu0
        %v9051 = vadd.f32 0.0, %v9050
        %9052 = vmatmul.f32.gmra.mxu0 %v8910
        %v9053 = vpop.f32.mrf.mxu0
        %v9054 = vadd.f32 0.0, %v9053
        %9055 = vmatmul.f32.gmra.mxu0 %v8915
        %v9056 = vpop.f32.mrf.mxu0
        %v9057 = vadd.f32 0.0, %v9056
        %9058 = vmatmul.f32.gmra.mxu0 %v8920
        %v9059 = vpop.f32.mrf.mxu0
        %v9060 = vadd.f32 0.0, %v9059
        %9061 = vmatmul.f32.gmra.mxu0 %v8925
        %v9062 = vpop.f32.mrf.mxu0
        %v9063 = vadd.f32 0.0, %v9062
        %9064 = vmatmul.f32.gmra.mxu0 %v8930
        %v9065 = vpop.f32.mrf.mxu0
        %v9066 = vadd.f32 0.0, %v9065
        %9067 = vmatmul.f32.gmra.mxu0 %v8935
        %v9068 = vpop.f32.mrf.mxu0
        %v9069 = vadd.f32 0.0, %v9068
        %9070 = vmatmul.f32.gmra.mxu0 %v8940
        %v9071 = vpop.f32.mrf.mxu0
        %v9072 = vadd.f32 0.0, %v9071
        %9073 = vmatmul.f32.gmra.mxu0 %v8945
        %v9074 = vpop.f32.mrf.mxu0
        %v9075 = vadd.f32 0.0, %v9074
        %9076 = vmatmul.f32.gmra.mxu0 %v8950
        %v9077 = vpop.f32.mrf.mxu0
        %v9078 = vadd.f32 0.0, %v9077
        %9079 = vmatmul.f32.gmra.mxu0 %v8955
        %v9080 = vpop.f32.mrf.mxu0
        %v9081 = vadd.f32 0.0, %v9080
        %9082 = vmatmul.f32.gmra.mxu0 %v8960
        %v9083 = vpop.f32.mrf.mxu0
        %v9084 = vadd.f32 0.0, %v9083
        %9085 = vmatmul.f32.gmra.mxu0 %v8965
        %v9086 = vpop.f32.mrf.mxu0
        %v9087 = vadd.f32 0.0, %v9086
        %9088 = vmatmul.f32.gmra.mxu0 %v8970
        %v9089 = vpop.f32.mrf.mxu0
        %v9090 = vadd.f32 0.0, %v9089
        %9091 = vmatmul.f32.gmra.mxu0 %v8975
        %v9092 = vpop.f32.mrf.mxu0
        %v9093 = vadd.f32 0.0, %v9092
        %9094 = vmatmul.f32.gmra.mxu0 %v8980
        %v9095 = vpop.f32.mrf.mxu0
        %v9096 = vadd.f32 0.0, %v9095
        %9097 = vdwg.mxu0
        %9098 = vmatpush.msra.mxu0 %v8319
        %9099 = vmatpush.msra.mxu0 %v8318
        %9100 = vmatpush.msra.mxu0 %v8317
        %9101 = vmatpush.msra.mxu0 %v8316
        %9102 = vmatpush.msra.mxu0 %v8315
        %9103 = vmatpush.msra.mxu0 %v8314
        %9104 = vmatpush.msra.mxu0 %v8313
        %9105 = vmatpush.msra.mxu0 %v8312
        %9106 = vmatpush.msra.mxu0 %v8311
        %9107 = vmatpush.msra.mxu0 %v8310
        %9108 = vmatpush.msra.mxu0 %v8309
        %9109 = vmatpush.msra.mxu0 %v8308
        %9110 = vmatpush.msra.mxu0 %v8307
        %9111 = vmatpush.msra.mxu0 %v8306
        %9112 = vmatpush.msra.mxu0 %v8305
        %9113 = vmatpush.msra.mxu0 %v8304
        %9114 = vmatmul.f32.gmra.mxu0 %v8906
        %v9115 = vpop.f32.mrf.mxu0
        %v9116 = vadd.f32 %v9051, %v9115
        %9117 = vmatmul.f32.gmra.mxu0 %v8911
        %v9118 = vpop.f32.mrf.mxu0
        %v9119 = vadd.f32 %v9054, %v9118
        %9120 = vmatmul.f32.gmra.mxu0 %v8916
        %v9121 = vpop.f32.mrf.mxu0
        %v9122 = vadd.f32 %v9057, %v9121
        %9123 = vmatmul.f32.gmra.mxu0 %v8921
        %v9124 = vpop.f32.mrf.mxu0
        %v9125 = vadd.f32 %v9060, %v9124
        %9126 = vmatmul.f32.gmra.mxu0 %v8926
        %v9127 = vpop.f32.mrf.mxu0
        %v9128 = vadd.f32 %v9063, %v9127
        %9129 = vmatmul.f32.gmra.mxu0 %v8931
        %v9130 = vpop.f32.mrf.mxu0
        %v9131 = vadd.f32 %v9066, %v9130
        %9132 = vmatmul.f32.gmra.mxu0 %v8936
        %v9133 = vpop.f32.mrf.mxu0
        %v9134 = vadd.f32 %v9069, %v9133
        %9135 = vmatmul.f32.gmra.mxu0 %v8941
        %v9136 = vpop.f32.mrf.mxu0
        %v9137 = vadd.f32 %v9072, %v9136
        %9138 = vmatmul.f32.gmra.mxu0 %v8946
        %v9139 = vpop.f32.mrf.mxu0
        %v9140 = vadd.f32 %v9075, %v9139
        %9141 = vmatmul.f32.gmra.mxu0 %v8951
        %v9142 = vpop.f32.mrf.mxu0
        %v9143 = vadd.f32 %v9078, %v9142
        %9144 = vmatmul.f32.gmra.mxu0 %v8956
        %v9145 = vpop.f32.mrf.mxu0
        %v9146 = vadd.f32 %v9081, %v9145
        %9147 = vmatmul.f32.gmra.mxu0 %v8961
        %v9148 = vpop.f32.mrf.mxu0
        %v9149 = vadd.f32 %v9084, %v9148
        %9150 = vmatmul.f32.gmra.mxu0 %v8966
        %v9151 = vpop.f32.mrf.mxu0
        %v9152 = vadd.f32 %v9087, %v9151
        %9153 = vmatmul.f32.gmra.mxu0 %v8971
        %v9154 = vpop.f32.mrf.mxu0
        %v9155 = vadd.f32 %v9090, %v9154
        %9156 = vmatmul.f32.gmra.mxu0 %v8976
        %v9157 = vpop.f32.mrf.mxu0
        %v9158 = vadd.f32 %v9093, %v9157
        %9159 = vmatmul.f32.gmra.mxu0 %v8981
        %v9160 = vpop.f32.mrf.mxu0
        %v9161 = vadd.f32 %v9096, %v9160
        %9162 = vdwg.mxu0
        %9163 = vmatpush.msra.mxu0 %v8335
        %9164 = vmatpush.msra.mxu0 %v8334
        %9165 = vmatpush.msra.mxu0 %v8333
        %9166 = vmatpush.msra.mxu0 %v8332
        %9167 = vmatpush.msra.mxu0 %v8331
        %9168 = vmatpush.msra.mxu0 %v8330
        %9169 = vmatpush.msra.mxu0 %v8329
        %9170 = vmatpush.msra.mxu0 %v8328
        %9171 = vmatpush.msra.mxu0 %v8327
        %9172 = vmatpush.msra.mxu0 %v8326
        %9173 = vmatpush.msra.mxu0 %v8325
        %9174 = vmatpush.msra.mxu0 %v8324
        %9175 = vmatpush.msra.mxu0 %v8323
        %9176 = vmatpush.msra.mxu0 %v8322
        %9177 = vmatpush.msra.mxu0 %v8321
        %9178 = vmatpush.msra.mxu0 %v8320
        %9179 = vmatmul.f32.gmra.mxu0 %v8907
        %v9180 = vpop.f32.mrf.mxu0
        %v9181 = vadd.f32 %v9116, %v9180
        %9182 = vmatmul.f32.gmra.mxu0 %v8912
        %v9183 = vpop.f32.mrf.mxu0
        %v9184 = vadd.f32 %v9119, %v9183
        %9185 = vmatmul.f32.gmra.mxu0 %v8917
        %v9186 = vpop.f32.mrf.mxu0
        %v9187 = vadd.f32 %v9122, %v9186
        %9188 = vmatmul.f32.gmra.mxu0 %v8922
        %v9189 = vpop.f32.mrf.mxu0
        %v9190 = vadd.f32 %v9125, %v9189
        %9191 = vmatmul.f32.gmra.mxu0 %v8927
        %v9192 = vpop.f32.mrf.mxu0
        %v9193 = vadd.f32 %v9128, %v9192
        %9194 = vmatmul.f32.gmra.mxu0 %v8932
        %v9195 = vpop.f32.mrf.mxu0
        %v9196 = vadd.f32 %v9131, %v9195
        %9197 = vmatmul.f32.gmra.mxu0 %v8937
        %v9198 = vpop.f32.mrf.mxu0
        %v9199 = vadd.f32 %v9134, %v9198
        %9200 = vmatmul.f32.gmra.mxu0 %v8942
        %v9201 = vpop.f32.mrf.mxu0
        %v9202 = vadd.f32 %v9137, %v9201
        %9203 = vmatmul.f32.gmra.mxu0 %v8947
        %v9204 = vpop.f32.mrf.mxu0
        %v9205 = vadd.f32 %v9140, %v9204
        %9206 = vmatmul.f32.gmra.mxu0 %v8952
        %v9207 = vpop.f32.mrf.mxu0
        %v9208 = vadd.f32 %v9143, %v9207
        %9209 = vmatmul.f32.gmra.mxu0 %v8957
        %v9210 = vpop.f32.mrf.mxu0
        %v9211 = vadd.f32 %v9146, %v9210
        %9212 = vmatmul.f32.gmra.mxu0 %v8962
        %v9213 = vpop.f32.mrf.mxu0
        %v9214 = vadd.f32 %v9149, %v9213
        %9215 = vmatmul.f32.gmra.mxu0 %v8967
        %v9216 = vpop.f32.mrf.mxu0
        %v9217 = vadd.f32 %v9152, %v9216
        %9218 = vmatmul.f32.gmra.mxu0 %v8972
        %v9219 = vpop.f32.mrf.mxu0
        %v9220 = vadd.f32 %v9155, %v9219
        %9221 = vmatmul.f32.gmra.mxu0 %v8977
        %v9222 = vpop.f32.mrf.mxu0
        %v9223 = vadd.f32 %v9158, %v9222
        %9224 = vmatmul.f32.gmra.mxu0 %v8982
        %v9225 = vpop.f32.mrf.mxu0
        %v9226 = vadd.f32 %v9161, %v9225
        %9227 = vdwg.mxu0
        %9228 = vmatpush.msra.mxu0 %v8351
        %9229 = vmatpush.msra.mxu0 %v8350
        %9230 = vmatpush.msra.mxu0 %v8349
        %9231 = vmatpush.msra.mxu0 %v8348
        %9232 = vmatpush.msra.mxu0 %v8347
        %9233 = vmatpush.msra.mxu0 %v8346
        %9234 = vmatpush.msra.mxu0 %v8345
        %9235 = vmatpush.msra.mxu0 %v8344
        %9236 = vmatpush.msra.mxu0 %v8343
        %9237 = vmatpush.msra.mxu0 %v8342
        %9238 = vmatpush.msra.mxu0 %v8341
        %9239 = vmatpush.msra.mxu0 %v8340
        %9240 = vmatpush.msra.mxu0 %v8339
        %9241 = vmatpush.msra.mxu0 %v8338
        %9242 = vmatpush.msra.mxu0 %v8337
        %9243 = vmatpush.msra.mxu0 %v8336
        %9244 = vmatmul.f32.gmra.mxu0 %v8908
        %v9245 = vpop.f32.mrf.mxu0
        %v9246 = vadd.f32 %v9181, %v9245
        %9247 = vmatmul.f32.gmra.mxu0 %v8913
        %v9248 = vpop.f32.mrf.mxu0
        %v9249 = vadd.f32 %v9184, %v9248
        %9250 = vmatmul.f32.gmra.mxu0 %v8918
        %v9251 = vpop.f32.mrf.mxu0
        %v9252 = vadd.f32 %v9187, %v9251
        %9253 = vmatmul.f32.gmra.mxu0 %v8923
        %v9254 = vpop.f32.mrf.mxu0
        %v9255 = vadd.f32 %v9190, %v9254
        %9256 = vmatmul.f32.gmra.mxu0 %v8928
        %v9257 = vpop.f32.mrf.mxu0
        %v9258 = vadd.f32 %v9193, %v9257
        %9259 = vmatmul.f32.gmra.mxu0 %v8933
        %v9260 = vpop.f32.mrf.mxu0
        %v9261 = vadd.f32 %v9196, %v9260
        %9262 = vmatmul.f32.gmra.mxu0 %v8938
        %v9263 = vpop.f32.mrf.mxu0
        %v9264 = vadd.f32 %v9199, %v9263
        %9265 = vmatmul.f32.gmra.mxu0 %v8943
        %v9266 = vpop.f32.mrf.mxu0
        %v9267 = vadd.f32 %v9202, %v9266
        %9268 = vmatmul.f32.gmra.mxu0 %v8948
        %v9269 = vpop.f32.mrf.mxu0
        %v9270 = vadd.f32 %v9205, %v9269
        %9271 = vmatmul.f32.gmra.mxu0 %v8953
        %v9272 = vpop.f32.mrf.mxu0
        %v9273 = vadd.f32 %v9208, %v9272
        %9274 = vmatmul.f32.gmra.mxu0 %v8958
        %v9275 = vpop.f32.mrf.mxu0
        %v9276 = vadd.f32 %v9211, %v9275
        %9277 = vmatmul.f32.gmra.mxu0 %v8963
        %v9278 = vpop.f32.mrf.mxu0
        %v9279 = vadd.f32 %v9214, %v9278
        %9280 = vmatmul.f32.gmra.mxu0 %v8968
        %v9281 = vpop.f32.mrf.mxu0
        %v9282 = vadd.f32 %v9217, %v9281
        %9283 = vmatmul.f32.gmra.mxu0 %v8973
        %v9284 = vpop.f32.mrf.mxu0
        %v9285 = vadd.f32 %v9220, %v9284
        %9286 = vmatmul.f32.gmra.mxu0 %v8978
        %v9287 = vpop.f32.mrf.mxu0
        %v9288 = vadd.f32 %v9223, %v9287
        %9289 = vmatmul.f32.gmra.mxu0 %v8983
        %v9290 = vpop.f32.mrf.mxu0
        %v9291 = vadd.f32 %v9226, %v9290
        %9292 = vdwg.mxu0
        %9293 = vmatpush.msra.mxu0 0.0
        %9294 = vmatpush.msra.mxu0 0.0
        %9295 = vmatpush.msra.mxu0 0.0
        %9296 = vmatpush.msra.mxu0 0.0
        %9297 = vmatpush.msra.mxu0 0.0
        %9298 = vmatpush.msra.mxu0 0.0
        %9299 = vmatpush.msra.mxu0 0.0
        %9300 = vmatpush.msra.mxu0 0.0
        %9301 = vmatpush.msra.mxu0 %v8359
        %9302 = vmatpush.msra.mxu0 %v8358
        %9303 = vmatpush.msra.mxu0 %v8357
        %9304 = vmatpush.msra.mxu0 %v8356
        %9305 = vmatpush.msra.mxu0 %v8355
        %9306 = vmatpush.msra.mxu0 %v8354
        %9307 = vmatpush.msra.mxu0 %v8353
        %9308 = vmatpush.msra.mxu0 %v8352
        %9309 = vmatmul.f32.gmra.mxu0 %v8986
        %v9310 = vpop.f32.mrf.mxu0
        %v9311 = vadd.f32 %v9246, %v9310
        %9312 = vmatmul.f32.gmra.mxu0 %v8989
        %v9313 = vpop.f32.mrf.mxu0
        %v9314 = vadd.f32 %v9249, %v9313
        %9315 = vmatmul.f32.gmra.mxu0 %v8992
        %v9316 = vpop.f32.mrf.mxu0
        %v9317 = vadd.f32 %v9252, %v9316
        %9318 = vmatmul.f32.gmra.mxu0 %v8995
        %v9319 = vpop.f32.mrf.mxu0
        %v9320 = vadd.f32 %v9255, %v9319
        %9321 = vmatmul.f32.gmra.mxu0 %v8998
        %v9322 = vpop.f32.mrf.mxu0
        %v9323 = vadd.f32 %v9258, %v9322
        %9324 = vmatmul.f32.gmra.mxu0 %v9001
        %v9325 = vpop.f32.mrf.mxu0
        %v9326 = vadd.f32 %v9261, %v9325
        %9327 = vmatmul.f32.gmra.mxu0 %v9004
        %v9328 = vpop.f32.mrf.mxu0
        %v9329 = vadd.f32 %v9264, %v9328
        %9330 = vmatmul.f32.gmra.mxu0 %v9007
        %v9331 = vpop.f32.mrf.mxu0
        %v9332 = vadd.f32 %v9267, %v9331
        %9333 = vmatmul.f32.gmra.mxu0 %v9010
        %v9334 = vpop.f32.mrf.mxu0
        %v9335 = vadd.f32 %v9270, %v9334
        %9336 = vmatmul.f32.gmra.mxu0 %v9013
        %v9337 = vpop.f32.mrf.mxu0
        %v9338 = vadd.f32 %v9273, %v9337
        %9339 = vmatmul.f32.gmra.mxu0 %v9016
        %v9340 = vpop.f32.mrf.mxu0
        %v9341 = vadd.f32 %v9276, %v9340
        %9342 = vmatmul.f32.gmra.mxu0 %v9019
        %v9343 = vpop.f32.mrf.mxu0
        %v9344 = vadd.f32 %v9279, %v9343
        %9345 = vmatmul.f32.gmra.mxu0 %v9022
        %v9346 = vpop.f32.mrf.mxu0
        %v9347 = vadd.f32 %v9282, %v9346
        %9348 = vmatmul.f32.gmra.mxu0 %v9025
        %v9349 = vpop.f32.mrf.mxu0
        %v9350 = vadd.f32 %v9285, %v9349
        %9351 = vmatmul.f32.gmra.mxu0 %v9028
        %v9352 = vpop.f32.mrf.mxu0
        %v9353 = vadd.f32 %v9288, %v9352
        %9354 = vmatmul.f32.gmra.mxu0 %v9031
        %v9355 = vpop.f32.mrf.mxu0
        %v9356 = vadd.f32 %v9291, %v9355
        %9357 = vdwg.mxu0
        %s9358 = scalar_lea.vmem %s355, 1
        %v9359 = vld [vmem:[%s9358] sm:$0x1]
        %s9360 = scalar_lea.vmem %s360, 1
        %v9361 = vld [vmem:[%s9360] sm:$0x1]
        %v9362 = vsel %vm7101, %v9311, 0.0
        %v9363 = vsel %vm7101, %v9314, 0.0
        %v9364 = vadd.f32 %v9362, %v9363
        %v9365 = vsel %vm7101, %v9317, 0.0
        %v9366 = vadd.f32 %v9364, %v9365
        %v9367 = vsel %vm7101, %v9320, 0.0
        %v9368 = vadd.f32 %v9366, %v9367
        %v9369 = vsel %vm7101, %v9323, 0.0
        %v9370 = vadd.f32 %v9368, %v9369
        %v9371 = vsel %vm7101, %v9326, 0.0
        %v9372 = vadd.f32 %v9370, %v9371
        %v9373 = vsel %vm7101, %v9329, 0.0
        %v9374 = vadd.f32 %v9372, %v9373
        %v9375 = vsel %vm7101, %v9332, 0.0
        %v9376 = vadd.f32 %v9374, %v9375
        %v9377 = vsel %vm7101, %v9335, 0.0
        %v9378 = vadd.f32 %v9376, %v9377
        %v9379 = vsel %vm7101, %v9338, 0.0
        %v9380 = vadd.f32 %v9378, %v9379
        %v9381 = vsel %vm7101, %v9341, 0.0
        %v9382 = vadd.f32 %v9380, %v9381
        %v9383 = vsel %vm7101, %v9344, 0.0
        %v9384 = vadd.f32 %v9382, %v9383
        %v9385 = vsel %vm7101, %v9347, 0.0
        %v9386 = vadd.f32 %v9384, %v9385
        %v9387 = vsel %vm7101, %v9350, 0.0
        %v9388 = vadd.f32 %v9386, %v9387
        %v9389 = vsel %vm7101, %v9353, 0.0
        %v9390 = vadd.f32 %v9388, %v9389
        %v9391 = vsel %vm7101, %v9356, 0.0
        %v9392 = vadd.f32 %v9390, %v9391
        %v9393 = vrot.slane %v9392, 4
        %v9394 = vadd.f32 %v9392, %v9393
        %v9395 = vrot.slane %v9394, 2
        %v9396 = vadd.f32 %v9394, %v9395
        %v9397 = vrot.slane %v9396, 1
        %v9398 = vadd.f32 %v9396, %v9397
        %v9399 = vmul.f32 %v9398, %v8130
        %v9400 = vsub.f32 %v9311, %v9399
        %v9401 = vsub.f32 %v9314, %v9399
        %v9402 = vsub.f32 %v9317, %v9399
        %v9403 = vsub.f32 %v9320, %v9399
        %v9404 = vsub.f32 %v9323, %v9399
        %v9405 = vsub.f32 %v9326, %v9399
        %v9406 = vsub.f32 %v9329, %v9399
        %v9407 = vsub.f32 %v9332, %v9399
        %v9408 = vsub.f32 %v9335, %v9399
        %v9409 = vsub.f32 %v9338, %v9399
        %v9410 = vsub.f32 %v9341, %v9399
        %v9411 = vsub.f32 %v9344, %v9399
        %v9412 = vsub.f32 %v9347, %v9399
        %v9413 = vsub.f32 %v9350, %v9399
        %v9414 = vsub.f32 %v9353, %v9399
        %v9415 = vsub.f32 %v9356, %v9399
        %v9416 = vmul.f32 %v9400, %v9400
        %v9417 = vmul.f32 %v9401, %v9401
        %v9418 = vmul.f32 %v9402, %v9402
        %v9419 = vmul.f32 %v9403, %v9403
        %v9420 = vmul.f32 %v9404, %v9404
        %v9421 = vmul.f32 %v9405, %v9405
        %v9422 = vmul.f32 %v9406, %v9406
        %v9423 = vmul.f32 %v9407, %v9407
        %v9424 = vmul.f32 %v9408, %v9408
        %v9425 = vmul.f32 %v9409, %v9409
        %v9426 = vmul.f32 %v9410, %v9410
        %v9427 = vmul.f32 %v9411, %v9411
        %v9428 = vmul.f32 %v9412, %v9412
        %v9429 = vmul.f32 %v9413, %v9413
        %v9430 = vmul.f32 %v9414, %v9414
        %v9431 = vmul.f32 %v9415, %v9415
        %v9432 = vsel %vm7101, %v9416, 0.0
        %v9433 = vsel %vm7101, %v9417, 0.0
        %v9434 = vadd.f32 %v9432, %v9433
        %v9435 = vsel %vm7101, %v9418, 0.0
        %v9436 = vadd.f32 %v9434, %v9435
        %v9437 = vsel %vm7101, %v9419, 0.0
        %v9438 = vadd.f32 %v9436, %v9437
        %v9439 = vsel %vm7101, %v9420, 0.0
        %v9440 = vadd.f32 %v9438, %v9439
        %v9441 = vsel %vm7101, %v9421, 0.0
        %v9442 = vadd.f32 %v9440, %v9441
        %v9443 = vsel %vm7101, %v9422, 0.0
        %v9444 = vadd.f32 %v9442, %v9443
        %v9445 = vsel %vm7101, %v9423, 0.0
        %v9446 = vadd.f32 %v9444, %v9445
        %v9447 = vsel %vm7101, %v9424, 0.0
        %v9448 = vadd.f32 %v9446, %v9447
        %v9449 = vsel %vm7101, %v9425, 0.0
        %v9450 = vadd.f32 %v9448, %v9449
        %v9451 = vsel %vm7101, %v9426, 0.0
        %v9452 = vadd.f32 %v9450, %v9451
        %v9453 = vsel %vm7101, %v9427, 0.0
        %v9454 = vadd.f32 %v9452, %v9453
        %v9455 = vsel %vm7101, %v9428, 0.0
        %v9456 = vadd.f32 %v9454, %v9455
        %v9457 = vsel %vm7101, %v9429, 0.0
        %v9458 = vadd.f32 %v9456, %v9457
        %v9459 = vsel %vm7101, %v9430, 0.0
        %v9460 = vadd.f32 %v9458, %v9459
        %v9461 = vsel %vm7101, %v9431, 0.0
        %v9462 = vadd.f32 %v9460, %v9461
        %v9463 = vrot.slane %v9462, 4
        %v9464 = vadd.f32 %v9462, %v9463
        %v9465 = vrot.slane %v9464, 2
        %v9466 = vadd.f32 %v9464, %v9465
        %v9467 = vrot.slane %v9466, 1
        %v9468 = vadd.f32 %v9466, %v9467
        %v9469 = vmul.f32 %v9468, %v8130
        %v9470 = vadd.f32 %v9469, 1e-05
        %v9471 = vrsqrt.pop %v9470
        %v9472 = vmul.f32 %v9471, %v9470
        %v9473 = vmul.f32 %v9472, %v9471
        %v9474 = vmul.f32 0.5, %v9473
        %v9475 = vsub.f32 1.5, %v9474
        %v9476 = vmul.f32 %v9471, %v9475
        %vm9477 = vweird.f32 %v9470
        %vm9478 = vweird.f32 %v9471
        %vm9479 = vmor %vm9477, %vm9478
        %v9480 = vsel %vm9479, %v9471, %v9476
        %v9481 = vmul.f32 %v9359, %v9480
        %v9482 = vmul.f32 %v9399, %v9481
        %v9483 = vsub.f32 %v9361, %v9482
        %v9485 = vperm.slane %v9481, 0
        %v9487 = vmul.f32 %v9311, %v9485
        %v9488 = vmul.f32 %v9314, %v9485
        %v9489 = vmul.f32 %v9317, %v9485
        %v9490 = vmul.f32 %v9320, %v9485
        %v9491 = vmul.f32 %v9323, %v9485
        %v9492 = vmul.f32 %v9326, %v9485
        %v9493 = vmul.f32 %v9329, %v9485
        %v9494 = vmul.f32 %v9332, %v9485
        %v9495 = vmul.f32 %v9335, %v9485
        %v9496 = vmul.f32 %v9338, %v9485
        %v9497 = vmul.f32 %v9341, %v9485
        %v9498 = vmul.f32 %v9344, %v9485
        %v9499 = vmul.f32 %v9347, %v9485
        %v9500 = vmul.f32 %v9350, %v9485
        %v9501 = vmul.f32 %v9353, %v9485
        %v9502 = vmul.f32 %v9356, %v9485
        %v9504 = vperm.slane %v9483, 0
        %v9506 = vadd.f32 %v9487, %v9504
        %v9507 = vadd.f32 %v9488, %v9504
        %v9508 = vadd.f32 %v9489, %v9504
        %v9509 = vadd.f32 %v9490, %v9504
        %v9510 = vadd.f32 %v9491, %v9504
        %v9511 = vadd.f32 %v9492, %v9504
        %v9512 = vadd.f32 %v9493, %v9504
        %v9513 = vadd.f32 %v9494, %v9504
        %v9514 = vadd.f32 %v9495, %v9504
        %v9515 = vadd.f32 %v9496, %v9504
        %v9516 = vadd.f32 %v9497, %v9504
        %v9517 = vadd.f32 %v9498, %v9504
        %v9518 = vadd.f32 %v9499, %v9504
        %v9519 = vadd.f32 %v9500, %v9504
        %v9520 = vadd.f32 %v9501, %v9504
        %v9521 = vadd.f32 %v9502, %v9504
        %v9522 = vadd.f32 %v9506, %v6997
        %v9523 = vadd.f32 %v9507, %v6998
        %v9524 = vadd.f32 %v9508, %v6999
        %v9525 = vadd.f32 %v9509, %v7000
        %v9526 = vadd.f32 %v9510, %v7001
        %v9527 = vadd.f32 %v9511, %v7002
        %v9528 = vadd.f32 %v9512, %v7003
        %v9529 = vadd.f32 %v9513, %v7004
        %v9530 = vadd.f32 %v9514, %v7005
        %v9531 = vadd.f32 %v9515, %v7006
        %v9532 = vadd.f32 %v9516, %v7007
        %v9533 = vadd.f32 %v9517, %v7008
        %v9534 = vadd.f32 %v9518, %v7009
        %v9535 = vadd.f32 %v9519, %v7010
        %v9536 = vadd.f32 %v9520, %v7011
        %v9537 = vadd.f32 %v9521, %v7012
        %v9538 = vmax.f32 %v9522, 0.0
        %v9539 = vmax.f32 %v9523, 0.0
        %v9540 = vmax.f32 %v9524, 0.0
        %v9541 = vmax.f32 %v9525, 0.0
        %v9542 = vmax.f32 %v9526, 0.0
        %v9543 = vmax.f32 %v9527, 0.0
        %v9544 = vmax.f32 %v9528, 0.0
        %v9545 = vmax.f32 %v9529, 0.0
        %v9546 = vmax.f32 %v9530, 0.0
        %v9547 = vmax.f32 %v9531, 0.0
        %v9548 = vmax.f32 %v9532, 0.0
        %v9549 = vmax.f32 %v9533, 0.0
        %v9550 = vmax.f32 %v9534, 0.0
        %v9551 = vmax.f32 %v9535, 0.0
        %v9552 = vmax.f32 %v9536, 0.0
        %v9553 = vmax.f32 %v9537, 0.0
        %9554 = vst.msk [vmem:[%s6996 + $0x1] sm:$0xff] %vm7101, %v9538
        %9555 = vst.msk [vmem:[%s6996 + $0x11] sm:$0xff] %vm7101, %v9539
        %9556 = vst.msk [vmem:[%s6996 + $0x21] sm:$0xff] %vm7101, %v9540
        %9557 = vst.msk [vmem:[%s6996 + $0x31] sm:$0xff] %vm7101, %v9541
        %9558 = vst.msk [vmem:[%s6996 + $0x41] sm:$0xff] %vm7101, %v9542
        %9559 = vst.msk [vmem:[%s6996 + $0x51] sm:$0xff] %vm7101, %v9543
        %9560 = vst.msk [vmem:[%s6996 + $0x61] sm:$0xff] %vm7101, %v9544
        %9561 = vst.msk [vmem:[%s6996 + $0x71] sm:$0xff] %vm7101, %v9545
        %9562 = vst.msk [vmem:[%s6996 + $0xa1] sm:$0xff] %vm7101, %v9546
        %9563 = vst.msk [vmem:[%s6996 + $0xb1] sm:$0xff] %vm7101, %v9547
        %9564 = vst.msk [vmem:[%s6996 + $0xc1] sm:$0xff] %vm7101, %v9548
        %9565 = vst.msk [vmem:[%s6996 + $0xd1] sm:$0xff] %vm7101, %v9549
        %9566 = vst.msk [vmem:[%s6996 + $0xe1] sm:$0xff] %vm7101, %v9550
        %9567 = vst.msk [vmem:[%s6996 + $0xf1] sm:$0xff] %vm7101, %v9551
        %9568 = vst.msk [vmem:[%s6996 + $0x101] sm:$0xff] %vm7101, %v9552
        %9569 = vst.msk [vmem:[%s6996 + $0x111] sm:$0xff] %vm7101, %v9553
        %p9570 = scmp.eq.s32.totalorder %s21, 5
        // Predicated region
        $region61: #{mini_resnet_forward.1} parent=55 // pred_check
          %p9571 = pneg %p9570
        $region62: #{mini_resnet_forward.1} parent=55 // pred_check_branch
          %9573 = sbr.rel (%p9571) target = $region64
        $region63: #{mini_resnet_forward.1} parent=55 // pred_region
          %v9574 = vsel %vm7101, %v9538, 0.0
          %v9575 = vsel %vm7101, %v9539, 0.0
          %v9576 = vadd.f32 %v9574, %v9575
          %v9577 = vsel %vm7101, %v9540, 0.0
          %v9578 = vadd.f32 %v9576, %v9577
          %v9579 = vsel %vm7101, %v9541, 0.0
          %v9580 = vadd.f32 %v9578, %v9579
          %v9581 = vsel %vm7101, %v9542, 0.0
          %v9582 = vadd.f32 %v9580, %v9581
          %v9583 = vsel %vm7101, %v9543, 0.0
          %v9584 = vadd.f32 %v9582, %v9583
          %v9585 = vsel %vm7101, %v9544, 0.0
          %v9586 = vadd.f32 %v9584, %v9585
          %v9587 = vsel %vm7101, %v9545, 0.0
          %v9588 = vadd.f32 %v9586, %v9587
          %v9589 = vrot.slane %v9588, 4
          %v9590 = vadd.f32 %v9588, %v9589
          %v9591 = vrot.slane %v9590, 2
          %v9592 = vadd.f32 %v9590, %v9591
          %v9593 = vrot.slane %v9592, 1
          %v9594 = vadd.f32 %v9592, %v9593
          %v9595 = vsel %vm7101, %v9546, 0.0
          %v9596 = vsel %vm7101, %v9547, 0.0
          %v9597 = vadd.f32 %v9595, %v9596
          %v9598 = vsel %vm7101, %v9548, 0.0
          %v9599 = vadd.f32 %v9597, %v9598
          %v9600 = vsel %vm7101, %v9549, 0.0
          %v9601 = vadd.f32 %v9599, %v9600
          %v9602 = vsel %vm7101, %v9550, 0.0
          %v9603 = vadd.f32 %v9601, %v9602
          %v9604 = vsel %vm7101, %v9551, 0.0
          %v9605 = vadd.f32 %v9603, %v9604
          %v9606 = vsel %vm7101, %v9552, 0.0
          %v9607 = vadd.f32 %v9605, %v9606
          %v9608 = vsel %vm7101, %v9553, 0.0
          %v9609 = vadd.f32 %v9607, %v9608
          %v9610 = vrot.slane %v9609, 4
          %v9611 = vadd.f32 %v9609, %v9610
          %v9612 = vrot.slane %v9611, 2
          %v9613 = vadd.f32 %v9611, %v9612
          %v9614 = vrot.slane %v9613, 1
          %v9615 = vadd.f32 %v9613, %v9614
          %v9616 = vrcp.pop 64.0
          %v9617 = vmul.f32 64.0, %v9616
          %v9618 = vsub.f32 1.0, %v9617
          %v9619 = vmul.f32 %v9616, %v9618
          %v9620 = vadd.f32 %v9616, %v9619
          %vm9621 = vweird.f32 %v9616
          %v9622 = vsel %vm9621, %v9616, %v9620
          %v9623 = vmul.f32 %v9594, %v9622
          %v9624 = vmul.f32 %v9615, %v9622
          %v9625 = vld [vmem:[%s7] sm:$0xff]
          %v9626 = vld [vmem:[%s7 + $0x8] sm:$0xff]
          %v9627 = vld [vmem:[%s7 + $0x10] sm:$0xff]
          %v9628 = vld [vmem:[%s7 + $0x18] sm:$0xff]
          %v9629 = vld [vmem:[%s7 + $0x20] sm:$0xff]
          %v9630 = vld [vmem:[%s7 + $0x28] sm:$0xff]
          %v9631 = vld [vmem:[%s7 + $0x30] sm:$0xff]
          %v9632 = vld [vmem:[%s7 + $0x38] sm:$0xff]
          %v9633 = vld [vmem:[%s8] sm:$0x1]
          %v9635 = vperm.slane %v9633, 0
          %vm9639 = vcmask 1041409
          %v9640 = vsel %vm9639, %v9624, %v9623
          %v9641 = vsel %vm7101, %v9640, 0
          %9643 = vmatpush.msra.mxu0 0.0
          %9644 = vmatpush.msra.mxu0 0.0
          %9645 = vmatpush.msra.mxu0 0.0
          %9646 = vmatpush.msra.mxu0 0.0
          %9647 = vmatpush.msra.mxu0 0.0
          %9648 = vmatpush.msra.mxu0 0.0
          %9649 = vmatpush.msra.mxu0 0.0
          %9650 = vmatpush.msra.mxu0 0.0
          %9651 = vmatpush.msra.mxu0 %v9632
          %9652 = vmatpush.msra.mxu0 %v9631
          %9653 = vmatpush.msra.mxu0 %v9630
          %9654 = vmatpush.msra.mxu0 %v9629
          %9655 = vmatpush.msra.mxu0 %v9628
          %9656 = vmatpush.msra.mxu0 %v9627
          %9657 = vmatpush.msra.mxu0 %v9626
          %9658 = vmatpush.msra.mxu0 %v9625
          %9659 = vmatmul.f32.gmra.mxu0 %v9641
          %v9660 = vpop.f32.mrf.mxu0
          %v9661 = vadd.f32 %v9635, %v9660
          %9662 = vdwg.mxu0
          %vm9663 = vcmask 74752
          %9664 = vst.msk [vmem:[#allocation7] sm:$0x3] %vm9663, %v9661
        $region64: #{mini_resnet_forward.1} parent=55 // pred_fallthru
          _
        // Predicated region
        $region65: #{mini_resnet_forward.1} parent=55 // pred_check
          %p9665 = pneg %p238
        $region66: #{mini_resnet_forward.1} parent=55 // pred_check_branch
          %9667 = sbr.rel (%p9665) target = $region68
        $region67: #{mini_resnet_forward.1} parent=55 // pred_region
          %9669 = vsyncadd [#allocation8], 0
          %s9671 = sshll.u32 [#allocation7], 4
          %s9672 = int_to_ptr.vmem [resolvable:$true] %s9671
          %s9673 = sshll.u32 %s9, 4
          %s9674 = int_to_ptr.hbm [resolvable:$true] %s9673
          %9676 = dma.vmem_to_hbm [thread:$0]  %s9672, 32, %s9674, [#allocation8]
        $region68: #{mini_resnet_forward.1} parent=55 // pred_fallthru
          _
        // Predicated region
        $region69: #{mini_resnet_forward.1} parent=55 // pred_check
          %p9677 = pneg %p238
        $region70: #{mini_resnet_forward.1} parent=55 // pred_check_branch
          %9679 = sbr.rel (%p9677) target = $region72
        $region71: #{mini_resnet_forward.1} parent=55 // pred_region
          %9681 = dma.done [#allocation8], 32
        $region72: #{mini_resnet_forward.1} parent=55 // pred_fallthru
          _
      $region56: #{mini_resnet_forward.1} parent=5 // pred_fallthru
        _
      %p9682 = scmp.le.s32.totalorder 2, %s16
      // Predicated region
      $region73: #{mini_resnet_forward.1} parent=5 // pred_check
        %p9683 = pneg %p9682
      $region74: #{mini_resnet_forward.1} parent=5 // pred_check_branch
        %9685 = sbr.rel (%p9683) target = $region76
      $region75: #{mini_resnet_forward.1} parent=5 // pred_region
        %s9686 = ssub.s32 %s16, 2
      $region76: #{mini_resnet_forward.1} parent=5 // pred_fallthru
        _
    $region6: #{mini_resnet_forward.1} parent=1 // loop_footer
      %s20 = sadd.s32 1, %s16
    $region7: #{mini_resnet_forward.1} parent=1 // loop_footer_branch
      %15 = sbr.rel target = $region3
    $region8: #{mini_resnet_forward.1} parent=1 // loop_exit
      _
    %9687 = vsyncpa [#allocation8], 1
    %s9688 = scalar_lea.sflag [#allocation8], 1
    %9689 = vsyncpa %s9688, 1

</llo_original>
